<compile_context>
chip_gen: v7x
topology: tpu7x:2x2x1
jax: 0.10.0
libtpu: 0.0.40
codegen_flags: <defaults>
</compile_context>

<pallas_src>
import math
from functools import partial

import jax
import jax.numpy as jnp
from jax.experimental import pallas as pl
from jax.experimental.pallas import tpu as pltpu


# ----------------------------------------------------------------------------
# In-kernel helpers
# ----------------------------------------------------------------------------

def _ln(v, gamma, beta, eps=1e-5):
    """Row-wise LayerNorm over the last dim (matches nn.LayerNorm, eps=1e-5)."""
    mu = jnp.mean(v, axis=-1, keepdims=True)
    var = jnp.mean((v - mu) ** 2, axis=-1, keepdims=True)
    return (v - mu) * jax.lax.rsqrt(var + eps) * gamma + beta


# ----------------------------------------------------------------------------
# Fused forward kernel
# ----------------------------------------------------------------------------

def seqgen_fused_kernel(
    # ---- inputs -----------------------------------------------------------
    x_ref, lens_ref,
    pre_g_ref, pre_b_ref,
    enc_wih_ref, enc_bih_ref, enc_whh_ref, enc_bhh_ref,
    post_g_ref, post_b_ref,
    h2x0_w_ref, h2x0_b_ref,
    wg0_ref, bm0_ref, wh0_ref, x2h0_ref, bx0_ref, h2h0_ref, bh0_ref,
    wg1_ref, bm1_ref, wh1_ref, x2h1_ref, bx1_ref, h2h1_ref, bh1_ref,
    outp_w_ref, outp_b_ref, head_w_ref, head_b_ref,
    # ---- outputs ----------------------------------------------------------
    all_hid_ref,    # (T*B, G) encoder hidden states, time-major rows
    latent_ref,     # (B, G)   post-LN global hidden
    pred_ref,       # (T*B, P) fused out_proj + all prediction heads
    # ---- VMEM scratch -----------------------------------------------------
    gx_enc_ref,     # (T*B, 3G) hoisted encoder input projections
    gxd_ref,        # (T*B, 3H) hoisted decoder layer-0 input projections
    dec_ref,        # (T*B, H)  decoder outputs
):
    f32 = jnp.float32
    bf16 = jnp.bfloat16

    B = lens_ref.shape[0]
    TB, _ = x_ref.shape
    T = TB // B
    G = enc_whh_ref.shape[0]
    H = wh0_ref.shape[0]

    # ======================= encoder (nn.GRU, 1 layer) =====================
    x2d = x_ref[...]                                        # raw features, (T*B, D)
    xn2d = _ln(x2d, pre_g_ref[...], pre_b_ref[...])          # pre_encoder_norm

    # Hoisted x @ W_ih for ALL timesteps in one bf16 GEMM (f32 accumulate);
    # the recurrent loop only keeps h @ W_hh on the serial path.
    gx_enc_ref[...] = (jnp.dot(xn2d.astype(bf16), enc_wih_ref[...],
                               preferred_element_type=f32) + enc_bih_ref[...])

    enc_whh = enc_whh_ref[...]                               # bf16 (G, 3G)
    enc_bhh = enc_bhh_ref[...]
    lens_m1 = lens_ref[...] - 1                              # (B, 1) int32

    def enc_step(t, carry):
        h, g_last = carry
        row = pl.multiple_of(t * B, B)
        gx = gx_enc_ref[pl.ds(row, B), :]                    # (B, 3G)
        gh = jnp.dot(h.astype(bf16), enc_whh,
                     preferred_element_type=f32) + enc_bhh
        r = jax.nn.sigmoid(gx[:, :G] + gh[:, :G])
        z = jax.nn.sigmoid(gx[:, G:2 * G] + gh[:, G:2 * G])
        n = jnp.tanh(gx[:, 2 * G:] + r * gh[:, 2 * G:])
        h_new = (1.0 - z) * n + z * h
        all_hid_ref[pl.ds(row, B), :] = h_new
        # In-kernel replacement of the wrapper-side last-state gather:
        # pick h at step seq_len-1 per batch row (seq_len==0 keeps zeros).
        g_last = jnp.where(lens_m1 == t, h_new, g_last)
        return h_new, g_last

    h_init = jnp.zeros((B, G), f32)
    _, g_last = jax.lax.fori_loop(0, T, enc_step, (h_init, h_init), unroll=True)

    global_h = _ln(g_last, post_g_ref[...], post_b_ref[...])  # post_encoder_norm
    latent_ref[...] = global_h                                # dropout=identity (eval)

    # ================= decoder prologue (time-invariant terms) =============
    g_bf = global_h.astype(bf16)
    x0 = jnp.dot(g_bf, h2x0_w_ref[...],
                 preferred_element_type=f32) + h2x0_b_ref[...]     # hidden_to_x0
    gmix0 = jnp.dot(g_bf, wg0_ref[...],
                    preferred_element_type=f32) + bm0_ref[...]      # mix_global (global part)
    gmix1 = jnp.dot(g_bf, wg1_ref[...],
                    preferred_element_type=f32) + bm1_ref[...]
    x0p = (jnp.dot(x0.astype(bf16), x2h0_ref[...],
                   preferred_element_type=f32) + bx0_ref[...])      # layer-0 proj of x0

    # Hoisted layer-0 x2h projection of the RAW inputs (decoder consumes the
    # un-normalized features; step t>=1 uses x[t-1]).  Row T-1 is unused.
    gxd_ref[...] = (jnp.dot(x2d.astype(bf16), x2h0_ref[...],
                            preferred_element_type=f32) + bx0_ref[...])

    wh0 = wh0_ref[...]; h2h0 = h2h0_ref[...]; bh0 = bh0_ref[...]
    wh1 = wh1_ref[...]; x2h1 = x2h1_ref[...]; bx1 = bx1_ref[...]
    h2h1 = h2h1_ref[...]; bh1 = bh1_ref[...]

    def cell(gx, hx, gmix, wh, h2h, bh):
        # hx <- GELU(mix_global([global_hidden, hx])); global part hoisted.
        # Approximate (tanh) GELU: rides the EUP slot; ~1e-3 deviation.
        hx_m = jax.nn.gelu(
            gmix + jnp.dot(hx.astype(bf16), wh, preferred_element_type=f32),
            approximate=True)
        gh = jnp.dot(hx_m.astype(bf16), h2h, preferred_element_type=f32) + bh
        reset = jax.nn.sigmoid(gx[:, :H] + gh[:, :H])
        upd = jax.nn.sigmoid(gx[:, H:2 * H] + gh[:, H:2 * H])
        new = jnp.tanh(gx[:, 2 * H:] + reset * gh[:, 2 * H:])
        # custom GRUCell convention: upd * hx_m + (1 - upd) * new
        return upd * hx_m + (1.0 - upd) * new

    def dec_step(gx_in, h0, h1):
        h0 = cell(gx_in, h0, gmix0, wh0, h2h0, bh0)
        gx1 = jnp.dot(h0.astype(bf16), x2h1, preferred_element_type=f32) + bx1
        h1 = cell(gx1, h1, gmix1, wh1, h2h1, bh1)
        return h0, h1

    # t = 0: input is x0 = hidden_to_x0(global_hidden)
    dh0 = jnp.zeros((B, H), f32)
    dh1 = jnp.zeros((B, H), f32)
    dh0, dh1 = dec_step(x0p, dh0, dh1)
    dec_ref[pl.ds(0, B), :] = dh1

    def dec_body(t, carry):
        c0, c1 = carry
        row_prev = pl.multiple_of((t - 1) * B, B)
        c0, c1 = dec_step(gxd_ref[pl.ds(row_prev, B), :], c0, c1)
        row = pl.multiple_of(t * B, B)
        dec_ref[pl.ds(row, B), :] = c1
        return c0, c1

    # Only the T steps whose outputs are consumed (reference computes T+1 and
    # drops the last projected step).
    jax.lax.fori_loop(1, T, dec_body, (dh0, dh1), unroll=True)

    # ============ out_proj + all prediction heads (two-stage GEMM) ==========
    dec2d = dec_ref[...]                                      # (T*B, H)
    y = (jnp.dot(dec2d.astype(bf16), outp_w_ref[...],
                 preferred_element_type=f32) + outp_b_ref[...])     # (T*B, D)
    pred_ref[...] = (jnp.dot(y.astype(bf16), head_w_ref[...],
                             preferred_element_type=f32)
                     + head_b_ref[...])                              # (T*B, P)


# ----------------------------------------------------------------------------
# pallas_call wrapper (single launch) + jitted XLA glue
# ----------------------------------------------------------------------------

_PARAM_KEYS = (
    "pre_ln_g", "pre_ln_b",
    "enc_w_ih", "enc_b_ih", "enc_w_hh", "enc_b_hh",
    "post_ln_g", "post_ln_b",
    "h2x0_w", "h2x0_b",
    "dec0_wg", "dec0_bm", "dec0_wh", "dec0_x2h", "dec0_bx", "dec0_h2h", "dec0_bh",
    "dec1_wg", "dec1_bm", "dec1_wh", "dec1_x2h", "dec1_bx", "dec1_h2h", "dec1_bh",
    "outp_w", "outp_b", "head_w", "head_b",
)


def seqgen_fused_call(params, x, seq_lens):
    B, T, D = x.shape
    G = params["enc_w_hh"].shape[0]
    H = params["dec0_wh"].shape[0]
    P = params["head_w"].shape[1]

    # Time-major 2-D row layout (row t*B + b); the only layout op on the input.
    x2d = jnp.transpose(x, (1, 0, 2)).reshape(T * B, D).astype(jnp.float32)
    lens2d = seq_lens.reshape(B, 1).astype(jnp.int32)

    out_shape = (
        jax.ShapeDtypeStruct((T * B, G), jnp.float32),   # encoder hidden states
        jax.ShapeDtypeStruct((B, G), jnp.float32),        # global hidden (latent)
        jax.ShapeDtypeStruct((T * B, P), jnp.float32),    # fused head outputs
    )
    scratch_shapes = [
        pltpu.VMEM((T * B, 3 * G), jnp.float32),
        pltpu.VMEM((T * B, 3 * H), jnp.float32),
        pltpu.VMEM((T * B, H), jnp.float32),
    ]
    # No grid: one invocation, everything (weights + whole sequence) lives in
    # VMEM for the duration of the kernel -> no pipelining / double-buffering.
    return pl.pallas_call(
        seqgen_fused_kernel,
        out_shape=out_shape,
        scratch_shapes=scratch_shapes,
        compiler_params=pltpu.CompilerParams(
            vmem_limit_bytes=32 * 1024 * 1024),
    )(x2d, lens2d, *[params[k] for k in _PARAM_KEYS])


@partial(jax.jit, static_argnames=("head_slices",))
def seqgen_forward(params, x, time_steps, seq_lens, head_slices):
    B, T, _ = x.shape
    G = params["enc_w_hh"].shape[0]
    P = params["head_w"].shape[1]

    all_hid_2d, latent, pred_2d = seqgen_fused_call(params, x, seq_lens)

    # Cheap layout-only epilogue (fused into the same jitted program).
    all_hid = jnp.transpose(all_hid_2d.reshape(T, B, G), (1, 0, 2))   # (B, T, G)
    pred_full = jnp.transpose(pred_2d.reshape(T, B, P), (1, 0, 2))    # (B, T, P)

    pred = {name: pred_full[:, :, off:off + width]
            for name, off, width in head_slices}
    # use_deltas=False -> no pred['delta']

    padded_batch = {"x": x, "time_steps": time_steps, "seq_lens": seq_lens}
    gt = {"input_batch": padded_batch, "time_steps": time_steps}
    # NOTE: all_latents contains padded-step states (nn.GRU-without-pack
    # behavior, as in the reference); downstream consumers must mask.
    return {"gt": gt, "pred": pred, "latent": latent, "all_latents": all_hid}


# ----------------------------------------------------------------------------
# Deterministic parameter init (shapes match the module's __init__).
# GEMM weight matrices stored bf16 (MXU operands); biases / LN params f32.
# ----------------------------------------------------------------------------

def init_params(key, D, G, H, vocabs, n_num):
    keys = iter(jax.random.split(key, 64))
    bf16 = jnp.bfloat16

    def u(shape, std, dtype=jnp.float32):
        return jax.random.uniform(next(keys), shape, jnp.float32,
                                  -std, std).astype(dtype)

    sG = 1.0 / math.sqrt(G)
    sH = 1.0 / math.sqrt(H)
    sD = 1.0 / math.sqrt(D)

    p = {
        "pre_ln_g": jnp.ones((1, D), jnp.float32),
        "pre_ln_b": jnp.zeros((1, D), jnp.float32),
        "post_ln_g": jnp.ones((1, G), jnp.float32),
        "post_ln_b": jnp.zeros((1, G), jnp.float32),
        # nn.GRU(input_dim, encoder_hidden) — fused [in, 3*hidden] layout,
        # gates stacked in PyTorch order (reset, update, new).
        "enc_w_ih": u((D, 3 * G), sG, bf16), "enc_b_ih": u((1, 3 * G), sG),
        "enc_w_hh": u((G, 3 * G), sG, bf16), "enc_b_hh": u((1, 3 * G), sG),
        # hidden_to_x0: Linear(encoder_hidden, input_dim)
        "h2x0_w": u((G, D), sG, bf16), "h2x0_b": u((1, D), sG),
        # out_proj: Linear(decoder_hidden, input_dim)
        "outp_w": u((H, D), sH, bf16), "outp_b": u((1, D), sH),
    }

    def cell(prefix, din):
        # mix_global = Linear(H + G, H) split into global / hidden parts.
        p[prefix + "wg"] = u((G, H), sH, bf16)
        p[prefix + "wh"] = u((H, H), sH, bf16)
        p[prefix + "bm"] = u((1, H), sH)
        p[prefix + "x2h"] = u((din, 3 * H), sH, bf16)
        p[prefix + "bx"] = u((1, 3 * H), sH)
        p[prefix + "h2h"] = u((H, 3 * H), sH, bf16)
        p[prefix + "bh"] = u((1, 3 * H), sH)

    cell("dec0_", D)   # GRUCell(input_dim, H, G)
    cell("dec1_", H)   # GRUCell(H, H, G)

    # TODO(synk): simple linear heads stand in for EmbeddingPredictor /
    #             NumericalFeatureProjector (external prp module). All heads
    #             are packed into one [D, P] matrix (P padded to 128 lanes for
    #             an unmasked, lane-dense output store).
    total = sum(vocabs) + n_num
    P = max(128, ((total + 127) // 128) * 128)
    head_w = jnp.zeros((D, P), jnp.float32)
    head_b = jnp.zeros((1, P), jnp.float32)
    slices = []
    off = 0
    for i, v in enumerate(vocabs):
        head_w = head_w.at[:, off:off + v].set(u((D, v), sD))
        head_b = head_b.at[:, off:off + v].set(u((1, v), sD))
        slices.append(("cat_%d" % i, off, v))
        off += v
    for i in range(n_num):
        head_w = head_w.at[:, off:off + 1].set(u((D, 1), sD))
        head_b = head_b.at[:, off:off + 1].set(u((1, 1), sD))
        slices.append(("num_%d" % i, off, 1))
        off += 1
    p["head_w"] = head_w.astype(bf16)
    p["head_b"] = head_b
    return p, tuple(slices)


# ----------------------------------------------------------------------------
# Main
# ----------------------------------------------------------------------------

if __name__ == "__main__":
    B, T = 4, 8          # batch, sequence length
    D = 16               # input_dim (all embeddings + numeric features)
    G = 32               # encoder_hidden (global hidden)
    H = 32               # decoder_hidden
    vocabs = [8, 8]      # 2 categorical features
    n_num = 1            # 1 numeric feature

    key = jax.random.PRNGKey(0)
    k_param, k_x, k_t = jax.random.split(key, 3)

    params, head_slices = init_params(k_param, D, G, H, vocabs, n_num)

    x = jax.random.normal(k_x, (B, T, D), jnp.float32)
    time_steps = jnp.cumsum(
        jax.random.uniform(k_t, (B, T), jnp.float32, 0.1, 1.0), axis=1)
    seq_lens = jnp.array([T, T - 2, T - 1, T // 2], dtype=jnp.int32)

    out = seqgen_forward(params, x, time_steps, seq_lens,
                         head_slices=head_slices)
    jax.block_until_ready(out)

    # Light sanity checks on shapes and values.
    assert out["latent"].shape == (B, G)
    assert out["all_latents"].shape == (B, T, G)
    assert out["pred"]["cat_0"].shape == (B, T, vocabs[0])
    assert out["pred"]["cat_1"].shape == (B, T, vocabs[1])
    assert out["pred"]["num_0"].shape == (B, T, 1)
    assert all(bool(jnp.all(jnp.isfinite(v))) for v in out["pred"].values())
    assert bool(jnp.all(jnp.isfinite(out["latent"])))
    assert bool(jnp.all(jnp.isfinite(out["all_latents"])))

    print("KERNEL_OK")
</pallas_src>

<mosaic_0001>
module attributes {stable_mosaic.version = 11 : i64} {
  func.func @seqgen_fused_kernel(%arg0: memref<32x16xf32, #tpu.memory_space<vmem>>, %arg1: memref<4x1xi32, #tpu.memory_space<vmem>>, %arg2: memref<1x16xf32, #tpu.memory_space<vmem>>, %arg3: memref<1x16xf32, #tpu.memory_space<vmem>>, %arg4: memref<16x96xbf16, #tpu.memory_space<vmem>>, %arg5: memref<1x96xf32, #tpu.memory_space<vmem>>, %arg6: memref<32x96xbf16, #tpu.memory_space<vmem>>, %arg7: memref<1x96xf32, #tpu.memory_space<vmem>>, %arg8: memref<1x32xf32, #tpu.memory_space<vmem>>, %arg9: memref<1x32xf32, #tpu.memory_space<vmem>>, %arg10: memref<32x16xbf16, #tpu.memory_space<vmem>>, %arg11: memref<1x16xf32, #tpu.memory_space<vmem>>, %arg12: memref<32x32xbf16, #tpu.memory_space<vmem>>, %arg13: memref<1x32xf32, #tpu.memory_space<vmem>>, %arg14: memref<32x32xbf16, #tpu.memory_space<vmem>>, %arg15: memref<16x96xbf16, #tpu.memory_space<vmem>>, %arg16: memref<1x96xf32, #tpu.memory_space<vmem>>, %arg17: memref<32x96xbf16, #tpu.memory_space<vmem>>, %arg18: memref<1x96xf32, #tpu.memory_space<vmem>>, %arg19: memref<32x32xbf16, #tpu.memory_space<vmem>>, %arg20: memref<1x32xf32, #tpu.memory_space<vmem>>, %arg21: memref<32x32xbf16, #tpu.memory_space<vmem>>, %arg22: memref<32x96xbf16, #tpu.memory_space<vmem>>, %arg23: memref<1x96xf32, #tpu.memory_space<vmem>>, %arg24: memref<32x96xbf16, #tpu.memory_space<vmem>>, %arg25: memref<1x96xf32, #tpu.memory_space<vmem>>, %arg26: memref<32x16xbf16, #tpu.memory_space<vmem>>, %arg27: memref<1x16xf32, #tpu.memory_space<vmem>>, %arg28: memref<16x128xbf16, #tpu.memory_space<vmem>>, %arg29: memref<1x128xf32, #tpu.memory_space<vmem>>, %arg30: memref<32x32xf32, #tpu.memory_space<vmem>>, %arg31: memref<4x32xf32, #tpu.memory_space<vmem>>, %arg32: memref<32x128xf32, #tpu.memory_space<vmem>>, %arg33: memref<32x96xf32, #tpu.memory_space<vmem>>, %arg34: memref<32x96xf32, #tpu.memory_space<vmem>>, %arg35: memref<32x32xf32, #tpu.memory_space<vmem>>) attributes {dimension_semantics = [], scalar_prefetch = 0 : i64, scratch_operands = 3 : i64, tpu.core_type = #tpu.core_type<tc>} {
    %c0 = arith.constant 0 : index
    %c0_0 = arith.constant 0 : index
    %0 = vector.load %arg0[%c0, %c0_0] : memref<32x16xf32, #tpu.memory_space<vmem>>, vector<32x16xf32>
    %c0_1 = arith.constant 0 : index
    %c0_2 = arith.constant 0 : index
    %1 = vector.load %arg2[%c0_1, %c0_2] : memref<1x16xf32, #tpu.memory_space<vmem>>, vector<1x16xf32>
    %c0_3 = arith.constant 0 : index
    %c0_4 = arith.constant 0 : index
    %2 = vector.load %arg3[%c0_3, %c0_4] : memref<1x16xf32, #tpu.memory_space<vmem>>, vector<1x16xf32>
    %cst = arith.constant dense<0.000000e+00> : vector<32xf32>
    %3 = vector.multi_reduction <add>, %0, %cst [1] : vector<32x16xf32> to vector<32xf32>
    %4 = vector.shape_cast %3 : vector<32xf32> to vector<32x1xf32>
    %cst_5 = arith.constant 1.600000e+01 : f32
    %5 = vector.broadcast %cst_5 : f32 to vector<32x1xf32>
    %6 = arith.divf %4, %5 : vector<32x1xf32>
    %7 = vector.broadcast %6 : vector<32x1xf32> to vector<32x16xf32>
    %8 = arith.subf %0, %7 : vector<32x16xf32>
    %9 = arith.mulf %8, %8 : vector<32x16xf32>
    %cst_6 = arith.constant dense<0.000000e+00> : vector<32xf32>
    %10 = vector.multi_reduction <add>, %9, %cst_6 [1] : vector<32x16xf32> to vector<32xf32>
    %11 = vector.shape_cast %10 : vector<32xf32> to vector<32x1xf32>
    %cst_7 = arith.constant 1.600000e+01 : f32
    %12 = vector.broadcast %cst_7 : f32 to vector<32x1xf32>
    %13 = arith.divf %11, %12 : vector<32x1xf32>
    %14 = vector.broadcast %6 : vector<32x1xf32> to vector<32x16xf32>
    %15 = arith.subf %0, %14 : vector<32x16xf32>
    %cst_8 = arith.constant 9.99999974E-6 : f32
    %16 = vector.broadcast %cst_8 : f32 to vector<32x1xf32>
    %17 = arith.addf %13, %16 : vector<32x1xf32>
    %18 = math.rsqrt %17 : vector<32x1xf32>
    %19 = vector.broadcast %18 : vector<32x1xf32> to vector<32x16xf32>
    %20 = arith.mulf %15, %19 : vector<32x16xf32>
    %21 = vector.broadcast %1 : vector<1x16xf32> to vector<32x16xf32>
    %22 = arith.mulf %20, %21 : vector<32x16xf32>
    %23 = vector.broadcast %2 : vector<1x16xf32> to vector<32x16xf32>
    %24 = arith.addf %22, %23 : vector<32x16xf32>
    %25 = arith.truncf %24 : vector<32x16xf32> to vector<32x16xbf16>
    %c0_9 = arith.constant 0 : index
    %c0_10 = arith.constant 0 : index
    %26 = vector.load %arg4[%c0_9, %c0_10] : memref<16x96xbf16, #tpu.memory_space<vmem>>, vector<16x96xbf16>
    %cst_11 = arith.constant dense<0.000000e+00> : vector<32x96xf32>
    %27 = tpu.matmul %25, %26, %cst_11 {dimension_numbers = #tpu.dot_dimension_numbers<[1], [0], [0], [1], [0, 0, 1, 1], [], []>} : vector<32x16xbf16>, vector<16x96xbf16>, vector<32x96xf32> -> vector<32x96xf32>
    %c0_12 = arith.constant 0 : index
    %c0_13 = arith.constant 0 : index
    %28 = vector.load %arg5[%c0_12, %c0_13] : memref<1x96xf32, #tpu.memory_space<vmem>>, vector<1x96xf32>
    %29 = vector.broadcast %28 : vector<1x96xf32> to vector<32x96xf32>
    %30 = arith.addf %27, %29 : vector<32x96xf32>
    %c0_14 = arith.constant 0 : index
    %c0_15 = arith.constant 0 : index
    %31 = vector.load %arg33[%c0_14, %c0_15] : memref<32x96xf32, #tpu.memory_space<vmem>>, vector<32x96xf32>
    tpu.vector_store %arg33[%c0_14, %c0_15], %30 {strides = array<i32>} : memref<32x96xf32, #tpu.memory_space<vmem>>, vector<32x96xf32>,
    %c0_16 = arith.constant 0 : index
    %c0_17 = arith.constant 0 : index
    %32 = vector.load %arg6[%c0_16, %c0_17] : memref<32x96xbf16, #tpu.memory_space<vmem>>, vector<32x96xbf16>
    %c0_18 = arith.constant 0 : index
    %c0_19 = arith.constant 0 : index
    %33 = vector.load %arg7[%c0_18, %c0_19] : memref<1x96xf32, #tpu.memory_space<vmem>>, vector<1x96xf32>
    %c0_20 = arith.constant 0 : index
    %c0_21 = arith.constant 0 : index
    %34 = vector.load %arg1[%c0_20, %c0_21] : memref<4x1xi32, #tpu.memory_space<vmem>>, vector<4x1xi32>
    %c1_i32 = arith.constant 1 : i32
    %35 = vector.broadcast %c1_i32 : i32 to vector<4x1xi32>
    %36 = arith.subi %34, %35 : vector<4x1xi32>
    %cst_22 = arith.constant 0.000000e+00 : f32
    %37 = vector.broadcast %cst_22 : f32 to vector<4x32xf32>
    %c0_i32 = arith.constant 0 : i32
    %c4_i32 = arith.constant 4 : i32
    %38 = arith.muli %c0_i32, %c4_i32 : i32
    %39 = tpu.assume_multiple %38, 4 : i32
    %40 = arith.index_cast %39 : i32 to index
    %c0_23 = arith.constant 0 : index
    %41 = vector.load %arg33[%40, %c0_23] : memref<32x96xf32, #tpu.memory_space<vmem>>, vector<4x96xf32>
    %42 = arith.truncf %37 : vector<4x32xf32> to vector<4x32xbf16>
    %cst_24 = arith.constant dense<0.000000e+00> : vector<4x96xf32>
    %43 = tpu.matmul %42, %32, %cst_24 {dimension_numbers = #tpu.dot_dimension_numbers<[1], [0], [0], [1], [0, 0, 1, 1], [], []>} : vector<4x32xbf16>, vector<32x96xbf16>, vector<4x96xf32> -> vector<4x96xf32>
    %44 = vector.broadcast %33 : vector<1x96xf32> to vector<4x96xf32>
    %45 = arith.addf %43, %44 : vector<4x96xf32>
    %46 = vector.extract_strided_slice %41 {offsets = [0, 0], sizes = [4, 32], strides = [1, 1]} : vector<4x96xf32> to vector<4x32xf32>
    %47 = vector.extract_strided_slice %45 {offsets = [0, 0], sizes = [4, 32], strides = [1, 1]} : vector<4x96xf32> to vector<4x32xf32>
    %48 = arith.addf %46, %47 : vector<4x32xf32>
    %49 = arith.negf %48 : vector<4x32xf32>
    %50 = math.exp %49 : vector<4x32xf32>
    %cst_25 = arith.constant 1.000000e+00 : f32
    %51 = vector.broadcast %cst_25 : f32 to vector<4x32xf32>
    %52 = arith.addf %51, %50 : vector<4x32xf32>
    %53 = arith.divf %51, %52 : vector<4x32xf32>
    %54 = vector.extract_strided_slice %41 {offsets = [0, 32], sizes = [4, 32], strides = [1, 1]} : vector<4x96xf32> to vector<4x32xf32>
    %55 = vector.extract_strided_slice %45 {offsets = [0, 32], sizes = [4, 32], strides = [1, 1]} : vector<4x96xf32> to vector<4x32xf32>
    %56 = arith.addf %54, %55 : vector<4x32xf32>
    %57 = arith.negf %56 : vector<4x32xf32>
    %58 = math.exp %57 : vector<4x32xf32>
    %cst_26 = arith.constant 1.000000e+00 : f32
    %59 = vector.broadcast %cst_26 : f32 to vector<4x32xf32>
    %60 = arith.addf %59, %58 : vector<4x32xf32>
    %61 = arith.divf %59, %60 : vector<4x32xf32>
    %62 = vector.extract_strided_slice %41 {offsets = [0, 64], sizes = [4, 32], strides = [1, 1]} : vector<4x96xf32> to vector<4x32xf32>
    %63 = vector.extract_strided_slice %45 {offsets = [0, 64], sizes = [4, 32], strides = [1, 1]} : vector<4x96xf32> to vector<4x32xf32>
    %64 = arith.mulf %53, %63 : vector<4x32xf32>
    %65 = arith.addf %62, %64 : vector<4x32xf32>
    %66 = math.tanh %65 : vector<4x32xf32>
    %cst_27 = arith.constant 1.000000e+00 : f32
    %67 = vector.broadcast %cst_27 : f32 to vector<4x32xf32>
    %68 = arith.subf %67, %61 : vector<4x32xf32>
    %69 = arith.mulf %68, %66 : vector<4x32xf32>
    %70 = arith.mulf %61, %37 : vector<4x32xf32>
    %71 = arith.addf %69, %70 : vector<4x32xf32>
    %72 = arith.index_cast %39 : i32 to index
    %c0_28 = arith.constant 0 : index
    %73 = vector.load %arg30[%72, %c0_28] : memref<32x32xf32, #tpu.memory_space<vmem>>, vector<4x32xf32>
    tpu.vector_store %arg30[%72, %c0_28], %71 {strides = array<i32>} : memref<32x32xf32, #tpu.memory_space<vmem>>, vector<4x32xf32>,
    %74 = vector.broadcast %c0_i32 : i32 to vector<4x1xi32>
    %75 = arith.cmpi eq, %36, %74 : vector<4x1xi32>
    %76 = vector.shape_cast %75 : vector<4x1xi1> to vector<4x1xi1>
    %77 = vector.broadcast %76 : vector<4x1xi1> to vector<4x32xi1>
    %78 = arith.select %77, %71, %37 : vector<4x32xi1>, vector<4x32xf32>
    %c1_i32_29 = arith.constant 1 : i32
    %c4_i32_30 = arith.constant 4 : i32
    %79 = arith.muli %c1_i32_29, %c4_i32_30 : i32
    %80 = tpu.assume_multiple %79, 4 : i32
    %81 = arith.index_cast %80 : i32 to index
    %c0_31 = arith.constant 0 : index
    %82 = vector.load %arg33[%81, %c0_31] : memref<32x96xf32, #tpu.memory_space<vmem>>, vector<4x96xf32>
    %83 = arith.truncf %71 : vector<4x32xf32> to vector<4x32xbf16>
    %cst_32 = arith.constant dense<0.000000e+00> : vector<4x96xf32>
    %84 = tpu.matmul %83, %32, %cst_32 {dimension_numbers = #tpu.dot_dimension_numbers<[1], [0], [0], [1], [0, 0, 1, 1], [], []>} : vector<4x32xbf16>, vector<32x96xbf16>, vector<4x96xf32> -> vector<4x96xf32>
    %85 = vector.broadcast %33 : vector<1x96xf32> to vector<4x96xf32>
    %86 = arith.addf %84, %85 : vector<4x96xf32>
    %87 = vector.extract_strided_slice %82 {offsets = [0, 0], sizes = [4, 32], strides = [1, 1]} : vector<4x96xf32> to vector<4x32xf32>
    %88 = vector.extract_strided_slice %86 {offsets = [0, 0], sizes = [4, 32], strides = [1, 1]} : vector<4x96xf32> to vector<4x32xf32>
    %89 = arith.addf %87, %88 : vector<4x32xf32>
    %90 = arith.negf %89 : vector<4x32xf32>
    %91 = math.exp %90 : vector<4x32xf32>
    %cst_33 = arith.constant 1.000000e+00 : f32
    %92 = vector.broadcast %cst_33 : f32 to vector<4x32xf32>
    %93 = arith.addf %92, %91 : vector<4x32xf32>
    %94 = arith.divf %92, %93 : vector<4x32xf32>
    %95 = vector.extract_strided_slice %82 {offsets = [0, 32], sizes = [4, 32], strides = [1, 1]} : vector<4x96xf32> to vector<4x32xf32>
    %96 = vector.extract_strided_slice %86 {offsets = [0, 32], sizes = [4, 32], strides = [1, 1]} : vector<4x96xf32> to vector<4x32xf32>
    %97 = arith.addf %95, %96 : vector<4x32xf32>
    %98 = arith.negf %97 : vector<4x32xf32>
    %99 = math.exp %98 : vector<4x32xf32>
    %cst_34 = arith.constant 1.000000e+00 : f32
    %100 = vector.broadcast %cst_34 : f32 to vector<4x32xf32>
    %101 = arith.addf %100, %99 : vector<4x32xf32>
    %102 = arith.divf %100, %101 : vector<4x32xf32>
    %103 = vector.extract_strided_slice %82 {offsets = [0, 64], sizes = [4, 32], strides = [1, 1]} : vector<4x96xf32> to vector<4x32xf32>
    %104 = vector.extract_strided_slice %86 {offsets = [0, 64], sizes = [4, 32], strides = [1, 1]} : vector<4x96xf32> to vector<4x32xf32>
    %105 = arith.mulf %94, %104 : vector<4x32xf32>
    %106 = arith.addf %103, %105 : vector<4x32xf32>
    %107 = math.tanh %106 : vector<4x32xf32>
    %cst_35 = arith.constant 1.000000e+00 : f32
    %108 = vector.broadcast %cst_35 : f32 to vector<4x32xf32>
    %109 = arith.subf %108, %102 : vector<4x32xf32>
    %110 = arith.mulf %109, %107 : vector<4x32xf32>
    %111 = arith.mulf %102, %71 : vector<4x32xf32>
    %112 = arith.addf %110, %111 : vector<4x32xf32>
    %113 = arith.index_cast %80 : i32 to index
    %c0_36 = arith.constant 0 : index
    %114 = vector.load %arg30[%113, %c0_36] : memref<32x32xf32, #tpu.memory_space<vmem>>, vector<4x32xf32>
    tpu.vector_store %arg30[%113, %c0_36], %112 {strides = array<i32>} : memref<32x32xf32, #tpu.memory_space<vmem>>, vector<4x32xf32>,
    %115 = vector.broadcast %c1_i32_29 : i32 to vector<4x1xi32>
    %116 = arith.cmpi eq, %36, %115 : vector<4x1xi32>
    %117 = vector.shape_cast %116 : vector<4x1xi1> to vector<4x1xi1>
    %118 = vector.broadcast %117 : vector<4x1xi1> to vector<4x32xi1>
    %119 = arith.select %118, %112, %78 : vector<4x32xi1>, vector<4x32xf32>
    %c2_i32 = arith.constant 2 : i32
    %c4_i32_37 = arith.constant 4 : i32
    %120 = arith.muli %c2_i32, %c4_i32_37 : i32
    %121 = tpu.assume_multiple %120, 4 : i32
    %122 = arith.index_cast %121 : i32 to index
    %c0_38 = arith.constant 0 : index
    %123 = vector.load %arg33[%122, %c0_38] : memref<32x96xf32, #tpu.memory_space<vmem>>, vector<4x96xf32>
    %124 = arith.truncf %112 : vector<4x32xf32> to vector<4x32xbf16>
    %cst_39 = arith.constant dense<0.000000e+00> : vector<4x96xf32>
    %125 = tpu.matmul %124, %32, %cst_39 {dimension_numbers = #tpu.dot_dimension_numbers<[1], [0], [0], [1], [0, 0, 1, 1], [], []>} : vector<4x32xbf16>, vector<32x96xbf16>, vector<4x96xf32> -> vector<4x96xf32>
    %126 = vector.broadcast %33 : vector<1x96xf32> to vector<4x96xf32>
    %127 = arith.addf %125, %126 : vector<4x96xf32>
    %128 = vector.extract_strided_slice %123 {offsets = [0, 0], sizes = [4, 32], strides = [1, 1]} : vector<4x96xf32> to vector<4x32xf32>
    %129 = vector.extract_strided_slice %127 {offsets = [0, 0], sizes = [4, 32], strides = [1, 1]} : vector<4x96xf32> to vector<4x32xf32>
    %130 = arith.addf %128, %129 : vector<4x32xf32>
    %131 = arith.negf %130 : vector<4x32xf32>
    %132 = math.exp %131 : vector<4x32xf32>
    %cst_40 = arith.constant 1.000000e+00 : f32
    %133 = vector.broadcast %cst_40 : f32 to vector<4x32xf32>
    %134 = arith.addf %133, %132 : vector<4x32xf32>
    %135 = arith.divf %133, %134 : vector<4x32xf32>
    %136 = vector.extract_strided_slice %123 {offsets = [0, 32], sizes = [4, 32], strides = [1, 1]} : vector<4x96xf32> to vector<4x32xf32>
    %137 = vector.extract_strided_slice %127 {offsets = [0, 32], sizes = [4, 32], strides = [1, 1]} : vector<4x96xf32> to vector<4x32xf32>
    %138 = arith.addf %136, %137 : vector<4x32xf32>
    %139 = arith.negf %138 : vector<4x32xf32>
    %140 = math.exp %139 : vector<4x32xf32>
    %cst_41 = arith.constant 1.000000e+00 : f32
    %141 = vector.broadcast %cst_41 : f32 to vector<4x32xf32>
    %142 = arith.addf %141, %140 : vector<4x32xf32>
    %143 = arith.divf %141, %142 : vector<4x32xf32>
    %144 = vector.extract_strided_slice %123 {offsets = [0, 64], sizes = [4, 32], strides = [1, 1]} : vector<4x96xf32> to vector<4x32xf32>
    %145 = vector.extract_strided_slice %127 {offsets = [0, 64], sizes = [4, 32], strides = [1, 1]} : vector<4x96xf32> to vector<4x32xf32>
    %146 = arith.mulf %135, %145 : vector<4x32xf32>
    %147 = arith.addf %144, %146 : vector<4x32xf32>
    %148 = math.tanh %147 : vector<4x32xf32>
    %cst_42 = arith.constant 1.000000e+00 : f32
    %149 = vector.broadcast %cst_42 : f32 to vector<4x32xf32>
    %150 = arith.subf %149, %143 : vector<4x32xf32>
    %151 = arith.mulf %150, %148 : vector<4x32xf32>
    %152 = arith.mulf %143, %112 : vector<4x32xf32>
    %153 = arith.addf %151, %152 : vector<4x32xf32>
    %154 = arith.index_cast %121 : i32 to index
    %c0_43 = arith.constant 0 : index
    %155 = vector.load %arg30[%154, %c0_43] : memref<32x32xf32, #tpu.memory_space<vmem>>, vector<4x32xf32>
    tpu.vector_store %arg30[%154, %c0_43], %153 {strides = array<i32>} : memref<32x32xf32, #tpu.memory_space<vmem>>, vector<4x32xf32>,
    %156 = vector.broadcast %c2_i32 : i32 to vector<4x1xi32>
    %157 = arith.cmpi eq, %36, %156 : vector<4x1xi32>
    %158 = vector.shape_cast %157 : vector<4x1xi1> to vector<4x1xi1>
    %159 = vector.broadcast %158 : vector<4x1xi1> to vector<4x32xi1>
    %160 = arith.select %159, %153, %119 : vector<4x32xi1>, vector<4x32xf32>
    %c3_i32 = arith.constant 3 : i32
    %c4_i32_44 = arith.constant 4 : i32
    %161 = arith.muli %c3_i32, %c4_i32_44 : i32
    %162 = tpu.assume_multiple %161, 4 : i32
    %163 = arith.index_cast %162 : i32 to index
    %c0_45 = arith.constant 0 : index
    %164 = vector.load %arg33[%163, %c0_45] : memref<32x96xf32, #tpu.memory_space<vmem>>, vector<4x96xf32>
    %165 = arith.truncf %153 : vector<4x32xf32> to vector<4x32xbf16>
    %cst_46 = arith.constant dense<0.000000e+00> : vector<4x96xf32>
    %166 = tpu.matmul %165, %32, %cst_46 {dimension_numbers = #tpu.dot_dimension_numbers<[1], [0], [0], [1], [0, 0, 1, 1], [], []>} : vector<4x32xbf16>, vector<32x96xbf16>, vector<4x96xf32> -> vector<4x96xf32>
    %167 = vector.broadcast %33 : vector<1x96xf32> to vector<4x96xf32>
    %168 = arith.addf %166, %167 : vector<4x96xf32>
    %169 = vector.extract_strided_slice %164 {offsets = [0, 0], sizes = [4, 32], strides = [1, 1]} : vector<4x96xf32> to vector<4x32xf32>
    %170 = vector.extract_strided_slice %168 {offsets = [0, 0], sizes = [4, 32], strides = [1, 1]} : vector<4x96xf32> to vector<4x32xf32>
    %171 = arith.addf %169, %170 : vector<4x32xf32>
    %172 = arith.negf %171 : vector<4x32xf32>
    %173 = math.exp %172 : vector<4x32xf32>
    %cst_47 = arith.constant 1.000000e+00 : f32
    %174 = vector.broadcast %cst_47 : f32 to vector<4x32xf32>
    %175 = arith.addf %174, %173 : vector<4x32xf32>
    %176 = arith.divf %174, %175 : vector<4x32xf32>
    %177 = vector.extract_strided_slice %164 {offsets = [0, 32], sizes = [4, 32], strides = [1, 1]} : vector<4x96xf32> to vector<4x32xf32>
    %178 = vector.extract_strided_slice %168 {offsets = [0, 32], sizes = [4, 32], strides = [1, 1]} : vector<4x96xf32> to vector<4x32xf32>
    %179 = arith.addf %177, %178 : vector<4x32xf32>
    %180 = arith.negf %179 : vector<4x32xf32>
    %181 = math.exp %180 : vector<4x32xf32>
    %cst_48 = arith.constant 1.000000e+00 : f32
    %182 = vector.broadcast %cst_48 : f32 to vector<4x32xf32>
    %183 = arith.addf %182, %181 : vector<4x32xf32>
    %184 = arith.divf %182, %183 : vector<4x32xf32>
    %185 = vector.extract_strided_slice %164 {offsets = [0, 64], sizes = [4, 32], strides = [1, 1]} : vector<4x96xf32> to vector<4x32xf32>
    %186 = vector.extract_strided_slice %168 {offsets = [0, 64], sizes = [4, 32], strides = [1, 1]} : vector<4x96xf32> to vector<4x32xf32>
    %187 = arith.mulf %176, %186 : vector<4x32xf32>
    %188 = arith.addf %185, %187 : vector<4x32xf32>
    %189 = math.tanh %188 : vector<4x32xf32>
    %cst_49 = arith.constant 1.000000e+00 : f32
    %190 = vector.broadcast %cst_49 : f32 to vector<4x32xf32>
    %191 = arith.subf %190, %184 : vector<4x32xf32>
    %192 = arith.mulf %191, %189 : vector<4x32xf32>
    %193 = arith.mulf %184, %153 : vector<4x32xf32>
    %194 = arith.addf %192, %193 : vector<4x32xf32>
    %195 = arith.index_cast %162 : i32 to index
    %c0_50 = arith.constant 0 : index
    %196 = vector.load %arg30[%195, %c0_50] : memref<32x32xf32, #tpu.memory_space<vmem>>, vector<4x32xf32>
    tpu.vector_store %arg30[%195, %c0_50], %194 {strides = array<i32>} : memref<32x32xf32, #tpu.memory_space<vmem>>, vector<4x32xf32>,
    %197 = vector.broadcast %c3_i32 : i32 to vector<4x1xi32>
    %198 = arith.cmpi eq, %36, %197 : vector<4x1xi32>
    %199 = vector.shape_cast %198 : vector<4x1xi1> to vector<4x1xi1>
    %200 = vector.broadcast %199 : vector<4x1xi1> to vector<4x32xi1>
    %201 = arith.select %200, %194, %160 : vector<4x32xi1>, vector<4x32xf32>
    %c4_i32_51 = arith.constant 4 : i32
    %c4_i32_52 = arith.constant 4 : i32
    %202 = arith.muli %c4_i32_51, %c4_i32_52 : i32
    %203 = tpu.assume_multiple %202, 4 : i32
    %204 = arith.index_cast %203 : i32 to index
    %c0_53 = arith.constant 0 : index
    %205 = vector.load %arg33[%204, %c0_53] : memref<32x96xf32, #tpu.memory_space<vmem>>, vector<4x96xf32>
    %206 = arith.truncf %194 : vector<4x32xf32> to vector<4x32xbf16>
    %cst_54 = arith.constant dense<0.000000e+00> : vector<4x96xf32>
    %207 = tpu.matmul %206, %32, %cst_54 {dimension_numbers = #tpu.dot_dimension_numbers<[1], [0], [0], [1], [0, 0, 1, 1], [], []>} : vector<4x32xbf16>, vector<32x96xbf16>, vector<4x96xf32> -> vector<4x96xf32>
    %208 = vector.broadcast %33 : vector<1x96xf32> to vector<4x96xf32>
    %209 = arith.addf %207, %208 : vector<4x96xf32>
    %210 = vector.extract_strided_slice %205 {offsets = [0, 0], sizes = [4, 32], strides = [1, 1]} : vector<4x96xf32> to vector<4x32xf32>
    %211 = vector.extract_strided_slice %209 {offsets = [0, 0], sizes = [4, 32], strides = [1, 1]} : vector<4x96xf32> to vector<4x32xf32>
    %212 = arith.addf %210, %211 : vector<4x32xf32>
    %213 = arith.negf %212 : vector<4x32xf32>
    %214 = math.exp %213 : vector<4x32xf32>
    %cst_55 = arith.constant 1.000000e+00 : f32
    %215 = vector.broadcast %cst_55 : f32 to vector<4x32xf32>
    %216 = arith.addf %215, %214 : vector<4x32xf32>
    %217 = arith.divf %215, %216 : vector<4x32xf32>
    %218 = vector.extract_strided_slice %205 {offsets = [0, 32], sizes = [4, 32], strides = [1, 1]} : vector<4x96xf32> to vector<4x32xf32>
    %219 = vector.extract_strided_slice %209 {offsets = [0, 32], sizes = [4, 32], strides = [1, 1]} : vector<4x96xf32> to vector<4x32xf32>
    %220 = arith.addf %218, %219 : vector<4x32xf32>
    %221 = arith.negf %220 : vector<4x32xf32>
    %222 = math.exp %221 : vector<4x32xf32>
    %cst_56 = arith.constant 1.000000e+00 : f32
    %223 = vector.broadcast %cst_56 : f32 to vector<4x32xf32>
    %224 = arith.addf %223, %222 : vector<4x32xf32>
    %225 = arith.divf %223, %224 : vector<4x32xf32>
    %226 = vector.extract_strided_slice %205 {offsets = [0, 64], sizes = [4, 32], strides = [1, 1]} : vector<4x96xf32> to vector<4x32xf32>
    %227 = vector.extract_strided_slice %209 {offsets = [0, 64], sizes = [4, 32], strides = [1, 1]} : vector<4x96xf32> to vector<4x32xf32>
    %228 = arith.mulf %217, %227 : vector<4x32xf32>
    %229 = arith.addf %226, %228 : vector<4x32xf32>
    %230 = math.tanh %229 : vector<4x32xf32>
    %cst_57 = arith.constant 1.000000e+00 : f32
    %231 = vector.broadcast %cst_57 : f32 to vector<4x32xf32>
    %232 = arith.subf %231, %225 : vector<4x32xf32>
    %233 = arith.mulf %232, %230 : vector<4x32xf32>
    %234 = arith.mulf %225, %194 : vector<4x32xf32>
    %235 = arith.addf %233, %234 : vector<4x32xf32>
    %236 = arith.index_cast %203 : i32 to index
    %c0_58 = arith.constant 0 : index
    %237 = vector.load %arg30[%236, %c0_58] : memref<32x32xf32, #tpu.memory_space<vmem>>, vector<4x32xf32>
    tpu.vector_store %arg30[%236, %c0_58], %235 {strides = array<i32>} : memref<32x32xf32, #tpu.memory_space<vmem>>, vector<4x32xf32>,
    %238 = vector.broadcast %c4_i32_51 : i32 to vector<4x1xi32>
    %239 = arith.cmpi eq, %36, %238 : vector<4x1xi32>
    %240 = vector.shape_cast %239 : vector<4x1xi1> to vector<4x1xi1>
    %241 = vector.broadcast %240 : vector<4x1xi1> to vector<4x32xi1>
    %242 = arith.select %241, %235, %201 : vector<4x32xi1>, vector<4x32xf32>
    %c5_i32 = arith.constant 5 : i32
    %c4_i32_59 = arith.constant 4 : i32
    %243 = arith.muli %c5_i32, %c4_i32_59 : i32
    %244 = tpu.assume_multiple %243, 4 : i32
    %245 = arith.index_cast %244 : i32 to index
    %c0_60 = arith.constant 0 : index
    %246 = vector.load %arg33[%245, %c0_60] : memref<32x96xf32, #tpu.memory_space<vmem>>, vector<4x96xf32>
    %247 = arith.truncf %235 : vector<4x32xf32> to vector<4x32xbf16>
    %cst_61 = arith.constant dense<0.000000e+00> : vector<4x96xf32>
    %248 = tpu.matmul %247, %32, %cst_61 {dimension_numbers = #tpu.dot_dimension_numbers<[1], [0], [0], [1], [0, 0, 1, 1], [], []>} : vector<4x32xbf16>, vector<32x96xbf16>, vector<4x96xf32> -> vector<4x96xf32>
    %249 = vector.broadcast %33 : vector<1x96xf32> to vector<4x96xf32>
    %250 = arith.addf %248, %249 : vector<4x96xf32>
    %251 = vector.extract_strided_slice %246 {offsets = [0, 0], sizes = [4, 32], strides = [1, 1]} : vector<4x96xf32> to vector<4x32xf32>
    %252 = vector.extract_strided_slice %250 {offsets = [0, 0], sizes = [4, 32], strides = [1, 1]} : vector<4x96xf32> to vector<4x32xf32>
    %253 = arith.addf %251, %252 : vector<4x32xf32>
    %254 = arith.negf %253 : vector<4x32xf32>
    %255 = math.exp %254 : vector<4x32xf32>
    %cst_62 = arith.constant 1.000000e+00 : f32
    %256 = vector.broadcast %cst_62 : f32 to vector<4x32xf32>
    %257 = arith.addf %256, %255 : vector<4x32xf32>
    %258 = arith.divf %256, %257 : vector<4x32xf32>
    %259 = vector.extract_strided_slice %246 {offsets = [0, 32], sizes = [4, 32], strides = [1, 1]} : vector<4x96xf32> to vector<4x32xf32>
    %260 = vector.extract_strided_slice %250 {offsets = [0, 32], sizes = [4, 32], strides = [1, 1]} : vector<4x96xf32> to vector<4x32xf32>
    %261 = arith.addf %259, %260 : vector<4x32xf32>
    %262 = arith.negf %261 : vector<4x32xf32>
    %263 = math.exp %262 : vector<4x32xf32>
    %cst_63 = arith.constant 1.000000e+00 : f32
    %264 = vector.broadcast %cst_63 : f32 to vector<4x32xf32>
    %265 = arith.addf %264, %263 : vector<4x32xf32>
    %266 = arith.divf %264, %265 : vector<4x32xf32>
    %267 = vector.extract_strided_slice %246 {offsets = [0, 64], sizes = [4, 32], strides = [1, 1]} : vector<4x96xf32> to vector<4x32xf32>
    %268 = vector.extract_strided_slice %250 {offsets = [0, 64], sizes = [4, 32], strides = [1, 1]} : vector<4x96xf32> to vector<4x32xf32>
    %269 = arith.mulf %258, %268 : vector<4x32xf32>
    %270 = arith.addf %267, %269 : vector<4x32xf32>
    %271 = math.tanh %270 : vector<4x32xf32>
    %cst_64 = arith.constant 1.000000e+00 : f32
    %272 = vector.broadcast %cst_64 : f32 to vector<4x32xf32>
    %273 = arith.subf %272, %266 : vector<4x32xf32>
    %274 = arith.mulf %273, %271 : vector<4x32xf32>
    %275 = arith.mulf %266, %235 : vector<4x32xf32>
    %276 = arith.addf %274, %275 : vector<4x32xf32>
    %277 = arith.index_cast %244 : i32 to index
    %c0_65 = arith.constant 0 : index
    %278 = vector.load %arg30[%277, %c0_65] : memref<32x32xf32, #tpu.memory_space<vmem>>, vector<4x32xf32>
    tpu.vector_store %arg30[%277, %c0_65], %276 {strides = array<i32>} : memref<32x32xf32, #tpu.memory_space<vmem>>, vector<4x32xf32>,
    %279 = vector.broadcast %c5_i32 : i32 to vector<4x1xi32>
    %280 = arith.cmpi eq, %36, %279 : vector<4x1xi32>
    %281 = vector.shape_cast %280 : vector<4x1xi1> to vector<4x1xi1>
    %282 = vector.broadcast %281 : vector<4x1xi1> to vector<4x32xi1>
    %283 = arith.select %282, %276, %242 : vector<4x32xi1>, vector<4x32xf32>
    %c6_i32 = arith.constant 6 : i32
    %c4_i32_66 = arith.constant 4 : i32
    %284 = arith.muli %c6_i32, %c4_i32_66 : i32
    %285 = tpu.assume_multiple %284, 4 : i32
    %286 = arith.index_cast %285 : i32 to index
    %c0_67 = arith.constant 0 : index
    %287 = vector.load %arg33[%286, %c0_67] : memref<32x96xf32, #tpu.memory_space<vmem>>, vector<4x96xf32>
    %288 = arith.truncf %276 : vector<4x32xf32> to vector<4x32xbf16>
    %cst_68 = arith.constant dense<0.000000e+00> : vector<4x96xf32>
    %289 = tpu.matmul %288, %32, %cst_68 {dimension_numbers = #tpu.dot_dimension_numbers<[1], [0], [0], [1], [0, 0, 1, 1], [], []>} : vector<4x32xbf16>, vector<32x96xbf16>, vector<4x96xf32> -> vector<4x96xf32>
    %290 = vector.broadcast %33 : vector<1x96xf32> to vector<4x96xf32>
    %291 = arith.addf %289, %290 : vector<4x96xf32>
    %292 = vector.extract_strided_slice %287 {offsets = [0, 0], sizes = [4, 32], strides = [1, 1]} : vector<4x96xf32> to vector<4x32xf32>
    %293 = vector.extract_strided_slice %291 {offsets = [0, 0], sizes = [4, 32], strides = [1, 1]} : vector<4x96xf32> to vector<4x32xf32>
    %294 = arith.addf %292, %293 : vector<4x32xf32>
    %295 = arith.negf %294 : vector<4x32xf32>
    %296 = math.exp %295 : vector<4x32xf32>
    %cst_69 = arith.constant 1.000000e+00 : f32
    %297 = vector.broadcast %cst_69 : f32 to vector<4x32xf32>
    %298 = arith.addf %297, %296 : vector<4x32xf32>
    %299 = arith.divf %297, %298 : vector<4x32xf32>
    %300 = vector.extract_strided_slice %287 {offsets = [0, 32], sizes = [4, 32], strides = [1, 1]} : vector<4x96xf32> to vector<4x32xf32>
    %301 = vector.extract_strided_slice %291 {offsets = [0, 32], sizes = [4, 32], strides = [1, 1]} : vector<4x96xf32> to vector<4x32xf32>
    %302 = arith.addf %300, %301 : vector<4x32xf32>
    %303 = arith.negf %302 : vector<4x32xf32>
    %304 = math.exp %303 : vector<4x32xf32>
    %cst_70 = arith.constant 1.000000e+00 : f32
    %305 = vector.broadcast %cst_70 : f32 to vector<4x32xf32>
    %306 = arith.addf %305, %304 : vector<4x32xf32>
    %307 = arith.divf %305, %306 : vector<4x32xf32>
    %308 = vector.extract_strided_slice %287 {offsets = [0, 64], sizes = [4, 32], strides = [1, 1]} : vector<4x96xf32> to vector<4x32xf32>
    %309 = vector.extract_strided_slice %291 {offsets = [0, 64], sizes = [4, 32], strides = [1, 1]} : vector<4x96xf32> to vector<4x32xf32>
    %310 = arith.mulf %299, %309 : vector<4x32xf32>
    %311 = arith.addf %308, %310 : vector<4x32xf32>
    %312 = math.tanh %311 : vector<4x32xf32>
    %cst_71 = arith.constant 1.000000e+00 : f32
    %313 = vector.broadcast %cst_71 : f32 to vector<4x32xf32>
    %314 = arith.subf %313, %307 : vector<4x32xf32>
    %315 = arith.mulf %314, %312 : vector<4x32xf32>
    %316 = arith.mulf %307, %276 : vector<4x32xf32>
    %317 = arith.addf %315, %316 : vector<4x32xf32>
    %318 = arith.index_cast %285 : i32 to index
    %c0_72 = arith.constant 0 : index
    %319 = vector.load %arg30[%318, %c0_72] : memref<32x32xf32, #tpu.memory_space<vmem>>, vector<4x32xf32>
    tpu.vector_store %arg30[%318, %c0_72], %317 {strides = array<i32>} : memref<32x32xf32, #tpu.memory_space<vmem>>, vector<4x32xf32>,
    %320 = vector.broadcast %c6_i32 : i32 to vector<4x1xi32>
    %321 = arith.cmpi eq, %36, %320 : vector<4x1xi32>
    %322 = vector.shape_cast %321 : vector<4x1xi1> to vector<4x1xi1>
    %323 = vector.broadcast %322 : vector<4x1xi1> to vector<4x32xi1>
    %324 = arith.select %323, %317, %283 : vector<4x32xi1>, vector<4x32xf32>
    %c7_i32 = arith.constant 7 : i32
    %c4_i32_73 = arith.constant 4 : i32
    %325 = arith.muli %c7_i32, %c4_i32_73 : i32
    %326 = tpu.assume_multiple %325, 4 : i32
    %327 = arith.index_cast %326 : i32 to index
    %c0_74 = arith.constant 0 : index
    %328 = vector.load %arg33[%327, %c0_74] : memref<32x96xf32, #tpu.memory_space<vmem>>, vector<4x96xf32>
    %329 = arith.truncf %317 : vector<4x32xf32> to vector<4x32xbf16>
    %cst_75 = arith.constant dense<0.000000e+00> : vector<4x96xf32>
    %330 = tpu.matmul %329, %32, %cst_75 {dimension_numbers = #tpu.dot_dimension_numbers<[1], [0], [0], [1], [0, 0, 1, 1], [], []>} : vector<4x32xbf16>, vector<32x96xbf16>, vector<4x96xf32> -> vector<4x96xf32>
    %331 = vector.broadcast %33 : vector<1x96xf32> to vector<4x96xf32>
    %332 = arith.addf %330, %331 : vector<4x96xf32>
    %333 = vector.extract_strided_slice %328 {offsets = [0, 0], sizes = [4, 32], strides = [1, 1]} : vector<4x96xf32> to vector<4x32xf32>
    %334 = vector.extract_strided_slice %332 {offsets = [0, 0], sizes = [4, 32], strides = [1, 1]} : vector<4x96xf32> to vector<4x32xf32>
    %335 = arith.addf %333, %334 : vector<4x32xf32>
    %336 = arith.negf %335 : vector<4x32xf32>
    %337 = math.exp %336 : vector<4x32xf32>
    %cst_76 = arith.constant 1.000000e+00 : f32
    %338 = vector.broadcast %cst_76 : f32 to vector<4x32xf32>
    %339 = arith.addf %338, %337 : vector<4x32xf32>
    %340 = arith.divf %338, %339 : vector<4x32xf32>
    %341 = vector.extract_strided_slice %328 {offsets = [0, 32], sizes = [4, 32], strides = [1, 1]} : vector<4x96xf32> to vector<4x32xf32>
    %342 = vector.extract_strided_slice %332 {offsets = [0, 32], sizes = [4, 32], strides = [1, 1]} : vector<4x96xf32> to vector<4x32xf32>
    %343 = arith.addf %341, %342 : vector<4x32xf32>
    %344 = arith.negf %343 : vector<4x32xf32>
    %345 = math.exp %344 : vector<4x32xf32>
    %cst_77 = arith.constant 1.000000e+00 : f32
    %346 = vector.broadcast %cst_77 : f32 to vector<4x32xf32>
    %347 = arith.addf %346, %345 : vector<4x32xf32>
    %348 = arith.divf %346, %347 : vector<4x32xf32>
    %349 = vector.extract_strided_slice %328 {offsets = [0, 64], sizes = [4, 32], strides = [1, 1]} : vector<4x96xf32> to vector<4x32xf32>
    %350 = vector.extract_strided_slice %332 {offsets = [0, 64], sizes = [4, 32], strides = [1, 1]} : vector<4x96xf32> to vector<4x32xf32>
    %351 = arith.mulf %340, %350 : vector<4x32xf32>
    %352 = arith.addf %349, %351 : vector<4x32xf32>
    %353 = math.tanh %352 : vector<4x32xf32>
    %cst_78 = arith.constant 1.000000e+00 : f32
    %354 = vector.broadcast %cst_78 : f32 to vector<4x32xf32>
    %355 = arith.subf %354, %348 : vector<4x32xf32>
    %356 = arith.mulf %355, %353 : vector<4x32xf32>
    %357 = arith.mulf %348, %317 : vector<4x32xf32>
    %358 = arith.addf %356, %357 : vector<4x32xf32>
    %359 = arith.index_cast %326 : i32 to index
    %c0_79 = arith.constant 0 : index
    %360 = vector.load %arg30[%359, %c0_79] : memref<32x32xf32, #tpu.memory_space<vmem>>, vector<4x32xf32>
    tpu.vector_store %arg30[%359, %c0_79], %358 {strides = array<i32>} : memref<32x32xf32, #tpu.memory_space<vmem>>, vector<4x32xf32>,
    %361 = vector.broadcast %c7_i32 : i32 to vector<4x1xi32>
    %362 = arith.cmpi eq, %36, %361 : vector<4x1xi32>
    %363 = vector.shape_cast %362 : vector<4x1xi1> to vector<4x1xi1>
    %364 = vector.broadcast %363 : vector<4x1xi1> to vector<4x32xi1>
    %365 = arith.select %364, %358, %324 : vector<4x32xi1>, vector<4x32xf32>
    %c8_i32 = arith.constant 8 : i32
    %c0_80 = arith.constant 0 : index
    %c0_81 = arith.constant 0 : index
    %366 = vector.load %arg8[%c0_80, %c0_81] : memref<1x32xf32, #tpu.memory_space<vmem>>, vector<1x32xf32>
    %c0_82 = arith.constant 0 : index
    %c0_83 = arith.constant 0 : index
    %367 = vector.load %arg9[%c0_82, %c0_83] : memref<1x32xf32, #tpu.memory_space<vmem>>, vector<1x32xf32>
    %cst_84 = arith.constant dense<0.000000e+00> : vector<4xf32>
    %368 = vector.multi_reduction <add>, %365, %cst_84 [1] : vector<4x32xf32> to vector<4xf32>
    %369 = vector.shape_cast %368 : vector<4xf32> to vector<4x1xf32>
    %cst_85 = arith.constant 3.200000e+01 : f32
    %370 = vector.broadcast %cst_85 : f32 to vector<4x1xf32>
    %371 = arith.divf %369, %370 : vector<4x1xf32>
    %372 = vector.broadcast %371 : vector<4x1xf32> to vector<4x32xf32>
    %373 = arith.subf %365, %372 : vector<4x32xf32>
    %374 = arith.mulf %373, %373 : vector<4x32xf32>
    %cst_86 = arith.constant dense<0.000000e+00> : vector<4xf32>
    %375 = vector.multi_reduction <add>, %374, %cst_86 [1] : vector<4x32xf32> to vector<4xf32>
    %376 = vector.shape_cast %375 : vector<4xf32> to vector<4x1xf32>
    %cst_87 = arith.constant 3.200000e+01 : f32
    %377 = vector.broadcast %cst_87 : f32 to vector<4x1xf32>
    %378 = arith.divf %376, %377 : vector<4x1xf32>
    %379 = vector.broadcast %371 : vector<4x1xf32> to vector<4x32xf32>
    %380 = arith.subf %365, %379 : vector<4x32xf32>
    %cst_88 = arith.constant 9.99999974E-6 : f32
    %381 = vector.broadcast %cst_88 : f32 to vector<4x1xf32>
    %382 = arith.addf %378, %381 : vector<4x1xf32>
    %383 = math.rsqrt %382 : vector<4x1xf32>
    %384 = vector.broadcast %383 : vector<4x1xf32> to vector<4x32xf32>
    %385 = arith.mulf %380, %384 : vector<4x32xf32>
    %386 = vector.broadcast %366 : vector<1x32xf32> to vector<4x32xf32>
    %387 = arith.mulf %385, %386 : vector<4x32xf32>
    %388 = vector.broadcast %367 : vector<1x32xf32> to vector<4x32xf32>
    %389 = arith.addf %387, %388 : vector<4x32xf32>
    %c0_89 = arith.constant 0 : index
    %c0_90 = arith.constant 0 : index
    %390 = vector.load %arg31[%c0_89, %c0_90] : memref<4x32xf32, #tpu.memory_space<vmem>>, vector<4x32xf32>
    tpu.vector_store %arg31[%c0_89, %c0_90], %389 {strides = array<i32>} : memref<4x32xf32, #tpu.memory_space<vmem>>, vector<4x32xf32>,
    %391 = arith.truncf %389 : vector<4x32xf32> to vector<4x32xbf16>
    %c0_91 = arith.constant 0 : index
    %c0_92 = arith.constant 0 : index
    %392 = vector.load %arg10[%c0_91, %c0_92] : memref<32x16xbf16, #tpu.memory_space<vmem>>, vector<32x16xbf16>
    %cst_93 = arith.constant dense<0.000000e+00> : vector<4x16xf32>
    %393 = tpu.matmul %391, %392, %cst_93 {dimension_numbers = #tpu.dot_dimension_numbers<[1], [0], [0], [1], [0, 0, 1, 1], [], []>} : vector<4x32xbf16>, vector<32x16xbf16>, vector<4x16xf32> -> vector<4x16xf32>
    %c0_94 = arith.constant 0 : index
    %c0_95 = arith.constant 0 : index
    %394 = vector.load %arg11[%c0_94, %c0_95] : memref<1x16xf32, #tpu.memory_space<vmem>>, vector<1x16xf32>
    %395 = vector.broadcast %394 : vector<1x16xf32> to vector<4x16xf32>
    %396 = arith.addf %393, %395 : vector<4x16xf32>
    %c0_96 = arith.constant 0 : index
    %c0_97 = arith.constant 0 : index
    %397 = vector.load %arg12[%c0_96, %c0_97] : memref<32x32xbf16, #tpu.memory_space<vmem>>, vector<32x32xbf16>
    %cst_98 = arith.constant dense<0.000000e+00> : vector<4x32xf32>
    %398 = tpu.matmul %391, %397, %cst_98 {dimension_numbers = #tpu.dot_dimension_numbers<[1], [0], [0], [1], [0, 0, 1, 1], [], []>} : vector<4x32xbf16>, vector<32x32xbf16>, vector<4x32xf32> -> vector<4x32xf32>
    %c0_99 = arith.constant 0 : index
    %c0_100 = arith.constant 0 : index
    %399 = vector.load %arg13[%c0_99, %c0_100] : memref<1x32xf32, #tpu.memory_space<vmem>>, vector<1x32xf32>
    %400 = vector.broadcast %399 : vector<1x32xf32> to vector<4x32xf32>
    %401 = arith.addf %398, %400 : vector<4x32xf32>
    %c0_101 = arith.constant 0 : index
    %c0_102 = arith.constant 0 : index
    %402 = vector.load %arg19[%c0_101, %c0_102] : memref<32x32xbf16, #tpu.memory_space<vmem>>, vector<32x32xbf16>
    %cst_103 = arith.constant dense<0.000000e+00> : vector<4x32xf32>
    %403 = tpu.matmul %391, %402, %cst_103 {dimension_numbers = #tpu.dot_dimension_numbers<[1], [0], [0], [1], [0, 0, 1, 1], [], []>} : vector<4x32xbf16>, vector<32x32xbf16>, vector<4x32xf32> -> vector<4x32xf32>
    %c0_104 = arith.constant 0 : index
    %c0_105 = arith.constant 0 : index
    %404 = vector.load %arg20[%c0_104, %c0_105] : memref<1x32xf32, #tpu.memory_space<vmem>>, vector<1x32xf32>
    %405 = vector.broadcast %404 : vector<1x32xf32> to vector<4x32xf32>
    %406 = arith.addf %403, %405 : vector<4x32xf32>
    %407 = arith.truncf %396 : vector<4x16xf32> to vector<4x16xbf16>
    %c0_106 = arith.constant 0 : index
    %c0_107 = arith.constant 0 : index
    %408 = vector.load %arg15[%c0_106, %c0_107] : memref<16x96xbf16, #tpu.memory_space<vmem>>, vector<16x96xbf16>
    %cst_108 = arith.constant dense<0.000000e+00> : vector<4x96xf32>
    %409 = tpu.matmul %407, %408, %cst_108 {dimension_numbers = #tpu.dot_dimension_numbers<[1], [0], [0], [1], [0, 0, 1, 1], [], []>} : vector<4x16xbf16>, vector<16x96xbf16>, vector<4x96xf32> -> vector<4x96xf32>
    %c0_109 = arith.constant 0 : index
    %c0_110 = arith.constant 0 : index
    %410 = vector.load %arg16[%c0_109, %c0_110] : memref<1x96xf32, #tpu.memory_space<vmem>>, vector<1x96xf32>
    %411 = vector.broadcast %410 : vector<1x96xf32> to vector<4x96xf32>
    %412 = arith.addf %409, %411 : vector<4x96xf32>
    %413 = arith.truncf %0 : vector<32x16xf32> to vector<32x16xbf16>
    %c0_111 = arith.constant 0 : index
    %c0_112 = arith.constant 0 : index
    %414 = vector.load %arg15[%c0_111, %c0_112] : memref<16x96xbf16, #tpu.memory_space<vmem>>, vector<16x96xbf16>
    %cst_113 = arith.constant dense<0.000000e+00> : vector<32x96xf32>
    %415 = tpu.matmul %413, %414, %cst_113 {dimension_numbers = #tpu.dot_dimension_numbers<[1], [0], [0], [1], [0, 0, 1, 1], [], []>} : vector<32x16xbf16>, vector<16x96xbf16>, vector<32x96xf32> -> vector<32x96xf32>
    %c0_114 = arith.constant 0 : index
    %c0_115 = arith.constant 0 : index
    %416 = vector.load %arg16[%c0_114, %c0_115] : memref<1x96xf32, #tpu.memory_space<vmem>>, vector<1x96xf32>
    %417 = vector.broadcast %416 : vector<1x96xf32> to vector<32x96xf32>
    %418 = arith.addf %415, %417 : vector<32x96xf32>
    %c0_116 = arith.constant 0 : index
    %c0_117 = arith.constant 0 : index
    %419 = vector.load %arg34[%c0_116, %c0_117] : memref<32x96xf32, #tpu.memory_space<vmem>>, vector<32x96xf32>
    tpu.vector_store %arg34[%c0_116, %c0_117], %418 {strides = array<i32>} : memref<32x96xf32, #tpu.memory_space<vmem>>, vector<32x96xf32>,
    %c0_118 = arith.constant 0 : index
    %c0_119 = arith.constant 0 : index
    %420 = vector.load %arg14[%c0_118, %c0_119] : memref<32x32xbf16, #tpu.memory_space<vmem>>, vector<32x32xbf16>
    %c0_120 = arith.constant 0 : index
    %c0_121 = arith.constant 0 : index
    %421 = vector.load %arg17[%c0_120, %c0_121] : memref<32x96xbf16, #tpu.memory_space<vmem>>, vector<32x96xbf16>
    %c0_122 = arith.constant 0 : index
    %c0_123 = arith.constant 0 : index
    %422 = vector.load %arg18[%c0_122, %c0_123] : memref<1x96xf32, #tpu.memory_space<vmem>>, vector<1x96xf32>
    %c0_124 = arith.constant 0 : index
    %c0_125 = arith.constant 0 : index
    %423 = vector.load %arg21[%c0_124, %c0_125] : memref<32x32xbf16, #tpu.memory_space<vmem>>, vector<32x32xbf16>
    %c0_126 = arith.constant 0 : index
    %c0_127 = arith.constant 0 : index
    %424 = vector.load %arg22[%c0_126, %c0_127] : memref<32x96xbf16, #tpu.memory_space<vmem>>, vector<32x96xbf16>
    %c0_128 = arith.constant 0 : index
    %c0_129 = arith.constant 0 : index
    %425 = vector.load %arg23[%c0_128, %c0_129] : memref<1x96xf32, #tpu.memory_space<vmem>>, vector<1x96xf32>
    %c0_130 = arith.constant 0 : index
    %c0_131 = arith.constant 0 : index
    %426 = vector.load %arg24[%c0_130, %c0_131] : memref<32x96xbf16, #tpu.memory_space<vmem>>, vector<32x96xbf16>
    %c0_132 = arith.constant 0 : index
    %c0_133 = arith.constant 0 : index
    %427 = vector.load %arg25[%c0_132, %c0_133] : memref<1x96xf32, #tpu.memory_space<vmem>>, vector<1x96xf32>
    %cst_134 = arith.constant 0.000000e+00 : f32
    %428 = vector.broadcast %cst_134 : f32 to vector<4x32xf32>
    %cst_135 = arith.constant 0.000000e+00 : f32
    %429 = vector.broadcast %cst_135 : f32 to vector<4x32xf32>
    %430 = arith.truncf %428 : vector<4x32xf32> to vector<4x32xbf16>
    %cst_136 = arith.constant dense<0.000000e+00> : vector<4x32xf32>
    %431 = tpu.matmul %430, %420, %cst_136 {dimension_numbers = #tpu.dot_dimension_numbers<[1], [0], [0], [1], [0, 0, 1, 1], [], []>} : vector<4x32xbf16>, vector<32x32xbf16>, vector<4x32xf32> -> vector<4x32xf32>
    %432 = arith.addf %401, %431 : vector<4x32xf32>
    %433 = arith.mulf %432, %432 : vector<4x32xf32>
    %434 = arith.mulf %432, %433 : vector<4x32xf32>
    %cst_137 = arith.constant 4.471500e-02 : f32
    %435 = vector.broadcast %cst_137 : f32 to vector<4x32xf32>
    %436 = arith.mulf %435, %434 : vector<4x32xf32>
    %437 = arith.addf %432, %436 : vector<4x32xf32>
    %cst_138 = arith.constant 0.797884583 : f32
    %438 = vector.broadcast %cst_138 : f32 to vector<4x32xf32>
    %439 = arith.mulf %438, %437 : vector<4x32xf32>
    %440 = math.tanh %439 : vector<4x32xf32>
    %cst_139 = arith.constant 1.000000e+00 : f32
    %441 = vector.broadcast %cst_139 : f32 to vector<4x32xf32>
    %442 = arith.addf %441, %440 : vector<4x32xf32>
    %cst_140 = arith.constant 5.000000e-01 : f32
    %443 = vector.broadcast %cst_140 : f32 to vector<4x32xf32>
    %444 = arith.mulf %443, %442 : vector<4x32xf32>
    %445 = arith.mulf %432, %444 : vector<4x32xf32>
    %446 = arith.truncf %445 : vector<4x32xf32> to vector<4x32xbf16>
    %cst_141 = arith.constant dense<0.000000e+00> : vector<4x96xf32>
    %447 = tpu.matmul %446, %421, %cst_141 {dimension_numbers = #tpu.dot_dimension_numbers<[1], [0], [0], [1], [0, 0, 1, 1], [], []>} : vector<4x32xbf16>, vector<32x96xbf16>, vector<4x96xf32> -> vector<4x96xf32>
    %448 = vector.broadcast %422 : vector<1x96xf32> to vector<4x96xf32>
    %449 = arith.addf %447, %448 : vector<4x96xf32>
    %450 = vector.extract_strided_slice %412 {offsets = [0, 0], sizes = [4, 32], strides = [1, 1]} : vector<4x96xf32> to vector<4x32xf32>
    %451 = vector.extract_strided_slice %449 {offsets = [0, 0], sizes = [4, 32], strides = [1, 1]} : vector<4x96xf32> to vector<4x32xf32>
    %452 = arith.addf %450, %451 : vector<4x32xf32>
    %453 = arith.negf %452 : vector<4x32xf32>
    %454 = math.exp %453 : vector<4x32xf32>
    %cst_142 = arith.constant 1.000000e+00 : f32
    %455 = vector.broadcast %cst_142 : f32 to vector<4x32xf32>
    %456 = arith.addf %455, %454 : vector<4x32xf32>
    %457 = arith.divf %455, %456 : vector<4x32xf32>
    %458 = vector.extract_strided_slice %412 {offsets = [0, 32], sizes = [4, 32], strides = [1, 1]} : vector<4x96xf32> to vector<4x32xf32>
    %459 = vector.extract_strided_slice %449 {offsets = [0, 32], sizes = [4, 32], strides = [1, 1]} : vector<4x96xf32> to vector<4x32xf32>
    %460 = arith.addf %458, %459 : vector<4x32xf32>
    %461 = arith.negf %460 : vector<4x32xf32>
    %462 = math.exp %461 : vector<4x32xf32>
    %cst_143 = arith.constant 1.000000e+00 : f32
    %463 = vector.broadcast %cst_143 : f32 to vector<4x32xf32>
    %464 = arith.addf %463, %462 : vector<4x32xf32>
    %465 = arith.divf %463, %464 : vector<4x32xf32>
    %466 = vector.extract_strided_slice %412 {offsets = [0, 64], sizes = [4, 32], strides = [1, 1]} : vector<4x96xf32> to vector<4x32xf32>
    %467 = vector.extract_strided_slice %449 {offsets = [0, 64], sizes = [4, 32], strides = [1, 1]} : vector<4x96xf32> to vector<4x32xf32>
    %468 = arith.mulf %457, %467 : vector<4x32xf32>
    %469 = arith.addf %466, %468 : vector<4x32xf32>
    %470 = math.tanh %469 : vector<4x32xf32>
    %471 = arith.mulf %465, %445 : vector<4x32xf32>
    %cst_144 = arith.constant 1.000000e+00 : f32
    %472 = vector.broadcast %cst_144 : f32 to vector<4x32xf32>
    %473 = arith.subf %472, %465 : vector<4x32xf32>
    %474 = arith.mulf %473, %470 : vector<4x32xf32>
    %475 = arith.addf %471, %474 : vector<4x32xf32>
    %476 = arith.truncf %475 : vector<4x32xf32> to vector<4x32xbf16>
    %cst_145 = arith.constant dense<0.000000e+00> : vector<4x96xf32>
    %477 = tpu.matmul %476, %424, %cst_145 {dimension_numbers = #tpu.dot_dimension_numbers<[1], [0], [0], [1], [0, 0, 1, 1], [], []>} : vector<4x32xbf16>, vector<32x96xbf16>, vector<4x96xf32> -> vector<4x96xf32>
    %478 = vector.broadcast %425 : vector<1x96xf32> to vector<4x96xf32>
    %479 = arith.addf %477, %478 : vector<4x96xf32>
    %480 = arith.truncf %429 : vector<4x32xf32> to vector<4x32xbf16>
    %cst_146 = arith.constant dense<0.000000e+00> : vector<4x32xf32>
    %481 = tpu.matmul %480, %423, %cst_146 {dimension_numbers = #tpu.dot_dimension_numbers<[1], [0], [0], [1], [0, 0, 1, 1], [], []>} : vector<4x32xbf16>, vector<32x32xbf16>, vector<4x32xf32> -> vector<4x32xf32>
    %482 = arith.addf %406, %481 : vector<4x32xf32>
    %483 = arith.mulf %482, %482 : vector<4x32xf32>
    %484 = arith.mulf %482, %483 : vector<4x32xf32>
    %cst_147 = arith.constant 4.471500e-02 : f32
    %485 = vector.broadcast %cst_147 : f32 to vector<4x32xf32>
    %486 = arith.mulf %485, %484 : vector<4x32xf32>
    %487 = arith.addf %482, %486 : vector<4x32xf32>
    %cst_148 = arith.constant 0.797884583 : f32
    %488 = vector.broadcast %cst_148 : f32 to vector<4x32xf32>
    %489 = arith.mulf %488, %487 : vector<4x32xf32>
    %490 = math.tanh %489 : vector<4x32xf32>
    %cst_149 = arith.constant 1.000000e+00 : f32
    %491 = vector.broadcast %cst_149 : f32 to vector<4x32xf32>
    %492 = arith.addf %491, %490 : vector<4x32xf32>
    %cst_150 = arith.constant 5.000000e-01 : f32
    %493 = vector.broadcast %cst_150 : f32 to vector<4x32xf32>
    %494 = arith.mulf %493, %492 : vector<4x32xf32>
    %495 = arith.mulf %482, %494 : vector<4x32xf32>
    %496 = arith.truncf %495 : vector<4x32xf32> to vector<4x32xbf16>
    %cst_151 = arith.constant dense<0.000000e+00> : vector<4x96xf32>
    %497 = tpu.matmul %496, %426, %cst_151 {dimension_numbers = #tpu.dot_dimension_numbers<[1], [0], [0], [1], [0, 0, 1, 1], [], []>} : vector<4x32xbf16>, vector<32x96xbf16>, vector<4x96xf32> -> vector<4x96xf32>
    %498 = vector.broadcast %427 : vector<1x96xf32> to vector<4x96xf32>
    %499 = arith.addf %497, %498 : vector<4x96xf32>
    %500 = vector.extract_strided_slice %479 {offsets = [0, 0], sizes = [4, 32], strides = [1, 1]} : vector<4x96xf32> to vector<4x32xf32>
    %501 = vector.extract_strided_slice %499 {offsets = [0, 0], sizes = [4, 32], strides = [1, 1]} : vector<4x96xf32> to vector<4x32xf32>
    %502 = arith.addf %500, %501 : vector<4x32xf32>
    %503 = arith.negf %502 : vector<4x32xf32>
    %504 = math.exp %503 : vector<4x32xf32>
    %cst_152 = arith.constant 1.000000e+00 : f32
    %505 = vector.broadcast %cst_152 : f32 to vector<4x32xf32>
    %506 = arith.addf %505, %504 : vector<4x32xf32>
    %507 = arith.divf %505, %506 : vector<4x32xf32>
    %508 = vector.extract_strided_slice %479 {offsets = [0, 32], sizes = [4, 32], strides = [1, 1]} : vector<4x96xf32> to vector<4x32xf32>
    %509 = vector.extract_strided_slice %499 {offsets = [0, 32], sizes = [4, 32], strides = [1, 1]} : vector<4x96xf32> to vector<4x32xf32>
    %510 = arith.addf %508, %509 : vector<4x32xf32>
    %511 = arith.negf %510 : vector<4x32xf32>
    %512 = math.exp %511 : vector<4x32xf32>
    %cst_153 = arith.constant 1.000000e+00 : f32
    %513 = vector.broadcast %cst_153 : f32 to vector<4x32xf32>
    %514 = arith.addf %513, %512 : vector<4x32xf32>
    %515 = arith.divf %513, %514 : vector<4x32xf32>
    %516 = vector.extract_strided_slice %479 {offsets = [0, 64], sizes = [4, 32], strides = [1, 1]} : vector<4x96xf32> to vector<4x32xf32>
    %517 = vector.extract_strided_slice %499 {offsets = [0, 64], sizes = [4, 32], strides = [1, 1]} : vector<4x96xf32> to vector<4x32xf32>
    %518 = arith.mulf %507, %517 : vector<4x32xf32>
    %519 = arith.addf %516, %518 : vector<4x32xf32>
    %520 = math.tanh %519 : vector<4x32xf32>
    %521 = arith.mulf %515, %495 : vector<4x32xf32>
    %cst_154 = arith.constant 1.000000e+00 : f32
    %522 = vector.broadcast %cst_154 : f32 to vector<4x32xf32>
    %523 = arith.subf %522, %515 : vector<4x32xf32>
    %524 = arith.mulf %523, %520 : vector<4x32xf32>
    %525 = arith.addf %521, %524 : vector<4x32xf32>
    %c0_155 = arith.constant 0 : index
    %c0_156 = arith.constant 0 : index
    %526 = vector.load %arg35[%c0_155, %c0_156] : memref<32x32xf32, #tpu.memory_space<vmem>>, vector<4x32xf32>
    tpu.vector_store %arg35[%c0_155, %c0_156], %525 {strides = array<i32>} : memref<32x32xf32, #tpu.memory_space<vmem>>, vector<4x32xf32>,
    %c1_i32_157 = arith.constant 1 : i32
    %c1_i32_158 = arith.constant 1 : i32
    %527 = arith.subi %c1_i32_157, %c1_i32_158 : i32
    %c4_i32_159 = arith.constant 4 : i32
    %528 = arith.muli %527, %c4_i32_159 : i32
    %529 = tpu.assume_multiple %528, 4 : i32
    %530 = arith.index_cast %529 : i32 to index
    %c0_160 = arith.constant 0 : index
    %531 = vector.load %arg34[%530, %c0_160] : memref<32x96xf32, #tpu.memory_space<vmem>>, vector<4x96xf32>
    %532 = arith.truncf %475 : vector<4x32xf32> to vector<4x32xbf16>
    %cst_161 = arith.constant dense<0.000000e+00> : vector<4x32xf32>
    %533 = tpu.matmul %532, %420, %cst_161 {dimension_numbers = #tpu.dot_dimension_numbers<[1], [0], [0], [1], [0, 0, 1, 1], [], []>} : vector<4x32xbf16>, vector<32x32xbf16>, vector<4x32xf32> -> vector<4x32xf32>
    %534 = arith.addf %401, %533 : vector<4x32xf32>
    %535 = arith.mulf %534, %534 : vector<4x32xf32>
    %536 = arith.mulf %534, %535 : vector<4x32xf32>
    %cst_162 = arith.constant 4.471500e-02 : f32
    %537 = vector.broadcast %cst_162 : f32 to vector<4x32xf32>
    %538 = arith.mulf %537, %536 : vector<4x32xf32>
    %539 = arith.addf %534, %538 : vector<4x32xf32>
    %cst_163 = arith.constant 0.797884583 : f32
    %540 = vector.broadcast %cst_163 : f32 to vector<4x32xf32>
    %541 = arith.mulf %540, %539 : vector<4x32xf32>
    %542 = math.tanh %541 : vector<4x32xf32>
    %cst_164 = arith.constant 1.000000e+00 : f32
    %543 = vector.broadcast %cst_164 : f32 to vector<4x32xf32>
    %544 = arith.addf %543, %542 : vector<4x32xf32>
    %cst_165 = arith.constant 5.000000e-01 : f32
    %545 = vector.broadcast %cst_165 : f32 to vector<4x32xf32>
    %546 = arith.mulf %545, %544 : vector<4x32xf32>
    %547 = arith.mulf %534, %546 : vector<4x32xf32>
    %548 = arith.truncf %547 : vector<4x32xf32> to vector<4x32xbf16>
    %cst_166 = arith.constant dense<0.000000e+00> : vector<4x96xf32>
    %549 = tpu.matmul %548, %421, %cst_166 {dimension_numbers = #tpu.dot_dimension_numbers<[1], [0], [0], [1], [0, 0, 1, 1], [], []>} : vector<4x32xbf16>, vector<32x96xbf16>, vector<4x96xf32> -> vector<4x96xf32>
    %550 = vector.broadcast %422 : vector<1x96xf32> to vector<4x96xf32>
    %551 = arith.addf %549, %550 : vector<4x96xf32>
    %552 = vector.extract_strided_slice %531 {offsets = [0, 0], sizes = [4, 32], strides = [1, 1]} : vector<4x96xf32> to vector<4x32xf32>
    %553 = vector.extract_strided_slice %551 {offsets = [0, 0], sizes = [4, 32], strides = [1, 1]} : vector<4x96xf32> to vector<4x32xf32>
    %554 = arith.addf %552, %553 : vector<4x32xf32>
    %555 = arith.negf %554 : vector<4x32xf32>
    %556 = math.exp %555 : vector<4x32xf32>
    %cst_167 = arith.constant 1.000000e+00 : f32
    %557 = vector.broadcast %cst_167 : f32 to vector<4x32xf32>
    %558 = arith.addf %557, %556 : vector<4x32xf32>
    %559 = arith.divf %557, %558 : vector<4x32xf32>
    %560 = vector.extract_strided_slice %531 {offsets = [0, 32], sizes = [4, 32], strides = [1, 1]} : vector<4x96xf32> to vector<4x32xf32>
    %561 = vector.extract_strided_slice %551 {offsets = [0, 32], sizes = [4, 32], strides = [1, 1]} : vector<4x96xf32> to vector<4x32xf32>
    %562 = arith.addf %560, %561 : vector<4x32xf32>
    %563 = arith.negf %562 : vector<4x32xf32>
    %564 = math.exp %563 : vector<4x32xf32>
    %cst_168 = arith.constant 1.000000e+00 : f32
    %565 = vector.broadcast %cst_168 : f32 to vector<4x32xf32>
    %566 = arith.addf %565, %564 : vector<4x32xf32>
    %567 = arith.divf %565, %566 : vector<4x32xf32>
    %568 = vector.extract_strided_slice %531 {offsets = [0, 64], sizes = [4, 32], strides = [1, 1]} : vector<4x96xf32> to vector<4x32xf32>
    %569 = vector.extract_strided_slice %551 {offsets = [0, 64], sizes = [4, 32], strides = [1, 1]} : vector<4x96xf32> to vector<4x32xf32>
    %570 = arith.mulf %559, %569 : vector<4x32xf32>
    %571 = arith.addf %568, %570 : vector<4x32xf32>
    %572 = math.tanh %571 : vector<4x32xf32>
    %573 = arith.mulf %567, %547 : vector<4x32xf32>
    %cst_169 = arith.constant 1.000000e+00 : f32
    %574 = vector.broadcast %cst_169 : f32 to vector<4x32xf32>
    %575 = arith.subf %574, %567 : vector<4x32xf32>
    %576 = arith.mulf %575, %572 : vector<4x32xf32>
    %577 = arith.addf %573, %576 : vector<4x32xf32>
    %578 = arith.truncf %577 : vector<4x32xf32> to vector<4x32xbf16>
    %cst_170 = arith.constant dense<0.000000e+00> : vector<4x96xf32>
    %579 = tpu.matmul %578, %424, %cst_170 {dimension_numbers = #tpu.dot_dimension_numbers<[1], [0], [0], [1], [0, 0, 1, 1], [], []>} : vector<4x32xbf16>, vector<32x96xbf16>, vector<4x96xf32> -> vector<4x96xf32>
    %580 = vector.broadcast %425 : vector<1x96xf32> to vector<4x96xf32>
    %581 = arith.addf %579, %580 : vector<4x96xf32>
    %582 = arith.truncf %525 : vector<4x32xf32> to vector<4x32xbf16>
    %cst_171 = arith.constant dense<0.000000e+00> : vector<4x32xf32>
    %583 = tpu.matmul %582, %423, %cst_171 {dimension_numbers = #tpu.dot_dimension_numbers<[1], [0], [0], [1], [0, 0, 1, 1], [], []>} : vector<4x32xbf16>, vector<32x32xbf16>, vector<4x32xf32> -> vector<4x32xf32>
    %584 = arith.addf %406, %583 : vector<4x32xf32>
    %585 = arith.mulf %584, %584 : vector<4x32xf32>
    %586 = arith.mulf %584, %585 : vector<4x32xf32>
    %cst_172 = arith.constant 4.471500e-02 : f32
    %587 = vector.broadcast %cst_172 : f32 to vector<4x32xf32>
    %588 = arith.mulf %587, %586 : vector<4x32xf32>
    %589 = arith.addf %584, %588 : vector<4x32xf32>
    %cst_173 = arith.constant 0.797884583 : f32
    %590 = vector.broadcast %cst_173 : f32 to vector<4x32xf32>
    %591 = arith.mulf %590, %589 : vector<4x32xf32>
    %592 = math.tanh %591 : vector<4x32xf32>
    %cst_174 = arith.constant 1.000000e+00 : f32
    %593 = vector.broadcast %cst_174 : f32 to vector<4x32xf32>
    %594 = arith.addf %593, %592 : vector<4x32xf32>
    %cst_175 = arith.constant 5.000000e-01 : f32
    %595 = vector.broadcast %cst_175 : f32 to vector<4x32xf32>
    %596 = arith.mulf %595, %594 : vector<4x32xf32>
    %597 = arith.mulf %584, %596 : vector<4x32xf32>
    %598 = arith.truncf %597 : vector<4x32xf32> to vector<4x32xbf16>
    %cst_176 = arith.constant dense<0.000000e+00> : vector<4x96xf32>
    %599 = tpu.matmul %598, %426, %cst_176 {dimension_numbers = #tpu.dot_dimension_numbers<[1], [0], [0], [1], [0, 0, 1, 1], [], []>} : vector<4x32xbf16>, vector<32x96xbf16>, vector<4x96xf32> -> vector<4x96xf32>
    %600 = vector.broadcast %427 : vector<1x96xf32> to vector<4x96xf32>
    %601 = arith.addf %599, %600 : vector<4x96xf32>
    %602 = vector.extract_strided_slice %581 {offsets = [0, 0], sizes = [4, 32], strides = [1, 1]} : vector<4x96xf32> to vector<4x32xf32>
    %603 = vector.extract_strided_slice %601 {offsets = [0, 0], sizes = [4, 32], strides = [1, 1]} : vector<4x96xf32> to vector<4x32xf32>
    %604 = arith.addf %602, %603 : vector<4x32xf32>
    %605 = arith.negf %604 : vector<4x32xf32>
    %606 = math.exp %605 : vector<4x32xf32>
    %cst_177 = arith.constant 1.000000e+00 : f32
    %607 = vector.broadcast %cst_177 : f32 to vector<4x32xf32>
    %608 = arith.addf %607, %606 : vector<4x32xf32>
    %609 = arith.divf %607, %608 : vector<4x32xf32>
    %610 = vector.extract_strided_slice %581 {offsets = [0, 32], sizes = [4, 32], strides = [1, 1]} : vector<4x96xf32> to vector<4x32xf32>
    %611 = vector.extract_strided_slice %601 {offsets = [0, 32], sizes = [4, 32], strides = [1, 1]} : vector<4x96xf32> to vector<4x32xf32>
    %612 = arith.addf %610, %611 : vector<4x32xf32>
    %613 = arith.negf %612 : vector<4x32xf32>
    %614 = math.exp %613 : vector<4x32xf32>
    %cst_178 = arith.constant 1.000000e+00 : f32
    %615 = vector.broadcast %cst_178 : f32 to vector<4x32xf32>
    %616 = arith.addf %615, %614 : vector<4x32xf32>
    %617 = arith.divf %615, %616 : vector<4x32xf32>
    %618 = vector.extract_strided_slice %581 {offsets = [0, 64], sizes = [4, 32], strides = [1, 1]} : vector<4x96xf32> to vector<4x32xf32>
    %619 = vector.extract_strided_slice %601 {offsets = [0, 64], sizes = [4, 32], strides = [1, 1]} : vector<4x96xf32> to vector<4x32xf32>
    %620 = arith.mulf %609, %619 : vector<4x32xf32>
    %621 = arith.addf %618, %620 : vector<4x32xf32>
    %622 = math.tanh %621 : vector<4x32xf32>
    %623 = arith.mulf %617, %597 : vector<4x32xf32>
    %cst_179 = arith.constant 1.000000e+00 : f32
    %624 = vector.broadcast %cst_179 : f32 to vector<4x32xf32>
    %625 = arith.subf %624, %617 : vector<4x32xf32>
    %626 = arith.mulf %625, %622 : vector<4x32xf32>
    %627 = arith.addf %623, %626 : vector<4x32xf32>
    %c4_i32_180 = arith.constant 4 : i32
    %628 = arith.muli %c1_i32_157, %c4_i32_180 : i32
    %629 = tpu.assume_multiple %628, 4 : i32
    %630 = arith.index_cast %629 : i32 to index
    %c0_181 = arith.constant 0 : index
    %631 = vector.load %arg35[%630, %c0_181] : memref<32x32xf32, #tpu.memory_space<vmem>>, vector<4x32xf32>
    tpu.vector_store %arg35[%630, %c0_181], %627 {strides = array<i32>} : memref<32x32xf32, #tpu.memory_space<vmem>>, vector<4x32xf32>,
    %c2_i32_182 = arith.constant 2 : i32
    %c1_i32_183 = arith.constant 1 : i32
    %632 = arith.subi %c2_i32_182, %c1_i32_183 : i32
    %c4_i32_184 = arith.constant 4 : i32
    %633 = arith.muli %632, %c4_i32_184 : i32
    %634 = tpu.assume_multiple %633, 4 : i32
    %635 = arith.index_cast %634 : i32 to index
    %c0_185 = arith.constant 0 : index
    %636 = vector.load %arg34[%635, %c0_185] : memref<32x96xf32, #tpu.memory_space<vmem>>, vector<4x96xf32>
    %637 = arith.truncf %577 : vector<4x32xf32> to vector<4x32xbf16>
    %cst_186 = arith.constant dense<0.000000e+00> : vector<4x32xf32>
    %638 = tpu.matmul %637, %420, %cst_186 {dimension_numbers = #tpu.dot_dimension_numbers<[1], [0], [0], [1], [0, 0, 1, 1], [], []>} : vector<4x32xbf16>, vector<32x32xbf16>, vector<4x32xf32> -> vector<4x32xf32>
    %639 = arith.addf %401, %638 : vector<4x32xf32>
    %640 = arith.mulf %639, %639 : vector<4x32xf32>
    %641 = arith.mulf %639, %640 : vector<4x32xf32>
    %cst_187 = arith.constant 4.471500e-02 : f32
    %642 = vector.broadcast %cst_187 : f32 to vector<4x32xf32>
    %643 = arith.mulf %642, %641 : vector<4x32xf32>
    %644 = arith.addf %639, %643 : vector<4x32xf32>
    %cst_188 = arith.constant 0.797884583 : f32
    %645 = vector.broadcast %cst_188 : f32 to vector<4x32xf32>
    %646 = arith.mulf %645, %644 : vector<4x32xf32>
    %647 = math.tanh %646 : vector<4x32xf32>
    %cst_189 = arith.constant 1.000000e+00 : f32
    %648 = vector.broadcast %cst_189 : f32 to vector<4x32xf32>
    %649 = arith.addf %648, %647 : vector<4x32xf32>
    %cst_190 = arith.constant 5.000000e-01 : f32
    %650 = vector.broadcast %cst_190 : f32 to vector<4x32xf32>
    %651 = arith.mulf %650, %649 : vector<4x32xf32>
    %652 = arith.mulf %639, %651 : vector<4x32xf32>
    %653 = arith.truncf %652 : vector<4x32xf32> to vector<4x32xbf16>
    %cst_191 = arith.constant dense<0.000000e+00> : vector<4x96xf32>
    %654 = tpu.matmul %653, %421, %cst_191 {dimension_numbers = #tpu.dot_dimension_numbers<[1], [0], [0], [1], [0, 0, 1, 1], [], []>} : vector<4x32xbf16>, vector<32x96xbf16>, vector<4x96xf32> -> vector<4x96xf32>
    %655 = vector.broadcast %422 : vector<1x96xf32> to vector<4x96xf32>
    %656 = arith.addf %654, %655 : vector<4x96xf32>
    %657 = vector.extract_strided_slice %636 {offsets = [0, 0], sizes = [4, 32], strides = [1, 1]} : vector<4x96xf32> to vector<4x32xf32>
    %658 = vector.extract_strided_slice %656 {offsets = [0, 0], sizes = [4, 32], strides = [1, 1]} : vector<4x96xf32> to vector<4x32xf32>
    %659 = arith.addf %657, %658 : vector<4x32xf32>
    %660 = arith.negf %659 : vector<4x32xf32>
    %661 = math.exp %660 : vector<4x32xf32>
    %cst_192 = arith.constant 1.000000e+00 : f32
    %662 = vector.broadcast %cst_192 : f32 to vector<4x32xf32>
    %663 = arith.addf %662, %661 : vector<4x32xf32>
    %664 = arith.divf %662, %663 : vector<4x32xf32>
    %665 = vector.extract_strided_slice %636 {offsets = [0, 32], sizes = [4, 32], strides = [1, 1]} : vector<4x96xf32> to vector<4x32xf32>
    %666 = vector.extract_strided_slice %656 {offsets = [0, 32], sizes = [4, 32], strides = [1, 1]} : vector<4x96xf32> to vector<4x32xf32>
    %667 = arith.addf %665, %666 : vector<4x32xf32>
    %668 = arith.negf %667 : vector<4x32xf32>
    %669 = math.exp %668 : vector<4x32xf32>
    %cst_193 = arith.constant 1.000000e+00 : f32
    %670 = vector.broadcast %cst_193 : f32 to vector<4x32xf32>
    %671 = arith.addf %670, %669 : vector<4x32xf32>
    %672 = arith.divf %670, %671 : vector<4x32xf32>
    %673 = vector.extract_strided_slice %636 {offsets = [0, 64], sizes = [4, 32], strides = [1, 1]} : vector<4x96xf32> to vector<4x32xf32>
    %674 = vector.extract_strided_slice %656 {offsets = [0, 64], sizes = [4, 32], strides = [1, 1]} : vector<4x96xf32> to vector<4x32xf32>
    %675 = arith.mulf %664, %674 : vector<4x32xf32>
    %676 = arith.addf %673, %675 : vector<4x32xf32>
    %677 = math.tanh %676 : vector<4x32xf32>
    %678 = arith.mulf %672, %652 : vector<4x32xf32>
    %cst_194 = arith.constant 1.000000e+00 : f32
    %679 = vector.broadcast %cst_194 : f32 to vector<4x32xf32>
    %680 = arith.subf %679, %672 : vector<4x32xf32>
    %681 = arith.mulf %680, %677 : vector<4x32xf32>
    %682 = arith.addf %678, %681 : vector<4x32xf32>
    %683 = arith.truncf %682 : vector<4x32xf32> to vector<4x32xbf16>
    %cst_195 = arith.constant dense<0.000000e+00> : vector<4x96xf32>
    %684 = tpu.matmul %683, %424, %cst_195 {dimension_numbers = #tpu.dot_dimension_numbers<[1], [0], [0], [1], [0, 0, 1, 1], [], []>} : vector<4x32xbf16>, vector<32x96xbf16>, vector<4x96xf32> -> vector<4x96xf32>
    %685 = vector.broadcast %425 : vector<1x96xf32> to vector<4x96xf32>
    %686 = arith.addf %684, %685 : vector<4x96xf32>
    %687 = arith.truncf %627 : vector<4x32xf32> to vector<4x32xbf16>
    %cst_196 = arith.constant dense<0.000000e+00> : vector<4x32xf32>
    %688 = tpu.matmul %687, %423, %cst_196 {dimension_numbers = #tpu.dot_dimension_numbers<[1], [0], [0], [1], [0, 0, 1, 1], [], []>} : vector<4x32xbf16>, vector<32x32xbf16>, vector<4x32xf32> -> vector<4x32xf32>
    %689 = arith.addf %406, %688 : vector<4x32xf32>
    %690 = arith.mulf %689, %689 : vector<4x32xf32>
    %691 = arith.mulf %689, %690 : vector<4x32xf32>
    %cst_197 = arith.constant 4.471500e-02 : f32
    %692 = vector.broadcast %cst_197 : f32 to vector<4x32xf32>
    %693 = arith.mulf %692, %691 : vector<4x32xf32>
    %694 = arith.addf %689, %693 : vector<4x32xf32>
    %cst_198 = arith.constant 0.797884583 : f32
    %695 = vector.broadcast %cst_198 : f32 to vector<4x32xf32>
    %696 = arith.mulf %695, %694 : vector<4x32xf32>
    %697 = math.tanh %696 : vector<4x32xf32>
    %cst_199 = arith.constant 1.000000e+00 : f32
    %698 = vector.broadcast %cst_199 : f32 to vector<4x32xf32>
    %699 = arith.addf %698, %697 : vector<4x32xf32>
    %cst_200 = arith.constant 5.000000e-01 : f32
    %700 = vector.broadcast %cst_200 : f32 to vector<4x32xf32>
    %701 = arith.mulf %700, %699 : vector<4x32xf32>
    %702 = arith.mulf %689, %701 : vector<4x32xf32>
    %703 = arith.truncf %702 : vector<4x32xf32> to vector<4x32xbf16>
    %cst_201 = arith.constant dense<0.000000e+00> : vector<4x96xf32>
    %704 = tpu.matmul %703, %426, %cst_201 {dimension_numbers = #tpu.dot_dimension_numbers<[1], [0], [0], [1], [0, 0, 1, 1], [], []>} : vector<4x32xbf16>, vector<32x96xbf16>, vector<4x96xf32> -> vector<4x96xf32>
    %705 = vector.broadcast %427 : vector<1x96xf32> to vector<4x96xf32>
    %706 = arith.addf %704, %705 : vector<4x96xf32>
    %707 = vector.extract_strided_slice %686 {offsets = [0, 0], sizes = [4, 32], strides = [1, 1]} : vector<4x96xf32> to vector<4x32xf32>
    %708 = vector.extract_strided_slice %706 {offsets = [0, 0], sizes = [4, 32], strides = [1, 1]} : vector<4x96xf32> to vector<4x32xf32>
    %709 = arith.addf %707, %708 : vector<4x32xf32>
    %710 = arith.negf %709 : vector<4x32xf32>
    %711 = math.exp %710 : vector<4x32xf32>
    %cst_202 = arith.constant 1.000000e+00 : f32
    %712 = vector.broadcast %cst_202 : f32 to vector<4x32xf32>
    %713 = arith.addf %712, %711 : vector<4x32xf32>
    %714 = arith.divf %712, %713 : vector<4x32xf32>
    %715 = vector.extract_strided_slice %686 {offsets = [0, 32], sizes = [4, 32], strides = [1, 1]} : vector<4x96xf32> to vector<4x32xf32>
    %716 = vector.extract_strided_slice %706 {offsets = [0, 32], sizes = [4, 32], strides = [1, 1]} : vector<4x96xf32> to vector<4x32xf32>
    %717 = arith.addf %715, %716 : vector<4x32xf32>
    %718 = arith.negf %717 : vector<4x32xf32>
    %719 = math.exp %718 : vector<4x32xf32>
    %cst_203 = arith.constant 1.000000e+00 : f32
    %720 = vector.broadcast %cst_203 : f32 to vector<4x32xf32>
    %721 = arith.addf %720, %719 : vector<4x32xf32>
    %722 = arith.divf %720, %721 : vector<4x32xf32>
    %723 = vector.extract_strided_slice %686 {offsets = [0, 64], sizes = [4, 32], strides = [1, 1]} : vector<4x96xf32> to vector<4x32xf32>
    %724 = vector.extract_strided_slice %706 {offsets = [0, 64], sizes = [4, 32], strides = [1, 1]} : vector<4x96xf32> to vector<4x32xf32>
    %725 = arith.mulf %714, %724 : vector<4x32xf32>
    %726 = arith.addf %723, %725 : vector<4x32xf32>
    %727 = math.tanh %726 : vector<4x32xf32>
    %728 = arith.mulf %722, %702 : vector<4x32xf32>
    %cst_204 = arith.constant 1.000000e+00 : f32
    %729 = vector.broadcast %cst_204 : f32 to vector<4x32xf32>
    %730 = arith.subf %729, %722 : vector<4x32xf32>
    %731 = arith.mulf %730, %727 : vector<4x32xf32>
    %732 = arith.addf %728, %731 : vector<4x32xf32>
    %c4_i32_205 = arith.constant 4 : i32
    %733 = arith.muli %c2_i32_182, %c4_i32_205 : i32
    %734 = tpu.assume_multiple %733, 4 : i32
    %735 = arith.index_cast %734 : i32 to index
    %c0_206 = arith.constant 0 : index
    %736 = vector.load %arg35[%735, %c0_206] : memref<32x32xf32, #tpu.memory_space<vmem>>, vector<4x32xf32>
    tpu.vector_store %arg35[%735, %c0_206], %732 {strides = array<i32>} : memref<32x32xf32, #tpu.memory_space<vmem>>, vector<4x32xf32>,
    %c3_i32_207 = arith.constant 3 : i32
    %c1_i32_208 = arith.constant 1 : i32
    %737 = arith.subi %c3_i32_207, %c1_i32_208 : i32
    %c4_i32_209 = arith.constant 4 : i32
    %738 = arith.muli %737, %c4_i32_209 : i32
    %739 = tpu.assume_multiple %738, 4 : i32
    %740 = arith.index_cast %739 : i32 to index
    %c0_210 = arith.constant 0 : index
    %741 = vector.load %arg34[%740, %c0_210] : memref<32x96xf32, #tpu.memory_space<vmem>>, vector<4x96xf32>
    %742 = arith.truncf %682 : vector<4x32xf32> to vector<4x32xbf16>
    %cst_211 = arith.constant dense<0.000000e+00> : vector<4x32xf32>
    %743 = tpu.matmul %742, %420, %cst_211 {dimension_numbers = #tpu.dot_dimension_numbers<[1], [0], [0], [1], [0, 0, 1, 1], [], []>} : vector<4x32xbf16>, vector<32x32xbf16>, vector<4x32xf32> -> vector<4x32xf32>
    %744 = arith.addf %401, %743 : vector<4x32xf32>
    %745 = arith.mulf %744, %744 : vector<4x32xf32>
    %746 = arith.mulf %744, %745 : vector<4x32xf32>
    %cst_212 = arith.constant 4.471500e-02 : f32
    %747 = vector.broadcast %cst_212 : f32 to vector<4x32xf32>
    %748 = arith.mulf %747, %746 : vector<4x32xf32>
    %749 = arith.addf %744, %748 : vector<4x32xf32>
    %cst_213 = arith.constant 0.797884583 : f32
    %750 = vector.broadcast %cst_213 : f32 to vector<4x32xf32>
    %751 = arith.mulf %750, %749 : vector<4x32xf32>
    %752 = math.tanh %751 : vector<4x32xf32>
    %cst_214 = arith.constant 1.000000e+00 : f32
    %753 = vector.broadcast %cst_214 : f32 to vector<4x32xf32>
    %754 = arith.addf %753, %752 : vector<4x32xf32>
    %cst_215 = arith.constant 5.000000e-01 : f32
    %755 = vector.broadcast %cst_215 : f32 to vector<4x32xf32>
    %756 = arith.mulf %755, %754 : vector<4x32xf32>
    %757 = arith.mulf %744, %756 : vector<4x32xf32>
    %758 = arith.truncf %757 : vector<4x32xf32> to vector<4x32xbf16>
    %cst_216 = arith.constant dense<0.000000e+00> : vector<4x96xf32>
    %759 = tpu.matmul %758, %421, %cst_216 {dimension_numbers = #tpu.dot_dimension_numbers<[1], [0], [0], [1], [0, 0, 1, 1], [], []>} : vector<4x32xbf16>, vector<32x96xbf16>, vector<4x96xf32> -> vector<4x96xf32>
    %760 = vector.broadcast %422 : vector<1x96xf32> to vector<4x96xf32>
    %761 = arith.addf %759, %760 : vector<4x96xf32>
    %762 = vector.extract_strided_slice %741 {offsets = [0, 0], sizes = [4, 32], strides = [1, 1]} : vector<4x96xf32> to vector<4x32xf32>
    %763 = vector.extract_strided_slice %761 {offsets = [0, 0], sizes = [4, 32], strides = [1, 1]} : vector<4x96xf32> to vector<4x32xf32>
    %764 = arith.addf %762, %763 : vector<4x32xf32>
    %765 = arith.negf %764 : vector<4x32xf32>
    %766 = math.exp %765 : vector<4x32xf32>
    %cst_217 = arith.constant 1.000000e+00 : f32
    %767 = vector.broadcast %cst_217 : f32 to vector<4x32xf32>
    %768 = arith.addf %767, %766 : vector<4x32xf32>
    %769 = arith.divf %767, %768 : vector<4x32xf32>
    %770 = vector.extract_strided_slice %741 {offsets = [0, 32], sizes = [4, 32], strides = [1, 1]} : vector<4x96xf32> to vector<4x32xf32>
    %771 = vector.extract_strided_slice %761 {offsets = [0, 32], sizes = [4, 32], strides = [1, 1]} : vector<4x96xf32> to vector<4x32xf32>
    %772 = arith.addf %770, %771 : vector<4x32xf32>
    %773 = arith.negf %772 : vector<4x32xf32>
    %774 = math.exp %773 : vector<4x32xf32>
    %cst_218 = arith.constant 1.000000e+00 : f32
    %775 = vector.broadcast %cst_218 : f32 to vector<4x32xf32>
    %776 = arith.addf %775, %774 : vector<4x32xf32>
    %777 = arith.divf %775, %776 : vector<4x32xf32>
    %778 = vector.extract_strided_slice %741 {offsets = [0, 64], sizes = [4, 32], strides = [1, 1]} : vector<4x96xf32> to vector<4x32xf32>
    %779 = vector.extract_strided_slice %761 {offsets = [0, 64], sizes = [4, 32], strides = [1, 1]} : vector<4x96xf32> to vector<4x32xf32>
    %780 = arith.mulf %769, %779 : vector<4x32xf32>
    %781 = arith.addf %778, %780 : vector<4x32xf32>
    %782 = math.tanh %781 : vector<4x32xf32>
    %783 = arith.mulf %777, %757 : vector<4x32xf32>
    %cst_219 = arith.constant 1.000000e+00 : f32
    %784 = vector.broadcast %cst_219 : f32 to vector<4x32xf32>
    %785 = arith.subf %784, %777 : vector<4x32xf32>
    %786 = arith.mulf %785, %782 : vector<4x32xf32>
    %787 = arith.addf %783, %786 : vector<4x32xf32>
    %788 = arith.truncf %787 : vector<4x32xf32> to vector<4x32xbf16>
    %cst_220 = arith.constant dense<0.000000e+00> : vector<4x96xf32>
    %789 = tpu.matmul %788, %424, %cst_220 {dimension_numbers = #tpu.dot_dimension_numbers<[1], [0], [0], [1], [0, 0, 1, 1], [], []>} : vector<4x32xbf16>, vector<32x96xbf16>, vector<4x96xf32> -> vector<4x96xf32>
    %790 = vector.broadcast %425 : vector<1x96xf32> to vector<4x96xf32>
    %791 = arith.addf %789, %790 : vector<4x96xf32>
    %792 = arith.truncf %732 : vector<4x32xf32> to vector<4x32xbf16>
    %cst_221 = arith.constant dense<0.000000e+00> : vector<4x32xf32>
    %793 = tpu.matmul %792, %423, %cst_221 {dimension_numbers = #tpu.dot_dimension_numbers<[1], [0], [0], [1], [0, 0, 1, 1], [], []>} : vector<4x32xbf16>, vector<32x32xbf16>, vector<4x32xf32> -> vector<4x32xf32>
    %794 = arith.addf %406, %793 : vector<4x32xf32>
    %795 = arith.mulf %794, %794 : vector<4x32xf32>
    %796 = arith.mulf %794, %795 : vector<4x32xf32>
    %cst_222 = arith.constant 4.471500e-02 : f32
    %797 = vector.broadcast %cst_222 : f32 to vector<4x32xf32>
    %798 = arith.mulf %797, %796 : vector<4x32xf32>
    %799 = arith.addf %794, %798 : vector<4x32xf32>
    %cst_223 = arith.constant 0.797884583 : f32
    %800 = vector.broadcast %cst_223 : f32 to vector<4x32xf32>
    %801 = arith.mulf %800, %799 : vector<4x32xf32>
    %802 = math.tanh %801 : vector<4x32xf32>
    %cst_224 = arith.constant 1.000000e+00 : f32
    %803 = vector.broadcast %cst_224 : f32 to vector<4x32xf32>
    %804 = arith.addf %803, %802 : vector<4x32xf32>
    %cst_225 = arith.constant 5.000000e-01 : f32
    %805 = vector.broadcast %cst_225 : f32 to vector<4x32xf32>
    %806 = arith.mulf %805, %804 : vector<4x32xf32>
    %807 = arith.mulf %794, %806 : vector<4x32xf32>
    %808 = arith.truncf %807 : vector<4x32xf32> to vector<4x32xbf16>
    %cst_226 = arith.constant dense<0.000000e+00> : vector<4x96xf32>
    %809 = tpu.matmul %808, %426, %cst_226 {dimension_numbers = #tpu.dot_dimension_numbers<[1], [0], [0], [1], [0, 0, 1, 1], [], []>} : vector<4x32xbf16>, vector<32x96xbf16>, vector<4x96xf32> -> vector<4x96xf32>
    %810 = vector.broadcast %427 : vector<1x96xf32> to vector<4x96xf32>
    %811 = arith.addf %809, %810 : vector<4x96xf32>
    %812 = vector.extract_strided_slice %791 {offsets = [0, 0], sizes = [4, 32], strides = [1, 1]} : vector<4x96xf32> to vector<4x32xf32>
    %813 = vector.extract_strided_slice %811 {offsets = [0, 0], sizes = [4, 32], strides = [1, 1]} : vector<4x96xf32> to vector<4x32xf32>
    %814 = arith.addf %812, %813 : vector<4x32xf32>
    %815 = arith.negf %814 : vector<4x32xf32>
    %816 = math.exp %815 : vector<4x32xf32>
    %cst_227 = arith.constant 1.000000e+00 : f32
    %817 = vector.broadcast %cst_227 : f32 to vector<4x32xf32>
    %818 = arith.addf %817, %816 : vector<4x32xf32>
    %819 = arith.divf %817, %818 : vector<4x32xf32>
    %820 = vector.extract_strided_slice %791 {offsets = [0, 32], sizes = [4, 32], strides = [1, 1]} : vector<4x96xf32> to vector<4x32xf32>
    %821 = vector.extract_strided_slice %811 {offsets = [0, 32], sizes = [4, 32], strides = [1, 1]} : vector<4x96xf32> to vector<4x32xf32>
    %822 = arith.addf %820, %821 : vector<4x32xf32>
    %823 = arith.negf %822 : vector<4x32xf32>
    %824 = math.exp %823 : vector<4x32xf32>
    %cst_228 = arith.constant 1.000000e+00 : f32
    %825 = vector.broadcast %cst_228 : f32 to vector<4x32xf32>
    %826 = arith.addf %825, %824 : vector<4x32xf32>
    %827 = arith.divf %825, %826 : vector<4x32xf32>
    %828 = vector.extract_strided_slice %791 {offsets = [0, 64], sizes = [4, 32], strides = [1, 1]} : vector<4x96xf32> to vector<4x32xf32>
    %829 = vector.extract_strided_slice %811 {offsets = [0, 64], sizes = [4, 32], strides = [1, 1]} : vector<4x96xf32> to vector<4x32xf32>
    %830 = arith.mulf %819, %829 : vector<4x32xf32>
    %831 = arith.addf %828, %830 : vector<4x32xf32>
    %832 = math.tanh %831 : vector<4x32xf32>
    %833 = arith.mulf %827, %807 : vector<4x32xf32>
    %cst_229 = arith.constant 1.000000e+00 : f32
    %834 = vector.broadcast %cst_229 : f32 to vector<4x32xf32>
    %835 = arith.subf %834, %827 : vector<4x32xf32>
    %836 = arith.mulf %835, %832 : vector<4x32xf32>
    %837 = arith.addf %833, %836 : vector<4x32xf32>
    %c4_i32_230 = arith.constant 4 : i32
    %838 = arith.muli %c3_i32_207, %c4_i32_230 : i32
    %839 = tpu.assume_multiple %838, 4 : i32
    %840 = arith.index_cast %839 : i32 to index
    %c0_231 = arith.constant 0 : index
    %841 = vector.load %arg35[%840, %c0_231] : memref<32x32xf32, #tpu.memory_space<vmem>>, vector<4x32xf32>
    tpu.vector_store %arg35[%840, %c0_231], %837 {strides = array<i32>} : memref<32x32xf32, #tpu.memory_space<vmem>>, vector<4x32xf32>,
    %c4_i32_232 = arith.constant 4 : i32
    %c1_i32_233 = arith.constant 1 : i32
    %842 = arith.subi %c4_i32_232, %c1_i32_233 : i32
    %c4_i32_234 = arith.constant 4 : i32
    %843 = arith.muli %842, %c4_i32_234 : i32
    %844 = tpu.assume_multiple %843, 4 : i32
    %845 = arith.index_cast %844 : i32 to index
    %c0_235 = arith.constant 0 : index
    %846 = vector.load %arg34[%845, %c0_235] : memref<32x96xf32, #tpu.memory_space<vmem>>, vector<4x96xf32>
    %847 = arith.truncf %787 : vector<4x32xf32> to vector<4x32xbf16>
    %cst_236 = arith.constant dense<0.000000e+00> : vector<4x32xf32>
    %848 = tpu.matmul %847, %420, %cst_236 {dimension_numbers = #tpu.dot_dimension_numbers<[1], [0], [0], [1], [0, 0, 1, 1], [], []>} : vector<4x32xbf16>, vector<32x32xbf16>, vector<4x32xf32> -> vector<4x32xf32>
    %849 = arith.addf %401, %848 : vector<4x32xf32>
    %850 = arith.mulf %849, %849 : vector<4x32xf32>
    %851 = arith.mulf %849, %850 : vector<4x32xf32>
    %cst_237 = arith.constant 4.471500e-02 : f32
    %852 = vector.broadcast %cst_237 : f32 to vector<4x32xf32>
    %853 = arith.mulf %852, %851 : vector<4x32xf32>
    %854 = arith.addf %849, %853 : vector<4x32xf32>
    %cst_238 = arith.constant 0.797884583 : f32
    %855 = vector.broadcast %cst_238 : f32 to vector<4x32xf32>
    %856 = arith.mulf %855, %854 : vector<4x32xf32>
    %857 = math.tanh %856 : vector<4x32xf32>
    %cst_239 = arith.constant 1.000000e+00 : f32
    %858 = vector.broadcast %cst_239 : f32 to vector<4x32xf32>
    %859 = arith.addf %858, %857 : vector<4x32xf32>
    %cst_240 = arith.constant 5.000000e-01 : f32
    %860 = vector.broadcast %cst_240 : f32 to vector<4x32xf32>
    %861 = arith.mulf %860, %859 : vector<4x32xf32>
    %862 = arith.mulf %849, %861 : vector<4x32xf32>
    %863 = arith.truncf %862 : vector<4x32xf32> to vector<4x32xbf16>
    %cst_241 = arith.constant dense<0.000000e+00> : vector<4x96xf32>
    %864 = tpu.matmul %863, %421, %cst_241 {dimension_numbers = #tpu.dot_dimension_numbers<[1], [0], [0], [1], [0, 0, 1, 1], [], []>} : vector<4x32xbf16>, vector<32x96xbf16>, vector<4x96xf32> -> vector<4x96xf32>
    %865 = vector.broadcast %422 : vector<1x96xf32> to vector<4x96xf32>
    %866 = arith.addf %864, %865 : vector<4x96xf32>
    %867 = vector.extract_strided_slice %846 {offsets = [0, 0], sizes = [4, 32], strides = [1, 1]} : vector<4x96xf32> to vector<4x32xf32>
    %868 = vector.extract_strided_slice %866 {offsets = [0, 0], sizes = [4, 32], strides = [1, 1]} : vector<4x96xf32> to vector<4x32xf32>
    %869 = arith.addf %867, %868 : vector<4x32xf32>
    %870 = arith.negf %869 : vector<4x32xf32>
    %871 = math.exp %870 : vector<4x32xf32>
    %cst_242 = arith.constant 1.000000e+00 : f32
    %872 = vector.broadcast %cst_242 : f32 to vector<4x32xf32>
    %873 = arith.addf %872, %871 : vector<4x32xf32>
    %874 = arith.divf %872, %873 : vector<4x32xf32>
    %875 = vector.extract_strided_slice %846 {offsets = [0, 32], sizes = [4, 32], strides = [1, 1]} : vector<4x96xf32> to vector<4x32xf32>
    %876 = vector.extract_strided_slice %866 {offsets = [0, 32], sizes = [4, 32], strides = [1, 1]} : vector<4x96xf32> to vector<4x32xf32>
    %877 = arith.addf %875, %876 : vector<4x32xf32>
    %878 = arith.negf %877 : vector<4x32xf32>
    %879 = math.exp %878 : vector<4x32xf32>
    %cst_243 = arith.constant 1.000000e+00 : f32
    %880 = vector.broadcast %cst_243 : f32 to vector<4x32xf32>
    %881 = arith.addf %880, %879 : vector<4x32xf32>
    %882 = arith.divf %880, %881 : vector<4x32xf32>
    %883 = vector.extract_strided_slice %846 {offsets = [0, 64], sizes = [4, 32], strides = [1, 1]} : vector<4x96xf32> to vector<4x32xf32>
    %884 = vector.extract_strided_slice %866 {offsets = [0, 64], sizes = [4, 32], strides = [1, 1]} : vector<4x96xf32> to vector<4x32xf32>
    %885 = arith.mulf %874, %884 : vector<4x32xf32>
    %886 = arith.addf %883, %885 : vector<4x32xf32>
    %887 = math.tanh %886 : vector<4x32xf32>
    %888 = arith.mulf %882, %862 : vector<4x32xf32>
    %cst_244 = arith.constant 1.000000e+00 : f32
    %889 = vector.broadcast %cst_244 : f32 to vector<4x32xf32>
    %890 = arith.subf %889, %882 : vector<4x32xf32>
    %891 = arith.mulf %890, %887 : vector<4x32xf32>
    %892 = arith.addf %888, %891 : vector<4x32xf32>
    %893 = arith.truncf %892 : vector<4x32xf32> to vector<4x32xbf16>
    %cst_245 = arith.constant dense<0.000000e+00> : vector<4x96xf32>
    %894 = tpu.matmul %893, %424, %cst_245 {dimension_numbers = #tpu.dot_dimension_numbers<[1], [0], [0], [1], [0, 0, 1, 1], [], []>} : vector<4x32xbf16>, vector<32x96xbf16>, vector<4x96xf32> -> vector<4x96xf32>
    %895 = vector.broadcast %425 : vector<1x96xf32> to vector<4x96xf32>
    %896 = arith.addf %894, %895 : vector<4x96xf32>
    %897 = arith.truncf %837 : vector<4x32xf32> to vector<4x32xbf16>
    %cst_246 = arith.constant dense<0.000000e+00> : vector<4x32xf32>
    %898 = tpu.matmul %897, %423, %cst_246 {dimension_numbers = #tpu.dot_dimension_numbers<[1], [0], [0], [1], [0, 0, 1, 1], [], []>} : vector<4x32xbf16>, vector<32x32xbf16>, vector<4x32xf32> -> vector<4x32xf32>
    %899 = arith.addf %406, %898 : vector<4x32xf32>
    %900 = arith.mulf %899, %899 : vector<4x32xf32>
    %901 = arith.mulf %899, %900 : vector<4x32xf32>
    %cst_247 = arith.constant 4.471500e-02 : f32
    %902 = vector.broadcast %cst_247 : f32 to vector<4x32xf32>
    %903 = arith.mulf %902, %901 : vector<4x32xf32>
    %904 = arith.addf %899, %903 : vector<4x32xf32>
    %cst_248 = arith.constant 0.797884583 : f32
    %905 = vector.broadcast %cst_248 : f32 to vector<4x32xf32>
    %906 = arith.mulf %905, %904 : vector<4x32xf32>
    %907 = math.tanh %906 : vector<4x32xf32>
    %cst_249 = arith.constant 1.000000e+00 : f32
    %908 = vector.broadcast %cst_249 : f32 to vector<4x32xf32>
    %909 = arith.addf %908, %907 : vector<4x32xf32>
    %cst_250 = arith.constant 5.000000e-01 : f32
    %910 = vector.broadcast %cst_250 : f32 to vector<4x32xf32>
    %911 = arith.mulf %910, %909 : vector<4x32xf32>
    %912 = arith.mulf %899, %911 : vector<4x32xf32>
    %913 = arith.truncf %912 : vector<4x32xf32> to vector<4x32xbf16>
    %cst_251 = arith.constant dense<0.000000e+00> : vector<4x96xf32>
    %914 = tpu.matmul %913, %426, %cst_251 {dimension_numbers = #tpu.dot_dimension_numbers<[1], [0], [0], [1], [0, 0, 1, 1], [], []>} : vector<4x32xbf16>, vector<32x96xbf16>, vector<4x96xf32> -> vector<4x96xf32>
    %915 = vector.broadcast %427 : vector<1x96xf32> to vector<4x96xf32>
    %916 = arith.addf %914, %915 : vector<4x96xf32>
    %917 = vector.extract_strided_slice %896 {offsets = [0, 0], sizes = [4, 32], strides = [1, 1]} : vector<4x96xf32> to vector<4x32xf32>
    %918 = vector.extract_strided_slice %916 {offsets = [0, 0], sizes = [4, 32], strides = [1, 1]} : vector<4x96xf32> to vector<4x32xf32>
    %919 = arith.addf %917, %918 : vector<4x32xf32>
    %920 = arith.negf %919 : vector<4x32xf32>
    %921 = math.exp %920 : vector<4x32xf32>
    %cst_252 = arith.constant 1.000000e+00 : f32
    %922 = vector.broadcast %cst_252 : f32 to vector<4x32xf32>
    %923 = arith.addf %922, %921 : vector<4x32xf32>
    %924 = arith.divf %922, %923 : vector<4x32xf32>
    %925 = vector.extract_strided_slice %896 {offsets = [0, 32], sizes = [4, 32], strides = [1, 1]} : vector<4x96xf32> to vector<4x32xf32>
    %926 = vector.extract_strided_slice %916 {offsets = [0, 32], sizes = [4, 32], strides = [1, 1]} : vector<4x96xf32> to vector<4x32xf32>
    %927 = arith.addf %925, %926 : vector<4x32xf32>
    %928 = arith.negf %927 : vector<4x32xf32>
    %929 = math.exp %928 : vector<4x32xf32>
    %cst_253 = arith.constant 1.000000e+00 : f32
    %930 = vector.broadcast %cst_253 : f32 to vector<4x32xf32>
    %931 = arith.addf %930, %929 : vector<4x32xf32>
    %932 = arith.divf %930, %931 : vector<4x32xf32>
    %933 = vector.extract_strided_slice %896 {offsets = [0, 64], sizes = [4, 32], strides = [1, 1]} : vector<4x96xf32> to vector<4x32xf32>
    %934 = vector.extract_strided_slice %916 {offsets = [0, 64], sizes = [4, 32], strides = [1, 1]} : vector<4x96xf32> to vector<4x32xf32>
    %935 = arith.mulf %924, %934 : vector<4x32xf32>
    %936 = arith.addf %933, %935 : vector<4x32xf32>
    %937 = math.tanh %936 : vector<4x32xf32>
    %938 = arith.mulf %932, %912 : vector<4x32xf32>
    %cst_254 = arith.constant 1.000000e+00 : f32
    %939 = vector.broadcast %cst_254 : f32 to vector<4x32xf32>
    %940 = arith.subf %939, %932 : vector<4x32xf32>
    %941 = arith.mulf %940, %937 : vector<4x32xf32>
    %942 = arith.addf %938, %941 : vector<4x32xf32>
    %c4_i32_255 = arith.constant 4 : i32
    %943 = arith.muli %c4_i32_232, %c4_i32_255 : i32
    %944 = tpu.assume_multiple %943, 4 : i32
    %945 = arith.index_cast %944 : i32 to index
    %c0_256 = arith.constant 0 : index
    %946 = vector.load %arg35[%945, %c0_256] : memref<32x32xf32, #tpu.memory_space<vmem>>, vector<4x32xf32>
    tpu.vector_store %arg35[%945, %c0_256], %942 {strides = array<i32>} : memref<32x32xf32, #tpu.memory_space<vmem>>, vector<4x32xf32>,
    %c5_i32_257 = arith.constant 5 : i32
    %c1_i32_258 = arith.constant 1 : i32
    %947 = arith.subi %c5_i32_257, %c1_i32_258 : i32
    %c4_i32_259 = arith.constant 4 : i32
    %948 = arith.muli %947, %c4_i32_259 : i32
    %949 = tpu.assume_multiple %948, 4 : i32
    %950 = arith.index_cast %949 : i32 to index
    %c0_260 = arith.constant 0 : index
    %951 = vector.load %arg34[%950, %c0_260] : memref<32x96xf32, #tpu.memory_space<vmem>>, vector<4x96xf32>
    %952 = arith.truncf %892 : vector<4x32xf32> to vector<4x32xbf16>
    %cst_261 = arith.constant dense<0.000000e+00> : vector<4x32xf32>
    %953 = tpu.matmul %952, %420, %cst_261 {dimension_numbers = #tpu.dot_dimension_numbers<[1], [0], [0], [1], [0, 0, 1, 1], [], []>} : vector<4x32xbf16>, vector<32x32xbf16>, vector<4x32xf32> -> vector<4x32xf32>
    %954 = arith.addf %401, %953 : vector<4x32xf32>
    %955 = arith.mulf %954, %954 : vector<4x32xf32>
    %956 = arith.mulf %954, %955 : vector<4x32xf32>
    %cst_262 = arith.constant 4.471500e-02 : f32
    %957 = vector.broadcast %cst_262 : f32 to vector<4x32xf32>
    %958 = arith.mulf %957, %956 : vector<4x32xf32>
    %959 = arith.addf %954, %958 : vector<4x32xf32>
    %cst_263 = arith.constant 0.797884583 : f32
    %960 = vector.broadcast %cst_263 : f32 to vector<4x32xf32>
    %961 = arith.mulf %960, %959 : vector<4x32xf32>
    %962 = math.tanh %961 : vector<4x32xf32>
    %cst_264 = arith.constant 1.000000e+00 : f32
    %963 = vector.broadcast %cst_264 : f32 to vector<4x32xf32>
    %964 = arith.addf %963, %962 : vector<4x32xf32>
    %cst_265 = arith.constant 5.000000e-01 : f32
    %965 = vector.broadcast %cst_265 : f32 to vector<4x32xf32>
    %966 = arith.mulf %965, %964 : vector<4x32xf32>
    %967 = arith.mulf %954, %966 : vector<4x32xf32>
    %968 = arith.truncf %967 : vector<4x32xf32> to vector<4x32xbf16>
    %cst_266 = arith.constant dense<0.000000e+00> : vector<4x96xf32>
    %969 = tpu.matmul %968, %421, %cst_266 {dimension_numbers = #tpu.dot_dimension_numbers<[1], [0], [0], [1], [0, 0, 1, 1], [], []>} : vector<4x32xbf16>, vector<32x96xbf16>, vector<4x96xf32> -> vector<4x96xf32>
    %970 = vector.broadcast %422 : vector<1x96xf32> to vector<4x96xf32>
    %971 = arith.addf %969, %970 : vector<4x96xf32>
    %972 = vector.extract_strided_slice %951 {offsets = [0, 0], sizes = [4, 32], strides = [1, 1]} : vector<4x96xf32> to vector<4x32xf32>
    %973 = vector.extract_strided_slice %971 {offsets = [0, 0], sizes = [4, 32], strides = [1, 1]} : vector<4x96xf32> to vector<4x32xf32>
    %974 = arith.addf %972, %973 : vector<4x32xf32>
    %975 = arith.negf %974 : vector<4x32xf32>
    %976 = math.exp %975 : vector<4x32xf32>
    %cst_267 = arith.constant 1.000000e+00 : f32
    %977 = vector.broadcast %cst_267 : f32 to vector<4x32xf32>
    %978 = arith.addf %977, %976 : vector<4x32xf32>
    %979 = arith.divf %977, %978 : vector<4x32xf32>
    %980 = vector.extract_strided_slice %951 {offsets = [0, 32], sizes = [4, 32], strides = [1, 1]} : vector<4x96xf32> to vector<4x32xf32>
    %981 = vector.extract_strided_slice %971 {offsets = [0, 32], sizes = [4, 32], strides = [1, 1]} : vector<4x96xf32> to vector<4x32xf32>
    %982 = arith.addf %980, %981 : vector<4x32xf32>
    %983 = arith.negf %982 : vector<4x32xf32>
    %984 = math.exp %983 : vector<4x32xf32>
    %cst_268 = arith.constant 1.000000e+00 : f32
    %985 = vector.broadcast %cst_268 : f32 to vector<4x32xf32>
    %986 = arith.addf %985, %984 : vector<4x32xf32>
    %987 = arith.divf %985, %986 : vector<4x32xf32>
    %988 = vector.extract_strided_slice %951 {offsets = [0, 64], sizes = [4, 32], strides = [1, 1]} : vector<4x96xf32> to vector<4x32xf32>
    %989 = vector.extract_strided_slice %971 {offsets = [0, 64], sizes = [4, 32], strides = [1, 1]} : vector<4x96xf32> to vector<4x32xf32>
    %990 = arith.mulf %979, %989 : vector<4x32xf32>
    %991 = arith.addf %988, %990 : vector<4x32xf32>
    %992 = math.tanh %991 : vector<4x32xf32>
    %993 = arith.mulf %987, %967 : vector<4x32xf32>
    %cst_269 = arith.constant 1.000000e+00 : f32
    %994 = vector.broadcast %cst_269 : f32 to vector<4x32xf32>
    %995 = arith.subf %994, %987 : vector<4x32xf32>
    %996 = arith.mulf %995, %992 : vector<4x32xf32>
    %997 = arith.addf %993, %996 : vector<4x32xf32>
    %998 = arith.truncf %997 : vector<4x32xf32> to vector<4x32xbf16>
    %cst_270 = arith.constant dense<0.000000e+00> : vector<4x96xf32>
    %999 = tpu.matmul %998, %424, %cst_270 {dimension_numbers = #tpu.dot_dimension_numbers<[1], [0], [0], [1], [0, 0, 1, 1], [], []>} : vector<4x32xbf16>, vector<32x96xbf16>, vector<4x96xf32> -> vector<4x96xf32>
    %1000 = vector.broadcast %425 : vector<1x96xf32> to vector<4x96xf32>
    %1001 = arith.addf %999, %1000 : vector<4x96xf32>
    %1002 = arith.truncf %942 : vector<4x32xf32> to vector<4x32xbf16>
    %cst_271 = arith.constant dense<0.000000e+00> : vector<4x32xf32>
    %1003 = tpu.matmul %1002, %423, %cst_271 {dimension_numbers = #tpu.dot_dimension_numbers<[1], [0], [0], [1], [0, 0, 1, 1], [], []>} : vector<4x32xbf16>, vector<32x32xbf16>, vector<4x32xf32> -> vector<4x32xf32>
    %1004 = arith.addf %406, %1003 : vector<4x32xf32>
    %1005 = arith.mulf %1004, %1004 : vector<4x32xf32>
    %1006 = arith.mulf %1004, %1005 : vector<4x32xf32>
    %cst_272 = arith.constant 4.471500e-02 : f32
    %1007 = vector.broadcast %cst_272 : f32 to vector<4x32xf32>
    %1008 = arith.mulf %1007, %1006 : vector<4x32xf32>
    %1009 = arith.addf %1004, %1008 : vector<4x32xf32>
    %cst_273 = arith.constant 0.797884583 : f32
    %1010 = vector.broadcast %cst_273 : f32 to vector<4x32xf32>
    %1011 = arith.mulf %1010, %1009 : vector<4x32xf32>
    %1012 = math.tanh %1011 : vector<4x32xf32>
    %cst_274 = arith.constant 1.000000e+00 : f32
    %1013 = vector.broadcast %cst_274 : f32 to vector<4x32xf32>
    %1014 = arith.addf %1013, %1012 : vector<4x32xf32>
    %cst_275 = arith.constant 5.000000e-01 : f32
    %1015 = vector.broadcast %cst_275 : f32 to vector<4x32xf32>
    %1016 = arith.mulf %1015, %1014 : vector<4x32xf32>
    %1017 = arith.mulf %1004, %1016 : vector<4x32xf32>
    %1018 = arith.truncf %1017 : vector<4x32xf32> to vector<4x32xbf16>
    %cst_276 = arith.constant dense<0.000000e+00> : vector<4x96xf32>
    %1019 = tpu.matmul %1018, %426, %cst_276 {dimension_numbers = #tpu.dot_dimension_numbers<[1], [0], [0], [1], [0, 0, 1, 1], [], []>} : vector<4x32xbf16>, vector<32x96xbf16>, vector<4x96xf32> -> vector<4x96xf32>
    %1020 = vector.broadcast %427 : vector<1x96xf32> to vector<4x96xf32>
    %1021 = arith.addf %1019, %1020 : vector<4x96xf32>
    %1022 = vector.extract_strided_slice %1001 {offsets = [0, 0], sizes = [4, 32], strides = [1, 1]} : vector<4x96xf32> to vector<4x32xf32>
    %1023 = vector.extract_strided_slice %1021 {offsets = [0, 0], sizes = [4, 32], strides = [1, 1]} : vector<4x96xf32> to vector<4x32xf32>
    %1024 = arith.addf %1022, %1023 : vector<4x32xf32>
    %1025 = arith.negf %1024 : vector<4x32xf32>
    %1026 = math.exp %1025 : vector<4x32xf32>
    %cst_277 = arith.constant 1.000000e+00 : f32
    %1027 = vector.broadcast %cst_277 : f32 to vector<4x32xf32>
    %1028 = arith.addf %1027, %1026 : vector<4x32xf32>
    %1029 = arith.divf %1027, %1028 : vector<4x32xf32>
    %1030 = vector.extract_strided_slice %1001 {offsets = [0, 32], sizes = [4, 32], strides = [1, 1]} : vector<4x96xf32> to vector<4x32xf32>
    %1031 = vector.extract_strided_slice %1021 {offsets = [0, 32], sizes = [4, 32], strides = [1, 1]} : vector<4x96xf32> to vector<4x32xf32>
    %1032 = arith.addf %1030, %1031 : vector<4x32xf32>
    %1033 = arith.negf %1032 : vector<4x32xf32>
    %1034 = math.exp %1033 : vector<4x32xf32>
    %cst_278 = arith.constant 1.000000e+00 : f32
    %1035 = vector.broadcast %cst_278 : f32 to vector<4x32xf32>
    %1036 = arith.addf %1035, %1034 : vector<4x32xf32>
    %1037 = arith.divf %1035, %1036 : vector<4x32xf32>
    %1038 = vector.extract_strided_slice %1001 {offsets = [0, 64], sizes = [4, 32], strides = [1, 1]} : vector<4x96xf32> to vector<4x32xf32>
    %1039 = vector.extract_strided_slice %1021 {offsets = [0, 64], sizes = [4, 32], strides = [1, 1]} : vector<4x96xf32> to vector<4x32xf32>
    %1040 = arith.mulf %1029, %1039 : vector<4x32xf32>
    %1041 = arith.addf %1038, %1040 : vector<4x32xf32>
    %1042 = math.tanh %1041 : vector<4x32xf32>
    %1043 = arith.mulf %1037, %1017 : vector<4x32xf32>
    %cst_279 = arith.constant 1.000000e+00 : f32
    %1044 = vector.broadcast %cst_279 : f32 to vector<4x32xf32>
    %1045 = arith.subf %1044, %1037 : vector<4x32xf32>
    %1046 = arith.mulf %1045, %1042 : vector<4x32xf32>
    %1047 = arith.addf %1043, %1046 : vector<4x32xf32>
    %c4_i32_280 = arith.constant 4 : i32
    %1048 = arith.muli %c5_i32_257, %c4_i32_280 : i32
    %1049 = tpu.assume_multiple %1048, 4 : i32
    %1050 = arith.index_cast %1049 : i32 to index
    %c0_281 = arith.constant 0 : index
    %1051 = vector.load %arg35[%1050, %c0_281] : memref<32x32xf32, #tpu.memory_space<vmem>>, vector<4x32xf32>
    tpu.vector_store %arg35[%1050, %c0_281], %1047 {strides = array<i32>} : memref<32x32xf32, #tpu.memory_space<vmem>>, vector<4x32xf32>,
    %c6_i32_282 = arith.constant 6 : i32
    %c1_i32_283 = arith.constant 1 : i32
    %1052 = arith.subi %c6_i32_282, %c1_i32_283 : i32
    %c4_i32_284 = arith.constant 4 : i32
    %1053 = arith.muli %1052, %c4_i32_284 : i32
    %1054 = tpu.assume_multiple %1053, 4 : i32
    %1055 = arith.index_cast %1054 : i32 to index
    %c0_285 = arith.constant 0 : index
    %1056 = vector.load %arg34[%1055, %c0_285] : memref<32x96xf32, #tpu.memory_space<vmem>>, vector<4x96xf32>
    %1057 = arith.truncf %997 : vector<4x32xf32> to vector<4x32xbf16>
    %cst_286 = arith.constant dense<0.000000e+00> : vector<4x32xf32>
    %1058 = tpu.matmul %1057, %420, %cst_286 {dimension_numbers = #tpu.dot_dimension_numbers<[1], [0], [0], [1], [0, 0, 1, 1], [], []>} : vector<4x32xbf16>, vector<32x32xbf16>, vector<4x32xf32> -> vector<4x32xf32>
    %1059 = arith.addf %401, %1058 : vector<4x32xf32>
    %1060 = arith.mulf %1059, %1059 : vector<4x32xf32>
    %1061 = arith.mulf %1059, %1060 : vector<4x32xf32>
    %cst_287 = arith.constant 4.471500e-02 : f32
    %1062 = vector.broadcast %cst_287 : f32 to vector<4x32xf32>
    %1063 = arith.mulf %1062, %1061 : vector<4x32xf32>
    %1064 = arith.addf %1059, %1063 : vector<4x32xf32>
    %cst_288 = arith.constant 0.797884583 : f32
    %1065 = vector.broadcast %cst_288 : f32 to vector<4x32xf32>
    %1066 = arith.mulf %1065, %1064 : vector<4x32xf32>
    %1067 = math.tanh %1066 : vector<4x32xf32>
    %cst_289 = arith.constant 1.000000e+00 : f32
    %1068 = vector.broadcast %cst_289 : f32 to vector<4x32xf32>
    %1069 = arith.addf %1068, %1067 : vector<4x32xf32>
    %cst_290 = arith.constant 5.000000e-01 : f32
    %1070 = vector.broadcast %cst_290 : f32 to vector<4x32xf32>
    %1071 = arith.mulf %1070, %1069 : vector<4x32xf32>
    %1072 = arith.mulf %1059, %1071 : vector<4x32xf32>
    %1073 = arith.truncf %1072 : vector<4x32xf32> to vector<4x32xbf16>
    %cst_291 = arith.constant dense<0.000000e+00> : vector<4x96xf32>
    %1074 = tpu.matmul %1073, %421, %cst_291 {dimension_numbers = #tpu.dot_dimension_numbers<[1], [0], [0], [1], [0, 0, 1, 1], [], []>} : vector<4x32xbf16>, vector<32x96xbf16>, vector<4x96xf32> -> vector<4x96xf32>
    %1075 = vector.broadcast %422 : vector<1x96xf32> to vector<4x96xf32>
    %1076 = arith.addf %1074, %1075 : vector<4x96xf32>
    %1077 = vector.extract_strided_slice %1056 {offsets = [0, 0], sizes = [4, 32], strides = [1, 1]} : vector<4x96xf32> to vector<4x32xf32>
    %1078 = vector.extract_strided_slice %1076 {offsets = [0, 0], sizes = [4, 32], strides = [1, 1]} : vector<4x96xf32> to vector<4x32xf32>
    %1079 = arith.addf %1077, %1078 : vector<4x32xf32>
    %1080 = arith.negf %1079 : vector<4x32xf32>
    %1081 = math.exp %1080 : vector<4x32xf32>
    %cst_292 = arith.constant 1.000000e+00 : f32
    %1082 = vector.broadcast %cst_292 : f32 to vector<4x32xf32>
    %1083 = arith.addf %1082, %1081 : vector<4x32xf32>
    %1084 = arith.divf %1082, %1083 : vector<4x32xf32>
    %1085 = vector.extract_strided_slice %1056 {offsets = [0, 32], sizes = [4, 32], strides = [1, 1]} : vector<4x96xf32> to vector<4x32xf32>
    %1086 = vector.extract_strided_slice %1076 {offsets = [0, 32], sizes = [4, 32], strides = [1, 1]} : vector<4x96xf32> to vector<4x32xf32>
    %1087 = arith.addf %1085, %1086 : vector<4x32xf32>
    %1088 = arith.negf %1087 : vector<4x32xf32>
    %1089 = math.exp %1088 : vector<4x32xf32>
    %cst_293 = arith.constant 1.000000e+00 : f32
    %1090 = vector.broadcast %cst_293 : f32 to vector<4x32xf32>
    %1091 = arith.addf %1090, %1089 : vector<4x32xf32>
    %1092 = arith.divf %1090, %1091 : vector<4x32xf32>
    %1093 = vector.extract_strided_slice %1056 {offsets = [0, 64], sizes = [4, 32], strides = [1, 1]} : vector<4x96xf32> to vector<4x32xf32>
    %1094 = vector.extract_strided_slice %1076 {offsets = [0, 64], sizes = [4, 32], strides = [1, 1]} : vector<4x96xf32> to vector<4x32xf32>
    %1095 = arith.mulf %1084, %1094 : vector<4x32xf32>
    %1096 = arith.addf %1093, %1095 : vector<4x32xf32>
    %1097 = math.tanh %1096 : vector<4x32xf32>
    %1098 = arith.mulf %1092, %1072 : vector<4x32xf32>
    %cst_294 = arith.constant 1.000000e+00 : f32
    %1099 = vector.broadcast %cst_294 : f32 to vector<4x32xf32>
    %1100 = arith.subf %1099, %1092 : vector<4x32xf32>
    %1101 = arith.mulf %1100, %1097 : vector<4x32xf32>
    %1102 = arith.addf %1098, %1101 : vector<4x32xf32>
    %1103 = arith.truncf %1102 : vector<4x32xf32> to vector<4x32xbf16>
    %cst_295 = arith.constant dense<0.000000e+00> : vector<4x96xf32>
    %1104 = tpu.matmul %1103, %424, %cst_295 {dimension_numbers = #tpu.dot_dimension_numbers<[1], [0], [0], [1], [0, 0, 1, 1], [], []>} : vector<4x32xbf16>, vector<32x96xbf16>, vector<4x96xf32> -> vector<4x96xf32>
    %1105 = vector.broadcast %425 : vector<1x96xf32> to vector<4x96xf32>
    %1106 = arith.addf %1104, %1105 : vector<4x96xf32>
    %1107 = arith.truncf %1047 : vector<4x32xf32> to vector<4x32xbf16>
    %cst_296 = arith.constant dense<0.000000e+00> : vector<4x32xf32>
    %1108 = tpu.matmul %1107, %423, %cst_296 {dimension_numbers = #tpu.dot_dimension_numbers<[1], [0], [0], [1], [0, 0, 1, 1], [], []>} : vector<4x32xbf16>, vector<32x32xbf16>, vector<4x32xf32> -> vector<4x32xf32>
    %1109 = arith.addf %406, %1108 : vector<4x32xf32>
    %1110 = arith.mulf %1109, %1109 : vector<4x32xf32>
    %1111 = arith.mulf %1109, %1110 : vector<4x32xf32>
    %cst_297 = arith.constant 4.471500e-02 : f32
    %1112 = vector.broadcast %cst_297 : f32 to vector<4x32xf32>
    %1113 = arith.mulf %1112, %1111 : vector<4x32xf32>
    %1114 = arith.addf %1109, %1113 : vector<4x32xf32>
    %cst_298 = arith.constant 0.797884583 : f32
    %1115 = vector.broadcast %cst_298 : f32 to vector<4x32xf32>
    %1116 = arith.mulf %1115, %1114 : vector<4x32xf32>
    %1117 = math.tanh %1116 : vector<4x32xf32>
    %cst_299 = arith.constant 1.000000e+00 : f32
    %1118 = vector.broadcast %cst_299 : f32 to vector<4x32xf32>
    %1119 = arith.addf %1118, %1117 : vector<4x32xf32>
    %cst_300 = arith.constant 5.000000e-01 : f32
    %1120 = vector.broadcast %cst_300 : f32 to vector<4x32xf32>
    %1121 = arith.mulf %1120, %1119 : vector<4x32xf32>
    %1122 = arith.mulf %1109, %1121 : vector<4x32xf32>
    %1123 = arith.truncf %1122 : vector<4x32xf32> to vector<4x32xbf16>
    %cst_301 = arith.constant dense<0.000000e+00> : vector<4x96xf32>
    %1124 = tpu.matmul %1123, %426, %cst_301 {dimension_numbers = #tpu.dot_dimension_numbers<[1], [0], [0], [1], [0, 0, 1, 1], [], []>} : vector<4x32xbf16>, vector<32x96xbf16>, vector<4x96xf32> -> vector<4x96xf32>
    %1125 = vector.broadcast %427 : vector<1x96xf32> to vector<4x96xf32>
    %1126 = arith.addf %1124, %1125 : vector<4x96xf32>
    %1127 = vector.extract_strided_slice %1106 {offsets = [0, 0], sizes = [4, 32], strides = [1, 1]} : vector<4x96xf32> to vector<4x32xf32>
    %1128 = vector.extract_strided_slice %1126 {offsets = [0, 0], sizes = [4, 32], strides = [1, 1]} : vector<4x96xf32> to vector<4x32xf32>
    %1129 = arith.addf %1127, %1128 : vector<4x32xf32>
    %1130 = arith.negf %1129 : vector<4x32xf32>
    %1131 = math.exp %1130 : vector<4x32xf32>
    %cst_302 = arith.constant 1.000000e+00 : f32
    %1132 = vector.broadcast %cst_302 : f32 to vector<4x32xf32>
    %1133 = arith.addf %1132, %1131 : vector<4x32xf32>
    %1134 = arith.divf %1132, %1133 : vector<4x32xf32>
    %1135 = vector.extract_strided_slice %1106 {offsets = [0, 32], sizes = [4, 32], strides = [1, 1]} : vector<4x96xf32> to vector<4x32xf32>
    %1136 = vector.extract_strided_slice %1126 {offsets = [0, 32], sizes = [4, 32], strides = [1, 1]} : vector<4x96xf32> to vector<4x32xf32>
    %1137 = arith.addf %1135, %1136 : vector<4x32xf32>
    %1138 = arith.negf %1137 : vector<4x32xf32>
    %1139 = math.exp %1138 : vector<4x32xf32>
    %cst_303 = arith.constant 1.000000e+00 : f32
    %1140 = vector.broadcast %cst_303 : f32 to vector<4x32xf32>
    %1141 = arith.addf %1140, %1139 : vector<4x32xf32>
    %1142 = arith.divf %1140, %1141 : vector<4x32xf32>
    %1143 = vector.extract_strided_slice %1106 {offsets = [0, 64], sizes = [4, 32], strides = [1, 1]} : vector<4x96xf32> to vector<4x32xf32>
    %1144 = vector.extract_strided_slice %1126 {offsets = [0, 64], sizes = [4, 32], strides = [1, 1]} : vector<4x96xf32> to vector<4x32xf32>
    %1145 = arith.mulf %1134, %1144 : vector<4x32xf32>
    %1146 = arith.addf %1143, %1145 : vector<4x32xf32>
    %1147 = math.tanh %1146 : vector<4x32xf32>
    %1148 = arith.mulf %1142, %1122 : vector<4x32xf32>
    %cst_304 = arith.constant 1.000000e+00 : f32
    %1149 = vector.broadcast %cst_304 : f32 to vector<4x32xf32>
    %1150 = arith.subf %1149, %1142 : vector<4x32xf32>
    %1151 = arith.mulf %1150, %1147 : vector<4x32xf32>
    %1152 = arith.addf %1148, %1151 : vector<4x32xf32>
    %c4_i32_305 = arith.constant 4 : i32
    %1153 = arith.muli %c6_i32_282, %c4_i32_305 : i32
    %1154 = tpu.assume_multiple %1153, 4 : i32
    %1155 = arith.index_cast %1154 : i32 to index
    %c0_306 = arith.constant 0 : index
    %1156 = vector.load %arg35[%1155, %c0_306] : memref<32x32xf32, #tpu.memory_space<vmem>>, vector<4x32xf32>
    tpu.vector_store %arg35[%1155, %c0_306], %1152 {strides = array<i32>} : memref<32x32xf32, #tpu.memory_space<vmem>>, vector<4x32xf32>,
    %c7_i32_307 = arith.constant 7 : i32
    %c1_i32_308 = arith.constant 1 : i32
    %1157 = arith.subi %c7_i32_307, %c1_i32_308 : i32
    %c4_i32_309 = arith.constant 4 : i32
    %1158 = arith.muli %1157, %c4_i32_309 : i32
    %1159 = tpu.assume_multiple %1158, 4 : i32
    %1160 = arith.index_cast %1159 : i32 to index
    %c0_310 = arith.constant 0 : index
    %1161 = vector.load %arg34[%1160, %c0_310] : memref<32x96xf32, #tpu.memory_space<vmem>>, vector<4x96xf32>
    %1162 = arith.truncf %1102 : vector<4x32xf32> to vector<4x32xbf16>
    %cst_311 = arith.constant dense<0.000000e+00> : vector<4x32xf32>
    %1163 = tpu.matmul %1162, %420, %cst_311 {dimension_numbers = #tpu.dot_dimension_numbers<[1], [0], [0], [1], [0, 0, 1, 1], [], []>} : vector<4x32xbf16>, vector<32x32xbf16>, vector<4x32xf32> -> vector<4x32xf32>
    %1164 = arith.addf %401, %1163 : vector<4x32xf32>
    %1165 = arith.mulf %1164, %1164 : vector<4x32xf32>
    %1166 = arith.mulf %1164, %1165 : vector<4x32xf32>
    %cst_312 = arith.constant 4.471500e-02 : f32
    %1167 = vector.broadcast %cst_312 : f32 to vector<4x32xf32>
    %1168 = arith.mulf %1167, %1166 : vector<4x32xf32>
    %1169 = arith.addf %1164, %1168 : vector<4x32xf32>
    %cst_313 = arith.constant 0.797884583 : f32
    %1170 = vector.broadcast %cst_313 : f32 to vector<4x32xf32>
    %1171 = arith.mulf %1170, %1169 : vector<4x32xf32>
    %1172 = math.tanh %1171 : vector<4x32xf32>
    %cst_314 = arith.constant 1.000000e+00 : f32
    %1173 = vector.broadcast %cst_314 : f32 to vector<4x32xf32>
    %1174 = arith.addf %1173, %1172 : vector<4x32xf32>
    %cst_315 = arith.constant 5.000000e-01 : f32
    %1175 = vector.broadcast %cst_315 : f32 to vector<4x32xf32>
    %1176 = arith.mulf %1175, %1174 : vector<4x32xf32>
    %1177 = arith.mulf %1164, %1176 : vector<4x32xf32>
    %1178 = arith.truncf %1177 : vector<4x32xf32> to vector<4x32xbf16>
    %cst_316 = arith.constant dense<0.000000e+00> : vector<4x96xf32>
    %1179 = tpu.matmul %1178, %421, %cst_316 {dimension_numbers = #tpu.dot_dimension_numbers<[1], [0], [0], [1], [0, 0, 1, 1], [], []>} : vector<4x32xbf16>, vector<32x96xbf16>, vector<4x96xf32> -> vector<4x96xf32>
    %1180 = vector.broadcast %422 : vector<1x96xf32> to vector<4x96xf32>
    %1181 = arith.addf %1179, %1180 : vector<4x96xf32>
    %1182 = vector.extract_strided_slice %1161 {offsets = [0, 0], sizes = [4, 32], strides = [1, 1]} : vector<4x96xf32> to vector<4x32xf32>
    %1183 = vector.extract_strided_slice %1181 {offsets = [0, 0], sizes = [4, 32], strides = [1, 1]} : vector<4x96xf32> to vector<4x32xf32>
    %1184 = arith.addf %1182, %1183 : vector<4x32xf32>
    %1185 = arith.negf %1184 : vector<4x32xf32>
    %1186 = math.exp %1185 : vector<4x32xf32>
    %cst_317 = arith.constant 1.000000e+00 : f32
    %1187 = vector.broadcast %cst_317 : f32 to vector<4x32xf32>
    %1188 = arith.addf %1187, %1186 : vector<4x32xf32>
    %1189 = arith.divf %1187, %1188 : vector<4x32xf32>
    %1190 = vector.extract_strided_slice %1161 {offsets = [0, 32], sizes = [4, 32], strides = [1, 1]} : vector<4x96xf32> to vector<4x32xf32>
    %1191 = vector.extract_strided_slice %1181 {offsets = [0, 32], sizes = [4, 32], strides = [1, 1]} : vector<4x96xf32> to vector<4x32xf32>
    %1192 = arith.addf %1190, %1191 : vector<4x32xf32>
    %1193 = arith.negf %1192 : vector<4x32xf32>
    %1194 = math.exp %1193 : vector<4x32xf32>
    %cst_318 = arith.constant 1.000000e+00 : f32
    %1195 = vector.broadcast %cst_318 : f32 to vector<4x32xf32>
    %1196 = arith.addf %1195, %1194 : vector<4x32xf32>
    %1197 = arith.divf %1195, %1196 : vector<4x32xf32>
    %1198 = vector.extract_strided_slice %1161 {offsets = [0, 64], sizes = [4, 32], strides = [1, 1]} : vector<4x96xf32> to vector<4x32xf32>
    %1199 = vector.extract_strided_slice %1181 {offsets = [0, 64], sizes = [4, 32], strides = [1, 1]} : vector<4x96xf32> to vector<4x32xf32>
    %1200 = arith.mulf %1189, %1199 : vector<4x32xf32>
    %1201 = arith.addf %1198, %1200 : vector<4x32xf32>
    %1202 = math.tanh %1201 : vector<4x32xf32>
    %1203 = arith.mulf %1197, %1177 : vector<4x32xf32>
    %cst_319 = arith.constant 1.000000e+00 : f32
    %1204 = vector.broadcast %cst_319 : f32 to vector<4x32xf32>
    %1205 = arith.subf %1204, %1197 : vector<4x32xf32>
    %1206 = arith.mulf %1205, %1202 : vector<4x32xf32>
    %1207 = arith.addf %1203, %1206 : vector<4x32xf32>
    %1208 = arith.truncf %1207 : vector<4x32xf32> to vector<4x32xbf16>
    %cst_320 = arith.constant dense<0.000000e+00> : vector<4x96xf32>
    %1209 = tpu.matmul %1208, %424, %cst_320 {dimension_numbers = #tpu.dot_dimension_numbers<[1], [0], [0], [1], [0, 0, 1, 1], [], []>} : vector<4x32xbf16>, vector<32x96xbf16>, vector<4x96xf32> -> vector<4x96xf32>
    %1210 = vector.broadcast %425 : vector<1x96xf32> to vector<4x96xf32>
    %1211 = arith.addf %1209, %1210 : vector<4x96xf32>
    %1212 = arith.truncf %1152 : vector<4x32xf32> to vector<4x32xbf16>
    %cst_321 = arith.constant dense<0.000000e+00> : vector<4x32xf32>
    %1213 = tpu.matmul %1212, %423, %cst_321 {dimension_numbers = #tpu.dot_dimension_numbers<[1], [0], [0], [1], [0, 0, 1, 1], [], []>} : vector<4x32xbf16>, vector<32x32xbf16>, vector<4x32xf32> -> vector<4x32xf32>
    %1214 = arith.addf %406, %1213 : vector<4x32xf32>
    %1215 = arith.mulf %1214, %1214 : vector<4x32xf32>
    %1216 = arith.mulf %1214, %1215 : vector<4x32xf32>
    %cst_322 = arith.constant 4.471500e-02 : f32
    %1217 = vector.broadcast %cst_322 : f32 to vector<4x32xf32>
    %1218 = arith.mulf %1217, %1216 : vector<4x32xf32>
    %1219 = arith.addf %1214, %1218 : vector<4x32xf32>
    %cst_323 = arith.constant 0.797884583 : f32
    %1220 = vector.broadcast %cst_323 : f32 to vector<4x32xf32>
    %1221 = arith.mulf %1220, %1219 : vector<4x32xf32>
    %1222 = math.tanh %1221 : vector<4x32xf32>
    %cst_324 = arith.constant 1.000000e+00 : f32
    %1223 = vector.broadcast %cst_324 : f32 to vector<4x32xf32>
    %1224 = arith.addf %1223, %1222 : vector<4x32xf32>
    %cst_325 = arith.constant 5.000000e-01 : f32
    %1225 = vector.broadcast %cst_325 : f32 to vector<4x32xf32>
    %1226 = arith.mulf %1225, %1224 : vector<4x32xf32>
    %1227 = arith.mulf %1214, %1226 : vector<4x32xf32>
    %1228 = arith.truncf %1227 : vector<4x32xf32> to vector<4x32xbf16>
    %cst_326 = arith.constant dense<0.000000e+00> : vector<4x96xf32>
    %1229 = tpu.matmul %1228, %426, %cst_326 {dimension_numbers = #tpu.dot_dimension_numbers<[1], [0], [0], [1], [0, 0, 1, 1], [], []>} : vector<4x32xbf16>, vector<32x96xbf16>, vector<4x96xf32> -> vector<4x96xf32>
    %1230 = vector.broadcast %427 : vector<1x96xf32> to vector<4x96xf32>
    %1231 = arith.addf %1229, %1230 : vector<4x96xf32>
    %1232 = vector.extract_strided_slice %1211 {offsets = [0, 0], sizes = [4, 32], strides = [1, 1]} : vector<4x96xf32> to vector<4x32xf32>
    %1233 = vector.extract_strided_slice %1231 {offsets = [0, 0], sizes = [4, 32], strides = [1, 1]} : vector<4x96xf32> to vector<4x32xf32>
    %1234 = arith.addf %1232, %1233 : vector<4x32xf32>
    %1235 = arith.negf %1234 : vector<4x32xf32>
    %1236 = math.exp %1235 : vector<4x32xf32>
    %cst_327 = arith.constant 1.000000e+00 : f32
    %1237 = vector.broadcast %cst_327 : f32 to vector<4x32xf32>
    %1238 = arith.addf %1237, %1236 : vector<4x32xf32>
    %1239 = arith.divf %1237, %1238 : vector<4x32xf32>
    %1240 = vector.extract_strided_slice %1211 {offsets = [0, 32], sizes = [4, 32], strides = [1, 1]} : vector<4x96xf32> to vector<4x32xf32>
    %1241 = vector.extract_strided_slice %1231 {offsets = [0, 32], sizes = [4, 32], strides = [1, 1]} : vector<4x96xf32> to vector<4x32xf32>
    %1242 = arith.addf %1240, %1241 : vector<4x32xf32>
    %1243 = arith.negf %1242 : vector<4x32xf32>
    %1244 = math.exp %1243 : vector<4x32xf32>
    %cst_328 = arith.constant 1.000000e+00 : f32
    %1245 = vector.broadcast %cst_328 : f32 to vector<4x32xf32>
    %1246 = arith.addf %1245, %1244 : vector<4x32xf32>
    %1247 = arith.divf %1245, %1246 : vector<4x32xf32>
    %1248 = vector.extract_strided_slice %1211 {offsets = [0, 64], sizes = [4, 32], strides = [1, 1]} : vector<4x96xf32> to vector<4x32xf32>
    %1249 = vector.extract_strided_slice %1231 {offsets = [0, 64], sizes = [4, 32], strides = [1, 1]} : vector<4x96xf32> to vector<4x32xf32>
    %1250 = arith.mulf %1239, %1249 : vector<4x32xf32>
    %1251 = arith.addf %1248, %1250 : vector<4x32xf32>
    %1252 = math.tanh %1251 : vector<4x32xf32>
    %1253 = arith.mulf %1247, %1227 : vector<4x32xf32>
    %cst_329 = arith.constant 1.000000e+00 : f32
    %1254 = vector.broadcast %cst_329 : f32 to vector<4x32xf32>
    %1255 = arith.subf %1254, %1247 : vector<4x32xf32>
    %1256 = arith.mulf %1255, %1252 : vector<4x32xf32>
    %1257 = arith.addf %1253, %1256 : vector<4x32xf32>
    %c4_i32_330 = arith.constant 4 : i32
    %1258 = arith.muli %c7_i32_307, %c4_i32_330 : i32
    %1259 = tpu.assume_multiple %1258, 4 : i32
    %1260 = arith.index_cast %1259 : i32 to index
    %c0_331 = arith.constant 0 : index
    %1261 = vector.load %arg35[%1260, %c0_331] : memref<32x32xf32, #tpu.memory_space<vmem>>, vector<4x32xf32>
    tpu.vector_store %arg35[%1260, %c0_331], %1257 {strides = array<i32>} : memref<32x32xf32, #tpu.memory_space<vmem>>, vector<4x32xf32>,
    %c7_i32_332 = arith.constant 7 : i32
    %c0_333 = arith.constant 0 : index
    %c0_334 = arith.constant 0 : index
    %1262 = vector.load %arg35[%c0_333, %c0_334] : memref<32x32xf32, #tpu.memory_space<vmem>>, vector<32x32xf32>
    %1263 = arith.truncf %1262 : vector<32x32xf32> to vector<32x32xbf16>
    %c0_335 = arith.constant 0 : index
    %c0_336 = arith.constant 0 : index
    %1264 = vector.load %arg26[%c0_335, %c0_336] : memref<32x16xbf16, #tpu.memory_space<vmem>>, vector<32x16xbf16>
    %cst_337 = arith.constant dense<0.000000e+00> : vector<32x16xf32>
    %1265 = tpu.matmul %1263, %1264, %cst_337 {dimension_numbers = #tpu.dot_dimension_numbers<[1], [0], [0], [1], [0, 0, 1, 1], [], []>} : vector<32x32xbf16>, vector<32x16xbf16>, vector<32x16xf32> -> vector<32x16xf32>
    %c0_338 = arith.constant 0 : index
    %c0_339 = arith.constant 0 : index
    %1266 = vector.load %arg27[%c0_338, %c0_339] : memref<1x16xf32, #tpu.memory_space<vmem>>, vector<1x16xf32>
    %1267 = vector.broadcast %1266 : vector<1x16xf32> to vector<32x16xf32>
    %1268 = arith.addf %1265, %1267 : vector<32x16xf32>
    %1269 = arith.truncf %1268 : vector<32x16xf32> to vector<32x16xbf16>
    %c0_340 = arith.constant 0 : index
    %c0_341 = arith.constant 0 : index
    %1270 = vector.load %arg28[%c0_340, %c0_341] : memref<16x128xbf16, #tpu.memory_space<vmem>>, vector<16x128xbf16>
    %cst_342 = arith.constant dense<0.000000e+00> : vector<32x128xf32>
    %1271 = tpu.matmul %1269, %1270, %cst_342 {dimension_numbers = #tpu.dot_dimension_numbers<[1], [0], [0], [1], [0, 0, 1, 1], [], []>} : vector<32x16xbf16>, vector<16x128xbf16>, vector<32x128xf32> -> vector<32x128xf32>
    %c0_343 = arith.constant 0 : index
    %c0_344 = arith.constant 0 : index
    %1272 = vector.load %arg29[%c0_343, %c0_344] : memref<1x128xf32, #tpu.memory_space<vmem>>, vector<1x128xf32>
    %1273 = vector.broadcast %1272 : vector<1x128xf32> to vector<32x128xf32>
    %1274 = arith.addf %1271, %1273 : vector<32x128xf32>
    %c0_345 = arith.constant 0 : index
    %c0_346 = arith.constant 0 : index
    %1275 = vector.load %arg32[%c0_345, %c0_346] : memref<32x128xf32, #tpu.memory_space<vmem>>, vector<32x128xf32>
    tpu.vector_store %arg32[%c0_345, %c0_346], %1274 {strides = array<i32>} : memref<32x128xf32, #tpu.memory_space<vmem>>, vector<32x128xf32>,
    return
  }
}

</mosaic_0001>

<llo_original>
// kernel: seqgen_forward.1
$region0: #{seqgen_forward.1}
  #allocation0 [shape = 'u32[]', space=smem, size = 0x4, offset = 0x4, fixed_abs, tag = 'smem constant byte address 0x4 - core index']
  #allocation1 [shape = 'u32[144,128]{1,0:T(1,128)}', space=vmem, size = 0x12000, scoped, tag = 'internal scratch']
  #allocation2 [shape = 'f32[32,96]{1,0:T(8,128)}', space=vmem, size = 0x4000, scoped, tag = 'scratch operand']
  #allocation3 [shape = 'f32[32,96]{1,0:T(8,128)}', space=vmem, size = 0x4000, scoped, tag = 'scratch operand']
  #allocation4 [shape = 'f32[32,32]{1,0:T(8,128)}', space=vmem, size = 0x4000, scoped, tag = 'scratch operand']
  %s0 = inlined_call_operand.smem [shape: u32[33], index: -1, kind: input, shape index: {}]
  %s1 = sld [smem:[%s0]]
  %s2 = scalar_lea.smem %s0, 1
  %s3 = sld [smem:[%s2]]
  %s4 = scalar_lea.smem %s0, 2
  %s5 = sld [smem:[%s4]]
  %s6 = scalar_lea.smem %s0, 3
  %s7 = sld [smem:[%s6]]
  %s8 = scalar_lea.smem %s0, 4
  %s9 = sld [smem:[%s8]]
  %s10 = scalar_lea.smem %s0, 5
  %s11 = sld [smem:[%s10]]
  %s12 = scalar_lea.smem %s0, 6
  %s13 = sld [smem:[%s12]]
  %s14 = scalar_lea.smem %s0, 7
  %s15 = sld [smem:[%s14]]
  %s16 = scalar_lea.smem %s0, 8
  %s17 = sld [smem:[%s16]]
  %s18 = scalar_lea.smem %s0, 9
  %s19 = sld [smem:[%s18]]
  %s20 = scalar_lea.smem %s0, 10
  %s21 = sld [smem:[%s20]]
  %s22 = scalar_lea.smem %s0, 11
  %s23 = sld [smem:[%s22]]
  %s24 = scalar_lea.smem %s0, 12
  %s25 = sld [smem:[%s24]]
  %s26 = scalar_lea.smem %s0, 13
  %s27 = sld [smem:[%s26]]
  %s28 = scalar_lea.smem %s0, 14
  %s29 = sld [smem:[%s28]]
  %s30 = scalar_lea.smem %s0, 15
  %s31 = sld [smem:[%s30]]
  %s32 = scalar_lea.smem %s0, 16
  %s33 = sld [smem:[%s32]]
  %s34 = scalar_lea.smem %s0, 17
  %s35 = sld [smem:[%s34]]
  %s36 = scalar_lea.smem %s0, 18
  %s37 = sld [smem:[%s36]]
  %s38 = scalar_lea.smem %s0, 19
  %s39 = sld [smem:[%s38]]
  %s40 = scalar_lea.smem %s0, 20
  %s41 = sld [smem:[%s40]]
  %s42 = scalar_lea.smem %s0, 21
  %s43 = sld [smem:[%s42]]
  %s44 = scalar_lea.smem %s0, 22
  %s45 = sld [smem:[%s44]]
  %s46 = scalar_lea.smem %s0, 23
  %s47 = sld [smem:[%s46]]
  %s48 = scalar_lea.smem %s0, 24
  %s49 = sld [smem:[%s48]]
  %s50 = scalar_lea.smem %s0, 25
  %s51 = sld [smem:[%s50]]
  %s52 = scalar_lea.smem %s0, 26
  %s53 = sld [smem:[%s52]]
  %s54 = scalar_lea.smem %s0, 27
  %s55 = sld [smem:[%s54]]
  %s56 = scalar_lea.smem %s0, 28
  %s57 = sld [smem:[%s56]]
  %s58 = scalar_lea.smem %s0, 29
  %s59 = sld [smem:[%s58]]
  %s60 = scalar_lea.smem %s0, 30
  %s61 = sld [smem:[%s60]]
  %s62 = scalar_lea.smem %s0, 31
  %s63 = sld [smem:[%s62]]
  %s64 = scalar_lea.smem %s0, 32
  %s65 = sld [smem:[%s64]]
  %66 = xla_tuple %s61, %s63, %s65
  %s67 = sld [smem:[#allocation0]]
  $region190: #{seqgen_forward.1} parent=0
    _
  %s69 = ssub.s32 1, %s67
  %s70 = scalar_select 0, %s69, %s67
  $region1: #{seqgen_forward.1} parent=0
    #allocation5 [shape = 'u8[512]{0}', space=vmem, size = 0x400, scoped, tag = 'input window, operand 2, single buffered']
    #allocation6 [shape = 's32[1]{0}', space=sflag, size = 0x4, scoped, tag = 'scoped memory for seqgen_forward.1']
    #allocation7 [shape = 's32[1]{0}', space=sflag, size = 0x4, scoped, tag = 'scoped memory for seqgen_forward.1']
    #allocation8 [shape = 'u8[512]{0}', space=vmem, size = 0x400, scoped, tag = 'input window, operand 3, single buffered']
    #allocation9 [shape = 's32[1]{0}', space=sflag, size = 0x4, scoped, tag = 'scoped memory for seqgen_forward.1']
    #allocation10 [shape = 'u8[512]{0}', space=vmem, size = 0x400, scoped, tag = 'input window, operand 5, single buffered']
    #allocation11 [shape = 'u8[512]{0}', space=vmem, size = 0x400, scoped, tag = 'input window, operand 7, single buffered']
    #allocation12 [shape = 's32[1]{0}', space=sflag, size = 0x4, scoped, tag = 'scoped memory for seqgen_forward.1']
    #allocation13 [shape = 'u8[512]{0}', space=vmem, size = 0x400, scoped, tag = 'input window, operand 8, single buffered']
    #allocation14 [shape = 'u8[512]{0}', space=vmem, size = 0x400, scoped, tag = 'input window, operand 9, single buffered']
    #allocation15 [shape = 's32[1]{0}', space=sflag, size = 0x4, scoped, tag = 'scoped memory for seqgen_forward.1']
    #allocation16 [shape = 'u8[512]{0}', space=vmem, size = 0x400, scoped, tag = 'input window, operand 11, single buffered']
    #allocation17 [shape = 'u8[512]{0}', space=vmem, size = 0x400, scoped, tag = 'input window, operand 23, single buffered']
    #allocation18 [shape = 's32[1]{0}', space=sflag, size = 0x4, scoped, tag = 'scoped memory for seqgen_forward.1']
    #allocation19 [shape = 'u8[512]{0}', space=vmem, size = 0x400, scoped, tag = 'input window, operand 27, single buffered']
    #allocation20 [shape = 'u8[4096]{0}', space=vmem, size = 0x1000, scoped, tag = 'input window, operand 28, single buffered']
    #allocation21 [shape = 's32[1]{0}', space=sflag, size = 0x4, scoped, tag = 'scoped memory for seqgen_forward.1']
    #allocation22 [shape = 'u8[512]{0}', space=vmem, size = 0x400, scoped, tag = 'input window, operand 29, single buffered']
    #allocation23 [shape = 'u8[2048]{0}', space=vmem, size = 0x800, scoped, tag = 'output window, operand 1, single buffered']
    %71 = vsyncpa [#allocation6], 0
    %72 = vsyncpa [#allocation9], 0
    %73 = vsyncpa [#allocation12], 0
    %74 = vsyncpa [#allocation15], 0
    %75 = vsyncpa [#allocation18], 0
    %76 = vsyncpa [#allocation21], 0
    %77 = vsyncpa [#allocation7], 0
    // Predicated region
    $region2: #{seqgen_forward.1} parent=1 // pred_check
      _
    $region3: #{seqgen_forward.1} parent=1 // pred_check_branch
      %79 = sbr.rel (0) target = $region5
    $region4: #{seqgen_forward.1} parent=1 // pred_region
      _
    $region5: #{seqgen_forward.1} parent=1 // pred_fallthru
      _
    // Predicated region
    $region6: #{seqgen_forward.1} parent=1 // pred_check
      _
    $region7: #{seqgen_forward.1} parent=1 // pred_check_branch
      %81 = sbr.rel (0) target = $region9
    $region8: #{seqgen_forward.1} parent=1 // pred_region
      _
    $region9: #{seqgen_forward.1} parent=1 // pred_fallthru
      _
    // Predicated region
    $region10: #{seqgen_forward.1} parent=1 // pred_check
      _
    $region11: #{seqgen_forward.1} parent=1 // pred_check_branch
      %83 = sbr.rel (0) target = $region13
    $region12: #{seqgen_forward.1} parent=1 // pred_region
      %s85 = ssub.s32 16, 16
      %86 = vsyncadd [#allocation6], %s85
      %s88 = sshll.u32 [#allocation5], 4
      %s89 = int_to_ptr.vmem [resolvable:$true] %s88
      %91 = dma.hbm_to_vmem [thread:$0]  %s5, 16, %s89, [#allocation6]
    $region13: #{seqgen_forward.1} parent=1 // pred_fallthru
      _
    // Predicated region
    $region14: #{seqgen_forward.1} parent=1 // pred_check
      _
    $region15: #{seqgen_forward.1} parent=1 // pred_check_branch
      %93 = sbr.rel (0) target = $region17
    $region16: #{seqgen_forward.1} parent=1 // pred_region
      %s95 = ssub.s32 16, 16
      %96 = vsyncadd [#allocation9], %s95
      %s98 = sshll.u32 [#allocation8], 4
      %s99 = int_to_ptr.vmem [resolvable:$true] %s98
      %101 = dma.hbm_to_vmem [thread:$0]  %s7, 16, %s99, [#allocation9]
    $region17: #{seqgen_forward.1} parent=1 // pred_fallthru
      _
    // Predicated region
    $region18: #{seqgen_forward.1} parent=1 // pred_check
      _
    $region19: #{seqgen_forward.1} parent=1 // pred_check_branch
      %103 = sbr.rel (0) target = $region21
    $region20: #{seqgen_forward.1} parent=1 // pred_region
      _
    $region21: #{seqgen_forward.1} parent=1 // pred_fallthru
      _
    // Predicated region
    $region22: #{seqgen_forward.1} parent=1 // pred_check
      _
    $region23: #{seqgen_forward.1} parent=1 // pred_check_branch
      %105 = sbr.rel (0) target = $region25
    $region24: #{seqgen_forward.1} parent=1 // pred_region
      %s107 = ssub.s32 16, 16
      %108 = vsyncadd [#allocation9], %s107
      %s110 = sshll.u32 [#allocation10], 4
      %s111 = int_to_ptr.vmem [resolvable:$true] %s110
      %113 = dma.hbm_to_vmem [thread:$0]  %s11, 16, %s111, [#allocation9]
    $region25: #{seqgen_forward.1} parent=1 // pred_fallthru
      _
    // Predicated region
    $region26: #{seqgen_forward.1} parent=1 // pred_check
      _
    $region27: #{seqgen_forward.1} parent=1 // pred_check_branch
      %115 = sbr.rel (0) target = $region29
    $region28: #{seqgen_forward.1} parent=1 // pred_region
      _
    $region29: #{seqgen_forward.1} parent=1 // pred_fallthru
      _
    // Predicated region
    $region30: #{seqgen_forward.1} parent=1 // pred_check
      _
    $region31: #{seqgen_forward.1} parent=1 // pred_check_branch
      %117 = sbr.rel (0) target = $region33
    $region32: #{seqgen_forward.1} parent=1 // pred_region
      %s119 = ssub.s32 16, 16
      %120 = vsyncadd [#allocation12], %s119
      %s122 = sshll.u32 [#allocation11], 4
      %s123 = int_to_ptr.vmem [resolvable:$true] %s122
      %125 = dma.hbm_to_vmem [thread:$0]  %s15, 16, %s123, [#allocation12]
    $region33: #{seqgen_forward.1} parent=1 // pred_fallthru
      _
    // Predicated region
    $region34: #{seqgen_forward.1} parent=1 // pred_check
      _
    $region35: #{seqgen_forward.1} parent=1 // pred_check_branch
      %127 = sbr.rel (0) target = $region37
    $region36: #{seqgen_forward.1} parent=1 // pred_region
      %s129 = ssub.s32 16, 16
      %130 = vsyncadd [#allocation12], %s129
      %s132 = sshll.u32 [#allocation13], 4
      %s133 = int_to_ptr.vmem [resolvable:$true] %s132
      %135 = dma.hbm_to_vmem [thread:$0]  %s17, 16, %s133, [#allocation12]
    $region37: #{seqgen_forward.1} parent=1 // pred_fallthru
      _
    // Predicated region
    $region38: #{seqgen_forward.1} parent=1 // pred_check
      _
    $region39: #{seqgen_forward.1} parent=1 // pred_check_branch
      %137 = sbr.rel (0) target = $region41
    $region40: #{seqgen_forward.1} parent=1 // pred_region
      %s139 = ssub.s32 16, 16
      %140 = vsyncadd [#allocation15], %s139
      %s142 = sshll.u32 [#allocation14], 4
      %s143 = int_to_ptr.vmem [resolvable:$true] %s142
      %145 = dma.hbm_to_vmem [thread:$0]  %s19, 16, %s143, [#allocation15]
    $region41: #{seqgen_forward.1} parent=1 // pred_fallthru
      _
    // Predicated region
    $region42: #{seqgen_forward.1} parent=1 // pred_check
      _
    $region43: #{seqgen_forward.1} parent=1 // pred_check_branch
      %147 = sbr.rel (0) target = $region45
    $region44: #{seqgen_forward.1} parent=1 // pred_region
      _
    $region45: #{seqgen_forward.1} parent=1 // pred_fallthru
      _
    // Predicated region
    $region46: #{seqgen_forward.1} parent=1 // pred_check
      _
    $region47: #{seqgen_forward.1} parent=1 // pred_check_branch
      %149 = sbr.rel (0) target = $region49
    $region48: #{seqgen_forward.1} parent=1 // pred_region
      %s151 = ssub.s32 16, 16
      %152 = vsyncadd [#allocation15], %s151
      %s154 = sshll.u32 [#allocation16], 4
      %s155 = int_to_ptr.vmem [resolvable:$true] %s154
      %157 = dma.hbm_to_vmem [thread:$0]  %s23, 16, %s155, [#allocation15]
    $region49: #{seqgen_forward.1} parent=1 // pred_fallthru
      _
    // Predicated region
    $region50: #{seqgen_forward.1} parent=1 // pred_check
      _
    $region51: #{seqgen_forward.1} parent=1 // pred_check_branch
      %159 = sbr.rel (0) target = $region53
    $region52: #{seqgen_forward.1} parent=1 // pred_region
      _
    $region53: #{seqgen_forward.1} parent=1 // pred_fallthru
      _
    // Predicated region
    $region54: #{seqgen_forward.1} parent=1 // pred_check
      _
    $region55: #{seqgen_forward.1} parent=1 // pred_check_branch
      %161 = sbr.rel (0) target = $region57
    $region56: #{seqgen_forward.1} parent=1 // pred_region
      _
    $region57: #{seqgen_forward.1} parent=1 // pred_fallthru
      _
    // Predicated region
    $region58: #{seqgen_forward.1} parent=1 // pred_check
      _
    $region59: #{seqgen_forward.1} parent=1 // pred_check_branch
      %163 = sbr.rel (0) target = $region61
    $region60: #{seqgen_forward.1} parent=1 // pred_region
      _
    $region61: #{seqgen_forward.1} parent=1 // pred_fallthru
      _
    // Predicated region
    $region62: #{seqgen_forward.1} parent=1 // pred_check
      _
    $region63: #{seqgen_forward.1} parent=1 // pred_check_branch
      %165 = sbr.rel (0) target = $region65
    $region64: #{seqgen_forward.1} parent=1 // pred_region
      _
    $region65: #{seqgen_forward.1} parent=1 // pred_fallthru
      _
    // Predicated region
    $region66: #{seqgen_forward.1} parent=1 // pred_check
      _
    $region67: #{seqgen_forward.1} parent=1 // pred_check_branch
      %167 = sbr.rel (0) target = $region69
    $region68: #{seqgen_forward.1} parent=1 // pred_region
      _
    $region69: #{seqgen_forward.1} parent=1 // pred_fallthru
      _
    // Predicated region
    $region70: #{seqgen_forward.1} parent=1 // pred_check
      _
    $region71: #{seqgen_forward.1} parent=1 // pred_check_branch
      %169 = sbr.rel (0) target = $region73
    $region72: #{seqgen_forward.1} parent=1 // pred_region
      _
    $region73: #{seqgen_forward.1} parent=1 // pred_fallthru
      _
    // Predicated region
    $region74: #{seqgen_forward.1} parent=1 // pred_check
      _
    $region75: #{seqgen_forward.1} parent=1 // pred_check_branch
      %171 = sbr.rel (0) target = $region77
    $region76: #{seqgen_forward.1} parent=1 // pred_region
      _
    $region77: #{seqgen_forward.1} parent=1 // pred_fallthru
      _
    // Predicated region
    $region78: #{seqgen_forward.1} parent=1 // pred_check
      _
    $region79: #{seqgen_forward.1} parent=1 // pred_check_branch
      %173 = sbr.rel (0) target = $region81
    $region80: #{seqgen_forward.1} parent=1 // pred_region
      _
    $region81: #{seqgen_forward.1} parent=1 // pred_fallthru
      _
    // Predicated region
    $region82: #{seqgen_forward.1} parent=1 // pred_check
      _
    $region83: #{seqgen_forward.1} parent=1 // pred_check_branch
      %175 = sbr.rel (0) target = $region85
    $region84: #{seqgen_forward.1} parent=1 // pred_region
      _
    $region85: #{seqgen_forward.1} parent=1 // pred_fallthru
      _
    // Predicated region
    $region86: #{seqgen_forward.1} parent=1 // pred_check
      _
    $region87: #{seqgen_forward.1} parent=1 // pred_check_branch
      %177 = sbr.rel (0) target = $region89
    $region88: #{seqgen_forward.1} parent=1 // pred_region
      _
    $region89: #{seqgen_forward.1} parent=1 // pred_fallthru
      _
    // Predicated region
    $region90: #{seqgen_forward.1} parent=1 // pred_check
      _
    $region91: #{seqgen_forward.1} parent=1 // pred_check_branch
      %179 = sbr.rel (0) target = $region93
    $region92: #{seqgen_forward.1} parent=1 // pred_region
      _
    $region93: #{seqgen_forward.1} parent=1 // pred_fallthru
      _
    // Predicated region
    $region94: #{seqgen_forward.1} parent=1 // pred_check
      _
    $region95: #{seqgen_forward.1} parent=1 // pred_check_branch
      %181 = sbr.rel (0) target = $region97
    $region96: #{seqgen_forward.1} parent=1 // pred_region
      %s183 = ssub.s32 16, 16
      %184 = vsyncadd [#allocation18], %s183
      %s186 = sshll.u32 [#allocation17], 4
      %s187 = int_to_ptr.vmem [resolvable:$true] %s186
      %189 = dma.hbm_to_vmem [thread:$0]  %s47, 16, %s187, [#allocation18]
    $region97: #{seqgen_forward.1} parent=1 // pred_fallthru
      _
    // Predicated region
    $region98: #{seqgen_forward.1} parent=1 // pred_check
      _
    $region99: #{seqgen_forward.1} parent=1 // pred_check_branch
      %191 = sbr.rel (0) target = $region101
    $region100: #{seqgen_forward.1} parent=1 // pred_region
      _
    $region101: #{seqgen_forward.1} parent=1 // pred_fallthru
      _
    // Predicated region
    $region102: #{seqgen_forward.1} parent=1 // pred_check
      _
    $region103: #{seqgen_forward.1} parent=1 // pred_check_branch
      %193 = sbr.rel (0) target = $region105
    $region104: #{seqgen_forward.1} parent=1 // pred_region
      _
    $region105: #{seqgen_forward.1} parent=1 // pred_fallthru
      _
    // Predicated region
    $region106: #{seqgen_forward.1} parent=1 // pred_check
      _
    $region107: #{seqgen_forward.1} parent=1 // pred_check_branch
      %195 = sbr.rel (0) target = $region109
    $region108: #{seqgen_forward.1} parent=1 // pred_region
      _
    $region109: #{seqgen_forward.1} parent=1 // pred_fallthru
      _
    // Predicated region
    $region110: #{seqgen_forward.1} parent=1 // pred_check
      _
    $region111: #{seqgen_forward.1} parent=1 // pred_check_branch
      %197 = sbr.rel (0) target = $region113
    $region112: #{seqgen_forward.1} parent=1 // pred_region
      %s199 = ssub.s32 16, 16
      %200 = vsyncadd [#allocation18], %s199
      %s202 = sshll.u32 [#allocation19], 4
      %s203 = int_to_ptr.vmem [resolvable:$true] %s202
      %205 = dma.hbm_to_vmem [thread:$0]  %s55, 16, %s203, [#allocation18]
    $region113: #{seqgen_forward.1} parent=1 // pred_fallthru
      _
    // Predicated region
    $region114: #{seqgen_forward.1} parent=1 // pred_check
      _
    $region115: #{seqgen_forward.1} parent=1 // pred_check_branch
      %207 = sbr.rel (0) target = $region117
    $region116: #{seqgen_forward.1} parent=1 // pred_region
      %s209 = ssub.s32 128, 128
      %210 = vsyncadd [#allocation21], %s209
      %s211 = sshll.u32 [#allocation20], 4
      %s212 = int_to_ptr.vmem [resolvable:$true] %s211
      %217 = dma.hbm_to_vmem [thread:$0]  %s57, 128, %s212, [#allocation21], 64, 64, 4
    $region117: #{seqgen_forward.1} parent=1 // pred_fallthru
      _
    // Predicated region
    $region118: #{seqgen_forward.1} parent=1 // pred_check
      _
    $region119: #{seqgen_forward.1} parent=1 // pred_check_branch
      %219 = sbr.rel (0) target = $region121
    $region120: #{seqgen_forward.1} parent=1 // pred_region
      %s221 = ssub.s32 16, 16
      %222 = vsyncadd [#allocation21], %s221
      %s224 = sshll.u32 [#allocation22], 4
      %s225 = int_to_ptr.vmem [resolvable:$true] %s224
      %227 = dma.hbm_to_vmem [thread:$0]  %s59, 16, %s225, [#allocation21]
    $region121: #{seqgen_forward.1} parent=1 // pred_fallthru
      _
    // Predicated region
    $region122: #{seqgen_forward.1} parent=1 // pred_check
      _
    $region123: #{seqgen_forward.1} parent=1 // pred_check_branch
      %229 = sbr.rel (0) target = $region125
    $region124: #{seqgen_forward.1} parent=1 // pred_region
      %230 = dma.done [#allocation6], 16
    $region125: #{seqgen_forward.1} parent=1 // pred_fallthru
      _
    // Predicated region
    $region126: #{seqgen_forward.1} parent=1 // pred_check
      _
    $region127: #{seqgen_forward.1} parent=1 // pred_check_branch
      %232 = sbr.rel (0) target = $region129
    $region128: #{seqgen_forward.1} parent=1 // pred_region
      %233 = dma.done [#allocation9], 16
    $region129: #{seqgen_forward.1} parent=1 // pred_fallthru
      _
    // Predicated region
    $region130: #{seqgen_forward.1} parent=1 // pred_check
      _
    $region131: #{seqgen_forward.1} parent=1 // pred_check_branch
      %235 = sbr.rel (0) target = $region133
    $region132: #{seqgen_forward.1} parent=1 // pred_region
      %236 = dma.done [#allocation9], 16
    $region133: #{seqgen_forward.1} parent=1 // pred_fallthru
      _
    // Predicated region
    $region134: #{seqgen_forward.1} parent=1 // pred_check
      _
    $region135: #{seqgen_forward.1} parent=1 // pred_check_branch
      %238 = sbr.rel (0) target = $region137
    $region136: #{seqgen_forward.1} parent=1 // pred_region
      %239 = dma.done [#allocation12], 16
    $region137: #{seqgen_forward.1} parent=1 // pred_fallthru
      _
    // Predicated region
    $region138: #{seqgen_forward.1} parent=1 // pred_check
      _
    $region139: #{seqgen_forward.1} parent=1 // pred_check_branch
      %241 = sbr.rel (0) target = $region141
    $region140: #{seqgen_forward.1} parent=1 // pred_region
      %242 = dma.done [#allocation12], 16
    $region141: #{seqgen_forward.1} parent=1 // pred_fallthru
      _
    // Predicated region
    $region142: #{seqgen_forward.1} parent=1 // pred_check
      _
    $region143: #{seqgen_forward.1} parent=1 // pred_check_branch
      %244 = sbr.rel (0) target = $region145
    $region144: #{seqgen_forward.1} parent=1 // pred_region
      %245 = dma.done [#allocation15], 16
    $region145: #{seqgen_forward.1} parent=1 // pred_fallthru
      _
    // Predicated region
    $region146: #{seqgen_forward.1} parent=1 // pred_check
      _
    $region147: #{seqgen_forward.1} parent=1 // pred_check_branch
      %247 = sbr.rel (0) target = $region149
    $region148: #{seqgen_forward.1} parent=1 // pred_region
      %248 = dma.done [#allocation15], 16
    $region149: #{seqgen_forward.1} parent=1 // pred_fallthru
      _
    // Predicated region
    $region150: #{seqgen_forward.1} parent=1 // pred_check
      _
    $region151: #{seqgen_forward.1} parent=1 // pred_check_branch
      %250 = sbr.rel (0) target = $region153
    $region152: #{seqgen_forward.1} parent=1 // pred_region
      %251 = dma.done [#allocation18], 16
    $region153: #{seqgen_forward.1} parent=1 // pred_fallthru
      _
    // Predicated region
    $region154: #{seqgen_forward.1} parent=1 // pred_check
      _
    $region155: #{seqgen_forward.1} parent=1 // pred_check_branch
      %253 = sbr.rel (0) target = $region157
    $region156: #{seqgen_forward.1} parent=1 // pred_region
      %254 = dma.done [#allocation18], 16
    $region157: #{seqgen_forward.1} parent=1 // pred_fallthru
      _
    // Predicated region
    $region158: #{seqgen_forward.1} parent=1 // pred_check
      _
    $region159: #{seqgen_forward.1} parent=1 // pred_check_branch
      %256 = sbr.rel (0) target = $region161
    $region160: #{seqgen_forward.1} parent=1 // pred_region
      %257 = dma.done [#allocation21], 128
    $region161: #{seqgen_forward.1} parent=1 // pred_fallthru
      _
    // Predicated region
    $region162: #{seqgen_forward.1} parent=1 // pred_check
      _
    $region163: #{seqgen_forward.1} parent=1 // pred_check_branch
      %259 = sbr.rel (0) target = $region165
    $region164: #{seqgen_forward.1} parent=1 // pred_region
      %260 = dma.done [#allocation21], 16
    $region165: #{seqgen_forward.1} parent=1 // pred_fallthru
      _
    %v262 = vld [vmem:[%s1] sm:$0xff]
    %v263 = vld [vmem:[%s1 + $0x8] sm:$0xff]
    %v264 = vld [vmem:[%s1 + $0x10] sm:$0xff]
    %v265 = vld [vmem:[%s1 + $0x18] sm:$0xff]
    %v266 = vld [vmem:[#allocation5] sm:$0x1]
    %v267 = vld [vmem:[#allocation8] sm:$0x1]
    %vm268 = vcmask 130048
    %v269 = vsel %vm268, %v262, 0.0
    %270 = vadd.xlane.f32.xlu0 %v269
    %v271 = vpop.xlane.xlu0 %270
    %v272 = vsel %vm268, %v263, 0.0
    %273 = vadd.xlane.f32.xlu0 %v272
    %v274 = vpop.xlane.xlu0 %273
    %v275 = vsel %vm268, %v264, 0.0
    %276 = vadd.xlane.f32.xlu0 %v275
    %v277 = vpop.xlane.xlu0 %276
    %v278 = vsel %vm268, %v265, 0.0
    %279 = vadd.xlane.f32.xlu0 %v278
    %v280 = vpop.xlane.xlu0 %279
    %v281 = vrcp.pop 16.0
    %v282 = vmul.f32 %v271, %v281
    %v283 = vmul.f32 %v274, %v281
    %v284 = vmul.f32 %v277, %v281
    %v285 = vmul.f32 %v280, %v281
    %v286 = vsub.f32 %v262, %v282
    %v287 = vsub.f32 %v263, %v283
    %v288 = vsub.f32 %v264, %v284
    %v289 = vsub.f32 %v265, %v285
    %v290 = vmul.f32 %v286, %v286
    %v291 = vmul.f32 %v287, %v287
    %v292 = vmul.f32 %v288, %v288
    %v293 = vmul.f32 %v289, %v289
    %v294 = vsel %vm268, %v290, 0.0
    %295 = vadd.xlane.f32.xlu0 %v294
    %v296 = vpop.xlane.xlu0 %295
    %v297 = vsel %vm268, %v291, 0.0
    %298 = vadd.xlane.f32.xlu0 %v297
    %v299 = vpop.xlane.xlu0 %298
    %v300 = vsel %vm268, %v292, 0.0
    %301 = vadd.xlane.f32.xlu0 %v300
    %v302 = vpop.xlane.xlu0 %301
    %v303 = vsel %vm268, %v293, 0.0
    %304 = vadd.xlane.f32.xlu0 %v303
    %v305 = vpop.xlane.xlu0 %304
    %v306 = vmul.f32 %v296, %v281
    %v307 = vmul.f32 %v299, %v281
    %v308 = vmul.f32 %v302, %v281
    %v309 = vmul.f32 %v305, %v281
    %v310 = vadd.f32 %v306, 1e-05
    %v311 = vadd.f32 %v307, 1e-05
    %v312 = vadd.f32 %v308, 1e-05
    %v313 = vadd.f32 %v309, 1e-05
    %v314 = vrsqrt.pop %v310
    %v315 = vrsqrt.pop %v311
    %v316 = vrsqrt.pop %v312
    %v317 = vrsqrt.pop %v313
    %v318 = vmul.f32 %v286, %v314
    %v319 = vmul.f32 %v287, %v315
    %v320 = vmul.f32 %v288, %v316
    %v321 = vmul.f32 %v289, %v317
    %v323 = vlaneseq
    %v324 = vshrl.u32 %v323, 7
    %v325 = vsub.s32 0, %v324
    %v326 = vrot.slane %v266, %v325
    %v328 = vmul.f32 %v318, %v326
    %v329 = vmul.f32 %v319, %v326
    %v330 = vmul.f32 %v320, %v326
    %v331 = vmul.f32 %v321, %v326
    %v333 = vlaneseq
    %v334 = vshrl.u32 %v333, 7
    %v335 = vsub.s32 0, %v334
    %v336 = vrot.slane %v267, %v335
    %v338 = vadd.f32 %v328, %v336
    %v339 = vadd.f32 %v329, %v336
    %v340 = vadd.f32 %v330, %v336
    %v341 = vadd.f32 %v331, %v336
    %v342 = vpack.c.bf16 %v339, %v338
    %v343 = vpack.c.bf16 %v341, %v340
    %v344 = vld [vmem:[%s9] sm:$0xf]
    %v345 = vld [vmem:[%s9 + $0x4] sm:$0xf]
    %v346 = vld [vmem:[#allocation10] sm:$0x1]
    %v348 = vlaneseq
    %v349 = vshrl.u32 %v348, 7
    %v350 = vsub.s32 0, %v349
    %v351 = vrot.slane %v346, %v350
    %v355 = vunpack.c.l.b16 %v344
    %v356 = vunpack.c.l.b16 %v345
    %v357 = vpack.c.b16 %v356, %v355
    %v360 = vsel %vm268, %v342, 0
    %v363 = vsel %vm268, %v343, 0
    %365 = vmatprep.subr.bf16.mxu0 0
    %366 = vmatpush1.bf16.msra.mxu0 %v357
    %367 = vmatprep.subr.bf16.mxu0 0
    %368 = vmatpush1.bf16.msra.mxu0 0
    %369 = vmatprep.subr.bf16.mxu0 0
    %370 = vmatpush1.bf16.msra.mxu0 0
    %371 = vmatprep.subr.bf16.mxu0 0
    %372 = vmatpush1.bf16.msra.mxu0 0
    %373 = vmatprep.subr.bf16.mxu0 0
    %374 = vmatpush1.bf16.msra.mxu0 0
    %375 = vmatprep.subr.bf16.mxu0 0
    %376 = vmatpush1.bf16.msra.mxu0 0
    %377 = vmatprep.subr.bf16.mxu0 0
    %378 = vmatpush1.bf16.msra.mxu0 0
    %379 = vmatprep.subr.bf16.mxu0 0
    %380 = vmatpush1.bf16.msra.mxu0 0
    %381 = vmatprep.subr.bf16.mxu0 0
    %382 = vmatpush1.bf16.msra.mxu0 0
    %383 = vmatprep.subr.bf16.mxu0 0
    %384 = vmatpush1.bf16.msra.mxu0 0
    %385 = vmatprep.subr.bf16.mxu0 0
    %386 = vmatpush1.bf16.msra.mxu0 0
    %387 = vmatprep.subr.bf16.mxu0 0
    %388 = vmatpush1.bf16.msra.mxu0 0
    %389 = vmatprep.subr.bf16.mxu0 0
    %390 = vmatpush1.bf16.msra.mxu0 0
    %391 = vmatprep.subr.bf16.mxu0 0
    %392 = vmatpush1.bf16.msra.mxu0 0
    %393 = vmatprep.subr.bf16.mxu0 0
    %394 = vmatpush1.bf16.msra.mxu0 0
    %395 = vmatprep.subr.bf16.mxu0 0
    %396 = vmatpush1.bf16.msra.mxu0 0
    %397 = vmatprep.mubr.bf16.mxu0 0
    %398 = vmatmul.mubr.bf16.gmra.mrb[0].mxu0 %v360
    %v399 = vpop.f32.mrb[0].mxu0
    %v400 = vadd.f32 %v351, %v399
    %v401 = vpop.f32.mrb[0].mxu0
    %v402 = vpop.f32.mrb[0].mxu0
    %v403 = vadd.f32 %v351, %v402
    %v404 = vpop.f32.mrb[0].mxu0
    %405 = vmatprep.mubr.bf16.mxu0 0
    %406 = vmatmul.mubr.bf16.gmra.mrb[0].mxu0 %v363
    %v407 = vpop.f32.mrb[0].mxu0
    %v408 = vadd.f32 %v351, %v407
    %v409 = vpop.f32.mrb[0].mxu0
    %v410 = vpop.f32.mrb[0].mxu0
    %v411 = vadd.f32 %v351, %v410
    %v412 = vpop.f32.mrb[0].mxu0
    %413 = vdwg.mxu0
    %vm414 = vcmask 785408
    %415 = vst.msk [vmem:[#allocation2] sm:$0xff] %vm414, %v400
    %416 = vst.msk [vmem:[#allocation2 + $0x8] sm:$0xff] %vm414, %v403
    %417 = vst.msk [vmem:[#allocation2 + $0x10] sm:$0xff] %vm414, %v408
    %418 = vst.msk [vmem:[#allocation2 + $0x18] sm:$0xff] %vm414, %v411
    %v419 = vld [vmem:[%s13] sm:$0xf]
    %v420 = vld [vmem:[%s13 + $0x4] sm:$0xf]
    %v421 = vld [vmem:[%s13 + $0x8] sm:$0xf]
    %v422 = vld [vmem:[%s13 + $0xc] sm:$0xf]
    %v423 = vld [vmem:[#allocation11] sm:$0x1]
    %v424 = vld [vmem:[%s3] sm:$0xf]
    %v425 = vsub.s32 %v424, 1
    %v426 = vld [vmem:[#allocation2] sm:$0xf]
    %v428 = vlaneseq
    %v429 = vshrl.u32 %v428, 7
    %v430 = vsub.s32 0, %v429
    %v431 = vrot.slane %v423, %v430
    %v437 = vunpack.c.l.b16 %v419
    %v438 = vunpack.c.l.b16 %v420
    %v439 = vunpack.c.l.b16 %v421
    %v440 = vunpack.c.l.b16 %v422
    %v441 = vpack.c.b16 %v438, %v437
    %v442 = vpack.c.b16 %v440, %v439
    %vm445 = vcmask 261120
    %v447 = vsel %vm445, 0, 0
    %449 = vmatprep.subr.bf16.mxu0 0
    %450 = vmatpush1.bf16.msra.mxu0 %v441
    %451 = vmatprep.subr.bf16.mxu0 0
    %452 = vmatpush1.bf16.msra.mxu0 %v442
    %453 = vmatprep.subr.bf16.mxu0 0
    %454 = vmatpush1.bf16.msra.mxu0 0
    %455 = vmatprep.subr.bf16.mxu0 0
    %456 = vmatpush1.bf16.msra.mxu0 0
    %457 = vmatprep.subr.bf16.mxu0 0
    %458 = vmatpush1.bf16.msra.mxu0 0
    %459 = vmatprep.subr.bf16.mxu0 0
    %460 = vmatpush1.bf16.msra.mxu0 0
    %461 = vmatprep.subr.bf16.mxu0 0
    %462 = vmatpush1.bf16.msra.mxu0 0
    %463 = vmatprep.subr.bf16.mxu0 0
    %464 = vmatpush1.bf16.msra.mxu0 0
    %465 = vmatprep.subr.bf16.mxu0 0
    %466 = vmatpush1.bf16.msra.mxu0 0
    %467 = vmatprep.subr.bf16.mxu0 0
    %468 = vmatpush1.bf16.msra.mxu0 0
    %469 = vmatprep.subr.bf16.mxu0 0
    %470 = vmatpush1.bf16.msra.mxu0 0
    %471 = vmatprep.subr.bf16.mxu0 0
    %472 = vmatpush1.bf16.msra.mxu0 0
    %473 = vmatprep.subr.bf16.mxu0 0
    %474 = vmatpush1.bf16.msra.mxu0 0
    %475 = vmatprep.subr.bf16.mxu0 0
    %476 = vmatpush1.bf16.msra.mxu0 0
    %477 = vmatprep.subr.bf16.mxu0 0
    %478 = vmatpush1.bf16.msra.mxu0 0
    %479 = vmatprep.subr.bf16.mxu0 0
    %480 = vmatpush1.bf16.msra.mxu0 0
    %481 = vmatprep.mubr.bf16.mxu0 0
    %482 = vmatmul.mubr.bf16.gmra.mrb[0].mxu0 %v447
    %v483 = vpop.f32.mrb[0].mxu0
    %v484 = vadd.f32 %v431, %v483
    %v485 = vpop.f32.mrb[0].mxu0
    %v486 = vpop.f32.mrb[0].mxu0
    %v487 = vpop.f32.mrb[0].mxu0
    %488 = vdwg.mxu0
    %v489 = vadd.f32 %v426, %v484
    %v490 = vxor.u32 %v489, 2147483648
    %v491 = vmul.f32 %v490, 1.442695
    %v492 = vpow.pop %v491
    %v493 = vadd.f32 %v492, 1.0
    %v494 = vrcp.pop %v493
    %v495 = vmul.f32 1.0, %v494
    %497 = vrot.lane.b32.xlu0 %v484, 64
    %v498 = vpop.permute.xlu0 %497
    %v500 = vmul.f32 %v495, %v498
    %502 = vrot.lane.b32.xlu0 %v500, 64
    %v503 = vpop.permute.xlu0 %502
    %v505 = vadd.f32 %v426, %v503
    %v506 = vtanh.pop %v505
    %v507 = vsub.f32 1.0, %v495
    %509 = vrot.lane.b32.xlu0 %v506, 96
    %v510 = vpop.permute.xlu0 %509
    %v512 = vmul.f32 %v507, %v510
    %v513 = vmul.f32 %v495, 0.0
    %v514 = vadd.f32 %v512, %v513
    %516 = vrot.lane.b32.xlu0 %v514, 96
    %v517 = vpop.permute.xlu0 %516
    %vm519 = vcmask 257024
    %520 = vst.msk [vmem:[%s61] sm:$0xf] %vm519, %v517
    %vm521 = vcmp.eq.s32.totalorder %v425, 0
    %v522 = vsel %vm521, 1, 0
    %523 = vset.pattern.permute.xlu0 0
    %524 = vperm.xlu0 %523, %v522
    %v525 = vpop.permute.xlu0 %524
    %vm526 = vcmp.eq.s32.totalorder %v525, 1
    %v527 = vsel %vm526, %v514, 0.0
    %s528 = scalar_lea.vmem [#allocation2], 4
    %v529 = vld [vmem:[%s528] sm:$0xf]
    %v530 = vpack.c.bf16 %v514, %v514
    %532 = vrot.lane.b32.xlu0 %v530, 96
    %v533 = vpop.permute.xlu0 %532
    %v535 = vsel %vm445, %v533, 0
    %537 = vmatprep.subr.bf16.mxu0 0
    %538 = vmatpush1.bf16.msra.mxu0 %v441
    %539 = vmatprep.subr.bf16.mxu0 0
    %540 = vmatpush1.bf16.msra.mxu0 %v442
    %541 = vmatprep.subr.bf16.mxu0 0
    %542 = vmatpush1.bf16.msra.mxu0 0
    %543 = vmatprep.subr.bf16.mxu0 0
    %544 = vmatpush1.bf16.msra.mxu0 0
    %545 = vmatprep.subr.bf16.mxu0 0
    %546 = vmatpush1.bf16.msra.mxu0 0
    %547 = vmatprep.subr.bf16.mxu0 0
    %548 = vmatpush1.bf16.msra.mxu0 0
    %549 = vmatprep.subr.bf16.mxu0 0
    %550 = vmatpush1.bf16.msra.mxu0 0
    %551 = vmatprep.subr.bf16.mxu0 0
    %552 = vmatpush1.bf16.msra.mxu0 0
    %553 = vmatprep.subr.bf16.mxu0 0
    %554 = vmatpush1.bf16.msra.mxu0 0
    %555 = vmatprep.subr.bf16.mxu0 0
    %556 = vmatpush1.bf16.msra.mxu0 0
    %557 = vmatprep.subr.bf16.mxu0 0
    %558 = vmatpush1.bf16.msra.mxu0 0
    %559 = vmatprep.subr.bf16.mxu0 0
    %560 = vmatpush1.bf16.msra.mxu0 0
    %561 = vmatprep.subr.bf16.mxu0 0
    %562 = vmatpush1.bf16.msra.mxu0 0
    %563 = vmatprep.subr.bf16.mxu0 0
    %564 = vmatpush1.bf16.msra.mxu0 0
    %565 = vmatprep.subr.bf16.mxu0 0
    %566 = vmatpush1.bf16.msra.mxu0 0
    %567 = vmatprep.subr.bf16.mxu0 0
    %568 = vmatpush1.bf16.msra.mxu0 0
    %569 = vmatprep.mubr.bf16.mxu0 0
    %570 = vmatmul.mubr.bf16.gmra.mrb[0].mxu0 %v535
    %v571 = vpop.f32.mrb[0].mxu0
    %v572 = vadd.f32 %v431, %v571
    %v573 = vpop.f32.mrb[0].mxu0
    %v574 = vpop.f32.mrb[0].mxu0
    %v575 = vpop.f32.mrb[0].mxu0
    %576 = vdwg.mxu0
    %v577 = vadd.f32 %v529, %v572
    %v578 = vxor.u32 %v577, 2147483648
    %v579 = vmul.f32 %v578, 1.442695
    %v580 = vpow.pop %v579
    %v581 = vadd.f32 %v580, 1.0
    %v582 = vrcp.pop %v581
    %v583 = vmul.f32 1.0, %v582
    %585 = vrot.lane.b32.xlu0 %v572, 64
    %v586 = vpop.permute.xlu0 %585
    %v588 = vmul.f32 %v583, %v586
    %590 = vrot.lane.b32.xlu0 %v588, 64
    %v591 = vpop.permute.xlu0 %590
    %v593 = vadd.f32 %v529, %v591
    %v594 = vtanh.pop %v593
    %v595 = vsub.f32 1.0, %v583
    %597 = vrot.lane.b32.xlu0 %v594, 96
    %v598 = vpop.permute.xlu0 %597
    %v600 = vmul.f32 %v595, %v598
    %v601 = vmul.f32 %v583, %v514
    %v602 = vadd.f32 %v600, %v601
    %604 = vrot.lane.b32.xlu0 %v602, 96
    %v605 = vpop.permute.xlu0 %604
    %s607 = scalar_lea.vmem %s61, 4
    %608 = vst.msk [vmem:[%s607] sm:$0xf] %vm519, %v605
    %vm609 = vcmp.eq.s32.totalorder %v425, 1
    %v610 = vsel %vm609, 1, 0
    %611 = vset.pattern.permute.xlu0 0
    %612 = vperm.xlu0 %611, %v610
    %v613 = vpop.permute.xlu0 %612
    %vm614 = vcmp.eq.s32.totalorder %v613, 1
    %v615 = vsel %vm614, %v602, %v527
    %s616 = scalar_lea.vmem [#allocation2], 8
    %v617 = vld [vmem:[%s616] sm:$0xf]
    %v618 = vpack.c.bf16 %v602, %v602
    %620 = vrot.lane.b32.xlu0 %v618, 96
    %v621 = vpop.permute.xlu0 %620
    %v623 = vsel %vm445, %v621, 0
    %625 = vmatprep.subr.bf16.mxu0 0
    %626 = vmatpush1.bf16.msra.mxu0 %v441
    %627 = vmatprep.subr.bf16.mxu0 0
    %628 = vmatpush1.bf16.msra.mxu0 %v442
    %629 = vmatprep.subr.bf16.mxu0 0
    %630 = vmatpush1.bf16.msra.mxu0 0
    %631 = vmatprep.subr.bf16.mxu0 0
    %632 = vmatpush1.bf16.msra.mxu0 0
    %633 = vmatprep.subr.bf16.mxu0 0
    %634 = vmatpush1.bf16.msra.mxu0 0
    %635 = vmatprep.subr.bf16.mxu0 0
    %636 = vmatpush1.bf16.msra.mxu0 0
    %637 = vmatprep.subr.bf16.mxu0 0
    %638 = vmatpush1.bf16.msra.mxu0 0
    %639 = vmatprep.subr.bf16.mxu0 0
    %640 = vmatpush1.bf16.msra.mxu0 0
    %641 = vmatprep.subr.bf16.mxu0 0
    %642 = vmatpush1.bf16.msra.mxu0 0
    %643 = vmatprep.subr.bf16.mxu0 0
    %644 = vmatpush1.bf16.msra.mxu0 0
    %645 = vmatprep.subr.bf16.mxu0 0
    %646 = vmatpush1.bf16.msra.mxu0 0
    %647 = vmatprep.subr.bf16.mxu0 0
    %648 = vmatpush1.bf16.msra.mxu0 0
    %649 = vmatprep.subr.bf16.mxu0 0
    %650 = vmatpush1.bf16.msra.mxu0 0
    %651 = vmatprep.subr.bf16.mxu0 0
    %652 = vmatpush1.bf16.msra.mxu0 0
    %653 = vmatprep.subr.bf16.mxu0 0
    %654 = vmatpush1.bf16.msra.mxu0 0
    %655 = vmatprep.subr.bf16.mxu0 0
    %656 = vmatpush1.bf16.msra.mxu0 0
    %657 = vmatprep.mubr.bf16.mxu0 0
    %658 = vmatmul.mubr.bf16.gmra.mrb[0].mxu0 %v623
    %v659 = vpop.f32.mrb[0].mxu0
    %v660 = vadd.f32 %v431, %v659
    %v661 = vpop.f32.mrb[0].mxu0
    %v662 = vpop.f32.mrb[0].mxu0
    %v663 = vpop.f32.mrb[0].mxu0
    %664 = vdwg.mxu0
    %v665 = vadd.f32 %v617, %v660
    %v666 = vxor.u32 %v665, 2147483648
    %v667 = vmul.f32 %v666, 1.442695
    %v668 = vpow.pop %v667
    %v669 = vadd.f32 %v668, 1.0
    %v670 = vrcp.pop %v669
    %v671 = vmul.f32 1.0, %v670
    %673 = vrot.lane.b32.xlu0 %v660, 64
    %v674 = vpop.permute.xlu0 %673
    %v676 = vmul.f32 %v671, %v674
    %678 = vrot.lane.b32.xlu0 %v676, 64
    %v679 = vpop.permute.xlu0 %678
    %v681 = vadd.f32 %v617, %v679
    %v682 = vtanh.pop %v681
    %v683 = vsub.f32 1.0, %v671
    %685 = vrot.lane.b32.xlu0 %v682, 96
    %v686 = vpop.permute.xlu0 %685
    %v688 = vmul.f32 %v683, %v686
    %v689 = vmul.f32 %v671, %v602
    %v690 = vadd.f32 %v688, %v689
    %692 = vrot.lane.b32.xlu0 %v690, 96
    %v693 = vpop.permute.xlu0 %692
    %s695 = scalar_lea.vmem %s61, 8
    %696 = vst.msk [vmem:[%s695] sm:$0xf] %vm519, %v693
    %vm697 = vcmp.eq.s32.totalorder %v425, 2
    %v698 = vsel %vm697, 1, 0
    %699 = vset.pattern.permute.xlu0 0
    %700 = vperm.xlu0 %699, %v698
    %v701 = vpop.permute.xlu0 %700
    %vm702 = vcmp.eq.s32.totalorder %v701, 1
    %v703 = vsel %vm702, %v690, %v615
    %s704 = scalar_lea.vmem [#allocation2], 12
    %v705 = vld [vmem:[%s704] sm:$0xf]
    %v706 = vpack.c.bf16 %v690, %v690
    %708 = vrot.lane.b32.xlu0 %v706, 96
    %v709 = vpop.permute.xlu0 %708
    %v711 = vsel %vm445, %v709, 0
    %713 = vmatprep.subr.bf16.mxu0 0
    %714 = vmatpush1.bf16.msra.mxu0 %v441
    %715 = vmatprep.subr.bf16.mxu0 0
    %716 = vmatpush1.bf16.msra.mxu0 %v442
    %717 = vmatprep.subr.bf16.mxu0 0
    %718 = vmatpush1.bf16.msra.mxu0 0
    %719 = vmatprep.subr.bf16.mxu0 0
    %720 = vmatpush1.bf16.msra.mxu0 0
    %721 = vmatprep.subr.bf16.mxu0 0
    %722 = vmatpush1.bf16.msra.mxu0 0
    %723 = vmatprep.subr.bf16.mxu0 0
    %724 = vmatpush1.bf16.msra.mxu0 0
    %725 = vmatprep.subr.bf16.mxu0 0
    %726 = vmatpush1.bf16.msra.mxu0 0
    %727 = vmatprep.subr.bf16.mxu0 0
    %728 = vmatpush1.bf16.msra.mxu0 0
    %729 = vmatprep.subr.bf16.mxu0 0
    %730 = vmatpush1.bf16.msra.mxu0 0
    %731 = vmatprep.subr.bf16.mxu0 0
    %732 = vmatpush1.bf16.msra.mxu0 0
    %733 = vmatprep.subr.bf16.mxu0 0
    %734 = vmatpush1.bf16.msra.mxu0 0
    %735 = vmatprep.subr.bf16.mxu0 0
    %736 = vmatpush1.bf16.msra.mxu0 0
    %737 = vmatprep.subr.bf16.mxu0 0
    %738 = vmatpush1.bf16.msra.mxu0 0
    %739 = vmatprep.subr.bf16.mxu0 0
    %740 = vmatpush1.bf16.msra.mxu0 0
    %741 = vmatprep.subr.bf16.mxu0 0
    %742 = vmatpush1.bf16.msra.mxu0 0
    %743 = vmatprep.subr.bf16.mxu0 0
    %744 = vmatpush1.bf16.msra.mxu0 0
    %745 = vmatprep.mubr.bf16.mxu0 0
    %746 = vmatmul.mubr.bf16.gmra.mrb[0].mxu0 %v711
    %v747 = vpop.f32.mrb[0].mxu0
    %v748 = vadd.f32 %v431, %v747
    %v749 = vpop.f32.mrb[0].mxu0
    %v750 = vpop.f32.mrb[0].mxu0
    %v751 = vpop.f32.mrb[0].mxu0
    %752 = vdwg.mxu0
    %v753 = vadd.f32 %v705, %v748
    %v754 = vxor.u32 %v753, 2147483648
    %v755 = vmul.f32 %v754, 1.442695
    %v756 = vpow.pop %v755
    %v757 = vadd.f32 %v756, 1.0
    %v758 = vrcp.pop %v757
    %v759 = vmul.f32 1.0, %v758
    %761 = vrot.lane.b32.xlu0 %v748, 64
    %v762 = vpop.permute.xlu0 %761
    %v764 = vmul.f32 %v759, %v762
    %766 = vrot.lane.b32.xlu0 %v764, 64
    %v767 = vpop.permute.xlu0 %766
    %v769 = vadd.f32 %v705, %v767
    %v770 = vtanh.pop %v769
    %v771 = vsub.f32 1.0, %v759
    %773 = vrot.lane.b32.xlu0 %v770, 96
    %v774 = vpop.permute.xlu0 %773
    %v776 = vmul.f32 %v771, %v774
    %v777 = vmul.f32 %v759, %v690
    %v778 = vadd.f32 %v776, %v777
    %780 = vrot.lane.b32.xlu0 %v778, 96
    %v781 = vpop.permute.xlu0 %780
    %s783 = scalar_lea.vmem %s61, 12
    %784 = vst.msk [vmem:[%s783] sm:$0xf] %vm519, %v781
    %vm785 = vcmp.eq.s32.totalorder %v425, 3
    %v786 = vsel %vm785, 1, 0
    %787 = vset.pattern.permute.xlu0 0
    %788 = vperm.xlu0 %787, %v786
    %v789 = vpop.permute.xlu0 %788
    %vm790 = vcmp.eq.s32.totalorder %v789, 1
    %v791 = vsel %vm790, %v778, %v703
    %s792 = scalar_lea.vmem [#allocation2], 16
    %v793 = vld [vmem:[%s792] sm:$0xf]
    %v794 = vpack.c.bf16 %v778, %v778
    %796 = vrot.lane.b32.xlu0 %v794, 96
    %v797 = vpop.permute.xlu0 %796
    %v799 = vsel %vm445, %v797, 0
    %801 = vmatprep.subr.bf16.mxu0 0
    %802 = vmatpush1.bf16.msra.mxu0 %v441
    %803 = vmatprep.subr.bf16.mxu0 0
    %804 = vmatpush1.bf16.msra.mxu0 %v442
    %805 = vmatprep.subr.bf16.mxu0 0
    %806 = vmatpush1.bf16.msra.mxu0 0
    %807 = vmatprep.subr.bf16.mxu0 0
    %808 = vmatpush1.bf16.msra.mxu0 0
    %809 = vmatprep.subr.bf16.mxu0 0
    %810 = vmatpush1.bf16.msra.mxu0 0
    %811 = vmatprep.subr.bf16.mxu0 0
    %812 = vmatpush1.bf16.msra.mxu0 0
    %813 = vmatprep.subr.bf16.mxu0 0
    %814 = vmatpush1.bf16.msra.mxu0 0
    %815 = vmatprep.subr.bf16.mxu0 0
    %816 = vmatpush1.bf16.msra.mxu0 0
    %817 = vmatprep.subr.bf16.mxu0 0
    %818 = vmatpush1.bf16.msra.mxu0 0
    %819 = vmatprep.subr.bf16.mxu0 0
    %820 = vmatpush1.bf16.msra.mxu0 0
    %821 = vmatprep.subr.bf16.mxu0 0
    %822 = vmatpush1.bf16.msra.mxu0 0
    %823 = vmatprep.subr.bf16.mxu0 0
    %824 = vmatpush1.bf16.msra.mxu0 0
    %825 = vmatprep.subr.bf16.mxu0 0
    %826 = vmatpush1.bf16.msra.mxu0 0
    %827 = vmatprep.subr.bf16.mxu0 0
    %828 = vmatpush1.bf16.msra.mxu0 0
    %829 = vmatprep.subr.bf16.mxu0 0
    %830 = vmatpush1.bf16.msra.mxu0 0
    %831 = vmatprep.subr.bf16.mxu0 0
    %832 = vmatpush1.bf16.msra.mxu0 0
    %833 = vmatprep.mubr.bf16.mxu0 0
    %834 = vmatmul.mubr.bf16.gmra.mrb[0].mxu0 %v799
    %v835 = vpop.f32.mrb[0].mxu0
    %v836 = vadd.f32 %v431, %v835
    %v837 = vpop.f32.mrb[0].mxu0
    %v838 = vpop.f32.mrb[0].mxu0
    %v839 = vpop.f32.mrb[0].mxu0
    %840 = vdwg.mxu0
    %v841 = vadd.f32 %v793, %v836
    %v842 = vxor.u32 %v841, 2147483648
    %v843 = vmul.f32 %v842, 1.442695
    %v844 = vpow.pop %v843
    %v845 = vadd.f32 %v844, 1.0
    %v846 = vrcp.pop %v845
    %v847 = vmul.f32 1.0, %v846
    %849 = vrot.lane.b32.xlu0 %v836, 64
    %v850 = vpop.permute.xlu0 %849
    %v852 = vmul.f32 %v847, %v850
    %854 = vrot.lane.b32.xlu0 %v852, 64
    %v855 = vpop.permute.xlu0 %854
    %v857 = vadd.f32 %v793, %v855
    %v858 = vtanh.pop %v857
    %v859 = vsub.f32 1.0, %v847
    %861 = vrot.lane.b32.xlu0 %v858, 96
    %v862 = vpop.permute.xlu0 %861
    %v864 = vmul.f32 %v859, %v862
    %v865 = vmul.f32 %v847, %v778
    %v866 = vadd.f32 %v864, %v865
    %868 = vrot.lane.b32.xlu0 %v866, 96
    %v869 = vpop.permute.xlu0 %868
    %s871 = scalar_lea.vmem %s61, 16
    %872 = vst.msk [vmem:[%s871] sm:$0xf] %vm519, %v869
    %vm873 = vcmp.eq.s32.totalorder %v425, 4
    %v874 = vsel %vm873, 1, 0
    %875 = vset.pattern.permute.xlu0 0
    %876 = vperm.xlu0 %875, %v874
    %v877 = vpop.permute.xlu0 %876
    %vm878 = vcmp.eq.s32.totalorder %v877, 1
    %v879 = vsel %vm878, %v866, %v791
    %s880 = scalar_lea.vmem [#allocation2], 20
    %v881 = vld [vmem:[%s880] sm:$0xf]
    %v882 = vpack.c.bf16 %v866, %v866
    %884 = vrot.lane.b32.xlu0 %v882, 96
    %v885 = vpop.permute.xlu0 %884
    %v887 = vsel %vm445, %v885, 0
    %889 = vmatprep.subr.bf16.mxu0 0
    %890 = vmatpush1.bf16.msra.mxu0 %v441
    %891 = vmatprep.subr.bf16.mxu0 0
    %892 = vmatpush1.bf16.msra.mxu0 %v442
    %893 = vmatprep.subr.bf16.mxu0 0
    %894 = vmatpush1.bf16.msra.mxu0 0
    %895 = vmatprep.subr.bf16.mxu0 0
    %896 = vmatpush1.bf16.msra.mxu0 0
    %897 = vmatprep.subr.bf16.mxu0 0
    %898 = vmatpush1.bf16.msra.mxu0 0
    %899 = vmatprep.subr.bf16.mxu0 0
    %900 = vmatpush1.bf16.msra.mxu0 0
    %901 = vmatprep.subr.bf16.mxu0 0
    %902 = vmatpush1.bf16.msra.mxu0 0
    %903 = vmatprep.subr.bf16.mxu0 0
    %904 = vmatpush1.bf16.msra.mxu0 0
    %905 = vmatprep.subr.bf16.mxu0 0
    %906 = vmatpush1.bf16.msra.mxu0 0
    %907 = vmatprep.subr.bf16.mxu0 0
    %908 = vmatpush1.bf16.msra.mxu0 0
    %909 = vmatprep.subr.bf16.mxu0 0
    %910 = vmatpush1.bf16.msra.mxu0 0
    %911 = vmatprep.subr.bf16.mxu0 0
    %912 = vmatpush1.bf16.msra.mxu0 0
    %913 = vmatprep.subr.bf16.mxu0 0
    %914 = vmatpush1.bf16.msra.mxu0 0
    %915 = vmatprep.subr.bf16.mxu0 0
    %916 = vmatpush1.bf16.msra.mxu0 0
    %917 = vmatprep.subr.bf16.mxu0 0
    %918 = vmatpush1.bf16.msra.mxu0 0
    %919 = vmatprep.subr.bf16.mxu0 0
    %920 = vmatpush1.bf16.msra.mxu0 0
    %921 = vmatprep.mubr.bf16.mxu0 0
    %922 = vmatmul.mubr.bf16.gmra.mrb[0].mxu0 %v887
    %v923 = vpop.f32.mrb[0].mxu0
    %v924 = vadd.f32 %v431, %v923
    %v925 = vpop.f32.mrb[0].mxu0
    %v926 = vpop.f32.mrb[0].mxu0
    %v927 = vpop.f32.mrb[0].mxu0
    %928 = vdwg.mxu0
    %v929 = vadd.f32 %v881, %v924
    %v930 = vxor.u32 %v929, 2147483648
    %v931 = vmul.f32 %v930, 1.442695
    %v932 = vpow.pop %v931
    %v933 = vadd.f32 %v932, 1.0
    %v934 = vrcp.pop %v933
    %v935 = vmul.f32 1.0, %v934
    %937 = vrot.lane.b32.xlu0 %v924, 64
    %v938 = vpop.permute.xlu0 %937
    %v940 = vmul.f32 %v935, %v938
    %942 = vrot.lane.b32.xlu0 %v940, 64
    %v943 = vpop.permute.xlu0 %942
    %v945 = vadd.f32 %v881, %v943
    %v946 = vtanh.pop %v945
    %v947 = vsub.f32 1.0, %v935
    %949 = vrot.lane.b32.xlu0 %v946, 96
    %v950 = vpop.permute.xlu0 %949
    %v952 = vmul.f32 %v947, %v950
    %v953 = vmul.f32 %v935, %v866
    %v954 = vadd.f32 %v952, %v953
    %956 = vrot.lane.b32.xlu0 %v954, 96
    %v957 = vpop.permute.xlu0 %956
    %s959 = scalar_lea.vmem %s61, 20
    %960 = vst.msk [vmem:[%s959] sm:$0xf] %vm519, %v957
    %vm961 = vcmp.eq.s32.totalorder %v425, 5
    %v962 = vsel %vm961, 1, 0
    %963 = vset.pattern.permute.xlu0 0
    %964 = vperm.xlu0 %963, %v962
    %v965 = vpop.permute.xlu0 %964
    %vm966 = vcmp.eq.s32.totalorder %v965, 1
    %v967 = vsel %vm966, %v954, %v879
    %s968 = scalar_lea.vmem [#allocation2], 24
    %v969 = vld [vmem:[%s968] sm:$0xf]
    %v970 = vpack.c.bf16 %v954, %v954
    %972 = vrot.lane.b32.xlu0 %v970, 96
    %v973 = vpop.permute.xlu0 %972
    %v975 = vsel %vm445, %v973, 0
    %977 = vmatprep.subr.bf16.mxu0 0
    %978 = vmatpush1.bf16.msra.mxu0 %v441
    %979 = vmatprep.subr.bf16.mxu0 0
    %980 = vmatpush1.bf16.msra.mxu0 %v442
    %981 = vmatprep.subr.bf16.mxu0 0
    %982 = vmatpush1.bf16.msra.mxu0 0
    %983 = vmatprep.subr.bf16.mxu0 0
    %984 = vmatpush1.bf16.msra.mxu0 0
    %985 = vmatprep.subr.bf16.mxu0 0
    %986 = vmatpush1.bf16.msra.mxu0 0
    %987 = vmatprep.subr.bf16.mxu0 0
    %988 = vmatpush1.bf16.msra.mxu0 0
    %989 = vmatprep.subr.bf16.mxu0 0
    %990 = vmatpush1.bf16.msra.mxu0 0
    %991 = vmatprep.subr.bf16.mxu0 0
    %992 = vmatpush1.bf16.msra.mxu0 0
    %993 = vmatprep.subr.bf16.mxu0 0
    %994 = vmatpush1.bf16.msra.mxu0 0
    %995 = vmatprep.subr.bf16.mxu0 0
    %996 = vmatpush1.bf16.msra.mxu0 0
    %997 = vmatprep.subr.bf16.mxu0 0
    %998 = vmatpush1.bf16.msra.mxu0 0
    %999 = vmatprep.subr.bf16.mxu0 0
    %1000 = vmatpush1.bf16.msra.mxu0 0
    %1001 = vmatprep.subr.bf16.mxu0 0
    %1002 = vmatpush1.bf16.msra.mxu0 0
    %1003 = vmatprep.subr.bf16.mxu0 0
    %1004 = vmatpush1.bf16.msra.mxu0 0
    %1005 = vmatprep.subr.bf16.mxu0 0
    %1006 = vmatpush1.bf16.msra.mxu0 0
    %1007 = vmatprep.subr.bf16.mxu0 0
    %1008 = vmatpush1.bf16.msra.mxu0 0
    %1009 = vmatprep.mubr.bf16.mxu0 0
    %1010 = vmatmul.mubr.bf16.gmra.mrb[0].mxu0 %v975
    %v1011 = vpop.f32.mrb[0].mxu0
    %v1012 = vadd.f32 %v431, %v1011
    %v1013 = vpop.f32.mrb[0].mxu0
    %v1014 = vpop.f32.mrb[0].mxu0
    %v1015 = vpop.f32.mrb[0].mxu0
    %1016 = vdwg.mxu0
    %v1017 = vadd.f32 %v969, %v1012
    %v1018 = vxor.u32 %v1017, 2147483648
    %v1019 = vmul.f32 %v1018, 1.442695
    %v1020 = vpow.pop %v1019
    %v1021 = vadd.f32 %v1020, 1.0
    %v1022 = vrcp.pop %v1021
    %v1023 = vmul.f32 1.0, %v1022
    %1025 = vrot.lane.b32.xlu0 %v1012, 64
    %v1026 = vpop.permute.xlu0 %1025
    %v1028 = vmul.f32 %v1023, %v1026
    %1030 = vrot.lane.b32.xlu0 %v1028, 64
    %v1031 = vpop.permute.xlu0 %1030
    %v1033 = vadd.f32 %v969, %v1031
    %v1034 = vtanh.pop %v1033
    %v1035 = vsub.f32 1.0, %v1023
    %1037 = vrot.lane.b32.xlu0 %v1034, 96
    %v1038 = vpop.permute.xlu0 %1037
    %v1040 = vmul.f32 %v1035, %v1038
    %v1041 = vmul.f32 %v1023, %v954
    %v1042 = vadd.f32 %v1040, %v1041
    %1044 = vrot.lane.b32.xlu0 %v1042, 96
    %v1045 = vpop.permute.xlu0 %1044
    %s1047 = scalar_lea.vmem %s61, 24
    %1048 = vst.msk [vmem:[%s1047] sm:$0xf] %vm519, %v1045
    %vm1049 = vcmp.eq.s32.totalorder %v425, 6
    %v1050 = vsel %vm1049, 1, 0
    %1051 = vset.pattern.permute.xlu0 0
    %1052 = vperm.xlu0 %1051, %v1050
    %v1053 = vpop.permute.xlu0 %1052
    %vm1054 = vcmp.eq.s32.totalorder %v1053, 1
    %v1055 = vsel %vm1054, %v1042, %v967
    %s1056 = scalar_lea.vmem [#allocation2], 28
    %v1057 = vld [vmem:[%s1056] sm:$0xf]
    %v1058 = vpack.c.bf16 %v1042, %v1042
    %1060 = vrot.lane.b32.xlu0 %v1058, 96
    %v1061 = vpop.permute.xlu0 %1060
    %v1063 = vsel %vm445, %v1061, 0
    %1065 = vmatprep.subr.bf16.mxu0 0
    %1066 = vmatpush1.bf16.msra.mxu0 %v441
    %1067 = vmatprep.subr.bf16.mxu0 0
    %1068 = vmatpush1.bf16.msra.mxu0 %v442
    %1069 = vmatprep.subr.bf16.mxu0 0
    %1070 = vmatpush1.bf16.msra.mxu0 0
    %1071 = vmatprep.subr.bf16.mxu0 0
    %1072 = vmatpush1.bf16.msra.mxu0 0
    %1073 = vmatprep.subr.bf16.mxu0 0
    %1074 = vmatpush1.bf16.msra.mxu0 0
    %1075 = vmatprep.subr.bf16.mxu0 0
    %1076 = vmatpush1.bf16.msra.mxu0 0
    %1077 = vmatprep.subr.bf16.mxu0 0
    %1078 = vmatpush1.bf16.msra.mxu0 0
    %1079 = vmatprep.subr.bf16.mxu0 0
    %1080 = vmatpush1.bf16.msra.mxu0 0
    %1081 = vmatprep.subr.bf16.mxu0 0
    %1082 = vmatpush1.bf16.msra.mxu0 0
    %1083 = vmatprep.subr.bf16.mxu0 0
    %1084 = vmatpush1.bf16.msra.mxu0 0
    %1085 = vmatprep.subr.bf16.mxu0 0
    %1086 = vmatpush1.bf16.msra.mxu0 0
    %1087 = vmatprep.subr.bf16.mxu0 0
    %1088 = vmatpush1.bf16.msra.mxu0 0
    %1089 = vmatprep.subr.bf16.mxu0 0
    %1090 = vmatpush1.bf16.msra.mxu0 0
    %1091 = vmatprep.subr.bf16.mxu0 0
    %1092 = vmatpush1.bf16.msra.mxu0 0
    %1093 = vmatprep.subr.bf16.mxu0 0
    %1094 = vmatpush1.bf16.msra.mxu0 0
    %1095 = vmatprep.subr.bf16.mxu0 0
    %1096 = vmatpush1.bf16.msra.mxu0 0
    %1097 = vmatprep.mubr.bf16.mxu0 0
    %1098 = vmatmul.mubr.bf16.gmra.mrb[0].mxu0 %v1063
    %v1099 = vpop.f32.mrb[0].mxu0
    %v1100 = vadd.f32 %v431, %v1099
    %v1101 = vpop.f32.mrb[0].mxu0
    %v1102 = vpop.f32.mrb[0].mxu0
    %v1103 = vpop.f32.mrb[0].mxu0
    %1104 = vdwg.mxu0
    %v1105 = vadd.f32 %v1057, %v1100
    %v1106 = vxor.u32 %v1105, 2147483648
    %v1107 = vmul.f32 %v1106, 1.442695
    %v1108 = vpow.pop %v1107
    %v1109 = vadd.f32 %v1108, 1.0
    %v1110 = vrcp.pop %v1109
    %v1111 = vmul.f32 1.0, %v1110
    %1113 = vrot.lane.b32.xlu0 %v1100, 64
    %v1114 = vpop.permute.xlu0 %1113
    %v1116 = vmul.f32 %v1111, %v1114
    %1118 = vrot.lane.b32.xlu0 %v1116, 64
    %v1119 = vpop.permute.xlu0 %1118
    %v1121 = vadd.f32 %v1057, %v1119
    %v1122 = vtanh.pop %v1121
    %v1123 = vsub.f32 1.0, %v1111
    %1125 = vrot.lane.b32.xlu0 %v1122, 96
    %v1126 = vpop.permute.xlu0 %1125
    %v1128 = vmul.f32 %v1123, %v1126
    %v1129 = vmul.f32 %v1111, %v1042
    %v1130 = vadd.f32 %v1128, %v1129
    %1132 = vrot.lane.b32.xlu0 %v1130, 96
    %v1133 = vpop.permute.xlu0 %1132
    %s1135 = scalar_lea.vmem %s61, 28
    %1136 = vst.msk [vmem:[%s1135] sm:$0xf] %vm519, %v1133
    %vm1137 = vcmp.eq.s32.totalorder %v425, 7
    %v1138 = vsel %vm1137, 1, 0
    %1139 = vset.pattern.permute.xlu0 0
    %1140 = vperm.xlu0 %1139, %v1138
    %v1141 = vpop.permute.xlu0 %1140
    %vm1142 = vcmp.eq.s32.totalorder %v1141, 1
    %v1143 = vsel %vm1142, %v1130, %v1055
    %v1144 = vld [vmem:[#allocation13] sm:$0x1]
    %v1145 = vld [vmem:[#allocation14] sm:$0x1]
    %1147 = vrot.lane.b32.xlu0 %v1143, 96
    %v1148 = vpop.permute.xlu0 %1147
    %v1150 = vsel %vm519, %v1148, 0.0
    %1151 = vadd.xlane.f32.xlu0 %v1150
    %v1152 = vpop.xlane.xlu0 %1151
    %v1153 = vrcp.pop 32.0
    %v1154 = vmul.f32 %v1152, %v1153
    %v1155 = vsub.f32 %v1143, %v1154
    %v1156 = vmul.f32 %v1155, %v1155
    %1158 = vrot.lane.b32.xlu0 %v1156, 96
    %v1159 = vpop.permute.xlu0 %1158
    %v1161 = vsel %vm519, %v1159, 0.0
    %1162 = vadd.xlane.f32.xlu0 %v1161
    %v1163 = vpop.xlane.xlu0 %1162
    %v1164 = vmul.f32 %v1163, %v1153
    %v1165 = vadd.f32 %v1164, 1e-05
    %v1166 = vrsqrt.pop %v1165
    %v1167 = vmul.f32 %v1155, %v1166
    %v1169 = vlaneseq
    %v1170 = vshrl.u32 %v1169, 7
    %v1171 = vsub.s32 0, %v1170
    %v1172 = vrot.slane %v1144, %v1171
    %1173 = vrot.lane.b32.xlu0 %v1172, 32
    %v1174 = vpop.permute.xlu0 %1173
    %v1176 = vmul.f32 %v1167, %v1174
    %v1178 = vlaneseq
    %v1179 = vshrl.u32 %v1178, 7
    %v1180 = vsub.s32 0, %v1179
    %v1181 = vrot.slane %v1145, %v1180
    %1182 = vrot.lane.b32.xlu0 %v1181, 32
    %v1183 = vpop.permute.xlu0 %1182
    %v1185 = vadd.f32 %v1176, %v1183
    %1187 = vrot.lane.b32.xlu0 %v1185, 96
    %v1188 = vpop.permute.xlu0 %1187
    %1190 = vst.msk [vmem:[#allocation23] sm:$0xf] %vm519, %v1188
    %v1191 = vpack.c.bf16 %v1185, %v1185
    %v1192 = vld [vmem:[%s21] sm:$0xf]
    %v1193 = vld [vmem:[%s21 + $0x4] sm:$0xf]
    %v1194 = vld [vmem:[%s21 + $0x8] sm:$0xf]
    %v1195 = vld [vmem:[%s21 + $0xc] sm:$0xf]
    %v1196 = vld [vmem:[#allocation16] sm:$0x1]
    %v1198 = vlaneseq
    %v1199 = vshrl.u32 %v1198, 7
    %v1200 = vsub.s32 0, %v1199
    %v1201 = vrot.slane %v1196, %v1200
    %1204 = vrot.lane.b32.xlu0 %v1191, 96
    %v1205 = vpop.permute.xlu0 %1204
    %v1210 = vunpack.c.l.b16 %v1192
    %v1211 = vunpack.c.l.b16 %v1193
    %v1212 = vunpack.c.l.b16 %v1194
    %v1213 = vunpack.c.l.b16 %v1195
    %v1214 = vpack.c.b16 %v1211, %v1210
    %v1215 = vpack.c.b16 %v1213, %v1212
    %v1219 = vsel %vm445, %v1205, 0
    %1221 = vmatprep.subr.bf16.mxu0 0
    %1222 = vmatpush1.bf16.msra.mxu0 %v1214
    %1223 = vmatprep.subr.bf16.mxu0 0
    %1224 = vmatpush1.bf16.msra.mxu0 %v1215
    %1225 = vmatprep.subr.bf16.mxu0 0
    %1226 = vmatpush1.bf16.msra.mxu0 0
    %1227 = vmatprep.subr.bf16.mxu0 0
    %1228 = vmatpush1.bf16.msra.mxu0 0
    %1229 = vmatprep.subr.bf16.mxu0 0
    %1230 = vmatpush1.bf16.msra.mxu0 0
    %1231 = vmatprep.subr.bf16.mxu0 0
    %1232 = vmatpush1.bf16.msra.mxu0 0
    %1233 = vmatprep.subr.bf16.mxu0 0
    %1234 = vmatpush1.bf16.msra.mxu0 0
    %1235 = vmatprep.subr.bf16.mxu0 0
    %1236 = vmatpush1.bf16.msra.mxu0 0
    %1237 = vmatprep.subr.bf16.mxu0 0
    %1238 = vmatpush1.bf16.msra.mxu0 0
    %1239 = vmatprep.subr.bf16.mxu0 0
    %1240 = vmatpush1.bf16.msra.mxu0 0
    %1241 = vmatprep.subr.bf16.mxu0 0
    %1242 = vmatpush1.bf16.msra.mxu0 0
    %1243 = vmatprep.subr.bf16.mxu0 0
    %1244 = vmatpush1.bf16.msra.mxu0 0
    %1245 = vmatprep.subr.bf16.mxu0 0
    %1246 = vmatpush1.bf16.msra.mxu0 0
    %1247 = vmatprep.subr.bf16.mxu0 0
    %1248 = vmatpush1.bf16.msra.mxu0 0
    %1249 = vmatprep.subr.bf16.mxu0 0
    %1250 = vmatpush1.bf16.msra.mxu0 0
    %1251 = vmatprep.subr.bf16.mxu0 0
    %1252 = vmatpush1.bf16.msra.mxu0 0
    %1253 = vmatprep.mubr.bf16.mxu0 0
    %1254 = vmatmul.mubr.bf16.gmra.mrb[0].mxu0 %v1219
    %v1255 = vpop.f32.mrb[0].mxu0
    %v1256 = vadd.f32 %v1201, %v1255
    %v1257 = vpop.f32.mrb[0].mxu0
    %v1258 = vpop.f32.mrb[0].mxu0
    %v1259 = vpop.f32.mrb[0].mxu0
    %1260 = vdwg.mxu0
    %v1261 = vld [vmem:[%s25] sm:$0xf]
    %v1262 = vld [vmem:[%s25 + $0x4] sm:$0xf]
    %v1263 = vld [vmem:[%s25 + $0x8] sm:$0xf]
    %v1264 = vld [vmem:[%s25 + $0xc] sm:$0xf]
    %v1265 = vld [vmem:[%s27] sm:$0x1]
    %v1267 = vlaneseq
    %v1268 = vshrl.u32 %v1267, 7
    %v1269 = vsub.s32 0, %v1268
    %v1270 = vrot.slane %v1265, %v1269
    %v1276 = vunpack.c.l.b16 %v1261
    %v1277 = vunpack.c.l.b16 %v1262
    %v1278 = vunpack.c.l.b16 %v1263
    %v1279 = vunpack.c.l.b16 %v1264
    %v1280 = vpack.c.b16 %v1277, %v1276
    %v1281 = vpack.c.b16 %v1279, %v1278
    %1284 = vmatprep.subr.bf16.mxu0 0
    %1285 = vmatpush1.bf16.msra.mxu0 %v1280
    %1286 = vmatprep.subr.bf16.mxu0 0
    %1287 = vmatpush1.bf16.msra.mxu0 %v1281
    %1288 = vmatprep.subr.bf16.mxu0 0
    %1289 = vmatpush1.bf16.msra.mxu0 0
    %1290 = vmatprep.subr.bf16.mxu0 0
    %1291 = vmatpush1.bf16.msra.mxu0 0
    %1292 = vmatprep.subr.bf16.mxu0 0
    %1293 = vmatpush1.bf16.msra.mxu0 0
    %1294 = vmatprep.subr.bf16.mxu0 0
    %1295 = vmatpush1.bf16.msra.mxu0 0
    %1296 = vmatprep.subr.bf16.mxu0 0
    %1297 = vmatpush1.bf16.msra.mxu0 0
    %1298 = vmatprep.subr.bf16.mxu0 0
    %1299 = vmatpush1.bf16.msra.mxu0 0
    %1300 = vmatprep.subr.bf16.mxu0 0
    %1301 = vmatpush1.bf16.msra.mxu0 0
    %1302 = vmatprep.subr.bf16.mxu0 0
    %1303 = vmatpush1.bf16.msra.mxu0 0
    %1304 = vmatprep.subr.bf16.mxu0 0
    %1305 = vmatpush1.bf16.msra.mxu0 0
    %1306 = vmatprep.subr.bf16.mxu0 0
    %1307 = vmatpush1.bf16.msra.mxu0 0
    %1308 = vmatprep.subr.bf16.mxu0 0
    %1309 = vmatpush1.bf16.msra.mxu0 0
    %1310 = vmatprep.subr.bf16.mxu0 0
    %1311 = vmatpush1.bf16.msra.mxu0 0
    %1312 = vmatprep.subr.bf16.mxu0 0
    %1313 = vmatpush1.bf16.msra.mxu0 0
    %1314 = vmatprep.subr.bf16.mxu0 0
    %1315 = vmatpush1.bf16.msra.mxu0 0
    %1316 = vmatprep.mubr.bf16.mxu0 0
    %1317 = vmatmul.mubr.bf16.gmra.mrb[0].mxu0 %v1219
    %v1318 = vpop.f32.mrb[0].mxu0
    %v1319 = vadd.f32 %v1270, %v1318
    %v1320 = vpop.f32.mrb[0].mxu0
    %v1321 = vpop.f32.mrb[0].mxu0
    %v1322 = vpop.f32.mrb[0].mxu0
    %1323 = vdwg.mxu0
    %v1324 = vld [vmem:[%s39] sm:$0xf]
    %v1325 = vld [vmem:[%s39 + $0x4] sm:$0xf]
    %v1326 = vld [vmem:[%s39 + $0x8] sm:$0xf]
    %v1327 = vld [vmem:[%s39 + $0xc] sm:$0xf]
    %v1328 = vld [vmem:[%s41] sm:$0x1]
    %v1330 = vlaneseq
    %v1331 = vshrl.u32 %v1330, 7
    %v1332 = vsub.s32 0, %v1331
    %v1333 = vrot.slane %v1328, %v1332
    %v1339 = vunpack.c.l.b16 %v1324
    %v1340 = vunpack.c.l.b16 %v1325
    %v1341 = vunpack.c.l.b16 %v1326
    %v1342 = vunpack.c.l.b16 %v1327
    %v1343 = vpack.c.b16 %v1340, %v1339
    %v1344 = vpack.c.b16 %v1342, %v1341
    %1347 = vmatprep.subr.bf16.mxu0 0
    %1348 = vmatpush1.bf16.msra.mxu0 %v1343
    %1349 = vmatprep.subr.bf16.mxu0 0
    %1350 = vmatpush1.bf16.msra.mxu0 %v1344
    %1351 = vmatprep.subr.bf16.mxu0 0
    %1352 = vmatpush1.bf16.msra.mxu0 0
    %1353 = vmatprep.subr.bf16.mxu0 0
    %1354 = vmatpush1.bf16.msra.mxu0 0
    %1355 = vmatprep.subr.bf16.mxu0 0
    %1356 = vmatpush1.bf16.msra.mxu0 0
    %1357 = vmatprep.subr.bf16.mxu0 0
    %1358 = vmatpush1.bf16.msra.mxu0 0
    %1359 = vmatprep.subr.bf16.mxu0 0
    %1360 = vmatpush1.bf16.msra.mxu0 0
    %1361 = vmatprep.subr.bf16.mxu0 0
    %1362 = vmatpush1.bf16.msra.mxu0 0
    %1363 = vmatprep.subr.bf16.mxu0 0
    %1364 = vmatpush1.bf16.msra.mxu0 0
    %1365 = vmatprep.subr.bf16.mxu0 0
    %1366 = vmatpush1.bf16.msra.mxu0 0
    %1367 = vmatprep.subr.bf16.mxu0 0
    %1368 = vmatpush1.bf16.msra.mxu0 0
    %1369 = vmatprep.subr.bf16.mxu0 0
    %1370 = vmatpush1.bf16.msra.mxu0 0
    %1371 = vmatprep.subr.bf16.mxu0 0
    %1372 = vmatpush1.bf16.msra.mxu0 0
    %1373 = vmatprep.subr.bf16.mxu0 0
    %1374 = vmatpush1.bf16.msra.mxu0 0
    %1375 = vmatprep.subr.bf16.mxu0 0
    %1376 = vmatpush1.bf16.msra.mxu0 0
    %1377 = vmatprep.subr.bf16.mxu0 0
    %1378 = vmatpush1.bf16.msra.mxu0 0
    %1379 = vmatprep.mubr.bf16.mxu0 0
    %1380 = vmatmul.mubr.bf16.gmra.mrb[0].mxu0 %v1219
    %v1381 = vpop.f32.mrb[0].mxu0
    %v1382 = vadd.f32 %v1333, %v1381
    %v1383 = vpop.f32.mrb[0].mxu0
    %v1384 = vpop.f32.mrb[0].mxu0
    %v1385 = vpop.f32.mrb[0].mxu0
    %1386 = vdwg.mxu0
    %v1387 = vpack.c.bf16 %v1256, %v1256
    %v1388 = vld [vmem:[%s31] sm:$0xf]
    %v1389 = vld [vmem:[%s31 + $0x4] sm:$0xf]
    %v1390 = vld [vmem:[%s33] sm:$0x1]
    %v1392 = vlaneseq
    %v1393 = vshrl.u32 %v1392, 7
    %v1394 = vsub.s32 0, %v1393
    %v1395 = vrot.slane %v1390, %v1394
    %v1399 = vunpack.c.l.b16 %v1388
    %v1400 = vunpack.c.l.b16 %v1389
    %v1401 = vpack.c.b16 %v1400, %v1399
    %v1404 = vsel %vm268, %v1387, 0
    %1406 = vmatprep.subr.bf16.mxu0 0
    %1407 = vmatpush1.bf16.msra.mxu0 %v1401
    %1408 = vmatprep.subr.bf16.mxu0 0
    %1409 = vmatpush1.bf16.msra.mxu0 0
    %1410 = vmatprep.subr.bf16.mxu0 0
    %1411 = vmatpush1.bf16.msra.mxu0 0
    %1412 = vmatprep.subr.bf16.mxu0 0
    %1413 = vmatpush1.bf16.msra.mxu0 0
    %1414 = vmatprep.subr.bf16.mxu0 0
    %1415 = vmatpush1.bf16.msra.mxu0 0
    %1416 = vmatprep.subr.bf16.mxu0 0
    %1417 = vmatpush1.bf16.msra.mxu0 0
    %1418 = vmatprep.subr.bf16.mxu0 0
    %1419 = vmatpush1.bf16.msra.mxu0 0
    %1420 = vmatprep.subr.bf16.mxu0 0
    %1421 = vmatpush1.bf16.msra.mxu0 0
    %1422 = vmatprep.subr.bf16.mxu0 0
    %1423 = vmatpush1.bf16.msra.mxu0 0
    %1424 = vmatprep.subr.bf16.mxu0 0
    %1425 = vmatpush1.bf16.msra.mxu0 0
    %1426 = vmatprep.subr.bf16.mxu0 0
    %1427 = vmatpush1.bf16.msra.mxu0 0
    %1428 = vmatprep.subr.bf16.mxu0 0
    %1429 = vmatpush1.bf16.msra.mxu0 0
    %1430 = vmatprep.subr.bf16.mxu0 0
    %1431 = vmatpush1.bf16.msra.mxu0 0
    %1432 = vmatprep.subr.bf16.mxu0 0
    %1433 = vmatpush1.bf16.msra.mxu0 0
    %1434 = vmatprep.subr.bf16.mxu0 0
    %1435 = vmatpush1.bf16.msra.mxu0 0
    %1436 = vmatprep.subr.bf16.mxu0 0
    %1437 = vmatpush1.bf16.msra.mxu0 0
    %1438 = vmatprep.mubr.bf16.mxu0 0
    %1439 = vmatmul.mubr.bf16.gmra.mrb[0].mxu0 %v1404
    %v1440 = vpop.f32.mrb[0].mxu0
    %v1441 = vadd.f32 %v1395, %v1440
    %v1442 = vpop.f32.mrb[0].mxu0
    %v1443 = vpop.f32.mrb[0].mxu0
    %v1444 = vpop.f32.mrb[0].mxu0
    %1445 = vdwg.mxu0
    %v1446 = vpack.c.bf16 %v263, %v262
    %v1447 = vpack.c.bf16 %v265, %v264
    %v1449 = vsel %vm268, %v1446, 0
    %v1452 = vsel %vm268, %v1447, 0
    %1454 = vmatprep.subr.bf16.mxu0 0
    %1455 = vmatpush1.bf16.msra.mxu0 %v1401
    %1456 = vmatprep.subr.bf16.mxu0 0
    %1457 = vmatpush1.bf16.msra.mxu0 0
    %1458 = vmatprep.subr.bf16.mxu0 0
    %1459 = vmatpush1.bf16.msra.mxu0 0
    %1460 = vmatprep.subr.bf16.mxu0 0
    %1461 = vmatpush1.bf16.msra.mxu0 0
    %1462 = vmatprep.subr.bf16.mxu0 0
    %1463 = vmatpush1.bf16.msra.mxu0 0
    %1464 = vmatprep.subr.bf16.mxu0 0
    %1465 = vmatpush1.bf16.msra.mxu0 0
    %1466 = vmatprep.subr.bf16.mxu0 0
    %1467 = vmatpush1.bf16.msra.mxu0 0
    %1468 = vmatprep.subr.bf16.mxu0 0
    %1469 = vmatpush1.bf16.msra.mxu0 0
    %1470 = vmatprep.subr.bf16.mxu0 0
    %1471 = vmatpush1.bf16.msra.mxu0 0
    %1472 = vmatprep.subr.bf16.mxu0 0
    %1473 = vmatpush1.bf16.msra.mxu0 0
    %1474 = vmatprep.subr.bf16.mxu0 0
    %1475 = vmatpush1.bf16.msra.mxu0 0
    %1476 = vmatprep.subr.bf16.mxu0 0
    %1477 = vmatpush1.bf16.msra.mxu0 0
    %1478 = vmatprep.subr.bf16.mxu0 0
    %1479 = vmatpush1.bf16.msra.mxu0 0
    %1480 = vmatprep.subr.bf16.mxu0 0
    %1481 = vmatpush1.bf16.msra.mxu0 0
    %1482 = vmatprep.subr.bf16.mxu0 0
    %1483 = vmatpush1.bf16.msra.mxu0 0
    %1484 = vmatprep.subr.bf16.mxu0 0
    %1485 = vmatpush1.bf16.msra.mxu0 0
    %1486 = vmatprep.mubr.bf16.mxu0 0
    %1487 = vmatmul.mubr.bf16.gmra.mrb[0].mxu0 %v1449
    %v1488 = vpop.f32.mrb[0].mxu0
    %v1489 = vadd.f32 %v1395, %v1488
    %v1490 = vpop.f32.mrb[0].mxu0
    %v1491 = vpop.f32.mrb[0].mxu0
    %v1492 = vadd.f32 %v1395, %v1491
    %v1493 = vpop.f32.mrb[0].mxu0
    %1494 = vmatprep.mubr.bf16.mxu0 0
    %1495 = vmatmul.mubr.bf16.gmra.mrb[0].mxu0 %v1452
    %v1496 = vpop.f32.mrb[0].mxu0
    %v1497 = vadd.f32 %v1395, %v1496
    %v1498 = vpop.f32.mrb[0].mxu0
    %v1499 = vpop.f32.mrb[0].mxu0
    %v1500 = vadd.f32 %v1395, %v1499
    %v1501 = vpop.f32.mrb[0].mxu0
    %1502 = vdwg.mxu0
    %1503 = vst.msk [vmem:[#allocation3] sm:$0xff] %vm414, %v1489
    %1504 = vst.msk [vmem:[#allocation3 + $0x8] sm:$0xff] %vm414, %v1492
    %1505 = vst.msk [vmem:[#allocation3 + $0x10] sm:$0xff] %vm414, %v1497
    %1506 = vst.msk [vmem:[#allocation3 + $0x18] sm:$0xff] %vm414, %v1500
    %v1507 = vld [vmem:[%s29] sm:$0xf]
    %v1508 = vld [vmem:[%s29 + $0x4] sm:$0xf]
    %v1509 = vld [vmem:[%s29 + $0x8] sm:$0xf]
    %v1510 = vld [vmem:[%s29 + $0xc] sm:$0xf]
    %v1511 = vld [vmem:[%s35] sm:$0xf]
    %v1512 = vld [vmem:[%s35 + $0x4] sm:$0xf]
    %v1513 = vld [vmem:[%s35 + $0x8] sm:$0xf]
    %v1514 = vld [vmem:[%s35 + $0xc] sm:$0xf]
    %v1515 = vld [vmem:[%s37] sm:$0x1]
    %v1516 = vld [vmem:[%s43] sm:$0xf]
    %v1517 = vld [vmem:[%s43 + $0x4] sm:$0xf]
    %v1518 = vld [vmem:[%s43 + $0x8] sm:$0xf]
    %v1519 = vld [vmem:[%s43 + $0xc] sm:$0xf]
    %v1520 = vld [vmem:[%s45] sm:$0xf]
    %v1521 = vld [vmem:[%s45 + $0x4] sm:$0xf]
    %v1522 = vld [vmem:[%s45 + $0x8] sm:$0xf]
    %v1523 = vld [vmem:[%s45 + $0xc] sm:$0xf]
    %v1524 = vld [vmem:[#allocation17] sm:$0x1]
    %v1525 = vld [vmem:[%s49] sm:$0xf]
    %v1526 = vld [vmem:[%s49 + $0x4] sm:$0xf]
    %v1527 = vld [vmem:[%s49 + $0x8] sm:$0xf]
    %v1528 = vld [vmem:[%s49 + $0xc] sm:$0xf]
    %v1529 = vld [vmem:[%s51] sm:$0x1]
    %v1534 = vunpack.c.l.b16 %v1507
    %v1535 = vunpack.c.l.b16 %v1508
    %v1536 = vunpack.c.l.b16 %v1509
    %v1537 = vunpack.c.l.b16 %v1510
    %v1538 = vpack.c.b16 %v1535, %v1534
    %v1539 = vpack.c.b16 %v1537, %v1536
    %1542 = vmatprep.subr.bf16.mxu0 0
    %1543 = vmatpush1.bf16.msra.mxu0 %v1538
    %1544 = vmatprep.subr.bf16.mxu0 0
    %1545 = vmatpush1.bf16.msra.mxu0 %v1539
    %1546 = vmatprep.subr.bf16.mxu0 0
    %1547 = vmatpush1.bf16.msra.mxu0 0
    %1548 = vmatprep.subr.bf16.mxu0 0
    %1549 = vmatpush1.bf16.msra.mxu0 0
    %1550 = vmatprep.subr.bf16.mxu0 0
    %1551 = vmatpush1.bf16.msra.mxu0 0
    %1552 = vmatprep.subr.bf16.mxu0 0
    %1553 = vmatpush1.bf16.msra.mxu0 0
    %1554 = vmatprep.subr.bf16.mxu0 0
    %1555 = vmatpush1.bf16.msra.mxu0 0
    %1556 = vmatprep.subr.bf16.mxu0 0
    %1557 = vmatpush1.bf16.msra.mxu0 0
    %1558 = vmatprep.subr.bf16.mxu0 0
    %1559 = vmatpush1.bf16.msra.mxu0 0
    %1560 = vmatprep.subr.bf16.mxu0 0
    %1561 = vmatpush1.bf16.msra.mxu0 0
    %1562 = vmatprep.subr.bf16.mxu0 0
    %1563 = vmatpush1.bf16.msra.mxu0 0
    %1564 = vmatprep.subr.bf16.mxu0 0
    %1565 = vmatpush1.bf16.msra.mxu0 0
    %1566 = vmatprep.subr.bf16.mxu0 0
    %1567 = vmatpush1.bf16.msra.mxu0 0
    %1568 = vmatprep.subr.bf16.mxu0 0
    %1569 = vmatpush1.bf16.msra.mxu0 0
    %1570 = vmatprep.subr.bf16.mxu0 0
    %1571 = vmatpush1.bf16.msra.mxu0 0
    %1572 = vmatprep.subr.bf16.mxu0 0
    %1573 = vmatpush1.bf16.msra.mxu0 0
    %1574 = vmatprep.mubr.bf16.mxu0 0
    %1575 = vmatmul.mubr.bf16.gmra.mrb[0].mxu0 %v447
    %v1576 = vpop.f32.mrb[0].mxu0
    %v1577 = vadd.f32 0.0, %v1576
    %v1578 = vpop.f32.mrb[0].mxu0
    %v1579 = vpop.f32.mrb[0].mxu0
    %v1580 = vpop.f32.mrb[0].mxu0
    %1581 = vdwg.mxu0
    %v1582 = vadd.f32 %v1319, %v1577
    %v1583 = vmul.f32 %v1582, %v1582
    %v1584 = vmul.f32 %v1582, %v1583
    %v1585 = vmul.f32 %v1584, 0.044715
    %v1586 = vadd.f32 %v1582, %v1585
    %v1587 = vmul.f32 %v1586, 0.7978846
    %v1588 = vtanh.pop %v1587
    %v1589 = vadd.f32 %v1588, 1.0
    %v1590 = vmul.f32 %v1589, 0.5
    %v1591 = vmul.f32 %v1582, %v1590
    %v1592 = vpack.c.bf16 %v1591, %v1591
    %v1594 = vlaneseq
    %v1595 = vshrl.u32 %v1594, 7
    %v1596 = vsub.s32 0, %v1595
    %v1597 = vrot.slane %v1515, %v1596
    %v1603 = vunpack.c.l.b16 %v1511
    %v1604 = vunpack.c.l.b16 %v1512
    %v1605 = vunpack.c.l.b16 %v1513
    %v1606 = vunpack.c.l.b16 %v1514
    %v1607 = vpack.c.b16 %v1604, %v1603
    %v1608 = vpack.c.b16 %v1606, %v1605
    %v1612 = vsel %vm445, %v1592, 0
    %1614 = vmatprep.subr.bf16.mxu0 0
    %1615 = vmatpush1.bf16.msra.mxu0 %v1607
    %1616 = vmatprep.subr.bf16.mxu0 0
    %1617 = vmatpush1.bf16.msra.mxu0 %v1608
    %1618 = vmatprep.subr.bf16.mxu0 0
    %1619 = vmatpush1.bf16.msra.mxu0 0
    %1620 = vmatprep.subr.bf16.mxu0 0
    %1621 = vmatpush1.bf16.msra.mxu0 0
    %1622 = vmatprep.subr.bf16.mxu0 0
    %1623 = vmatpush1.bf16.msra.mxu0 0
    %1624 = vmatprep.subr.bf16.mxu0 0
    %1625 = vmatpush1.bf16.msra.mxu0 0
    %1626 = vmatprep.subr.bf16.mxu0 0
    %1627 = vmatpush1.bf16.msra.mxu0 0
    %1628 = vmatprep.subr.bf16.mxu0 0
    %1629 = vmatpush1.bf16.msra.mxu0 0
    %1630 = vmatprep.subr.bf16.mxu0 0
    %1631 = vmatpush1.bf16.msra.mxu0 0
    %1632 = vmatprep.subr.bf16.mxu0 0
    %1633 = vmatpush1.bf16.msra.mxu0 0
    %1634 = vmatprep.subr.bf16.mxu0 0
    %1635 = vmatpush1.bf16.msra.mxu0 0
    %1636 = vmatprep.subr.bf16.mxu0 0
    %1637 = vmatpush1.bf16.msra.mxu0 0
    %1638 = vmatprep.subr.bf16.mxu0 0
    %1639 = vmatpush1.bf16.msra.mxu0 0
    %1640 = vmatprep.subr.bf16.mxu0 0
    %1641 = vmatpush1.bf16.msra.mxu0 0
    %1642 = vmatprep.subr.bf16.mxu0 0
    %1643 = vmatpush1.bf16.msra.mxu0 0
    %1644 = vmatprep.subr.bf16.mxu0 0
    %1645 = vmatpush1.bf16.msra.mxu0 0
    %1646 = vmatprep.mubr.bf16.mxu0 0
    %1647 = vmatmul.mubr.bf16.gmra.mrb[0].mxu0 %v1612
    %v1648 = vpop.f32.mrb[0].mxu0
    %v1649 = vadd.f32 %v1597, %v1648
    %v1650 = vpop.f32.mrb[0].mxu0
    %v1651 = vpop.f32.mrb[0].mxu0
    %v1652 = vpop.f32.mrb[0].mxu0
    %1653 = vdwg.mxu0
    %v1654 = vadd.f32 %v1441, %v1649
    %v1655 = vxor.u32 %v1654, 2147483648
    %v1656 = vmul.f32 %v1655, 1.442695
    %v1657 = vpow.pop %v1656
    %v1658 = vadd.f32 %v1657, 1.0
    %v1659 = vrcp.pop %v1658
    %v1660 = vmul.f32 1.0, %v1659
    %1662 = vrot.lane.b32.xlu0 %v1649, 64
    %v1663 = vpop.permute.xlu0 %1662
    %v1665 = vmul.f32 %v1660, %v1663
    %1667 = vrot.lane.b32.xlu0 %v1665, 64
    %v1668 = vpop.permute.xlu0 %1667
    %v1670 = vadd.f32 %v1441, %v1668
    %v1671 = vtanh.pop %v1670
    %1673 = vrot.lane.b32.xlu0 %v1591, 32
    %v1674 = vpop.permute.xlu0 %1673
    %v1676 = vmul.f32 %v1660, %v1674
    %v1677 = vsub.f32 1.0, %v1660
    %1679 = vrot.lane.b32.xlu0 %v1671, 96
    %v1680 = vpop.permute.xlu0 %1679
    %v1682 = vmul.f32 %v1677, %v1680
    %v1683 = vadd.f32 %v1676, %v1682
    %v1684 = vpack.c.bf16 %v1683, %v1683
    %v1686 = vlaneseq
    %v1687 = vshrl.u32 %v1686, 7
    %v1688 = vsub.s32 0, %v1687
    %v1689 = vrot.slane %v1524, %v1688
    %1692 = vrot.lane.b32.xlu0 %v1684, 96
    %v1693 = vpop.permute.xlu0 %1692
    %v1698 = vunpack.c.l.b16 %v1520
    %v1699 = vunpack.c.l.b16 %v1521
    %v1700 = vunpack.c.l.b16 %v1522
    %v1701 = vunpack.c.l.b16 %v1523
    %v1702 = vpack.c.b16 %v1699, %v1698
    %v1703 = vpack.c.b16 %v1701, %v1700
    %v1707 = vsel %vm445, %v1693, 0
    %1709 = vmatprep.subr.bf16.mxu0 0
    %1710 = vmatpush1.bf16.msra.mxu0 %v1702
    %1711 = vmatprep.subr.bf16.mxu0 0
    %1712 = vmatpush1.bf16.msra.mxu0 %v1703
    %1713 = vmatprep.subr.bf16.mxu0 0
    %1714 = vmatpush1.bf16.msra.mxu0 0
    %1715 = vmatprep.subr.bf16.mxu0 0
    %1716 = vmatpush1.bf16.msra.mxu0 0
    %1717 = vmatprep.subr.bf16.mxu0 0
    %1718 = vmatpush1.bf16.msra.mxu0 0
    %1719 = vmatprep.subr.bf16.mxu0 0
    %1720 = vmatpush1.bf16.msra.mxu0 0
    %1721 = vmatprep.subr.bf16.mxu0 0
    %1722 = vmatpush1.bf16.msra.mxu0 0
    %1723 = vmatprep.subr.bf16.mxu0 0
    %1724 = vmatpush1.bf16.msra.mxu0 0
    %1725 = vmatprep.subr.bf16.mxu0 0
    %1726 = vmatpush1.bf16.msra.mxu0 0
    %1727 = vmatprep.subr.bf16.mxu0 0
    %1728 = vmatpush1.bf16.msra.mxu0 0
    %1729 = vmatprep.subr.bf16.mxu0 0
    %1730 = vmatpush1.bf16.msra.mxu0 0
    %1731 = vmatprep.subr.bf16.mxu0 0
    %1732 = vmatpush1.bf16.msra.mxu0 0
    %1733 = vmatprep.subr.bf16.mxu0 0
    %1734 = vmatpush1.bf16.msra.mxu0 0
    %1735 = vmatprep.subr.bf16.mxu0 0
    %1736 = vmatpush1.bf16.msra.mxu0 0
    %1737 = vmatprep.subr.bf16.mxu0 0
    %1738 = vmatpush1.bf16.msra.mxu0 0
    %1739 = vmatprep.subr.bf16.mxu0 0
    %1740 = vmatpush1.bf16.msra.mxu0 0
    %1741 = vmatprep.mubr.bf16.mxu0 0
    %1742 = vmatmul.mubr.bf16.gmra.mrb[0].mxu0 %v1707
    %v1743 = vpop.f32.mrb[0].mxu0
    %v1744 = vadd.f32 %v1689, %v1743
    %v1745 = vpop.f32.mrb[0].mxu0
    %v1746 = vpop.f32.mrb[0].mxu0
    %v1747 = vpop.f32.mrb[0].mxu0
    %1748 = vdwg.mxu0
    %v1753 = vunpack.c.l.b16 %v1516
    %v1754 = vunpack.c.l.b16 %v1517
    %v1755 = vunpack.c.l.b16 %v1518
    %v1756 = vunpack.c.l.b16 %v1519
    %v1757 = vpack.c.b16 %v1754, %v1753
    %v1758 = vpack.c.b16 %v1756, %v1755
    %1761 = vmatprep.subr.bf16.mxu0 0
    %1762 = vmatpush1.bf16.msra.mxu0 %v1757
    %1763 = vmatprep.subr.bf16.mxu0 0
    %1764 = vmatpush1.bf16.msra.mxu0 %v1758
    %1765 = vmatprep.subr.bf16.mxu0 0
    %1766 = vmatpush1.bf16.msra.mxu0 0
    %1767 = vmatprep.subr.bf16.mxu0 0
    %1768 = vmatpush1.bf16.msra.mxu0 0
    %1769 = vmatprep.subr.bf16.mxu0 0
    %1770 = vmatpush1.bf16.msra.mxu0 0
    %1771 = vmatprep.subr.bf16.mxu0 0
    %1772 = vmatpush1.bf16.msra.mxu0 0
    %1773 = vmatprep.subr.bf16.mxu0 0
    %1774 = vmatpush1.bf16.msra.mxu0 0
    %1775 = vmatprep.subr.bf16.mxu0 0
    %1776 = vmatpush1.bf16.msra.mxu0 0
    %1777 = vmatprep.subr.bf16.mxu0 0
    %1778 = vmatpush1.bf16.msra.mxu0 0
    %1779 = vmatprep.subr.bf16.mxu0 0
    %1780 = vmatpush1.bf16.msra.mxu0 0
    %1781 = vmatprep.subr.bf16.mxu0 0
    %1782 = vmatpush1.bf16.msra.mxu0 0
    %1783 = vmatprep.subr.bf16.mxu0 0
    %1784 = vmatpush1.bf16.msra.mxu0 0
    %1785 = vmatprep.subr.bf16.mxu0 0
    %1786 = vmatpush1.bf16.msra.mxu0 0
    %1787 = vmatprep.subr.bf16.mxu0 0
    %1788 = vmatpush1.bf16.msra.mxu0 0
    %1789 = vmatprep.subr.bf16.mxu0 0
    %1790 = vmatpush1.bf16.msra.mxu0 0
    %1791 = vmatprep.subr.bf16.mxu0 0
    %1792 = vmatpush1.bf16.msra.mxu0 0
    %1793 = vmatprep.mubr.bf16.mxu0 0
    %1794 = vmatmul.mubr.bf16.gmra.mrb[0].mxu0 %v447
    %v1795 = vpop.f32.mrb[0].mxu0
    %v1796 = vadd.f32 0.0, %v1795
    %v1797 = vpop.f32.mrb[0].mxu0
    %v1798 = vpop.f32.mrb[0].mxu0
    %v1799 = vpop.f32.mrb[0].mxu0
    %1800 = vdwg.mxu0
    %v1801 = vadd.f32 %v1382, %v1796
    %v1802 = vmul.f32 %v1801, %v1801
    %v1803 = vmul.f32 %v1801, %v1802
    %v1804 = vmul.f32 %v1803, 0.044715
    %v1805 = vadd.f32 %v1801, %v1804
    %v1806 = vmul.f32 %v1805, 0.7978846
    %v1807 = vtanh.pop %v1806
    %v1808 = vadd.f32 %v1807, 1.0
    %v1809 = vmul.f32 %v1808, 0.5
    %v1810 = vmul.f32 %v1801, %v1809
    %v1811 = vpack.c.bf16 %v1810, %v1810
    %v1813 = vlaneseq
    %v1814 = vshrl.u32 %v1813, 7
    %v1815 = vsub.s32 0, %v1814
    %v1816 = vrot.slane %v1529, %v1815
    %v1822 = vunpack.c.l.b16 %v1525
    %v1823 = vunpack.c.l.b16 %v1526
    %v1824 = vunpack.c.l.b16 %v1527
    %v1825 = vunpack.c.l.b16 %v1528
    %v1826 = vpack.c.b16 %v1823, %v1822
    %v1827 = vpack.c.b16 %v1825, %v1824
    %v1831 = vsel %vm445, %v1811, 0
    %1833 = vmatprep.subr.bf16.mxu0 0
    %1834 = vmatpush1.bf16.msra.mxu0 %v1826
    %1835 = vmatprep.subr.bf16.mxu0 0
    %1836 = vmatpush1.bf16.msra.mxu0 %v1827
    %1837 = vmatprep.subr.bf16.mxu0 0
    %1838 = vmatpush1.bf16.msra.mxu0 0
    %1839 = vmatprep.subr.bf16.mxu0 0
    %1840 = vmatpush1.bf16.msra.mxu0 0
    %1841 = vmatprep.subr.bf16.mxu0 0
    %1842 = vmatpush1.bf16.msra.mxu0 0
    %1843 = vmatprep.subr.bf16.mxu0 0
    %1844 = vmatpush1.bf16.msra.mxu0 0
    %1845 = vmatprep.subr.bf16.mxu0 0
    %1846 = vmatpush1.bf16.msra.mxu0 0
    %1847 = vmatprep.subr.bf16.mxu0 0
    %1848 = vmatpush1.bf16.msra.mxu0 0
    %1849 = vmatprep.subr.bf16.mxu0 0
    %1850 = vmatpush1.bf16.msra.mxu0 0
    %1851 = vmatprep.subr.bf16.mxu0 0
    %1852 = vmatpush1.bf16.msra.mxu0 0
    %1853 = vmatprep.subr.bf16.mxu0 0
    %1854 = vmatpush1.bf16.msra.mxu0 0
    %1855 = vmatprep.subr.bf16.mxu0 0
    %1856 = vmatpush1.bf16.msra.mxu0 0
    %1857 = vmatprep.subr.bf16.mxu0 0
    %1858 = vmatpush1.bf16.msra.mxu0 0
    %1859 = vmatprep.subr.bf16.mxu0 0
    %1860 = vmatpush1.bf16.msra.mxu0 0
    %1861 = vmatprep.subr.bf16.mxu0 0
    %1862 = vmatpush1.bf16.msra.mxu0 0
    %1863 = vmatprep.subr.bf16.mxu0 0
    %1864 = vmatpush1.bf16.msra.mxu0 0
    %1865 = vmatprep.mubr.bf16.mxu0 0
    %1866 = vmatmul.mubr.bf16.gmra.mrb[0].mxu0 %v1831
    %v1867 = vpop.f32.mrb[0].mxu0
    %v1868 = vadd.f32 %v1816, %v1867
    %v1869 = vpop.f32.mrb[0].mxu0
    %v1870 = vpop.f32.mrb[0].mxu0
    %v1871 = vpop.f32.mrb[0].mxu0
    %1872 = vdwg.mxu0
    %v1873 = vadd.f32 %v1744, %v1868
    %v1874 = vxor.u32 %v1873, 2147483648
    %v1875 = vmul.f32 %v1874, 1.442695
    %v1876 = vpow.pop %v1875
    %v1877 = vadd.f32 %v1876, 1.0
    %v1878 = vrcp.pop %v1877
    %v1879 = vmul.f32 1.0, %v1878
    %1881 = vrot.lane.b32.xlu0 %v1868, 64
    %v1882 = vpop.permute.xlu0 %1881
    %v1884 = vmul.f32 %v1879, %v1882
    %1886 = vrot.lane.b32.xlu0 %v1884, 64
    %v1887 = vpop.permute.xlu0 %1886
    %v1889 = vadd.f32 %v1744, %v1887
    %v1890 = vtanh.pop %v1889
    %1892 = vrot.lane.b32.xlu0 %v1810, 32
    %v1893 = vpop.permute.xlu0 %1892
    %v1895 = vmul.f32 %v1879, %v1893
    %v1896 = vsub.f32 1.0, %v1879
    %1898 = vrot.lane.b32.xlu0 %v1890, 96
    %v1899 = vpop.permute.xlu0 %1898
    %v1901 = vmul.f32 %v1896, %v1899
    %v1902 = vadd.f32 %v1895, %v1901
    %1904 = vrot.lane.b32.xlu0 %v1902, 96
    %v1905 = vpop.permute.xlu0 %1904
    %1907 = vst.msk [vmem:[#allocation4] sm:$0xf] %vm519, %v1905
    %v1908 = vld [vmem:[#allocation3] sm:$0xf]
    %1909 = vmatprep.subr.bf16.mxu0 0
    %1910 = vmatpush1.bf16.msra.mxu0 %v1538
    %1911 = vmatprep.subr.bf16.mxu0 0
    %1912 = vmatpush1.bf16.msra.mxu0 %v1539
    %1913 = vmatprep.subr.bf16.mxu0 0
    %1914 = vmatpush1.bf16.msra.mxu0 0
    %1915 = vmatprep.subr.bf16.mxu0 0
    %1916 = vmatpush1.bf16.msra.mxu0 0
    %1917 = vmatprep.subr.bf16.mxu0 0
    %1918 = vmatpush1.bf16.msra.mxu0 0
    %1919 = vmatprep.subr.bf16.mxu0 0
    %1920 = vmatpush1.bf16.msra.mxu0 0
    %1921 = vmatprep.subr.bf16.mxu0 0
    %1922 = vmatpush1.bf16.msra.mxu0 0
    %1923 = vmatprep.subr.bf16.mxu0 0
    %1924 = vmatpush1.bf16.msra.mxu0 0
    %1925 = vmatprep.subr.bf16.mxu0 0
    %1926 = vmatpush1.bf16.msra.mxu0 0
    %1927 = vmatprep.subr.bf16.mxu0 0
    %1928 = vmatpush1.bf16.msra.mxu0 0
    %1929 = vmatprep.subr.bf16.mxu0 0
    %1930 = vmatpush1.bf16.msra.mxu0 0
    %1931 = vmatprep.subr.bf16.mxu0 0
    %1932 = vmatpush1.bf16.msra.mxu0 0
    %1933 = vmatprep.subr.bf16.mxu0 0
    %1934 = vmatpush1.bf16.msra.mxu0 0
    %1935 = vmatprep.subr.bf16.mxu0 0
    %1936 = vmatpush1.bf16.msra.mxu0 0
    %1937 = vmatprep.subr.bf16.mxu0 0
    %1938 = vmatpush1.bf16.msra.mxu0 0
    %1939 = vmatprep.subr.bf16.mxu0 0
    %1940 = vmatpush1.bf16.msra.mxu0 0
    %1941 = vmatprep.mubr.bf16.mxu0 0
    %1942 = vmatmul.mubr.bf16.gmra.mrb[0].mxu0 %v1707
    %v1943 = vpop.f32.mrb[0].mxu0
    %v1944 = vadd.f32 0.0, %v1943
    %v1945 = vpop.f32.mrb[0].mxu0
    %v1946 = vpop.f32.mrb[0].mxu0
    %v1947 = vpop.f32.mrb[0].mxu0
    %1948 = vdwg.mxu0
    %v1949 = vadd.f32 %v1319, %v1944
    %v1950 = vmul.f32 %v1949, %v1949
    %v1951 = vmul.f32 %v1949, %v1950
    %v1952 = vmul.f32 %v1951, 0.044715
    %v1953 = vadd.f32 %v1949, %v1952
    %v1954 = vmul.f32 %v1953, 0.7978846
    %v1955 = vtanh.pop %v1954
    %v1956 = vadd.f32 %v1955, 1.0
    %v1957 = vmul.f32 %v1956, 0.5
    %v1958 = vmul.f32 %v1949, %v1957
    %v1959 = vpack.c.bf16 %v1958, %v1958
    %v1961 = vsel %vm445, %v1959, 0
    %1963 = vmatprep.subr.bf16.mxu0 0
    %1964 = vmatpush1.bf16.msra.mxu0 %v1607
    %1965 = vmatprep.subr.bf16.mxu0 0
    %1966 = vmatpush1.bf16.msra.mxu0 %v1608
    %1967 = vmatprep.subr.bf16.mxu0 0
    %1968 = vmatpush1.bf16.msra.mxu0 0
    %1969 = vmatprep.subr.bf16.mxu0 0
    %1970 = vmatpush1.bf16.msra.mxu0 0
    %1971 = vmatprep.subr.bf16.mxu0 0
    %1972 = vmatpush1.bf16.msra.mxu0 0
    %1973 = vmatprep.subr.bf16.mxu0 0
    %1974 = vmatpush1.bf16.msra.mxu0 0
    %1975 = vmatprep.subr.bf16.mxu0 0
    %1976 = vmatpush1.bf16.msra.mxu0 0
    %1977 = vmatprep.subr.bf16.mxu0 0
    %1978 = vmatpush1.bf16.msra.mxu0 0
    %1979 = vmatprep.subr.bf16.mxu0 0
    %1980 = vmatpush1.bf16.msra.mxu0 0
    %1981 = vmatprep.subr.bf16.mxu0 0
    %1982 = vmatpush1.bf16.msra.mxu0 0
    %1983 = vmatprep.subr.bf16.mxu0 0
    %1984 = vmatpush1.bf16.msra.mxu0 0
    %1985 = vmatprep.subr.bf16.mxu0 0
    %1986 = vmatpush1.bf16.msra.mxu0 0
    %1987 = vmatprep.subr.bf16.mxu0 0
    %1988 = vmatpush1.bf16.msra.mxu0 0
    %1989 = vmatprep.subr.bf16.mxu0 0
    %1990 = vmatpush1.bf16.msra.mxu0 0
    %1991 = vmatprep.subr.bf16.mxu0 0
    %1992 = vmatpush1.bf16.msra.mxu0 0
    %1993 = vmatprep.subr.bf16.mxu0 0
    %1994 = vmatpush1.bf16.msra.mxu0 0
    %1995 = vmatprep.mubr.bf16.mxu0 0
    %1996 = vmatmul.mubr.bf16.gmra.mrb[0].mxu0 %v1961
    %v1997 = vpop.f32.mrb[0].mxu0
    %v1998 = vadd.f32 %v1597, %v1997
    %v1999 = vpop.f32.mrb[0].mxu0
    %v2000 = vpop.f32.mrb[0].mxu0
    %v2001 = vpop.f32.mrb[0].mxu0
    %2002 = vdwg.mxu0
    %v2003 = vadd.f32 %v1908, %v1998
    %v2004 = vxor.u32 %v2003, 2147483648
    %v2005 = vmul.f32 %v2004, 1.442695
    %v2006 = vpow.pop %v2005
    %v2007 = vadd.f32 %v2006, 1.0
    %v2008 = vrcp.pop %v2007
    %v2009 = vmul.f32 1.0, %v2008
    %2011 = vrot.lane.b32.xlu0 %v1998, 64
    %v2012 = vpop.permute.xlu0 %2011
    %v2014 = vmul.f32 %v2009, %v2012
    %2016 = vrot.lane.b32.xlu0 %v2014, 64
    %v2017 = vpop.permute.xlu0 %2016
    %v2019 = vadd.f32 %v1908, %v2017
    %v2020 = vtanh.pop %v2019
    %2022 = vrot.lane.b32.xlu0 %v1958, 32
    %v2023 = vpop.permute.xlu0 %2022
    %v2025 = vmul.f32 %v2009, %v2023
    %v2026 = vsub.f32 1.0, %v2009
    %2028 = vrot.lane.b32.xlu0 %v2020, 96
    %v2029 = vpop.permute.xlu0 %2028
    %v2031 = vmul.f32 %v2026, %v2029
    %v2032 = vadd.f32 %v2025, %v2031
    %v2033 = vpack.c.bf16 %v2032, %v2032
    %2035 = vrot.lane.b32.xlu0 %v2033, 96
    %v2036 = vpop.permute.xlu0 %2035
    %v2038 = vsel %vm445, %v2036, 0
    %2040 = vmatprep.subr.bf16.mxu0 0
    %2041 = vmatpush1.bf16.msra.mxu0 %v1702
    %2042 = vmatprep.subr.bf16.mxu0 0
    %2043 = vmatpush1.bf16.msra.mxu0 %v1703
    %2044 = vmatprep.subr.bf16.mxu0 0
    %2045 = vmatpush1.bf16.msra.mxu0 0
    %2046 = vmatprep.subr.bf16.mxu0 0
    %2047 = vmatpush1.bf16.msra.mxu0 0
    %2048 = vmatprep.subr.bf16.mxu0 0
    %2049 = vmatpush1.bf16.msra.mxu0 0
    %2050 = vmatprep.subr.bf16.mxu0 0
    %2051 = vmatpush1.bf16.msra.mxu0 0
    %2052 = vmatprep.subr.bf16.mxu0 0
    %2053 = vmatpush1.bf16.msra.mxu0 0
    %2054 = vmatprep.subr.bf16.mxu0 0
    %2055 = vmatpush1.bf16.msra.mxu0 0
    %2056 = vmatprep.subr.bf16.mxu0 0
    %2057 = vmatpush1.bf16.msra.mxu0 0
    %2058 = vmatprep.subr.bf16.mxu0 0
    %2059 = vmatpush1.bf16.msra.mxu0 0
    %2060 = vmatprep.subr.bf16.mxu0 0
    %2061 = vmatpush1.bf16.msra.mxu0 0
    %2062 = vmatprep.subr.bf16.mxu0 0
    %2063 = vmatpush1.bf16.msra.mxu0 0
    %2064 = vmatprep.subr.bf16.mxu0 0
    %2065 = vmatpush1.bf16.msra.mxu0 0
    %2066 = vmatprep.subr.bf16.mxu0 0
    %2067 = vmatpush1.bf16.msra.mxu0 0
    %2068 = vmatprep.subr.bf16.mxu0 0
    %2069 = vmatpush1.bf16.msra.mxu0 0
    %2070 = vmatprep.subr.bf16.mxu0 0
    %2071 = vmatpush1.bf16.msra.mxu0 0
    %2072 = vmatprep.mubr.bf16.mxu0 0
    %2073 = vmatmul.mubr.bf16.gmra.mrb[0].mxu0 %v2038
    %v2074 = vpop.f32.mrb[0].mxu0
    %v2075 = vadd.f32 %v1689, %v2074
    %v2076 = vpop.f32.mrb[0].mxu0
    %v2077 = vpop.f32.mrb[0].mxu0
    %v2078 = vpop.f32.mrb[0].mxu0
    %2079 = vdwg.mxu0
    %v2080 = vpack.c.bf16 %v1902, %v1902
    %2082 = vrot.lane.b32.xlu0 %v2080, 96
    %v2083 = vpop.permute.xlu0 %2082
    %v2085 = vsel %vm445, %v2083, 0
    %2087 = vmatprep.subr.bf16.mxu0 0
    %2088 = vmatpush1.bf16.msra.mxu0 %v1757
    %2089 = vmatprep.subr.bf16.mxu0 0
    %2090 = vmatpush1.bf16.msra.mxu0 %v1758
    %2091 = vmatprep.subr.bf16.mxu0 0
    %2092 = vmatpush1.bf16.msra.mxu0 0
    %2093 = vmatprep.subr.bf16.mxu0 0
    %2094 = vmatpush1.bf16.msra.mxu0 0
    %2095 = vmatprep.subr.bf16.mxu0 0
    %2096 = vmatpush1.bf16.msra.mxu0 0
    %2097 = vmatprep.subr.bf16.mxu0 0
    %2098 = vmatpush1.bf16.msra.mxu0 0
    %2099 = vmatprep.subr.bf16.mxu0 0
    %2100 = vmatpush1.bf16.msra.mxu0 0
    %2101 = vmatprep.subr.bf16.mxu0 0
    %2102 = vmatpush1.bf16.msra.mxu0 0
    %2103 = vmatprep.subr.bf16.mxu0 0
    %2104 = vmatpush1.bf16.msra.mxu0 0
    %2105 = vmatprep.subr.bf16.mxu0 0
    %2106 = vmatpush1.bf16.msra.mxu0 0
    %2107 = vmatprep.subr.bf16.mxu0 0
    %2108 = vmatpush1.bf16.msra.mxu0 0
    %2109 = vmatprep.subr.bf16.mxu0 0
    %2110 = vmatpush1.bf16.msra.mxu0 0
    %2111 = vmatprep.subr.bf16.mxu0 0
    %2112 = vmatpush1.bf16.msra.mxu0 0
    %2113 = vmatprep.subr.bf16.mxu0 0
    %2114 = vmatpush1.bf16.msra.mxu0 0
    %2115 = vmatprep.subr.bf16.mxu0 0
    %2116 = vmatpush1.bf16.msra.mxu0 0
    %2117 = vmatprep.subr.bf16.mxu0 0
    %2118 = vmatpush1.bf16.msra.mxu0 0
    %2119 = vmatprep.mubr.bf16.mxu0 0
    %2120 = vmatmul.mubr.bf16.gmra.mrb[0].mxu0 %v2085
    %v2121 = vpop.f32.mrb[0].mxu0
    %v2122 = vadd.f32 0.0, %v2121
    %v2123 = vpop.f32.mrb[0].mxu0
    %v2124 = vpop.f32.mrb[0].mxu0
    %v2125 = vpop.f32.mrb[0].mxu0
    %2126 = vdwg.mxu0
    %v2127 = vadd.f32 %v1382, %v2122
    %v2128 = vmul.f32 %v2127, %v2127
    %v2129 = vmul.f32 %v2127, %v2128
    %v2130 = vmul.f32 %v2129, 0.044715
    %v2131 = vadd.f32 %v2127, %v2130
    %v2132 = vmul.f32 %v2131, 0.7978846
    %v2133 = vtanh.pop %v2132
    %v2134 = vadd.f32 %v2133, 1.0
    %v2135 = vmul.f32 %v2134, 0.5
    %v2136 = vmul.f32 %v2127, %v2135
    %v2137 = vpack.c.bf16 %v2136, %v2136
    %v2139 = vsel %vm445, %v2137, 0
    %2141 = vmatprep.subr.bf16.mxu0 0
    %2142 = vmatpush1.bf16.msra.mxu0 %v1826
    %2143 = vmatprep.subr.bf16.mxu0 0
    %2144 = vmatpush1.bf16.msra.mxu0 %v1827
    %2145 = vmatprep.subr.bf16.mxu0 0
    %2146 = vmatpush1.bf16.msra.mxu0 0
    %2147 = vmatprep.subr.bf16.mxu0 0
    %2148 = vmatpush1.bf16.msra.mxu0 0
    %2149 = vmatprep.subr.bf16.mxu0 0
    %2150 = vmatpush1.bf16.msra.mxu0 0
    %2151 = vmatprep.subr.bf16.mxu0 0
    %2152 = vmatpush1.bf16.msra.mxu0 0
    %2153 = vmatprep.subr.bf16.mxu0 0
    %2154 = vmatpush1.bf16.msra.mxu0 0
    %2155 = vmatprep.subr.bf16.mxu0 0
    %2156 = vmatpush1.bf16.msra.mxu0 0
    %2157 = vmatprep.subr.bf16.mxu0 0
    %2158 = vmatpush1.bf16.msra.mxu0 0
    %2159 = vmatprep.subr.bf16.mxu0 0
    %2160 = vmatpush1.bf16.msra.mxu0 0
    %2161 = vmatprep.subr.bf16.mxu0 0
    %2162 = vmatpush1.bf16.msra.mxu0 0
    %2163 = vmatprep.subr.bf16.mxu0 0
    %2164 = vmatpush1.bf16.msra.mxu0 0
    %2165 = vmatprep.subr.bf16.mxu0 0
    %2166 = vmatpush1.bf16.msra.mxu0 0
    %2167 = vmatprep.subr.bf16.mxu0 0
    %2168 = vmatpush1.bf16.msra.mxu0 0
    %2169 = vmatprep.subr.bf16.mxu0 0
    %2170 = vmatpush1.bf16.msra.mxu0 0
    %2171 = vmatprep.subr.bf16.mxu0 0
    %2172 = vmatpush1.bf16.msra.mxu0 0
    %2173 = vmatprep.mubr.bf16.mxu0 0
    %2174 = vmatmul.mubr.bf16.gmra.mrb[0].mxu0 %v2139
    %v2175 = vpop.f32.mrb[0].mxu0
    %v2176 = vadd.f32 %v1816, %v2175
    %v2177 = vpop.f32.mrb[0].mxu0
    %v2178 = vpop.f32.mrb[0].mxu0
    %v2179 = vpop.f32.mrb[0].mxu0
    %2180 = vdwg.mxu0
    %v2181 = vadd.f32 %v2075, %v2176
    %v2182 = vxor.u32 %v2181, 2147483648
    %v2183 = vmul.f32 %v2182, 1.442695
    %v2184 = vpow.pop %v2183
    %v2185 = vadd.f32 %v2184, 1.0
    %v2186 = vrcp.pop %v2185
    %v2187 = vmul.f32 1.0, %v2186
    %2189 = vrot.lane.b32.xlu0 %v2176, 64
    %v2190 = vpop.permute.xlu0 %2189
    %v2192 = vmul.f32 %v2187, %v2190
    %2194 = vrot.lane.b32.xlu0 %v2192, 64
    %v2195 = vpop.permute.xlu0 %2194
    %v2197 = vadd.f32 %v2075, %v2195
    %v2198 = vtanh.pop %v2197
    %2200 = vrot.lane.b32.xlu0 %v2136, 32
    %v2201 = vpop.permute.xlu0 %2200
    %v2203 = vmul.f32 %v2187, %v2201
    %v2204 = vsub.f32 1.0, %v2187
    %2206 = vrot.lane.b32.xlu0 %v2198, 96
    %v2207 = vpop.permute.xlu0 %2206
    %v2209 = vmul.f32 %v2204, %v2207
    %v2210 = vadd.f32 %v2203, %v2209
    %2212 = vrot.lane.b32.xlu0 %v2210, 96
    %v2213 = vpop.permute.xlu0 %2212
    %s2215 = scalar_lea.vmem [#allocation4], 4
    %2216 = vst.msk [vmem:[%s2215] sm:$0xf] %vm519, %v2213
    %s2217 = scalar_lea.vmem [#allocation3], 4
    %v2218 = vld [vmem:[%s2217] sm:$0xf]
    %2219 = vmatprep.subr.bf16.mxu0 0
    %2220 = vmatpush1.bf16.msra.mxu0 %v1538
    %2221 = vmatprep.subr.bf16.mxu0 0
    %2222 = vmatpush1.bf16.msra.mxu0 %v1539
    %2223 = vmatprep.subr.bf16.mxu0 0
    %2224 = vmatpush1.bf16.msra.mxu0 0
    %2225 = vmatprep.subr.bf16.mxu0 0
    %2226 = vmatpush1.bf16.msra.mxu0 0
    %2227 = vmatprep.subr.bf16.mxu0 0
    %2228 = vmatpush1.bf16.msra.mxu0 0
    %2229 = vmatprep.subr.bf16.mxu0 0
    %2230 = vmatpush1.bf16.msra.mxu0 0
    %2231 = vmatprep.subr.bf16.mxu0 0
    %2232 = vmatpush1.bf16.msra.mxu0 0
    %2233 = vmatprep.subr.bf16.mxu0 0
    %2234 = vmatpush1.bf16.msra.mxu0 0
    %2235 = vmatprep.subr.bf16.mxu0 0
    %2236 = vmatpush1.bf16.msra.mxu0 0
    %2237 = vmatprep.subr.bf16.mxu0 0
    %2238 = vmatpush1.bf16.msra.mxu0 0
    %2239 = vmatprep.subr.bf16.mxu0 0
    %2240 = vmatpush1.bf16.msra.mxu0 0
    %2241 = vmatprep.subr.bf16.mxu0 0
    %2242 = vmatpush1.bf16.msra.mxu0 0
    %2243 = vmatprep.subr.bf16.mxu0 0
    %2244 = vmatpush1.bf16.msra.mxu0 0
    %2245 = vmatprep.subr.bf16.mxu0 0
    %2246 = vmatpush1.bf16.msra.mxu0 0
    %2247 = vmatprep.subr.bf16.mxu0 0
    %2248 = vmatpush1.bf16.msra.mxu0 0
    %2249 = vmatprep.subr.bf16.mxu0 0
    %2250 = vmatpush1.bf16.msra.mxu0 0
    %2251 = vmatprep.mubr.bf16.mxu0 0
    %2252 = vmatmul.mubr.bf16.gmra.mrb[0].mxu0 %v2038
    %v2253 = vpop.f32.mrb[0].mxu0
    %v2254 = vadd.f32 0.0, %v2253
    %v2255 = vpop.f32.mrb[0].mxu0
    %v2256 = vpop.f32.mrb[0].mxu0
    %v2257 = vpop.f32.mrb[0].mxu0
    %2258 = vdwg.mxu0
    %v2259 = vadd.f32 %v1319, %v2254
    %v2260 = vmul.f32 %v2259, %v2259
    %v2261 = vmul.f32 %v2259, %v2260
    %v2262 = vmul.f32 %v2261, 0.044715
    %v2263 = vadd.f32 %v2259, %v2262
    %v2264 = vmul.f32 %v2263, 0.7978846
    %v2265 = vtanh.pop %v2264
    %v2266 = vadd.f32 %v2265, 1.0
    %v2267 = vmul.f32 %v2266, 0.5
    %v2268 = vmul.f32 %v2259, %v2267
    %v2269 = vpack.c.bf16 %v2268, %v2268
    %v2271 = vsel %vm445, %v2269, 0
    %2273 = vmatprep.subr.bf16.mxu0 0
    %2274 = vmatpush1.bf16.msra.mxu0 %v1607
    %2275 = vmatprep.subr.bf16.mxu0 0
    %2276 = vmatpush1.bf16.msra.mxu0 %v1608
    %2277 = vmatprep.subr.bf16.mxu0 0
    %2278 = vmatpush1.bf16.msra.mxu0 0
    %2279 = vmatprep.subr.bf16.mxu0 0
    %2280 = vmatpush1.bf16.msra.mxu0 0
    %2281 = vmatprep.subr.bf16.mxu0 0
    %2282 = vmatpush1.bf16.msra.mxu0 0
    %2283 = vmatprep.subr.bf16.mxu0 0
    %2284 = vmatpush1.bf16.msra.mxu0 0
    %2285 = vmatprep.subr.bf16.mxu0 0
    %2286 = vmatpush1.bf16.msra.mxu0 0
    %2287 = vmatprep.subr.bf16.mxu0 0
    %2288 = vmatpush1.bf16.msra.mxu0 0
    %2289 = vmatprep.subr.bf16.mxu0 0
    %2290 = vmatpush1.bf16.msra.mxu0 0
    %2291 = vmatprep.subr.bf16.mxu0 0
    %2292 = vmatpush1.bf16.msra.mxu0 0
    %2293 = vmatprep.subr.bf16.mxu0 0
    %2294 = vmatpush1.bf16.msra.mxu0 0
    %2295 = vmatprep.subr.bf16.mxu0 0
    %2296 = vmatpush1.bf16.msra.mxu0 0
    %2297 = vmatprep.subr.bf16.mxu0 0
    %2298 = vmatpush1.bf16.msra.mxu0 0
    %2299 = vmatprep.subr.bf16.mxu0 0
    %2300 = vmatpush1.bf16.msra.mxu0 0
    %2301 = vmatprep.subr.bf16.mxu0 0
    %2302 = vmatpush1.bf16.msra.mxu0 0
    %2303 = vmatprep.subr.bf16.mxu0 0
    %2304 = vmatpush1.bf16.msra.mxu0 0
    %2305 = vmatprep.mubr.bf16.mxu0 0
    %2306 = vmatmul.mubr.bf16.gmra.mrb[0].mxu0 %v2271
    %v2307 = vpop.f32.mrb[0].mxu0
    %v2308 = vadd.f32 %v1597, %v2307
    %v2309 = vpop.f32.mrb[0].mxu0
    %v2310 = vpop.f32.mrb[0].mxu0
    %v2311 = vpop.f32.mrb[0].mxu0
    %2312 = vdwg.mxu0
    %v2313 = vadd.f32 %v2218, %v2308
    %v2314 = vxor.u32 %v2313, 2147483648
    %v2315 = vmul.f32 %v2314, 1.442695
    %v2316 = vpow.pop %v2315
    %v2317 = vadd.f32 %v2316, 1.0
    %v2318 = vrcp.pop %v2317
    %v2319 = vmul.f32 1.0, %v2318
    %2321 = vrot.lane.b32.xlu0 %v2308, 64
    %v2322 = vpop.permute.xlu0 %2321
    %v2324 = vmul.f32 %v2319, %v2322
    %2326 = vrot.lane.b32.xlu0 %v2324, 64
    %v2327 = vpop.permute.xlu0 %2326
    %v2329 = vadd.f32 %v2218, %v2327
    %v2330 = vtanh.pop %v2329
    %2332 = vrot.lane.b32.xlu0 %v2268, 32
    %v2333 = vpop.permute.xlu0 %2332
    %v2335 = vmul.f32 %v2319, %v2333
    %v2336 = vsub.f32 1.0, %v2319
    %2338 = vrot.lane.b32.xlu0 %v2330, 96
    %v2339 = vpop.permute.xlu0 %2338
    %v2341 = vmul.f32 %v2336, %v2339
    %v2342 = vadd.f32 %v2335, %v2341
    %v2343 = vpack.c.bf16 %v2342, %v2342
    %2345 = vrot.lane.b32.xlu0 %v2343, 96
    %v2346 = vpop.permute.xlu0 %2345
    %v2348 = vsel %vm445, %v2346, 0
    %2350 = vmatprep.subr.bf16.mxu0 0
    %2351 = vmatpush1.bf16.msra.mxu0 %v1702
    %2352 = vmatprep.subr.bf16.mxu0 0
    %2353 = vmatpush1.bf16.msra.mxu0 %v1703
    %2354 = vmatprep.subr.bf16.mxu0 0
    %2355 = vmatpush1.bf16.msra.mxu0 0
    %2356 = vmatprep.subr.bf16.mxu0 0
    %2357 = vmatpush1.bf16.msra.mxu0 0
    %2358 = vmatprep.subr.bf16.mxu0 0
    %2359 = vmatpush1.bf16.msra.mxu0 0
    %2360 = vmatprep.subr.bf16.mxu0 0
    %2361 = vmatpush1.bf16.msra.mxu0 0
    %2362 = vmatprep.subr.bf16.mxu0 0
    %2363 = vmatpush1.bf16.msra.mxu0 0
    %2364 = vmatprep.subr.bf16.mxu0 0
    %2365 = vmatpush1.bf16.msra.mxu0 0
    %2366 = vmatprep.subr.bf16.mxu0 0
    %2367 = vmatpush1.bf16.msra.mxu0 0
    %2368 = vmatprep.subr.bf16.mxu0 0
    %2369 = vmatpush1.bf16.msra.mxu0 0
    %2370 = vmatprep.subr.bf16.mxu0 0
    %2371 = vmatpush1.bf16.msra.mxu0 0
    %2372 = vmatprep.subr.bf16.mxu0 0
    %2373 = vmatpush1.bf16.msra.mxu0 0
    %2374 = vmatprep.subr.bf16.mxu0 0
    %2375 = vmatpush1.bf16.msra.mxu0 0
    %2376 = vmatprep.subr.bf16.mxu0 0
    %2377 = vmatpush1.bf16.msra.mxu0 0
    %2378 = vmatprep.subr.bf16.mxu0 0
    %2379 = vmatpush1.bf16.msra.mxu0 0
    %2380 = vmatprep.subr.bf16.mxu0 0
    %2381 = vmatpush1.bf16.msra.mxu0 0
    %2382 = vmatprep.mubr.bf16.mxu0 0
    %2383 = vmatmul.mubr.bf16.gmra.mrb[0].mxu0 %v2348
    %v2384 = vpop.f32.mrb[0].mxu0
    %v2385 = vadd.f32 %v1689, %v2384
    %v2386 = vpop.f32.mrb[0].mxu0
    %v2387 = vpop.f32.mrb[0].mxu0
    %v2388 = vpop.f32.mrb[0].mxu0
    %2389 = vdwg.mxu0
    %v2390 = vpack.c.bf16 %v2210, %v2210
    %2392 = vrot.lane.b32.xlu0 %v2390, 96
    %v2393 = vpop.permute.xlu0 %2392
    %v2395 = vsel %vm445, %v2393, 0
    %2397 = vmatprep.subr.bf16.mxu0 0
    %2398 = vmatpush1.bf16.msra.mxu0 %v1757
    %2399 = vmatprep.subr.bf16.mxu0 0
    %2400 = vmatpush1.bf16.msra.mxu0 %v1758
    %2401 = vmatprep.subr.bf16.mxu0 0
    %2402 = vmatpush1.bf16.msra.mxu0 0
    %2403 = vmatprep.subr.bf16.mxu0 0
    %2404 = vmatpush1.bf16.msra.mxu0 0
    %2405 = vmatprep.subr.bf16.mxu0 0
    %2406 = vmatpush1.bf16.msra.mxu0 0
    %2407 = vmatprep.subr.bf16.mxu0 0
    %2408 = vmatpush1.bf16.msra.mxu0 0
    %2409 = vmatprep.subr.bf16.mxu0 0
    %2410 = vmatpush1.bf16.msra.mxu0 0
    %2411 = vmatprep.subr.bf16.mxu0 0
    %2412 = vmatpush1.bf16.msra.mxu0 0
    %2413 = vmatprep.subr.bf16.mxu0 0
    %2414 = vmatpush1.bf16.msra.mxu0 0
    %2415 = vmatprep.subr.bf16.mxu0 0
    %2416 = vmatpush1.bf16.msra.mxu0 0
    %2417 = vmatprep.subr.bf16.mxu0 0
    %2418 = vmatpush1.bf16.msra.mxu0 0
    %2419 = vmatprep.subr.bf16.mxu0 0
    %2420 = vmatpush1.bf16.msra.mxu0 0
    %2421 = vmatprep.subr.bf16.mxu0 0
    %2422 = vmatpush1.bf16.msra.mxu0 0
    %2423 = vmatprep.subr.bf16.mxu0 0
    %2424 = vmatpush1.bf16.msra.mxu0 0
    %2425 = vmatprep.subr.bf16.mxu0 0
    %2426 = vmatpush1.bf16.msra.mxu0 0
    %2427 = vmatprep.subr.bf16.mxu0 0
    %2428 = vmatpush1.bf16.msra.mxu0 0
    %2429 = vmatprep.mubr.bf16.mxu0 0
    %2430 = vmatmul.mubr.bf16.gmra.mrb[0].mxu0 %v2395
    %v2431 = vpop.f32.mrb[0].mxu0
    %v2432 = vadd.f32 0.0, %v2431
    %v2433 = vpop.f32.mrb[0].mxu0
    %v2434 = vpop.f32.mrb[0].mxu0
    %v2435 = vpop.f32.mrb[0].mxu0
    %2436 = vdwg.mxu0
    %v2437 = vadd.f32 %v1382, %v2432
    %v2438 = vmul.f32 %v2437, %v2437
    %v2439 = vmul.f32 %v2437, %v2438
    %v2440 = vmul.f32 %v2439, 0.044715
    %v2441 = vadd.f32 %v2437, %v2440
    %v2442 = vmul.f32 %v2441, 0.7978846
    %v2443 = vtanh.pop %v2442
    %v2444 = vadd.f32 %v2443, 1.0
    %v2445 = vmul.f32 %v2444, 0.5
    %v2446 = vmul.f32 %v2437, %v2445
    %v2447 = vpack.c.bf16 %v2446, %v2446
    %v2449 = vsel %vm445, %v2447, 0
    %2451 = vmatprep.subr.bf16.mxu0 0
    %2452 = vmatpush1.bf16.msra.mxu0 %v1826
    %2453 = vmatprep.subr.bf16.mxu0 0
    %2454 = vmatpush1.bf16.msra.mxu0 %v1827
    %2455 = vmatprep.subr.bf16.mxu0 0
    %2456 = vmatpush1.bf16.msra.mxu0 0
    %2457 = vmatprep.subr.bf16.mxu0 0
    %2458 = vmatpush1.bf16.msra.mxu0 0
    %2459 = vmatprep.subr.bf16.mxu0 0
    %2460 = vmatpush1.bf16.msra.mxu0 0
    %2461 = vmatprep.subr.bf16.mxu0 0
    %2462 = vmatpush1.bf16.msra.mxu0 0
    %2463 = vmatprep.subr.bf16.mxu0 0
    %2464 = vmatpush1.bf16.msra.mxu0 0
    %2465 = vmatprep.subr.bf16.mxu0 0
    %2466 = vmatpush1.bf16.msra.mxu0 0
    %2467 = vmatprep.subr.bf16.mxu0 0
    %2468 = vmatpush1.bf16.msra.mxu0 0
    %2469 = vmatprep.subr.bf16.mxu0 0
    %2470 = vmatpush1.bf16.msra.mxu0 0
    %2471 = vmatprep.subr.bf16.mxu0 0
    %2472 = vmatpush1.bf16.msra.mxu0 0
    %2473 = vmatprep.subr.bf16.mxu0 0
    %2474 = vmatpush1.bf16.msra.mxu0 0
    %2475 = vmatprep.subr.bf16.mxu0 0
    %2476 = vmatpush1.bf16.msra.mxu0 0
    %2477 = vmatprep.subr.bf16.mxu0 0
    %2478 = vmatpush1.bf16.msra.mxu0 0
    %2479 = vmatprep.subr.bf16.mxu0 0
    %2480 = vmatpush1.bf16.msra.mxu0 0
    %2481 = vmatprep.subr.bf16.mxu0 0
    %2482 = vmatpush1.bf16.msra.mxu0 0
    %2483 = vmatprep.mubr.bf16.mxu0 0
    %2484 = vmatmul.mubr.bf16.gmra.mrb[0].mxu0 %v2449
    %v2485 = vpop.f32.mrb[0].mxu0
    %v2486 = vadd.f32 %v1816, %v2485
    %v2487 = vpop.f32.mrb[0].mxu0
    %v2488 = vpop.f32.mrb[0].mxu0
    %v2489 = vpop.f32.mrb[0].mxu0
    %2490 = vdwg.mxu0
    %v2491 = vadd.f32 %v2385, %v2486
    %v2492 = vxor.u32 %v2491, 2147483648
    %v2493 = vmul.f32 %v2492, 1.442695
    %v2494 = vpow.pop %v2493
    %v2495 = vadd.f32 %v2494, 1.0
    %v2496 = vrcp.pop %v2495
    %v2497 = vmul.f32 1.0, %v2496
    %2499 = vrot.lane.b32.xlu0 %v2486, 64
    %v2500 = vpop.permute.xlu0 %2499
    %v2502 = vmul.f32 %v2497, %v2500
    %2504 = vrot.lane.b32.xlu0 %v2502, 64
    %v2505 = vpop.permute.xlu0 %2504
    %v2507 = vadd.f32 %v2385, %v2505
    %v2508 = vtanh.pop %v2507
    %2510 = vrot.lane.b32.xlu0 %v2446, 32
    %v2511 = vpop.permute.xlu0 %2510
    %v2513 = vmul.f32 %v2497, %v2511
    %v2514 = vsub.f32 1.0, %v2497
    %2516 = vrot.lane.b32.xlu0 %v2508, 96
    %v2517 = vpop.permute.xlu0 %2516
    %v2519 = vmul.f32 %v2514, %v2517
    %v2520 = vadd.f32 %v2513, %v2519
    %2522 = vrot.lane.b32.xlu0 %v2520, 96
    %v2523 = vpop.permute.xlu0 %2522
    %s2525 = scalar_lea.vmem [#allocation4], 8
    %2526 = vst.msk [vmem:[%s2525] sm:$0xf] %vm519, %v2523
    %s2527 = scalar_lea.vmem [#allocation3], 8
    %v2528 = vld [vmem:[%s2527] sm:$0xf]
    %2529 = vmatprep.subr.bf16.mxu0 0
    %2530 = vmatpush1.bf16.msra.mxu0 %v1538
    %2531 = vmatprep.subr.bf16.mxu0 0
    %2532 = vmatpush1.bf16.msra.mxu0 %v1539
    %2533 = vmatprep.subr.bf16.mxu0 0
    %2534 = vmatpush1.bf16.msra.mxu0 0
    %2535 = vmatprep.subr.bf16.mxu0 0
    %2536 = vmatpush1.bf16.msra.mxu0 0
    %2537 = vmatprep.subr.bf16.mxu0 0
    %2538 = vmatpush1.bf16.msra.mxu0 0
    %2539 = vmatprep.subr.bf16.mxu0 0
    %2540 = vmatpush1.bf16.msra.mxu0 0
    %2541 = vmatprep.subr.bf16.mxu0 0
    %2542 = vmatpush1.bf16.msra.mxu0 0
    %2543 = vmatprep.subr.bf16.mxu0 0
    %2544 = vmatpush1.bf16.msra.mxu0 0
    %2545 = vmatprep.subr.bf16.mxu0 0
    %2546 = vmatpush1.bf16.msra.mxu0 0
    %2547 = vmatprep.subr.bf16.mxu0 0
    %2548 = vmatpush1.bf16.msra.mxu0 0
    %2549 = vmatprep.subr.bf16.mxu0 0
    %2550 = vmatpush1.bf16.msra.mxu0 0
    %2551 = vmatprep.subr.bf16.mxu0 0
    %2552 = vmatpush1.bf16.msra.mxu0 0
    %2553 = vmatprep.subr.bf16.mxu0 0
    %2554 = vmatpush1.bf16.msra.mxu0 0
    %2555 = vmatprep.subr.bf16.mxu0 0
    %2556 = vmatpush1.bf16.msra.mxu0 0
    %2557 = vmatprep.subr.bf16.mxu0 0
    %2558 = vmatpush1.bf16.msra.mxu0 0
    %2559 = vmatprep.subr.bf16.mxu0 0
    %2560 = vmatpush1.bf16.msra.mxu0 0
    %2561 = vmatprep.mubr.bf16.mxu0 0
    %2562 = vmatmul.mubr.bf16.gmra.mrb[0].mxu0 %v2348
    %v2563 = vpop.f32.mrb[0].mxu0
    %v2564 = vadd.f32 0.0, %v2563
    %v2565 = vpop.f32.mrb[0].mxu0
    %v2566 = vpop.f32.mrb[0].mxu0
    %v2567 = vpop.f32.mrb[0].mxu0
    %2568 = vdwg.mxu0
    %v2569 = vadd.f32 %v1319, %v2564
    %v2570 = vmul.f32 %v2569, %v2569
    %v2571 = vmul.f32 %v2569, %v2570
    %v2572 = vmul.f32 %v2571, 0.044715
    %v2573 = vadd.f32 %v2569, %v2572
    %v2574 = vmul.f32 %v2573, 0.7978846
    %v2575 = vtanh.pop %v2574
    %v2576 = vadd.f32 %v2575, 1.0
    %v2577 = vmul.f32 %v2576, 0.5
    %v2578 = vmul.f32 %v2569, %v2577
    %v2579 = vpack.c.bf16 %v2578, %v2578
    %v2581 = vsel %vm445, %v2579, 0
    %2583 = vmatprep.subr.bf16.mxu0 0
    %2584 = vmatpush1.bf16.msra.mxu0 %v1607
    %2585 = vmatprep.subr.bf16.mxu0 0
    %2586 = vmatpush1.bf16.msra.mxu0 %v1608
    %2587 = vmatprep.subr.bf16.mxu0 0
    %2588 = vmatpush1.bf16.msra.mxu0 0
    %2589 = vmatprep.subr.bf16.mxu0 0
    %2590 = vmatpush1.bf16.msra.mxu0 0
    %2591 = vmatprep.subr.bf16.mxu0 0
    %2592 = vmatpush1.bf16.msra.mxu0 0
    %2593 = vmatprep.subr.bf16.mxu0 0
    %2594 = vmatpush1.bf16.msra.mxu0 0
    %2595 = vmatprep.subr.bf16.mxu0 0
    %2596 = vmatpush1.bf16.msra.mxu0 0
    %2597 = vmatprep.subr.bf16.mxu0 0
    %2598 = vmatpush1.bf16.msra.mxu0 0
    %2599 = vmatprep.subr.bf16.mxu0 0
    %2600 = vmatpush1.bf16.msra.mxu0 0
    %2601 = vmatprep.subr.bf16.mxu0 0
    %2602 = vmatpush1.bf16.msra.mxu0 0
    %2603 = vmatprep.subr.bf16.mxu0 0
    %2604 = vmatpush1.bf16.msra.mxu0 0
    %2605 = vmatprep.subr.bf16.mxu0 0
    %2606 = vmatpush1.bf16.msra.mxu0 0
    %2607 = vmatprep.subr.bf16.mxu0 0
    %2608 = vmatpush1.bf16.msra.mxu0 0
    %2609 = vmatprep.subr.bf16.mxu0 0
    %2610 = vmatpush1.bf16.msra.mxu0 0
    %2611 = vmatprep.subr.bf16.mxu0 0
    %2612 = vmatpush1.bf16.msra.mxu0 0
    %2613 = vmatprep.subr.bf16.mxu0 0
    %2614 = vmatpush1.bf16.msra.mxu0 0
    %2615 = vmatprep.mubr.bf16.mxu0 0
    %2616 = vmatmul.mubr.bf16.gmra.mrb[0].mxu0 %v2581
    %v2617 = vpop.f32.mrb[0].mxu0
    %v2618 = vadd.f32 %v1597, %v2617
    %v2619 = vpop.f32.mrb[0].mxu0
    %v2620 = vpop.f32.mrb[0].mxu0
    %v2621 = vpop.f32.mrb[0].mxu0
    %2622 = vdwg.mxu0
    %v2623 = vadd.f32 %v2528, %v2618
    %v2624 = vxor.u32 %v2623, 2147483648
    %v2625 = vmul.f32 %v2624, 1.442695
    %v2626 = vpow.pop %v2625
    %v2627 = vadd.f32 %v2626, 1.0
    %v2628 = vrcp.pop %v2627
    %v2629 = vmul.f32 1.0, %v2628
    %2631 = vrot.lane.b32.xlu0 %v2618, 64
    %v2632 = vpop.permute.xlu0 %2631
    %v2634 = vmul.f32 %v2629, %v2632
    %2636 = vrot.lane.b32.xlu0 %v2634, 64
    %v2637 = vpop.permute.xlu0 %2636
    %v2639 = vadd.f32 %v2528, %v2637
    %v2640 = vtanh.pop %v2639
    %2642 = vrot.lane.b32.xlu0 %v2578, 32
    %v2643 = vpop.permute.xlu0 %2642
    %v2645 = vmul.f32 %v2629, %v2643
    %v2646 = vsub.f32 1.0, %v2629
    %2648 = vrot.lane.b32.xlu0 %v2640, 96
    %v2649 = vpop.permute.xlu0 %2648
    %v2651 = vmul.f32 %v2646, %v2649
    %v2652 = vadd.f32 %v2645, %v2651
    %v2653 = vpack.c.bf16 %v2652, %v2652
    %2655 = vrot.lane.b32.xlu0 %v2653, 96
    %v2656 = vpop.permute.xlu0 %2655
    %v2658 = vsel %vm445, %v2656, 0
    %2660 = vmatprep.subr.bf16.mxu0 0
    %2661 = vmatpush1.bf16.msra.mxu0 %v1702
    %2662 = vmatprep.subr.bf16.mxu0 0
    %2663 = vmatpush1.bf16.msra.mxu0 %v1703
    %2664 = vmatprep.subr.bf16.mxu0 0
    %2665 = vmatpush1.bf16.msra.mxu0 0
    %2666 = vmatprep.subr.bf16.mxu0 0
    %2667 = vmatpush1.bf16.msra.mxu0 0
    %2668 = vmatprep.subr.bf16.mxu0 0
    %2669 = vmatpush1.bf16.msra.mxu0 0
    %2670 = vmatprep.subr.bf16.mxu0 0
    %2671 = vmatpush1.bf16.msra.mxu0 0
    %2672 = vmatprep.subr.bf16.mxu0 0
    %2673 = vmatpush1.bf16.msra.mxu0 0
    %2674 = vmatprep.subr.bf16.mxu0 0
    %2675 = vmatpush1.bf16.msra.mxu0 0
    %2676 = vmatprep.subr.bf16.mxu0 0
    %2677 = vmatpush1.bf16.msra.mxu0 0
    %2678 = vmatprep.subr.bf16.mxu0 0
    %2679 = vmatpush1.bf16.msra.mxu0 0
    %2680 = vmatprep.subr.bf16.mxu0 0
    %2681 = vmatpush1.bf16.msra.mxu0 0
    %2682 = vmatprep.subr.bf16.mxu0 0
    %2683 = vmatpush1.bf16.msra.mxu0 0
    %2684 = vmatprep.subr.bf16.mxu0 0
    %2685 = vmatpush1.bf16.msra.mxu0 0
    %2686 = vmatprep.subr.bf16.mxu0 0
    %2687 = vmatpush1.bf16.msra.mxu0 0
    %2688 = vmatprep.subr.bf16.mxu0 0
    %2689 = vmatpush1.bf16.msra.mxu0 0
    %2690 = vmatprep.subr.bf16.mxu0 0
    %2691 = vmatpush1.bf16.msra.mxu0 0
    %2692 = vmatprep.mubr.bf16.mxu0 0
    %2693 = vmatmul.mubr.bf16.gmra.mrb[0].mxu0 %v2658
    %v2694 = vpop.f32.mrb[0].mxu0
    %v2695 = vadd.f32 %v1689, %v2694
    %v2696 = vpop.f32.mrb[0].mxu0
    %v2697 = vpop.f32.mrb[0].mxu0
    %v2698 = vpop.f32.mrb[0].mxu0
    %2699 = vdwg.mxu0
    %v2700 = vpack.c.bf16 %v2520, %v2520
    %2702 = vrot.lane.b32.xlu0 %v2700, 96
    %v2703 = vpop.permute.xlu0 %2702
    %v2705 = vsel %vm445, %v2703, 0
    %2707 = vmatprep.subr.bf16.mxu0 0
    %2708 = vmatpush1.bf16.msra.mxu0 %v1757
    %2709 = vmatprep.subr.bf16.mxu0 0
    %2710 = vmatpush1.bf16.msra.mxu0 %v1758
    %2711 = vmatprep.subr.bf16.mxu0 0
    %2712 = vmatpush1.bf16.msra.mxu0 0
    %2713 = vmatprep.subr.bf16.mxu0 0
    %2714 = vmatpush1.bf16.msra.mxu0 0
    %2715 = vmatprep.subr.bf16.mxu0 0
    %2716 = vmatpush1.bf16.msra.mxu0 0
    %2717 = vmatprep.subr.bf16.mxu0 0
    %2718 = vmatpush1.bf16.msra.mxu0 0
    %2719 = vmatprep.subr.bf16.mxu0 0
    %2720 = vmatpush1.bf16.msra.mxu0 0
    %2721 = vmatprep.subr.bf16.mxu0 0
    %2722 = vmatpush1.bf16.msra.mxu0 0
    %2723 = vmatprep.subr.bf16.mxu0 0
    %2724 = vmatpush1.bf16.msra.mxu0 0
    %2725 = vmatprep.subr.bf16.mxu0 0
    %2726 = vmatpush1.bf16.msra.mxu0 0
    %2727 = vmatprep.subr.bf16.mxu0 0
    %2728 = vmatpush1.bf16.msra.mxu0 0
    %2729 = vmatprep.subr.bf16.mxu0 0
    %2730 = vmatpush1.bf16.msra.mxu0 0
    %2731 = vmatprep.subr.bf16.mxu0 0
    %2732 = vmatpush1.bf16.msra.mxu0 0
    %2733 = vmatprep.subr.bf16.mxu0 0
    %2734 = vmatpush1.bf16.msra.mxu0 0
    %2735 = vmatprep.subr.bf16.mxu0 0
    %2736 = vmatpush1.bf16.msra.mxu0 0
    %2737 = vmatprep.subr.bf16.mxu0 0
    %2738 = vmatpush1.bf16.msra.mxu0 0
    %2739 = vmatprep.mubr.bf16.mxu0 0
    %2740 = vmatmul.mubr.bf16.gmra.mrb[0].mxu0 %v2705
    %v2741 = vpop.f32.mrb[0].mxu0
    %v2742 = vadd.f32 0.0, %v2741
    %v2743 = vpop.f32.mrb[0].mxu0
    %v2744 = vpop.f32.mrb[0].mxu0
    %v2745 = vpop.f32.mrb[0].mxu0
    %2746 = vdwg.mxu0
    %v2747 = vadd.f32 %v1382, %v2742
    %v2748 = vmul.f32 %v2747, %v2747
    %v2749 = vmul.f32 %v2747, %v2748
    %v2750 = vmul.f32 %v2749, 0.044715
    %v2751 = vadd.f32 %v2747, %v2750
    %v2752 = vmul.f32 %v2751, 0.7978846
    %v2753 = vtanh.pop %v2752
    %v2754 = vadd.f32 %v2753, 1.0
    %v2755 = vmul.f32 %v2754, 0.5
    %v2756 = vmul.f32 %v2747, %v2755
    %v2757 = vpack.c.bf16 %v2756, %v2756
    %v2759 = vsel %vm445, %v2757, 0
    %2761 = vmatprep.subr.bf16.mxu0 0
    %2762 = vmatpush1.bf16.msra.mxu0 %v1826
    %2763 = vmatprep.subr.bf16.mxu0 0
    %2764 = vmatpush1.bf16.msra.mxu0 %v1827
    %2765 = vmatprep.subr.bf16.mxu0 0
    %2766 = vmatpush1.bf16.msra.mxu0 0
    %2767 = vmatprep.subr.bf16.mxu0 0
    %2768 = vmatpush1.bf16.msra.mxu0 0
    %2769 = vmatprep.subr.bf16.mxu0 0
    %2770 = vmatpush1.bf16.msra.mxu0 0
    %2771 = vmatprep.subr.bf16.mxu0 0
    %2772 = vmatpush1.bf16.msra.mxu0 0
    %2773 = vmatprep.subr.bf16.mxu0 0
    %2774 = vmatpush1.bf16.msra.mxu0 0
    %2775 = vmatprep.subr.bf16.mxu0 0
    %2776 = vmatpush1.bf16.msra.mxu0 0
    %2777 = vmatprep.subr.bf16.mxu0 0
    %2778 = vmatpush1.bf16.msra.mxu0 0
    %2779 = vmatprep.subr.bf16.mxu0 0
    %2780 = vmatpush1.bf16.msra.mxu0 0
    %2781 = vmatprep.subr.bf16.mxu0 0
    %2782 = vmatpush1.bf16.msra.mxu0 0
    %2783 = vmatprep.subr.bf16.mxu0 0
    %2784 = vmatpush1.bf16.msra.mxu0 0
    %2785 = vmatprep.subr.bf16.mxu0 0
    %2786 = vmatpush1.bf16.msra.mxu0 0
    %2787 = vmatprep.subr.bf16.mxu0 0
    %2788 = vmatpush1.bf16.msra.mxu0 0
    %2789 = vmatprep.subr.bf16.mxu0 0
    %2790 = vmatpush1.bf16.msra.mxu0 0
    %2791 = vmatprep.subr.bf16.mxu0 0
    %2792 = vmatpush1.bf16.msra.mxu0 0
    %2793 = vmatprep.mubr.bf16.mxu0 0
    %2794 = vmatmul.mubr.bf16.gmra.mrb[0].mxu0 %v2759
    %v2795 = vpop.f32.mrb[0].mxu0
    %v2796 = vadd.f32 %v1816, %v2795
    %v2797 = vpop.f32.mrb[0].mxu0
    %v2798 = vpop.f32.mrb[0].mxu0
    %v2799 = vpop.f32.mrb[0].mxu0
    %2800 = vdwg.mxu0
    %v2801 = vadd.f32 %v2695, %v2796
    %v2802 = vxor.u32 %v2801, 2147483648
    %v2803 = vmul.f32 %v2802, 1.442695
    %v2804 = vpow.pop %v2803
    %v2805 = vadd.f32 %v2804, 1.0
    %v2806 = vrcp.pop %v2805
    %v2807 = vmul.f32 1.0, %v2806
    %2809 = vrot.lane.b32.xlu0 %v2796, 64
    %v2810 = vpop.permute.xlu0 %2809
    %v2812 = vmul.f32 %v2807, %v2810
    %2814 = vrot.lane.b32.xlu0 %v2812, 64
    %v2815 = vpop.permute.xlu0 %2814
    %v2817 = vadd.f32 %v2695, %v2815
    %v2818 = vtanh.pop %v2817
    %2820 = vrot.lane.b32.xlu0 %v2756, 32
    %v2821 = vpop.permute.xlu0 %2820
    %v2823 = vmul.f32 %v2807, %v2821
    %v2824 = vsub.f32 1.0, %v2807
    %2826 = vrot.lane.b32.xlu0 %v2818, 96
    %v2827 = vpop.permute.xlu0 %2826
    %v2829 = vmul.f32 %v2824, %v2827
    %v2830 = vadd.f32 %v2823, %v2829
    %2832 = vrot.lane.b32.xlu0 %v2830, 96
    %v2833 = vpop.permute.xlu0 %2832
    %s2835 = scalar_lea.vmem [#allocation4], 12
    %2836 = vst.msk [vmem:[%s2835] sm:$0xf] %vm519, %v2833
    %s2837 = scalar_lea.vmem [#allocation3], 12
    %v2838 = vld [vmem:[%s2837] sm:$0xf]
    %2839 = vmatprep.subr.bf16.mxu0 0
    %2840 = vmatpush1.bf16.msra.mxu0 %v1538
    %2841 = vmatprep.subr.bf16.mxu0 0
    %2842 = vmatpush1.bf16.msra.mxu0 %v1539
    %2843 = vmatprep.subr.bf16.mxu0 0
    %2844 = vmatpush1.bf16.msra.mxu0 0
    %2845 = vmatprep.subr.bf16.mxu0 0
    %2846 = vmatpush1.bf16.msra.mxu0 0
    %2847 = vmatprep.subr.bf16.mxu0 0
    %2848 = vmatpush1.bf16.msra.mxu0 0
    %2849 = vmatprep.subr.bf16.mxu0 0
    %2850 = vmatpush1.bf16.msra.mxu0 0
    %2851 = vmatprep.subr.bf16.mxu0 0
    %2852 = vmatpush1.bf16.msra.mxu0 0
    %2853 = vmatprep.subr.bf16.mxu0 0
    %2854 = vmatpush1.bf16.msra.mxu0 0
    %2855 = vmatprep.subr.bf16.mxu0 0
    %2856 = vmatpush1.bf16.msra.mxu0 0
    %2857 = vmatprep.subr.bf16.mxu0 0
    %2858 = vmatpush1.bf16.msra.mxu0 0
    %2859 = vmatprep.subr.bf16.mxu0 0
    %2860 = vmatpush1.bf16.msra.mxu0 0
    %2861 = vmatprep.subr.bf16.mxu0 0
    %2862 = vmatpush1.bf16.msra.mxu0 0
    %2863 = vmatprep.subr.bf16.mxu0 0
    %2864 = vmatpush1.bf16.msra.mxu0 0
    %2865 = vmatprep.subr.bf16.mxu0 0
    %2866 = vmatpush1.bf16.msra.mxu0 0
    %2867 = vmatprep.subr.bf16.mxu0 0
    %2868 = vmatpush1.bf16.msra.mxu0 0
    %2869 = vmatprep.subr.bf16.mxu0 0
    %2870 = vmatpush1.bf16.msra.mxu0 0
    %2871 = vmatprep.mubr.bf16.mxu0 0
    %2872 = vmatmul.mubr.bf16.gmra.mrb[0].mxu0 %v2658
    %v2873 = vpop.f32.mrb[0].mxu0
    %v2874 = vadd.f32 0.0, %v2873
    %v2875 = vpop.f32.mrb[0].mxu0
    %v2876 = vpop.f32.mrb[0].mxu0
    %v2877 = vpop.f32.mrb[0].mxu0
    %2878 = vdwg.mxu0
    %v2879 = vadd.f32 %v1319, %v2874
    %v2880 = vmul.f32 %v2879, %v2879
    %v2881 = vmul.f32 %v2879, %v2880
    %v2882 = vmul.f32 %v2881, 0.044715
    %v2883 = vadd.f32 %v2879, %v2882
    %v2884 = vmul.f32 %v2883, 0.7978846
    %v2885 = vtanh.pop %v2884
    %v2886 = vadd.f32 %v2885, 1.0
    %v2887 = vmul.f32 %v2886, 0.5
    %v2888 = vmul.f32 %v2879, %v2887
    %v2889 = vpack.c.bf16 %v2888, %v2888
    %v2891 = vsel %vm445, %v2889, 0
    %2893 = vmatprep.subr.bf16.mxu0 0
    %2894 = vmatpush1.bf16.msra.mxu0 %v1607
    %2895 = vmatprep.subr.bf16.mxu0 0
    %2896 = vmatpush1.bf16.msra.mxu0 %v1608
    %2897 = vmatprep.subr.bf16.mxu0 0
    %2898 = vmatpush1.bf16.msra.mxu0 0
    %2899 = vmatprep.subr.bf16.mxu0 0
    %2900 = vmatpush1.bf16.msra.mxu0 0
    %2901 = vmatprep.subr.bf16.mxu0 0
    %2902 = vmatpush1.bf16.msra.mxu0 0
    %2903 = vmatprep.subr.bf16.mxu0 0
    %2904 = vmatpush1.bf16.msra.mxu0 0
    %2905 = vmatprep.subr.bf16.mxu0 0
    %2906 = vmatpush1.bf16.msra.mxu0 0
    %2907 = vmatprep.subr.bf16.mxu0 0
    %2908 = vmatpush1.bf16.msra.mxu0 0
    %2909 = vmatprep.subr.bf16.mxu0 0
    %2910 = vmatpush1.bf16.msra.mxu0 0
    %2911 = vmatprep.subr.bf16.mxu0 0
    %2912 = vmatpush1.bf16.msra.mxu0 0
    %2913 = vmatprep.subr.bf16.mxu0 0
    %2914 = vmatpush1.bf16.msra.mxu0 0
    %2915 = vmatprep.subr.bf16.mxu0 0
    %2916 = vmatpush1.bf16.msra.mxu0 0
    %2917 = vmatprep.subr.bf16.mxu0 0
    %2918 = vmatpush1.bf16.msra.mxu0 0
    %2919 = vmatprep.subr.bf16.mxu0 0
    %2920 = vmatpush1.bf16.msra.mxu0 0
    %2921 = vmatprep.subr.bf16.mxu0 0
    %2922 = vmatpush1.bf16.msra.mxu0 0
    %2923 = vmatprep.subr.bf16.mxu0 0
    %2924 = vmatpush1.bf16.msra.mxu0 0
    %2925 = vmatprep.mubr.bf16.mxu0 0
    %2926 = vmatmul.mubr.bf16.gmra.mrb[0].mxu0 %v2891
    %v2927 = vpop.f32.mrb[0].mxu0
    %v2928 = vadd.f32 %v1597, %v2927
    %v2929 = vpop.f32.mrb[0].mxu0
    %v2930 = vpop.f32.mrb[0].mxu0
    %v2931 = vpop.f32.mrb[0].mxu0
    %2932 = vdwg.mxu0
    %v2933 = vadd.f32 %v2838, %v2928
    %v2934 = vxor.u32 %v2933, 2147483648
    %v2935 = vmul.f32 %v2934, 1.442695
    %v2936 = vpow.pop %v2935
    %v2937 = vadd.f32 %v2936, 1.0
    %v2938 = vrcp.pop %v2937
    %v2939 = vmul.f32 1.0, %v2938
    %2941 = vrot.lane.b32.xlu0 %v2928, 64
    %v2942 = vpop.permute.xlu0 %2941
    %v2944 = vmul.f32 %v2939, %v2942
    %2946 = vrot.lane.b32.xlu0 %v2944, 64
    %v2947 = vpop.permute.xlu0 %2946
    %v2949 = vadd.f32 %v2838, %v2947
    %v2950 = vtanh.pop %v2949
    %2952 = vrot.lane.b32.xlu0 %v2888, 32
    %v2953 = vpop.permute.xlu0 %2952
    %v2955 = vmul.f32 %v2939, %v2953
    %v2956 = vsub.f32 1.0, %v2939
    %2958 = vrot.lane.b32.xlu0 %v2950, 96
    %v2959 = vpop.permute.xlu0 %2958
    %v2961 = vmul.f32 %v2956, %v2959
    %v2962 = vadd.f32 %v2955, %v2961
    %v2963 = vpack.c.bf16 %v2962, %v2962
    %2965 = vrot.lane.b32.xlu0 %v2963, 96
    %v2966 = vpop.permute.xlu0 %2965
    %v2968 = vsel %vm445, %v2966, 0
    %2970 = vmatprep.subr.bf16.mxu0 0
    %2971 = vmatpush1.bf16.msra.mxu0 %v1702
    %2972 = vmatprep.subr.bf16.mxu0 0
    %2973 = vmatpush1.bf16.msra.mxu0 %v1703
    %2974 = vmatprep.subr.bf16.mxu0 0
    %2975 = vmatpush1.bf16.msra.mxu0 0
    %2976 = vmatprep.subr.bf16.mxu0 0
    %2977 = vmatpush1.bf16.msra.mxu0 0
    %2978 = vmatprep.subr.bf16.mxu0 0
    %2979 = vmatpush1.bf16.msra.mxu0 0
    %2980 = vmatprep.subr.bf16.mxu0 0
    %2981 = vmatpush1.bf16.msra.mxu0 0
    %2982 = vmatprep.subr.bf16.mxu0 0
    %2983 = vmatpush1.bf16.msra.mxu0 0
    %2984 = vmatprep.subr.bf16.mxu0 0
    %2985 = vmatpush1.bf16.msra.mxu0 0
    %2986 = vmatprep.subr.bf16.mxu0 0
    %2987 = vmatpush1.bf16.msra.mxu0 0
    %2988 = vmatprep.subr.bf16.mxu0 0
    %2989 = vmatpush1.bf16.msra.mxu0 0
    %2990 = vmatprep.subr.bf16.mxu0 0
    %2991 = vmatpush1.bf16.msra.mxu0 0
    %2992 = vmatprep.subr.bf16.mxu0 0
    %2993 = vmatpush1.bf16.msra.mxu0 0
    %2994 = vmatprep.subr.bf16.mxu0 0
    %2995 = vmatpush1.bf16.msra.mxu0 0
    %2996 = vmatprep.subr.bf16.mxu0 0
    %2997 = vmatpush1.bf16.msra.mxu0 0
    %2998 = vmatprep.subr.bf16.mxu0 0
    %2999 = vmatpush1.bf16.msra.mxu0 0
    %3000 = vmatprep.subr.bf16.mxu0 0
    %3001 = vmatpush1.bf16.msra.mxu0 0
    %3002 = vmatprep.mubr.bf16.mxu0 0
    %3003 = vmatmul.mubr.bf16.gmra.mrb[0].mxu0 %v2968
    %v3004 = vpop.f32.mrb[0].mxu0
    %v3005 = vadd.f32 %v1689, %v3004
    %v3006 = vpop.f32.mrb[0].mxu0
    %v3007 = vpop.f32.mrb[0].mxu0
    %v3008 = vpop.f32.mrb[0].mxu0
    %3009 = vdwg.mxu0
    %v3010 = vpack.c.bf16 %v2830, %v2830
    %3012 = vrot.lane.b32.xlu0 %v3010, 96
    %v3013 = vpop.permute.xlu0 %3012
    %v3015 = vsel %vm445, %v3013, 0
    %3017 = vmatprep.subr.bf16.mxu0 0
    %3018 = vmatpush1.bf16.msra.mxu0 %v1757
    %3019 = vmatprep.subr.bf16.mxu0 0
    %3020 = vmatpush1.bf16.msra.mxu0 %v1758
    %3021 = vmatprep.subr.bf16.mxu0 0
    %3022 = vmatpush1.bf16.msra.mxu0 0
    %3023 = vmatprep.subr.bf16.mxu0 0
    %3024 = vmatpush1.bf16.msra.mxu0 0
    %3025 = vmatprep.subr.bf16.mxu0 0
    %3026 = vmatpush1.bf16.msra.mxu0 0
    %3027 = vmatprep.subr.bf16.mxu0 0
    %3028 = vmatpush1.bf16.msra.mxu0 0
    %3029 = vmatprep.subr.bf16.mxu0 0
    %3030 = vmatpush1.bf16.msra.mxu0 0
    %3031 = vmatprep.subr.bf16.mxu0 0
    %3032 = vmatpush1.bf16.msra.mxu0 0
    %3033 = vmatprep.subr.bf16.mxu0 0
    %3034 = vmatpush1.bf16.msra.mxu0 0
    %3035 = vmatprep.subr.bf16.mxu0 0
    %3036 = vmatpush1.bf16.msra.mxu0 0
    %3037 = vmatprep.subr.bf16.mxu0 0
    %3038 = vmatpush1.bf16.msra.mxu0 0
    %3039 = vmatprep.subr.bf16.mxu0 0
    %3040 = vmatpush1.bf16.msra.mxu0 0
    %3041 = vmatprep.subr.bf16.mxu0 0
    %3042 = vmatpush1.bf16.msra.mxu0 0
    %3043 = vmatprep.subr.bf16.mxu0 0
    %3044 = vmatpush1.bf16.msra.mxu0 0
    %3045 = vmatprep.subr.bf16.mxu0 0
    %3046 = vmatpush1.bf16.msra.mxu0 0
    %3047 = vmatprep.subr.bf16.mxu0 0
    %3048 = vmatpush1.bf16.msra.mxu0 0
    %3049 = vmatprep.mubr.bf16.mxu0 0
    %3050 = vmatmul.mubr.bf16.gmra.mrb[0].mxu0 %v3015
    %v3051 = vpop.f32.mrb[0].mxu0
    %v3052 = vadd.f32 0.0, %v3051
    %v3053 = vpop.f32.mrb[0].mxu0
    %v3054 = vpop.f32.mrb[0].mxu0
    %v3055 = vpop.f32.mrb[0].mxu0
    %3056 = vdwg.mxu0
    %v3057 = vadd.f32 %v1382, %v3052
    %v3058 = vmul.f32 %v3057, %v3057
    %v3059 = vmul.f32 %v3057, %v3058
    %v3060 = vmul.f32 %v3059, 0.044715
    %v3061 = vadd.f32 %v3057, %v3060
    %v3062 = vmul.f32 %v3061, 0.7978846
    %v3063 = vtanh.pop %v3062
    %v3064 = vadd.f32 %v3063, 1.0
    %v3065 = vmul.f32 %v3064, 0.5
    %v3066 = vmul.f32 %v3057, %v3065
    %v3067 = vpack.c.bf16 %v3066, %v3066
    %v3069 = vsel %vm445, %v3067, 0
    %3071 = vmatprep.subr.bf16.mxu0 0
    %3072 = vmatpush1.bf16.msra.mxu0 %v1826
    %3073 = vmatprep.subr.bf16.mxu0 0
    %3074 = vmatpush1.bf16.msra.mxu0 %v1827
    %3075 = vmatprep.subr.bf16.mxu0 0
    %3076 = vmatpush1.bf16.msra.mxu0 0
    %3077 = vmatprep.subr.bf16.mxu0 0
    %3078 = vmatpush1.bf16.msra.mxu0 0
    %3079 = vmatprep.subr.bf16.mxu0 0
    %3080 = vmatpush1.bf16.msra.mxu0 0
    %3081 = vmatprep.subr.bf16.mxu0 0
    %3082 = vmatpush1.bf16.msra.mxu0 0
    %3083 = vmatprep.subr.bf16.mxu0 0
    %3084 = vmatpush1.bf16.msra.mxu0 0
    %3085 = vmatprep.subr.bf16.mxu0 0
    %3086 = vmatpush1.bf16.msra.mxu0 0
    %3087 = vmatprep.subr.bf16.mxu0 0
    %3088 = vmatpush1.bf16.msra.mxu0 0
    %3089 = vmatprep.subr.bf16.mxu0 0
    %3090 = vmatpush1.bf16.msra.mxu0 0
    %3091 = vmatprep.subr.bf16.mxu0 0
    %3092 = vmatpush1.bf16.msra.mxu0 0
    %3093 = vmatprep.subr.bf16.mxu0 0
    %3094 = vmatpush1.bf16.msra.mxu0 0
    %3095 = vmatprep.subr.bf16.mxu0 0
    %3096 = vmatpush1.bf16.msra.mxu0 0
    %3097 = vmatprep.subr.bf16.mxu0 0
    %3098 = vmatpush1.bf16.msra.mxu0 0
    %3099 = vmatprep.subr.bf16.mxu0 0
    %3100 = vmatpush1.bf16.msra.mxu0 0
    %3101 = vmatprep.subr.bf16.mxu0 0
    %3102 = vmatpush1.bf16.msra.mxu0 0
    %3103 = vmatprep.mubr.bf16.mxu0 0
    %3104 = vmatmul.mubr.bf16.gmra.mrb[0].mxu0 %v3069
    %v3105 = vpop.f32.mrb[0].mxu0
    %v3106 = vadd.f32 %v1816, %v3105
    %v3107 = vpop.f32.mrb[0].mxu0
    %v3108 = vpop.f32.mrb[0].mxu0
    %v3109 = vpop.f32.mrb[0].mxu0
    %3110 = vdwg.mxu0
    %v3111 = vadd.f32 %v3005, %v3106
    %v3112 = vxor.u32 %v3111, 2147483648
    %v3113 = vmul.f32 %v3112, 1.442695
    %v3114 = vpow.pop %v3113
    %v3115 = vadd.f32 %v3114, 1.0
    %v3116 = vrcp.pop %v3115
    %v3117 = vmul.f32 1.0, %v3116
    %3119 = vrot.lane.b32.xlu0 %v3106, 64
    %v3120 = vpop.permute.xlu0 %3119
    %v3122 = vmul.f32 %v3117, %v3120
    %3124 = vrot.lane.b32.xlu0 %v3122, 64
    %v3125 = vpop.permute.xlu0 %3124
    %v3127 = vadd.f32 %v3005, %v3125
    %v3128 = vtanh.pop %v3127
    %3130 = vrot.lane.b32.xlu0 %v3066, 32
    %v3131 = vpop.permute.xlu0 %3130
    %v3133 = vmul.f32 %v3117, %v3131
    %v3134 = vsub.f32 1.0, %v3117
    %3136 = vrot.lane.b32.xlu0 %v3128, 96
    %v3137 = vpop.permute.xlu0 %3136
    %v3139 = vmul.f32 %v3134, %v3137
    %v3140 = vadd.f32 %v3133, %v3139
    %3142 = vrot.lane.b32.xlu0 %v3140, 96
    %v3143 = vpop.permute.xlu0 %3142
    %s3145 = scalar_lea.vmem [#allocation4], 16
    %3146 = vst.msk [vmem:[%s3145] sm:$0xf] %vm519, %v3143
    %s3147 = scalar_lea.vmem [#allocation3], 16
    %v3148 = vld [vmem:[%s3147] sm:$0xf]
    %3149 = vmatprep.subr.bf16.mxu0 0
    %3150 = vmatpush1.bf16.msra.mxu0 %v1538
    %3151 = vmatprep.subr.bf16.mxu0 0
    %3152 = vmatpush1.bf16.msra.mxu0 %v1539
    %3153 = vmatprep.subr.bf16.mxu0 0
    %3154 = vmatpush1.bf16.msra.mxu0 0
    %3155 = vmatprep.subr.bf16.mxu0 0
    %3156 = vmatpush1.bf16.msra.mxu0 0
    %3157 = vmatprep.subr.bf16.mxu0 0
    %3158 = vmatpush1.bf16.msra.mxu0 0
    %3159 = vmatprep.subr.bf16.mxu0 0
    %3160 = vmatpush1.bf16.msra.mxu0 0
    %3161 = vmatprep.subr.bf16.mxu0 0
    %3162 = vmatpush1.bf16.msra.mxu0 0
    %3163 = vmatprep.subr.bf16.mxu0 0
    %3164 = vmatpush1.bf16.msra.mxu0 0
    %3165 = vmatprep.subr.bf16.mxu0 0
    %3166 = vmatpush1.bf16.msra.mxu0 0
    %3167 = vmatprep.subr.bf16.mxu0 0
    %3168 = vmatpush1.bf16.msra.mxu0 0
    %3169 = vmatprep.subr.bf16.mxu0 0
    %3170 = vmatpush1.bf16.msra.mxu0 0
    %3171 = vmatprep.subr.bf16.mxu0 0
    %3172 = vmatpush1.bf16.msra.mxu0 0
    %3173 = vmatprep.subr.bf16.mxu0 0
    %3174 = vmatpush1.bf16.msra.mxu0 0
    %3175 = vmatprep.subr.bf16.mxu0 0
    %3176 = vmatpush1.bf16.msra.mxu0 0
    %3177 = vmatprep.subr.bf16.mxu0 0
    %3178 = vmatpush1.bf16.msra.mxu0 0
    %3179 = vmatprep.subr.bf16.mxu0 0
    %3180 = vmatpush1.bf16.msra.mxu0 0
    %3181 = vmatprep.mubr.bf16.mxu0 0
    %3182 = vmatmul.mubr.bf16.gmra.mrb[0].mxu0 %v2968
    %v3183 = vpop.f32.mrb[0].mxu0
    %v3184 = vadd.f32 0.0, %v3183
    %v3185 = vpop.f32.mrb[0].mxu0
    %v3186 = vpop.f32.mrb[0].mxu0
    %v3187 = vpop.f32.mrb[0].mxu0
    %3188 = vdwg.mxu0
    %v3189 = vadd.f32 %v1319, %v3184
    %v3190 = vmul.f32 %v3189, %v3189
    %v3191 = vmul.f32 %v3189, %v3190
    %v3192 = vmul.f32 %v3191, 0.044715
    %v3193 = vadd.f32 %v3189, %v3192
    %v3194 = vmul.f32 %v3193, 0.7978846
    %v3195 = vtanh.pop %v3194
    %v3196 = vadd.f32 %v3195, 1.0
    %v3197 = vmul.f32 %v3196, 0.5
    %v3198 = vmul.f32 %v3189, %v3197
    %v3199 = vpack.c.bf16 %v3198, %v3198
    %v3201 = vsel %vm445, %v3199, 0
    %3203 = vmatprep.subr.bf16.mxu0 0
    %3204 = vmatpush1.bf16.msra.mxu0 %v1607
    %3205 = vmatprep.subr.bf16.mxu0 0
    %3206 = vmatpush1.bf16.msra.mxu0 %v1608
    %3207 = vmatprep.subr.bf16.mxu0 0
    %3208 = vmatpush1.bf16.msra.mxu0 0
    %3209 = vmatprep.subr.bf16.mxu0 0
    %3210 = vmatpush1.bf16.msra.mxu0 0
    %3211 = vmatprep.subr.bf16.mxu0 0
    %3212 = vmatpush1.bf16.msra.mxu0 0
    %3213 = vmatprep.subr.bf16.mxu0 0
    %3214 = vmatpush1.bf16.msra.mxu0 0
    %3215 = vmatprep.subr.bf16.mxu0 0
    %3216 = vmatpush1.bf16.msra.mxu0 0
    %3217 = vmatprep.subr.bf16.mxu0 0
    %3218 = vmatpush1.bf16.msra.mxu0 0
    %3219 = vmatprep.subr.bf16.mxu0 0
    %3220 = vmatpush1.bf16.msra.mxu0 0
    %3221 = vmatprep.subr.bf16.mxu0 0
    %3222 = vmatpush1.bf16.msra.mxu0 0
    %3223 = vmatprep.subr.bf16.mxu0 0
    %3224 = vmatpush1.bf16.msra.mxu0 0
    %3225 = vmatprep.subr.bf16.mxu0 0
    %3226 = vmatpush1.bf16.msra.mxu0 0
    %3227 = vmatprep.subr.bf16.mxu0 0
    %3228 = vmatpush1.bf16.msra.mxu0 0
    %3229 = vmatprep.subr.bf16.mxu0 0
    %3230 = vmatpush1.bf16.msra.mxu0 0
    %3231 = vmatprep.subr.bf16.mxu0 0
    %3232 = vmatpush1.bf16.msra.mxu0 0
    %3233 = vmatprep.subr.bf16.mxu0 0
    %3234 = vmatpush1.bf16.msra.mxu0 0
    %3235 = vmatprep.mubr.bf16.mxu0 0
    %3236 = vmatmul.mubr.bf16.gmra.mrb[0].mxu0 %v3201
    %v3237 = vpop.f32.mrb[0].mxu0
    %v3238 = vadd.f32 %v1597, %v3237
    %v3239 = vpop.f32.mrb[0].mxu0
    %v3240 = vpop.f32.mrb[0].mxu0
    %v3241 = vpop.f32.mrb[0].mxu0
    %3242 = vdwg.mxu0
    %v3243 = vadd.f32 %v3148, %v3238
    %v3244 = vxor.u32 %v3243, 2147483648
    %v3245 = vmul.f32 %v3244, 1.442695
    %v3246 = vpow.pop %v3245
    %v3247 = vadd.f32 %v3246, 1.0
    %v3248 = vrcp.pop %v3247
    %v3249 = vmul.f32 1.0, %v3248
    %3251 = vrot.lane.b32.xlu0 %v3238, 64
    %v3252 = vpop.permute.xlu0 %3251
    %v3254 = vmul.f32 %v3249, %v3252
    %3256 = vrot.lane.b32.xlu0 %v3254, 64
    %v3257 = vpop.permute.xlu0 %3256
    %v3259 = vadd.f32 %v3148, %v3257
    %v3260 = vtanh.pop %v3259
    %3262 = vrot.lane.b32.xlu0 %v3198, 32
    %v3263 = vpop.permute.xlu0 %3262
    %v3265 = vmul.f32 %v3249, %v3263
    %v3266 = vsub.f32 1.0, %v3249
    %3268 = vrot.lane.b32.xlu0 %v3260, 96
    %v3269 = vpop.permute.xlu0 %3268
    %v3271 = vmul.f32 %v3266, %v3269
    %v3272 = vadd.f32 %v3265, %v3271
    %v3273 = vpack.c.bf16 %v3272, %v3272
    %3275 = vrot.lane.b32.xlu0 %v3273, 96
    %v3276 = vpop.permute.xlu0 %3275
    %v3278 = vsel %vm445, %v3276, 0
    %3280 = vmatprep.subr.bf16.mxu0 0
    %3281 = vmatpush1.bf16.msra.mxu0 %v1702
    %3282 = vmatprep.subr.bf16.mxu0 0
    %3283 = vmatpush1.bf16.msra.mxu0 %v1703
    %3284 = vmatprep.subr.bf16.mxu0 0
    %3285 = vmatpush1.bf16.msra.mxu0 0
    %3286 = vmatprep.subr.bf16.mxu0 0
    %3287 = vmatpush1.bf16.msra.mxu0 0
    %3288 = vmatprep.subr.bf16.mxu0 0
    %3289 = vmatpush1.bf16.msra.mxu0 0
    %3290 = vmatprep.subr.bf16.mxu0 0
    %3291 = vmatpush1.bf16.msra.mxu0 0
    %3292 = vmatprep.subr.bf16.mxu0 0
    %3293 = vmatpush1.bf16.msra.mxu0 0
    %3294 = vmatprep.subr.bf16.mxu0 0
    %3295 = vmatpush1.bf16.msra.mxu0 0
    %3296 = vmatprep.subr.bf16.mxu0 0
    %3297 = vmatpush1.bf16.msra.mxu0 0
    %3298 = vmatprep.subr.bf16.mxu0 0
    %3299 = vmatpush1.bf16.msra.mxu0 0
    %3300 = vmatprep.subr.bf16.mxu0 0
    %3301 = vmatpush1.bf16.msra.mxu0 0
    %3302 = vmatprep.subr.bf16.mxu0 0
    %3303 = vmatpush1.bf16.msra.mxu0 0
    %3304 = vmatprep.subr.bf16.mxu0 0
    %3305 = vmatpush1.bf16.msra.mxu0 0
    %3306 = vmatprep.subr.bf16.mxu0 0
    %3307 = vmatpush1.bf16.msra.mxu0 0
    %3308 = vmatprep.subr.bf16.mxu0 0
    %3309 = vmatpush1.bf16.msra.mxu0 0
    %3310 = vmatprep.subr.bf16.mxu0 0
    %3311 = vmatpush1.bf16.msra.mxu0 0
    %3312 = vmatprep.mubr.bf16.mxu0 0
    %3313 = vmatmul.mubr.bf16.gmra.mrb[0].mxu0 %v3278
    %v3314 = vpop.f32.mrb[0].mxu0
    %v3315 = vadd.f32 %v1689, %v3314
    %v3316 = vpop.f32.mrb[0].mxu0
    %v3317 = vpop.f32.mrb[0].mxu0
    %v3318 = vpop.f32.mrb[0].mxu0
    %3319 = vdwg.mxu0
    %v3320 = vpack.c.bf16 %v3140, %v3140
    %3322 = vrot.lane.b32.xlu0 %v3320, 96
    %v3323 = vpop.permute.xlu0 %3322
    %v3325 = vsel %vm445, %v3323, 0
    %3327 = vmatprep.subr.bf16.mxu0 0
    %3328 = vmatpush1.bf16.msra.mxu0 %v1757
    %3329 = vmatprep.subr.bf16.mxu0 0
    %3330 = vmatpush1.bf16.msra.mxu0 %v1758
    %3331 = vmatprep.subr.bf16.mxu0 0
    %3332 = vmatpush1.bf16.msra.mxu0 0
    %3333 = vmatprep.subr.bf16.mxu0 0
    %3334 = vmatpush1.bf16.msra.mxu0 0
    %3335 = vmatprep.subr.bf16.mxu0 0
    %3336 = vmatpush1.bf16.msra.mxu0 0
    %3337 = vmatprep.subr.bf16.mxu0 0
    %3338 = vmatpush1.bf16.msra.mxu0 0
    %3339 = vmatprep.subr.bf16.mxu0 0
    %3340 = vmatpush1.bf16.msra.mxu0 0
    %3341 = vmatprep.subr.bf16.mxu0 0
    %3342 = vmatpush1.bf16.msra.mxu0 0
    %3343 = vmatprep.subr.bf16.mxu0 0
    %3344 = vmatpush1.bf16.msra.mxu0 0
    %3345 = vmatprep.subr.bf16.mxu0 0
    %3346 = vmatpush1.bf16.msra.mxu0 0
    %3347 = vmatprep.subr.bf16.mxu0 0
    %3348 = vmatpush1.bf16.msra.mxu0 0
    %3349 = vmatprep.subr.bf16.mxu0 0
    %3350 = vmatpush1.bf16.msra.mxu0 0
    %3351 = vmatprep.subr.bf16.mxu0 0
    %3352 = vmatpush1.bf16.msra.mxu0 0
    %3353 = vmatprep.subr.bf16.mxu0 0
    %3354 = vmatpush1.bf16.msra.mxu0 0
    %3355 = vmatprep.subr.bf16.mxu0 0
    %3356 = vmatpush1.bf16.msra.mxu0 0
    %3357 = vmatprep.subr.bf16.mxu0 0
    %3358 = vmatpush1.bf16.msra.mxu0 0
    %3359 = vmatprep.mubr.bf16.mxu0 0
    %3360 = vmatmul.mubr.bf16.gmra.mrb[0].mxu0 %v3325
    %v3361 = vpop.f32.mrb[0].mxu0
    %v3362 = vadd.f32 0.0, %v3361
    %v3363 = vpop.f32.mrb[0].mxu0
    %v3364 = vpop.f32.mrb[0].mxu0
    %v3365 = vpop.f32.mrb[0].mxu0
    %3366 = vdwg.mxu0
    %v3367 = vadd.f32 %v1382, %v3362
    %v3368 = vmul.f32 %v3367, %v3367
    %v3369 = vmul.f32 %v3367, %v3368
    %v3370 = vmul.f32 %v3369, 0.044715
    %v3371 = vadd.f32 %v3367, %v3370
    %v3372 = vmul.f32 %v3371, 0.7978846
    %v3373 = vtanh.pop %v3372
    %v3374 = vadd.f32 %v3373, 1.0
    %v3375 = vmul.f32 %v3374, 0.5
    %v3376 = vmul.f32 %v3367, %v3375
    %v3377 = vpack.c.bf16 %v3376, %v3376
    %v3379 = vsel %vm445, %v3377, 0
    %3381 = vmatprep.subr.bf16.mxu0 0
    %3382 = vmatpush1.bf16.msra.mxu0 %v1826
    %3383 = vmatprep.subr.bf16.mxu0 0
    %3384 = vmatpush1.bf16.msra.mxu0 %v1827
    %3385 = vmatprep.subr.bf16.mxu0 0
    %3386 = vmatpush1.bf16.msra.mxu0 0
    %3387 = vmatprep.subr.bf16.mxu0 0
    %3388 = vmatpush1.bf16.msra.mxu0 0
    %3389 = vmatprep.subr.bf16.mxu0 0
    %3390 = vmatpush1.bf16.msra.mxu0 0
    %3391 = vmatprep.subr.bf16.mxu0 0
    %3392 = vmatpush1.bf16.msra.mxu0 0
    %3393 = vmatprep.subr.bf16.mxu0 0
    %3394 = vmatpush1.bf16.msra.mxu0 0
    %3395 = vmatprep.subr.bf16.mxu0 0
    %3396 = vmatpush1.bf16.msra.mxu0 0
    %3397 = vmatprep.subr.bf16.mxu0 0
    %3398 = vmatpush1.bf16.msra.mxu0 0
    %3399 = vmatprep.subr.bf16.mxu0 0
    %3400 = vmatpush1.bf16.msra.mxu0 0
    %3401 = vmatprep.subr.bf16.mxu0 0
    %3402 = vmatpush1.bf16.msra.mxu0 0
    %3403 = vmatprep.subr.bf16.mxu0 0
    %3404 = vmatpush1.bf16.msra.mxu0 0
    %3405 = vmatprep.subr.bf16.mxu0 0
    %3406 = vmatpush1.bf16.msra.mxu0 0
    %3407 = vmatprep.subr.bf16.mxu0 0
    %3408 = vmatpush1.bf16.msra.mxu0 0
    %3409 = vmatprep.subr.bf16.mxu0 0
    %3410 = vmatpush1.bf16.msra.mxu0 0
    %3411 = vmatprep.subr.bf16.mxu0 0
    %3412 = vmatpush1.bf16.msra.mxu0 0
    %3413 = vmatprep.mubr.bf16.mxu0 0
    %3414 = vmatmul.mubr.bf16.gmra.mrb[0].mxu0 %v3379
    %v3415 = vpop.f32.mrb[0].mxu0
    %v3416 = vadd.f32 %v1816, %v3415
    %v3417 = vpop.f32.mrb[0].mxu0
    %v3418 = vpop.f32.mrb[0].mxu0
    %v3419 = vpop.f32.mrb[0].mxu0
    %3420 = vdwg.mxu0
    %v3421 = vadd.f32 %v3315, %v3416
    %v3422 = vxor.u32 %v3421, 2147483648
    %v3423 = vmul.f32 %v3422, 1.442695
    %v3424 = vpow.pop %v3423
    %v3425 = vadd.f32 %v3424, 1.0
    %v3426 = vrcp.pop %v3425
    %v3427 = vmul.f32 1.0, %v3426
    %3429 = vrot.lane.b32.xlu0 %v3416, 64
    %v3430 = vpop.permute.xlu0 %3429
    %v3432 = vmul.f32 %v3427, %v3430
    %3434 = vrot.lane.b32.xlu0 %v3432, 64
    %v3435 = vpop.permute.xlu0 %3434
    %v3437 = vadd.f32 %v3315, %v3435
    %v3438 = vtanh.pop %v3437
    %3440 = vrot.lane.b32.xlu0 %v3376, 32
    %v3441 = vpop.permute.xlu0 %3440
    %v3443 = vmul.f32 %v3427, %v3441
    %v3444 = vsub.f32 1.0, %v3427
    %3446 = vrot.lane.b32.xlu0 %v3438, 96
    %v3447 = vpop.permute.xlu0 %3446
    %v3449 = vmul.f32 %v3444, %v3447
    %v3450 = vadd.f32 %v3443, %v3449
    %3452 = vrot.lane.b32.xlu0 %v3450, 96
    %v3453 = vpop.permute.xlu0 %3452
    %s3455 = scalar_lea.vmem [#allocation4], 20
    %3456 = vst.msk [vmem:[%s3455] sm:$0xf] %vm519, %v3453
    %s3457 = scalar_lea.vmem [#allocation3], 20
    %v3458 = vld [vmem:[%s3457] sm:$0xf]
    %3459 = vmatprep.subr.bf16.mxu0 0
    %3460 = vmatpush1.bf16.msra.mxu0 %v1538
    %3461 = vmatprep.subr.bf16.mxu0 0
    %3462 = vmatpush1.bf16.msra.mxu0 %v1539
    %3463 = vmatprep.subr.bf16.mxu0 0
    %3464 = vmatpush1.bf16.msra.mxu0 0
    %3465 = vmatprep.subr.bf16.mxu0 0
    %3466 = vmatpush1.bf16.msra.mxu0 0
    %3467 = vmatprep.subr.bf16.mxu0 0
    %3468 = vmatpush1.bf16.msra.mxu0 0
    %3469 = vmatprep.subr.bf16.mxu0 0
    %3470 = vmatpush1.bf16.msra.mxu0 0
    %3471 = vmatprep.subr.bf16.mxu0 0
    %3472 = vmatpush1.bf16.msra.mxu0 0
    %3473 = vmatprep.subr.bf16.mxu0 0
    %3474 = vmatpush1.bf16.msra.mxu0 0
    %3475 = vmatprep.subr.bf16.mxu0 0
    %3476 = vmatpush1.bf16.msra.mxu0 0
    %3477 = vmatprep.subr.bf16.mxu0 0
    %3478 = vmatpush1.bf16.msra.mxu0 0
    %3479 = vmatprep.subr.bf16.mxu0 0
    %3480 = vmatpush1.bf16.msra.mxu0 0
    %3481 = vmatprep.subr.bf16.mxu0 0
    %3482 = vmatpush1.bf16.msra.mxu0 0
    %3483 = vmatprep.subr.bf16.mxu0 0
    %3484 = vmatpush1.bf16.msra.mxu0 0
    %3485 = vmatprep.subr.bf16.mxu0 0
    %3486 = vmatpush1.bf16.msra.mxu0 0
    %3487 = vmatprep.subr.bf16.mxu0 0
    %3488 = vmatpush1.bf16.msra.mxu0 0
    %3489 = vmatprep.subr.bf16.mxu0 0
    %3490 = vmatpush1.bf16.msra.mxu0 0
    %3491 = vmatprep.mubr.bf16.mxu0 0
    %3492 = vmatmul.mubr.bf16.gmra.mrb[0].mxu0 %v3278
    %v3493 = vpop.f32.mrb[0].mxu0
    %v3494 = vadd.f32 0.0, %v3493
    %v3495 = vpop.f32.mrb[0].mxu0
    %v3496 = vpop.f32.mrb[0].mxu0
    %v3497 = vpop.f32.mrb[0].mxu0
    %3498 = vdwg.mxu0
    %v3499 = vadd.f32 %v1319, %v3494
    %v3500 = vmul.f32 %v3499, %v3499
    %v3501 = vmul.f32 %v3499, %v3500
    %v3502 = vmul.f32 %v3501, 0.044715
    %v3503 = vadd.f32 %v3499, %v3502
    %v3504 = vmul.f32 %v3503, 0.7978846
    %v3505 = vtanh.pop %v3504
    %v3506 = vadd.f32 %v3505, 1.0
    %v3507 = vmul.f32 %v3506, 0.5
    %v3508 = vmul.f32 %v3499, %v3507
    %v3509 = vpack.c.bf16 %v3508, %v3508
    %v3511 = vsel %vm445, %v3509, 0
    %3513 = vmatprep.subr.bf16.mxu0 0
    %3514 = vmatpush1.bf16.msra.mxu0 %v1607
    %3515 = vmatprep.subr.bf16.mxu0 0
    %3516 = vmatpush1.bf16.msra.mxu0 %v1608
    %3517 = vmatprep.subr.bf16.mxu0 0
    %3518 = vmatpush1.bf16.msra.mxu0 0
    %3519 = vmatprep.subr.bf16.mxu0 0
    %3520 = vmatpush1.bf16.msra.mxu0 0
    %3521 = vmatprep.subr.bf16.mxu0 0
    %3522 = vmatpush1.bf16.msra.mxu0 0
    %3523 = vmatprep.subr.bf16.mxu0 0
    %3524 = vmatpush1.bf16.msra.mxu0 0
    %3525 = vmatprep.subr.bf16.mxu0 0
    %3526 = vmatpush1.bf16.msra.mxu0 0
    %3527 = vmatprep.subr.bf16.mxu0 0
    %3528 = vmatpush1.bf16.msra.mxu0 0
    %3529 = vmatprep.subr.bf16.mxu0 0
    %3530 = vmatpush1.bf16.msra.mxu0 0
    %3531 = vmatprep.subr.bf16.mxu0 0
    %3532 = vmatpush1.bf16.msra.mxu0 0
    %3533 = vmatprep.subr.bf16.mxu0 0
    %3534 = vmatpush1.bf16.msra.mxu0 0
    %3535 = vmatprep.subr.bf16.mxu0 0
    %3536 = vmatpush1.bf16.msra.mxu0 0
    %3537 = vmatprep.subr.bf16.mxu0 0
    %3538 = vmatpush1.bf16.msra.mxu0 0
    %3539 = vmatprep.subr.bf16.mxu0 0
    %3540 = vmatpush1.bf16.msra.mxu0 0
    %3541 = vmatprep.subr.bf16.mxu0 0
    %3542 = vmatpush1.bf16.msra.mxu0 0
    %3543 = vmatprep.subr.bf16.mxu0 0
    %3544 = vmatpush1.bf16.msra.mxu0 0
    %3545 = vmatprep.mubr.bf16.mxu0 0
    %3546 = vmatmul.mubr.bf16.gmra.mrb[0].mxu0 %v3511
    %v3547 = vpop.f32.mrb[0].mxu0
    %v3548 = vadd.f32 %v1597, %v3547
    %v3549 = vpop.f32.mrb[0].mxu0
    %v3550 = vpop.f32.mrb[0].mxu0
    %v3551 = vpop.f32.mrb[0].mxu0
    %3552 = vdwg.mxu0
    %v3553 = vadd.f32 %v3458, %v3548
    %v3554 = vxor.u32 %v3553, 2147483648
    %v3555 = vmul.f32 %v3554, 1.442695
    %v3556 = vpow.pop %v3555
    %v3557 = vadd.f32 %v3556, 1.0
    %v3558 = vrcp.pop %v3557
    %v3559 = vmul.f32 1.0, %v3558
    %3561 = vrot.lane.b32.xlu0 %v3548, 64
    %v3562 = vpop.permute.xlu0 %3561
    %v3564 = vmul.f32 %v3559, %v3562
    %3566 = vrot.lane.b32.xlu0 %v3564, 64
    %v3567 = vpop.permute.xlu0 %3566
    %v3569 = vadd.f32 %v3458, %v3567
    %v3570 = vtanh.pop %v3569
    %3572 = vrot.lane.b32.xlu0 %v3508, 32
    %v3573 = vpop.permute.xlu0 %3572
    %v3575 = vmul.f32 %v3559, %v3573
    %v3576 = vsub.f32 1.0, %v3559
    %3578 = vrot.lane.b32.xlu0 %v3570, 96
    %v3579 = vpop.permute.xlu0 %3578
    %v3581 = vmul.f32 %v3576, %v3579
    %v3582 = vadd.f32 %v3575, %v3581
    %v3583 = vpack.c.bf16 %v3582, %v3582
    %3585 = vrot.lane.b32.xlu0 %v3583, 96
    %v3586 = vpop.permute.xlu0 %3585
    %v3588 = vsel %vm445, %v3586, 0
    %3590 = vmatprep.subr.bf16.mxu0 0
    %3591 = vmatpush1.bf16.msra.mxu0 %v1702
    %3592 = vmatprep.subr.bf16.mxu0 0
    %3593 = vmatpush1.bf16.msra.mxu0 %v1703
    %3594 = vmatprep.subr.bf16.mxu0 0
    %3595 = vmatpush1.bf16.msra.mxu0 0
    %3596 = vmatprep.subr.bf16.mxu0 0
    %3597 = vmatpush1.bf16.msra.mxu0 0
    %3598 = vmatprep.subr.bf16.mxu0 0
    %3599 = vmatpush1.bf16.msra.mxu0 0
    %3600 = vmatprep.subr.bf16.mxu0 0
    %3601 = vmatpush1.bf16.msra.mxu0 0
    %3602 = vmatprep.subr.bf16.mxu0 0
    %3603 = vmatpush1.bf16.msra.mxu0 0
    %3604 = vmatprep.subr.bf16.mxu0 0
    %3605 = vmatpush1.bf16.msra.mxu0 0
    %3606 = vmatprep.subr.bf16.mxu0 0
    %3607 = vmatpush1.bf16.msra.mxu0 0
    %3608 = vmatprep.subr.bf16.mxu0 0
    %3609 = vmatpush1.bf16.msra.mxu0 0
    %3610 = vmatprep.subr.bf16.mxu0 0
    %3611 = vmatpush1.bf16.msra.mxu0 0
    %3612 = vmatprep.subr.bf16.mxu0 0
    %3613 = vmatpush1.bf16.msra.mxu0 0
    %3614 = vmatprep.subr.bf16.mxu0 0
    %3615 = vmatpush1.bf16.msra.mxu0 0
    %3616 = vmatprep.subr.bf16.mxu0 0
    %3617 = vmatpush1.bf16.msra.mxu0 0
    %3618 = vmatprep.subr.bf16.mxu0 0
    %3619 = vmatpush1.bf16.msra.mxu0 0
    %3620 = vmatprep.subr.bf16.mxu0 0
    %3621 = vmatpush1.bf16.msra.mxu0 0
    %3622 = vmatprep.mubr.bf16.mxu0 0
    %3623 = vmatmul.mubr.bf16.gmra.mrb[0].mxu0 %v3588
    %v3624 = vpop.f32.mrb[0].mxu0
    %v3625 = vadd.f32 %v1689, %v3624
    %v3626 = vpop.f32.mrb[0].mxu0
    %v3627 = vpop.f32.mrb[0].mxu0
    %v3628 = vpop.f32.mrb[0].mxu0
    %3629 = vdwg.mxu0
    %v3630 = vpack.c.bf16 %v3450, %v3450
    %3632 = vrot.lane.b32.xlu0 %v3630, 96
    %v3633 = vpop.permute.xlu0 %3632
    %v3635 = vsel %vm445, %v3633, 0
    %3637 = vmatprep.subr.bf16.mxu0 0
    %3638 = vmatpush1.bf16.msra.mxu0 %v1757
    %3639 = vmatprep.subr.bf16.mxu0 0
    %3640 = vmatpush1.bf16.msra.mxu0 %v1758
    %3641 = vmatprep.subr.bf16.mxu0 0
    %3642 = vmatpush1.bf16.msra.mxu0 0
    %3643 = vmatprep.subr.bf16.mxu0 0
    %3644 = vmatpush1.bf16.msra.mxu0 0
    %3645 = vmatprep.subr.bf16.mxu0 0
    %3646 = vmatpush1.bf16.msra.mxu0 0
    %3647 = vmatprep.subr.bf16.mxu0 0
    %3648 = vmatpush1.bf16.msra.mxu0 0
    %3649 = vmatprep.subr.bf16.mxu0 0
    %3650 = vmatpush1.bf16.msra.mxu0 0
    %3651 = vmatprep.subr.bf16.mxu0 0
    %3652 = vmatpush1.bf16.msra.mxu0 0
    %3653 = vmatprep.subr.bf16.mxu0 0
    %3654 = vmatpush1.bf16.msra.mxu0 0
    %3655 = vmatprep.subr.bf16.mxu0 0
    %3656 = vmatpush1.bf16.msra.mxu0 0
    %3657 = vmatprep.subr.bf16.mxu0 0
    %3658 = vmatpush1.bf16.msra.mxu0 0
    %3659 = vmatprep.subr.bf16.mxu0 0
    %3660 = vmatpush1.bf16.msra.mxu0 0
    %3661 = vmatprep.subr.bf16.mxu0 0
    %3662 = vmatpush1.bf16.msra.mxu0 0
    %3663 = vmatprep.subr.bf16.mxu0 0
    %3664 = vmatpush1.bf16.msra.mxu0 0
    %3665 = vmatprep.subr.bf16.mxu0 0
    %3666 = vmatpush1.bf16.msra.mxu0 0
    %3667 = vmatprep.subr.bf16.mxu0 0
    %3668 = vmatpush1.bf16.msra.mxu0 0
    %3669 = vmatprep.mubr.bf16.mxu0 0
    %3670 = vmatmul.mubr.bf16.gmra.mrb[0].mxu0 %v3635
    %v3671 = vpop.f32.mrb[0].mxu0
    %v3672 = vadd.f32 0.0, %v3671
    %v3673 = vpop.f32.mrb[0].mxu0
    %v3674 = vpop.f32.mrb[0].mxu0
    %v3675 = vpop.f32.mrb[0].mxu0
    %3676 = vdwg.mxu0
    %v3677 = vadd.f32 %v1382, %v3672
    %v3678 = vmul.f32 %v3677, %v3677
    %v3679 = vmul.f32 %v3677, %v3678
    %v3680 = vmul.f32 %v3679, 0.044715
    %v3681 = vadd.f32 %v3677, %v3680
    %v3682 = vmul.f32 %v3681, 0.7978846
    %v3683 = vtanh.pop %v3682
    %v3684 = vadd.f32 %v3683, 1.0
    %v3685 = vmul.f32 %v3684, 0.5
    %v3686 = vmul.f32 %v3677, %v3685
    %v3687 = vpack.c.bf16 %v3686, %v3686
    %v3689 = vsel %vm445, %v3687, 0
    %3691 = vmatprep.subr.bf16.mxu0 0
    %3692 = vmatpush1.bf16.msra.mxu0 %v1826
    %3693 = vmatprep.subr.bf16.mxu0 0
    %3694 = vmatpush1.bf16.msra.mxu0 %v1827
    %3695 = vmatprep.subr.bf16.mxu0 0
    %3696 = vmatpush1.bf16.msra.mxu0 0
    %3697 = vmatprep.subr.bf16.mxu0 0
    %3698 = vmatpush1.bf16.msra.mxu0 0
    %3699 = vmatprep.subr.bf16.mxu0 0
    %3700 = vmatpush1.bf16.msra.mxu0 0
    %3701 = vmatprep.subr.bf16.mxu0 0
    %3702 = vmatpush1.bf16.msra.mxu0 0
    %3703 = vmatprep.subr.bf16.mxu0 0
    %3704 = vmatpush1.bf16.msra.mxu0 0
    %3705 = vmatprep.subr.bf16.mxu0 0
    %3706 = vmatpush1.bf16.msra.mxu0 0
    %3707 = vmatprep.subr.bf16.mxu0 0
    %3708 = vmatpush1.bf16.msra.mxu0 0
    %3709 = vmatprep.subr.bf16.mxu0 0
    %3710 = vmatpush1.bf16.msra.mxu0 0
    %3711 = vmatprep.subr.bf16.mxu0 0
    %3712 = vmatpush1.bf16.msra.mxu0 0
    %3713 = vmatprep.subr.bf16.mxu0 0
    %3714 = vmatpush1.bf16.msra.mxu0 0
    %3715 = vmatprep.subr.bf16.mxu0 0
    %3716 = vmatpush1.bf16.msra.mxu0 0
    %3717 = vmatprep.subr.bf16.mxu0 0
    %3718 = vmatpush1.bf16.msra.mxu0 0
    %3719 = vmatprep.subr.bf16.mxu0 0
    %3720 = vmatpush1.bf16.msra.mxu0 0
    %3721 = vmatprep.subr.bf16.mxu0 0
    %3722 = vmatpush1.bf16.msra.mxu0 0
    %3723 = vmatprep.mubr.bf16.mxu0 0
    %3724 = vmatmul.mubr.bf16.gmra.mrb[0].mxu0 %v3689
    %v3725 = vpop.f32.mrb[0].mxu0
    %v3726 = vadd.f32 %v1816, %v3725
    %v3727 = vpop.f32.mrb[0].mxu0
    %v3728 = vpop.f32.mrb[0].mxu0
    %v3729 = vpop.f32.mrb[0].mxu0
    %3730 = vdwg.mxu0
    %v3731 = vadd.f32 %v3625, %v3726
    %v3732 = vxor.u32 %v3731, 2147483648
    %v3733 = vmul.f32 %v3732, 1.442695
    %v3734 = vpow.pop %v3733
    %v3735 = vadd.f32 %v3734, 1.0
    %v3736 = vrcp.pop %v3735
    %v3737 = vmul.f32 1.0, %v3736
    %3739 = vrot.lane.b32.xlu0 %v3726, 64
    %v3740 = vpop.permute.xlu0 %3739
    %v3742 = vmul.f32 %v3737, %v3740
    %3744 = vrot.lane.b32.xlu0 %v3742, 64
    %v3745 = vpop.permute.xlu0 %3744
    %v3747 = vadd.f32 %v3625, %v3745
    %v3748 = vtanh.pop %v3747
    %3750 = vrot.lane.b32.xlu0 %v3686, 32
    %v3751 = vpop.permute.xlu0 %3750
    %v3753 = vmul.f32 %v3737, %v3751
    %v3754 = vsub.f32 1.0, %v3737
    %3756 = vrot.lane.b32.xlu0 %v3748, 96
    %v3757 = vpop.permute.xlu0 %3756
    %v3759 = vmul.f32 %v3754, %v3757
    %v3760 = vadd.f32 %v3753, %v3759
    %3762 = vrot.lane.b32.xlu0 %v3760, 96
    %v3763 = vpop.permute.xlu0 %3762
    %s3765 = scalar_lea.vmem [#allocation4], 24
    %3766 = vst.msk [vmem:[%s3765] sm:$0xf] %vm519, %v3763
    %s3767 = scalar_lea.vmem [#allocation3], 24
    %v3768 = vld [vmem:[%s3767] sm:$0xf]
    %3769 = vmatprep.subr.bf16.mxu0 0
    %3770 = vmatpush1.bf16.msra.mxu0 %v1538
    %3771 = vmatprep.subr.bf16.mxu0 0
    %3772 = vmatpush1.bf16.msra.mxu0 %v1539
    %3773 = vmatprep.subr.bf16.mxu0 0
    %3774 = vmatpush1.bf16.msra.mxu0 0
    %3775 = vmatprep.subr.bf16.mxu0 0
    %3776 = vmatpush1.bf16.msra.mxu0 0
    %3777 = vmatprep.subr.bf16.mxu0 0
    %3778 = vmatpush1.bf16.msra.mxu0 0
    %3779 = vmatprep.subr.bf16.mxu0 0
    %3780 = vmatpush1.bf16.msra.mxu0 0
    %3781 = vmatprep.subr.bf16.mxu0 0
    %3782 = vmatpush1.bf16.msra.mxu0 0
    %3783 = vmatprep.subr.bf16.mxu0 0
    %3784 = vmatpush1.bf16.msra.mxu0 0
    %3785 = vmatprep.subr.bf16.mxu0 0
    %3786 = vmatpush1.bf16.msra.mxu0 0
    %3787 = vmatprep.subr.bf16.mxu0 0
    %3788 = vmatpush1.bf16.msra.mxu0 0
    %3789 = vmatprep.subr.bf16.mxu0 0
    %3790 = vmatpush1.bf16.msra.mxu0 0
    %3791 = vmatprep.subr.bf16.mxu0 0
    %3792 = vmatpush1.bf16.msra.mxu0 0
    %3793 = vmatprep.subr.bf16.mxu0 0
    %3794 = vmatpush1.bf16.msra.mxu0 0
    %3795 = vmatprep.subr.bf16.mxu0 0
    %3796 = vmatpush1.bf16.msra.mxu0 0
    %3797 = vmatprep.subr.bf16.mxu0 0
    %3798 = vmatpush1.bf16.msra.mxu0 0
    %3799 = vmatprep.subr.bf16.mxu0 0
    %3800 = vmatpush1.bf16.msra.mxu0 0
    %3801 = vmatprep.mubr.bf16.mxu0 0
    %3802 = vmatmul.mubr.bf16.gmra.mrb[0].mxu0 %v3588
    %v3803 = vpop.f32.mrb[0].mxu0
    %v3804 = vadd.f32 0.0, %v3803
    %v3805 = vpop.f32.mrb[0].mxu0
    %v3806 = vpop.f32.mrb[0].mxu0
    %v3807 = vpop.f32.mrb[0].mxu0
    %3808 = vdwg.mxu0
    %v3809 = vadd.f32 %v1319, %v3804
    %v3810 = vmul.f32 %v3809, %v3809
    %v3811 = vmul.f32 %v3809, %v3810
    %v3812 = vmul.f32 %v3811, 0.044715
    %v3813 = vadd.f32 %v3809, %v3812
    %v3814 = vmul.f32 %v3813, 0.7978846
    %v3815 = vtanh.pop %v3814
    %v3816 = vadd.f32 %v3815, 1.0
    %v3817 = vmul.f32 %v3816, 0.5
    %v3818 = vmul.f32 %v3809, %v3817
    %v3819 = vpack.c.bf16 %v3818, %v3818
    %v3821 = vsel %vm445, %v3819, 0
    %3823 = vmatprep.subr.bf16.mxu0 0
    %3824 = vmatpush1.bf16.msra.mxu0 %v1607
    %3825 = vmatprep.subr.bf16.mxu0 0
    %3826 = vmatpush1.bf16.msra.mxu0 %v1608
    %3827 = vmatprep.subr.bf16.mxu0 0
    %3828 = vmatpush1.bf16.msra.mxu0 0
    %3829 = vmatprep.subr.bf16.mxu0 0
    %3830 = vmatpush1.bf16.msra.mxu0 0
    %3831 = vmatprep.subr.bf16.mxu0 0
    %3832 = vmatpush1.bf16.msra.mxu0 0
    %3833 = vmatprep.subr.bf16.mxu0 0
    %3834 = vmatpush1.bf16.msra.mxu0 0
    %3835 = vmatprep.subr.bf16.mxu0 0
    %3836 = vmatpush1.bf16.msra.mxu0 0
    %3837 = vmatprep.subr.bf16.mxu0 0
    %3838 = vmatpush1.bf16.msra.mxu0 0
    %3839 = vmatprep.subr.bf16.mxu0 0
    %3840 = vmatpush1.bf16.msra.mxu0 0
    %3841 = vmatprep.subr.bf16.mxu0 0
    %3842 = vmatpush1.bf16.msra.mxu0 0
    %3843 = vmatprep.subr.bf16.mxu0 0
    %3844 = vmatpush1.bf16.msra.mxu0 0
    %3845 = vmatprep.subr.bf16.mxu0 0
    %3846 = vmatpush1.bf16.msra.mxu0 0
    %3847 = vmatprep.subr.bf16.mxu0 0
    %3848 = vmatpush1.bf16.msra.mxu0 0
    %3849 = vmatprep.subr.bf16.mxu0 0
    %3850 = vmatpush1.bf16.msra.mxu0 0
    %3851 = vmatprep.subr.bf16.mxu0 0
    %3852 = vmatpush1.bf16.msra.mxu0 0
    %3853 = vmatprep.subr.bf16.mxu0 0
    %3854 = vmatpush1.bf16.msra.mxu0 0
    %3855 = vmatprep.mubr.bf16.mxu0 0
    %3856 = vmatmul.mubr.bf16.gmra.mrb[0].mxu0 %v3821
    %v3857 = vpop.f32.mrb[0].mxu0
    %v3858 = vadd.f32 %v1597, %v3857
    %v3859 = vpop.f32.mrb[0].mxu0
    %v3860 = vpop.f32.mrb[0].mxu0
    %v3861 = vpop.f32.mrb[0].mxu0
    %3862 = vdwg.mxu0
    %v3863 = vadd.f32 %v3768, %v3858
    %v3864 = vxor.u32 %v3863, 2147483648
    %v3865 = vmul.f32 %v3864, 1.442695
    %v3866 = vpow.pop %v3865
    %v3867 = vadd.f32 %v3866, 1.0
    %v3868 = vrcp.pop %v3867
    %v3869 = vmul.f32 1.0, %v3868
    %3871 = vrot.lane.b32.xlu0 %v3858, 64
    %v3872 = vpop.permute.xlu0 %3871
    %v3874 = vmul.f32 %v3869, %v3872
    %3876 = vrot.lane.b32.xlu0 %v3874, 64
    %v3877 = vpop.permute.xlu0 %3876
    %v3879 = vadd.f32 %v3768, %v3877
    %v3880 = vtanh.pop %v3879
    %3882 = vrot.lane.b32.xlu0 %v3818, 32
    %v3883 = vpop.permute.xlu0 %3882
    %v3885 = vmul.f32 %v3869, %v3883
    %v3886 = vsub.f32 1.0, %v3869
    %3888 = vrot.lane.b32.xlu0 %v3880, 96
    %v3889 = vpop.permute.xlu0 %3888
    %v3891 = vmul.f32 %v3886, %v3889
    %v3892 = vadd.f32 %v3885, %v3891
    %v3893 = vpack.c.bf16 %v3892, %v3892
    %3895 = vrot.lane.b32.xlu0 %v3893, 96
    %v3896 = vpop.permute.xlu0 %3895
    %v3898 = vsel %vm445, %v3896, 0
    %3900 = vmatprep.subr.bf16.mxu0 0
    %3901 = vmatpush1.bf16.msra.mxu0 %v1702
    %3902 = vmatprep.subr.bf16.mxu0 0
    %3903 = vmatpush1.bf16.msra.mxu0 %v1703
    %3904 = vmatprep.subr.bf16.mxu0 0
    %3905 = vmatpush1.bf16.msra.mxu0 0
    %3906 = vmatprep.subr.bf16.mxu0 0
    %3907 = vmatpush1.bf16.msra.mxu0 0
    %3908 = vmatprep.subr.bf16.mxu0 0
    %3909 = vmatpush1.bf16.msra.mxu0 0
    %3910 = vmatprep.subr.bf16.mxu0 0
    %3911 = vmatpush1.bf16.msra.mxu0 0
    %3912 = vmatprep.subr.bf16.mxu0 0
    %3913 = vmatpush1.bf16.msra.mxu0 0
    %3914 = vmatprep.subr.bf16.mxu0 0
    %3915 = vmatpush1.bf16.msra.mxu0 0
    %3916 = vmatprep.subr.bf16.mxu0 0
    %3917 = vmatpush1.bf16.msra.mxu0 0
    %3918 = vmatprep.subr.bf16.mxu0 0
    %3919 = vmatpush1.bf16.msra.mxu0 0
    %3920 = vmatprep.subr.bf16.mxu0 0
    %3921 = vmatpush1.bf16.msra.mxu0 0
    %3922 = vmatprep.subr.bf16.mxu0 0
    %3923 = vmatpush1.bf16.msra.mxu0 0
    %3924 = vmatprep.subr.bf16.mxu0 0
    %3925 = vmatpush1.bf16.msra.mxu0 0
    %3926 = vmatprep.subr.bf16.mxu0 0
    %3927 = vmatpush1.bf16.msra.mxu0 0
    %3928 = vmatprep.subr.bf16.mxu0 0
    %3929 = vmatpush1.bf16.msra.mxu0 0
    %3930 = vmatprep.subr.bf16.mxu0 0
    %3931 = vmatpush1.bf16.msra.mxu0 0
    %3932 = vmatprep.mubr.bf16.mxu0 0
    %3933 = vmatmul.mubr.bf16.gmra.mrb[0].mxu0 %v3898
    %v3934 = vpop.f32.mrb[0].mxu0
    %v3935 = vadd.f32 %v1689, %v3934
    %v3936 = vpop.f32.mrb[0].mxu0
    %v3937 = vpop.f32.mrb[0].mxu0
    %v3938 = vpop.f32.mrb[0].mxu0
    %3939 = vdwg.mxu0
    %v3940 = vpack.c.bf16 %v3760, %v3760
    %3942 = vrot.lane.b32.xlu0 %v3940, 96
    %v3943 = vpop.permute.xlu0 %3942
    %v3945 = vsel %vm445, %v3943, 0
    %3947 = vmatprep.subr.bf16.mxu0 0
    %3948 = vmatpush1.bf16.msra.mxu0 %v1757
    %3949 = vmatprep.subr.bf16.mxu0 0
    %3950 = vmatpush1.bf16.msra.mxu0 %v1758
    %3951 = vmatprep.subr.bf16.mxu0 0
    %3952 = vmatpush1.bf16.msra.mxu0 0
    %3953 = vmatprep.subr.bf16.mxu0 0
    %3954 = vmatpush1.bf16.msra.mxu0 0
    %3955 = vmatprep.subr.bf16.mxu0 0
    %3956 = vmatpush1.bf16.msra.mxu0 0
    %3957 = vmatprep.subr.bf16.mxu0 0
    %3958 = vmatpush1.bf16.msra.mxu0 0
    %3959 = vmatprep.subr.bf16.mxu0 0
    %3960 = vmatpush1.bf16.msra.mxu0 0
    %3961 = vmatprep.subr.bf16.mxu0 0
    %3962 = vmatpush1.bf16.msra.mxu0 0
    %3963 = vmatprep.subr.bf16.mxu0 0
    %3964 = vmatpush1.bf16.msra.mxu0 0
    %3965 = vmatprep.subr.bf16.mxu0 0
    %3966 = vmatpush1.bf16.msra.mxu0 0
    %3967 = vmatprep.subr.bf16.mxu0 0
    %3968 = vmatpush1.bf16.msra.mxu0 0
    %3969 = vmatprep.subr.bf16.mxu0 0
    %3970 = vmatpush1.bf16.msra.mxu0 0
    %3971 = vmatprep.subr.bf16.mxu0 0
    %3972 = vmatpush1.bf16.msra.mxu0 0
    %3973 = vmatprep.subr.bf16.mxu0 0
    %3974 = vmatpush1.bf16.msra.mxu0 0
    %3975 = vmatprep.subr.bf16.mxu0 0
    %3976 = vmatpush1.bf16.msra.mxu0 0
    %3977 = vmatprep.subr.bf16.mxu0 0
    %3978 = vmatpush1.bf16.msra.mxu0 0
    %3979 = vmatprep.mubr.bf16.mxu0 0
    %3980 = vmatmul.mubr.bf16.gmra.mrb[0].mxu0 %v3945
    %v3981 = vpop.f32.mrb[0].mxu0
    %v3982 = vadd.f32 0.0, %v3981
    %v3983 = vpop.f32.mrb[0].mxu0
    %v3984 = vpop.f32.mrb[0].mxu0
    %v3985 = vpop.f32.mrb[0].mxu0
    %3986 = vdwg.mxu0
    %v3987 = vadd.f32 %v1382, %v3982
    %v3988 = vmul.f32 %v3987, %v3987
    %v3989 = vmul.f32 %v3987, %v3988
    %v3990 = vmul.f32 %v3989, 0.044715
    %v3991 = vadd.f32 %v3987, %v3990
    %v3992 = vmul.f32 %v3991, 0.7978846
    %v3993 = vtanh.pop %v3992
    %v3994 = vadd.f32 %v3993, 1.0
    %v3995 = vmul.f32 %v3994, 0.5
    %v3996 = vmul.f32 %v3987, %v3995
    %v3997 = vpack.c.bf16 %v3996, %v3996
    %v3999 = vsel %vm445, %v3997, 0
    %4001 = vmatprep.subr.bf16.mxu0 0
    %4002 = vmatpush1.bf16.msra.mxu0 %v1826
    %4003 = vmatprep.subr.bf16.mxu0 0
    %4004 = vmatpush1.bf16.msra.mxu0 %v1827
    %4005 = vmatprep.subr.bf16.mxu0 0
    %4006 = vmatpush1.bf16.msra.mxu0 0
    %4007 = vmatprep.subr.bf16.mxu0 0
    %4008 = vmatpush1.bf16.msra.mxu0 0
    %4009 = vmatprep.subr.bf16.mxu0 0
    %4010 = vmatpush1.bf16.msra.mxu0 0
    %4011 = vmatprep.subr.bf16.mxu0 0
    %4012 = vmatpush1.bf16.msra.mxu0 0
    %4013 = vmatprep.subr.bf16.mxu0 0
    %4014 = vmatpush1.bf16.msra.mxu0 0
    %4015 = vmatprep.subr.bf16.mxu0 0
    %4016 = vmatpush1.bf16.msra.mxu0 0
    %4017 = vmatprep.subr.bf16.mxu0 0
    %4018 = vmatpush1.bf16.msra.mxu0 0
    %4019 = vmatprep.subr.bf16.mxu0 0
    %4020 = vmatpush1.bf16.msra.mxu0 0
    %4021 = vmatprep.subr.bf16.mxu0 0
    %4022 = vmatpush1.bf16.msra.mxu0 0
    %4023 = vmatprep.subr.bf16.mxu0 0
    %4024 = vmatpush1.bf16.msra.mxu0 0
    %4025 = vmatprep.subr.bf16.mxu0 0
    %4026 = vmatpush1.bf16.msra.mxu0 0
    %4027 = vmatprep.subr.bf16.mxu0 0
    %4028 = vmatpush1.bf16.msra.mxu0 0
    %4029 = vmatprep.subr.bf16.mxu0 0
    %4030 = vmatpush1.bf16.msra.mxu0 0
    %4031 = vmatprep.subr.bf16.mxu0 0
    %4032 = vmatpush1.bf16.msra.mxu0 0
    %4033 = vmatprep.mubr.bf16.mxu0 0
    %4034 = vmatmul.mubr.bf16.gmra.mrb[0].mxu0 %v3999
    %v4035 = vpop.f32.mrb[0].mxu0
    %v4036 = vadd.f32 %v1816, %v4035
    %v4037 = vpop.f32.mrb[0].mxu0
    %v4038 = vpop.f32.mrb[0].mxu0
    %v4039 = vpop.f32.mrb[0].mxu0
    %4040 = vdwg.mxu0
    %v4041 = vadd.f32 %v3935, %v4036
    %v4042 = vxor.u32 %v4041, 2147483648
    %v4043 = vmul.f32 %v4042, 1.442695
    %v4044 = vpow.pop %v4043
    %v4045 = vadd.f32 %v4044, 1.0
    %v4046 = vrcp.pop %v4045
    %v4047 = vmul.f32 1.0, %v4046
    %4049 = vrot.lane.b32.xlu0 %v4036, 64
    %v4050 = vpop.permute.xlu0 %4049
    %v4052 = vmul.f32 %v4047, %v4050
    %4054 = vrot.lane.b32.xlu0 %v4052, 64
    %v4055 = vpop.permute.xlu0 %4054
    %v4057 = vadd.f32 %v3935, %v4055
    %v4058 = vtanh.pop %v4057
    %4060 = vrot.lane.b32.xlu0 %v3996, 32
    %v4061 = vpop.permute.xlu0 %4060
    %v4063 = vmul.f32 %v4047, %v4061
    %v4064 = vsub.f32 1.0, %v4047
    %4066 = vrot.lane.b32.xlu0 %v4058, 96
    %v4067 = vpop.permute.xlu0 %4066
    %v4069 = vmul.f32 %v4064, %v4067
    %v4070 = vadd.f32 %v4063, %v4069
    %4072 = vrot.lane.b32.xlu0 %v4070, 96
    %v4073 = vpop.permute.xlu0 %4072
    %s4075 = scalar_lea.vmem [#allocation4], 28
    %4076 = vst.msk [vmem:[%s4075] sm:$0xf] %vm519, %v4073
    %v4077 = vld [vmem:[#allocation4] sm:$0xff]
    %v4078 = vld [vmem:[#allocation4 + $0x8] sm:$0xff]
    %v4079 = vld [vmem:[#allocation4 + $0x10] sm:$0xff]
    %v4080 = vld [vmem:[#allocation4 + $0x18] sm:$0xff]
    %v4081 = vpack.c.bf16 %v4078, %v4077
    %v4082 = vpack.c.bf16 %v4080, %v4079
    %v4083 = vld [vmem:[%s53] sm:$0xf]
    %v4084 = vld [vmem:[%s53 + $0x4] sm:$0xf]
    %v4085 = vld [vmem:[%s53 + $0x8] sm:$0xf]
    %v4086 = vld [vmem:[%s53 + $0xc] sm:$0xf]
    %v4087 = vld [vmem:[#allocation19] sm:$0x1]
    %v4089 = vlaneseq
    %v4090 = vshrl.u32 %v4089, 7
    %v4091 = vsub.s32 0, %v4090
    %v4092 = vrot.slane %v4087, %v4091
    %v4098 = vunpack.c.l.b16 %v4083
    %v4099 = vunpack.c.l.b16 %v4084
    %v4100 = vunpack.c.l.b16 %v4085
    %v4101 = vunpack.c.l.b16 %v4086
    %v4102 = vpack.c.b16 %v4099, %v4098
    %v4103 = vpack.c.b16 %v4101, %v4100
    %v4107 = vsel %vm445, %v4081, 0
    %v4110 = vsel %vm445, %v4082, 0
    %4112 = vmatprep.subr.bf16.mxu0 0
    %4113 = vmatpush1.bf16.msra.mxu0 %v4102
    %4114 = vmatprep.subr.bf16.mxu0 0
    %4115 = vmatpush1.bf16.msra.mxu0 %v4103
    %4116 = vmatprep.subr.bf16.mxu0 0
    %4117 = vmatpush1.bf16.msra.mxu0 0
    %4118 = vmatprep.subr.bf16.mxu0 0
    %4119 = vmatpush1.bf16.msra.mxu0 0
    %4120 = vmatprep.subr.bf16.mxu0 0
    %4121 = vmatpush1.bf16.msra.mxu0 0
    %4122 = vmatprep.subr.bf16.mxu0 0
    %4123 = vmatpush1.bf16.msra.mxu0 0
    %4124 = vmatprep.subr.bf16.mxu0 0
    %4125 = vmatpush1.bf16.msra.mxu0 0
    %4126 = vmatprep.subr.bf16.mxu0 0
    %4127 = vmatpush1.bf16.msra.mxu0 0
    %4128 = vmatprep.subr.bf16.mxu0 0
    %4129 = vmatpush1.bf16.msra.mxu0 0
    %4130 = vmatprep.subr.bf16.mxu0 0
    %4131 = vmatpush1.bf16.msra.mxu0 0
    %4132 = vmatprep.subr.bf16.mxu0 0
    %4133 = vmatpush1.bf16.msra.mxu0 0
    %4134 = vmatprep.subr.bf16.mxu0 0
    %4135 = vmatpush1.bf16.msra.mxu0 0
    %4136 = vmatprep.subr.bf16.mxu0 0
    %4137 = vmatpush1.bf16.msra.mxu0 0
    %4138 = vmatprep.subr.bf16.mxu0 0
    %4139 = vmatpush1.bf16.msra.mxu0 0
    %4140 = vmatprep.subr.bf16.mxu0 0
    %4141 = vmatpush1.bf16.msra.mxu0 0
    %4142 = vmatprep.subr.bf16.mxu0 0
    %4143 = vmatpush1.bf16.msra.mxu0 0
    %4144 = vmatprep.mubr.bf16.mxu0 0
    %4145 = vmatmul.mubr.bf16.gmra.mrb[0].mxu0 %v4107
    %v4146 = vpop.f32.mrb[0].mxu0
    %v4147 = vadd.f32 %v4092, %v4146
    %v4148 = vpop.f32.mrb[0].mxu0
    %v4149 = vpop.f32.mrb[0].mxu0
    %v4150 = vadd.f32 %v4092, %v4149
    %v4151 = vpop.f32.mrb[0].mxu0
    %4152 = vmatprep.mubr.bf16.mxu0 0
    %4153 = vmatmul.mubr.bf16.gmra.mrb[0].mxu0 %v4110
    %v4154 = vpop.f32.mrb[0].mxu0
    %v4155 = vadd.f32 %v4092, %v4154
    %v4156 = vpop.f32.mrb[0].mxu0
    %v4157 = vpop.f32.mrb[0].mxu0
    %v4158 = vadd.f32 %v4092, %v4157
    %v4159 = vpop.f32.mrb[0].mxu0
    %4160 = vdwg.mxu0
    %v4161 = vpack.c.bf16 %v4150, %v4147
    %v4162 = vpack.c.bf16 %v4158, %v4155
    %v4163 = vld [vmem:[#allocation20] sm:$0xf]
    %v4164 = vld [vmem:[#allocation20 + $0x4] sm:$0xf]
    %v4165 = vld [vmem:[#allocation22] sm:$0x1]
    %v4167 = vlaneseq
    %v4168 = vshrl.u32 %v4167, 7
    %v4169 = vsub.s32 0, %v4168
    %v4170 = vrot.slane %v4165, %v4169
    %v4174 = vunpack.c.l.b16 %v4163
    %v4175 = vunpack.c.l.b16 %v4164
    %v4176 = vpack.c.b16 %v4175, %v4174
    %v4179 = vsel %vm268, %v4161, 0
    %v4182 = vsel %vm268, %v4162, 0
    %4184 = vmatprep.subr.bf16.mxu0 0
    %4185 = vmatpush1.bf16.msra.mxu0 %v4176
    %4186 = vmatprep.subr.bf16.mxu0 0
    %4187 = vmatpush1.bf16.msra.mxu0 0
    %4188 = vmatprep.subr.bf16.mxu0 0
    %4189 = vmatpush1.bf16.msra.mxu0 0
    %4190 = vmatprep.subr.bf16.mxu0 0
    %4191 = vmatpush1.bf16.msra.mxu0 0
    %4192 = vmatprep.subr.bf16.mxu0 0
    %4193 = vmatpush1.bf16.msra.mxu0 0
    %4194 = vmatprep.subr.bf16.mxu0 0
    %4195 = vmatpush1.bf16.msra.mxu0 0
    %4196 = vmatprep.subr.bf16.mxu0 0
    %4197 = vmatpush1.bf16.msra.mxu0 0
    %4198 = vmatprep.subr.bf16.mxu0 0
    %4199 = vmatpush1.bf16.msra.mxu0 0
    %4200 = vmatprep.subr.bf16.mxu0 0
    %4201 = vmatpush1.bf16.msra.mxu0 0
    %4202 = vmatprep.subr.bf16.mxu0 0
    %4203 = vmatpush1.bf16.msra.mxu0 0
    %4204 = vmatprep.subr.bf16.mxu0 0
    %4205 = vmatpush1.bf16.msra.mxu0 0
    %4206 = vmatprep.subr.bf16.mxu0 0
    %4207 = vmatpush1.bf16.msra.mxu0 0
    %4208 = vmatprep.subr.bf16.mxu0 0
    %4209 = vmatpush1.bf16.msra.mxu0 0
    %4210 = vmatprep.subr.bf16.mxu0 0
    %4211 = vmatpush1.bf16.msra.mxu0 0
    %4212 = vmatprep.subr.bf16.mxu0 0
    %4213 = vmatpush1.bf16.msra.mxu0 0
    %4214 = vmatprep.subr.bf16.mxu0 0
    %4215 = vmatpush1.bf16.msra.mxu0 0
    %4216 = vmatprep.mubr.bf16.mxu0 0
    %4217 = vmatmul.mubr.bf16.gmra.mrb[0].mxu0 %v4179
    %v4218 = vpop.f32.mrb[0].mxu0
    %v4219 = vadd.f32 %v4170, %v4218
    %v4220 = vpop.f32.mrb[0].mxu0
    %v4221 = vpop.f32.mrb[0].mxu0
    %v4222 = vadd.f32 %v4170, %v4221
    %v4223 = vpop.f32.mrb[0].mxu0
    %4224 = vmatprep.mubr.bf16.mxu0 0
    %4225 = vmatmul.mubr.bf16.gmra.mrb[0].mxu0 %v4182
    %v4226 = vpop.f32.mrb[0].mxu0
    %v4227 = vadd.f32 %v4170, %v4226
    %v4228 = vpop.f32.mrb[0].mxu0
    %v4229 = vpop.f32.mrb[0].mxu0
    %v4230 = vadd.f32 %v4170, %v4229
    %v4231 = vpop.f32.mrb[0].mxu0
    %4232 = vdwg.mxu0
    %4233 = vst [vmem:[%s65] sm:$0xff] %v4219
    %4234 = vst [vmem:[%s65 + $0x8] sm:$0xff] %v4222
    %4235 = vst [vmem:[%s65 + $0x10] sm:$0xff] %v4227
    %4236 = vst [vmem:[%s65 + $0x18] sm:$0xff] %v4230
    // Predicated region
    $region166: #{seqgen_forward.1} parent=1 // pred_check
      _
    $region167: #{seqgen_forward.1} parent=1 // pred_check_branch
      %4238 = sbr.rel (0) target = $region169
    $region168: #{seqgen_forward.1} parent=1 // pred_region
      _
    $region169: #{seqgen_forward.1} parent=1 // pred_fallthru
      _
    // Predicated region
    $region170: #{seqgen_forward.1} parent=1 // pred_check
      _
    $region171: #{seqgen_forward.1} parent=1 // pred_check_branch
      %4240 = sbr.rel (0) target = $region173
    $region172: #{seqgen_forward.1} parent=1 // pred_region
      %s4242 = ssub.s32 64, 64
      %4243 = vsyncadd [#allocation7], %s4242
      %s4245 = sshll.u32 [#allocation23], 4
      %s4246 = int_to_ptr.vmem [resolvable:$true] %s4245
      %4248 = dma.vmem_to_hbm [thread:$0]  %s4246, 64, %s63, [#allocation7]
    $region173: #{seqgen_forward.1} parent=1 // pred_fallthru
      _
    // Predicated region
    $region174: #{seqgen_forward.1} parent=1 // pred_check
      _
    $region175: #{seqgen_forward.1} parent=1 // pred_check_branch
      %4250 = sbr.rel (0) target = $region177
    $region176: #{seqgen_forward.1} parent=1 // pred_region
      _
    $region177: #{seqgen_forward.1} parent=1 // pred_fallthru
      _
    // Predicated region
    $region178: #{seqgen_forward.1} parent=1 // pred_check
      _
    $region179: #{seqgen_forward.1} parent=1 // pred_check_branch
      %4252 = sbr.rel (0) target = $region181
    $region180: #{seqgen_forward.1} parent=1 // pred_region
      _
    $region181: #{seqgen_forward.1} parent=1 // pred_fallthru
      _
    // Predicated region
    $region182: #{seqgen_forward.1} parent=1 // pred_check
      _
    $region183: #{seqgen_forward.1} parent=1 // pred_check_branch
      %4254 = sbr.rel (0) target = $region185
    $region184: #{seqgen_forward.1} parent=1 // pred_region
      %4255 = dma.done [#allocation7], 64
    $region185: #{seqgen_forward.1} parent=1 // pred_fallthru
      _
    // Predicated region
    $region186: #{seqgen_forward.1} parent=1 // pred_check
      _
    $region187: #{seqgen_forward.1} parent=1 // pred_check_branch
      %4257 = sbr.rel (0) target = $region189
    $region188: #{seqgen_forward.1} parent=1 // pred_region
      _
    $region189: #{seqgen_forward.1} parent=1 // pred_fallthru
      _
    %4258 = vsyncpa [#allocation6], 1
    %4259 = vsyncpa [#allocation9], 1
    %4260 = vsyncpa [#allocation12], 1
    %4261 = vsyncpa [#allocation15], 1
    %4262 = vsyncpa [#allocation18], 1
    %4263 = vsyncpa [#allocation21], 1
    %4264 = vsyncpa [#allocation7], 1

</llo_original>
